<compile_context>
chip_gen: v7x
topology: tpu7x:2x2x1
jax: 0.10.0
libtpu: 0.0.40
codegen_flags: <defaults>
</compile_context>

<pallas_src>
import math

import jax
import jax.numpy as jnp
from jax import lax
from jax.experimental import pallas as pl
from jax.experimental.pallas import tpu as pltpu


# ----------------------------- configuration -----------------------------
N_BINS = 84                     # cropped CQT bins (7 octaves x 12 semitones)
BINS_BEFORE_CROP = 96           # n_bins + 12 semitones of transposition headroom
BIN_GROUP = 128                 # per-(harmonic, cos/sin) padded column group (lane aligned)
HARMONICS = (1, 2)              # HarmonicVQT harmonics
N_HARMONICS = len(HARMONICS)
FRAME_LEN = 128                 # samples per analysis frame
N_FRAMES = 8                    # frames per segment
SAMPLE_RATE = 4096.0
F_MIN = 32.7                    # C1
OUT_CHANNELS = [4, 8]           # ChromaNet out_channels
KERNELS = [3, 3]                # ChromaNet kernel sizes
TEMPERATURE = 0.1
N_CLASSES = 24

C0 = N_HARMONICS                # conv1 in-channels
C1, C2 = OUT_CHANNELS           # conv1 / conv2 out-channels
KW = KH = 3                     # 3x3 'same' convs
W = N_FRAMES                    # conv width  (frames  -> sublanes)
H = N_BINS                      # conv height (bins    -> lanes)


# ----------------------------- fused Pallas kernel -----------------------------
def _stone_kernel(src_ref, off_ref,                       # scalar prefetch (SMEM)
                  frames_ref, basis_ref,                  # VMEM blocks
                  w1_ref, b1_ref, w2_ref, b2_ref,         # SMEM conv weights/biases
                  w3_ref, b3_ref,                         # VMEM head weights
                  out_ref,                                # (1, 24) output block
                  p1_ref, p2_ref):                        # VMEM padded-activation scratch
    i = pl.program_id(0)
    off = off_ref[i]                                      # crop offset for this sample

    # ---- HCQT: one fused bf16 MXU matmul against the [cos | sin] basis ------
    y = jnp.dot(frames_ref[...], basis_ref[...],
                preferred_element_type=jnp.float32)       # (8, 2 * NH * 128) f32

    # ---- CropCQT folded in: one-hot selection matmul (no dynamic slicing) ---
    row = lax.broadcasted_iota(jnp.int32, (BIN_GROUP, N_BINS), 0)
    col = lax.broadcasted_iota(jnp.int32, (BIN_GROUP, N_BINS), 1)
    sel = (row == col + off).astype(jnp.float32)          # (128, 84) one-hot

    p1_ref[...] = jnp.zeros_like(p1_ref)                  # zero 'same'-conv borders
    for h in range(N_HARMONICS):
        re = y[:, h * BIN_GROUP:(h + 1) * BIN_GROUP]
        im = y[:, (N_HARMONICS + h) * BIN_GROUP:(N_HARMONICS + h + 1) * BIN_GROUP]
        mag = jnp.sqrt(re * re + im * im + 1e-12)         # (8, 128) magnitude
        # cropped (frames=8, bins=84) slab, bins on the lane axis
        p1_ref[h, 1:1 + W, 1:1 + H] = jnp.dot(
            mag, sel, preferred_element_type=jnp.float32)

    # ---- conv1 (3x3 'same') + ReLU: shifted VPU MACs -------------------------
    p1 = p1_ref[...]                                      # (C0, W+2, H+2)
    taps1 = [p1[ci, kw:kw + W, kh:kh + H]
             for ci in range(C0) for kw in range(KW) for kh in range(KH)]
    p2_ref[...] = jnp.zeros_like(p2_ref)
    for co in range(C1):
        acc = jnp.zeros((W, H), jnp.float32)
        base = co * C0 * KW * KH
        for t in range(C0 * KW * KH):
            acc = acc + w1_ref[base + t] * taps1[t]
        p2_ref[co, 1:1 + W, 1:1 + H] = jnp.maximum(acc + b1_ref[co], 0.0)

    # ---- conv2 + ReLU, 1x1 head folded into global-avg-pool, softmax(T) -----
    p2 = p2_ref[...]                                      # (C1, W+2, H+2)
    taps2 = [p2[ci, kw:kw + W, kh:kh + H]
             for ci in range(C1) for kw in range(KW) for kh in range(KH)]
    inv_scale = 1.0 / (W * H * TEMPERATURE)               # mean + temperature folded
    logits = b3_ref[...] * (1.0 / TEMPERATURE)            # (1, 24)
    for co in range(C2):
        acc = jnp.zeros((W, H), jnp.float32)
        base = co * C1 * KW * KH
        for t in range(C1 * KW * KH):
            acc = acc + w2_ref[base + t] * taps2[t]
        y2c = jnp.maximum(acc + b2_ref[co], 0.0)          # (8, 84)
        pooled = jnp.sum(jnp.sum(y2c, axis=1, keepdims=True),
                         axis=0, keepdims=True)           # (1, 1)
        logits = logits + (pooled * inv_scale) * w3_ref[co:co + 1, :]

    m = jnp.max(logits, axis=-1, keepdims=True)
    e = jnp.exp(logits - m)
    den = jnp.sum(e, axis=-1, keepdims=True)
    out_ref[...] = e * pl.reciprocal(den, approx=True)


# ----------------------------- kernel wrapper -----------------------------
def stone_fused_pallas(src, offsets, frames, basis, params):
    """src/offsets: (3B,) int32, frames: (2B, 8, 128) bf16, basis: (128, 512) bf16."""
    n_out = src.shape[0]                                  # 3B ChromaNet inputs

    grid_spec = pltpu.PrefetchScalarGridSpec(
        num_scalar_prefetch=2,
        grid=(n_out,),
        in_specs=[
            # frames for sample i come from HCQT source row src[i]
            pl.BlockSpec((None, N_FRAMES, FRAME_LEN),
                         lambda i, src_r, off_r: (src_r[i], 0, 0)),
            # fused cos|sin basis, resident across the whole grid
            pl.BlockSpec((FRAME_LEN, 2 * N_HARMONICS * BIN_GROUP),
                         lambda i, src_r, off_r: (0, 0)),
            pl.BlockSpec(memory_space=pltpu.MemorySpace.SMEM),   # w1 (flat)
            pl.BlockSpec(memory_space=pltpu.MemorySpace.SMEM),   # b1
            pl.BlockSpec(memory_space=pltpu.MemorySpace.SMEM),   # w2 (flat)
            pl.BlockSpec(memory_space=pltpu.MemorySpace.SMEM),   # b2
            pl.BlockSpec((C2, N_CLASSES), lambda i, src_r, off_r: (0, 0)),   # w3
            pl.BlockSpec((1, N_CLASSES), lambda i, src_r, off_r: (0, 0)),    # b3
        ],
        out_specs=pl.BlockSpec((None, 1, N_CLASSES),
                               lambda i, src_r, off_r: (i, 0, 0)),
        scratch_shapes=[
            pltpu.VMEM((C0, W + 2, H + 2), jnp.float32),   # padded conv1 input
            pltpu.VMEM((C1, W + 2, H + 2), jnp.float32),   # padded conv2 input
        ],
    )
    y = pl.pallas_call(
        _stone_kernel,
        out_shape=jax.ShapeDtypeStruct((n_out, 1, N_CLASSES), jnp.float32),
        grid_spec=grid_spec,
        compiler_params=pltpu.CompilerParams(
            dimension_semantics=("parallel",)),
    )(src, offsets, frames, basis,
      params["w1"], params["b1"], params["w2"], params["b2"],
      params["w3"], params["b3"])
    return y.reshape(n_out, N_CLASSES)


# ----------------------------- glue (plain JAX) -----------------------------
def make_cqt_basis():
    """Windowed cos/sin CQT basis, 128-lane-padded per (harmonic, phase) group.

    Column layout: [cos_h1 | cos_h2 | sin_h1 | sin_h2], each group 128 wide with
    the last 32 columns zero (bins 96..127 unused)."""
    t = jnp.arange(FRAME_LEN, dtype=jnp.float32) / SAMPLE_RATE
    window = 0.5 - 0.5 * jnp.cos(
        2.0 * math.pi * jnp.arange(FRAME_LEN, dtype=jnp.float32) / FRAME_LEN)
    freqs = F_MIN * 2.0 ** (jnp.arange(BINS_BEFORE_CROP, dtype=jnp.float32) / 12.0)
    pad = BIN_GROUP - BINS_BEFORE_CROP
    cos_parts, sin_parts = [], []
    for h in HARMONICS:
        phase = 2.0 * math.pi * (freqs[None, :] * float(h)) * t[:, None]  # (128, 96)
        c = window[:, None] * jnp.cos(phase)
        s = window[:, None] * jnp.sin(phase)
        cos_parts.append(jnp.pad(c, ((0, 0), (0, pad))))
        sin_parts.append(jnp.pad(s, ((0, 0), (0, pad))))
    basis = jnp.concatenate(cos_parts + sin_parts, axis=1)   # (128, 512)
    return basis.astype(jnp.bfloat16)


def init_chromanet_params(key):
    """Conv weights flattened (co-major, then ci, kw, kh) for SMEM scalar reads."""
    k1, k2, k3 = jax.random.split(key, 3)
    fan1 = C0 * KW * KH
    fan2 = C1 * KW * KH
    params = {
        "w1": jax.random.normal(k1, (C1 * C0 * KW * KH,), jnp.float32) / math.sqrt(fan1),
        "b1": jnp.zeros((C1,), jnp.float32),
        "w2": jax.random.normal(k2, (C2 * C1 * KW * KH,), jnp.float32) / math.sqrt(fan2),
        "b2": jnp.zeros((C2,), jnp.float32),
        "w3": jax.random.normal(k3, (C2, N_CLASSES), jnp.float32) / math.sqrt(C2),
        "b3": jnp.zeros((1, N_CLASSES), jnp.float32),
    }
    return params


def stone_forward(audio, params, basis, rand_key):
    """Stereo two-segment branch of Stone.forward.

    audio: (B, T, 2)  ->  (y: (3B, 24) softmax probs, difference: (B,) int32)
    """
    assert audio.shape[2] == 2
    batch = audio.shape[0]
    assert audio.shape[1] == N_FRAMES * FRAME_LEN
    s1 = audio[:, :, 0]
    s2 = audio[:, :, 1]
    frames = (jnp.concatenate([s1, s2], axis=0)
              .reshape(2 * batch, N_FRAMES, FRAME_LEN)
              .astype(jnp.bfloat16))                      # bf16 halves HCQT DMA bytes

    kt, ko = jax.random.split(rand_key)
    to_transpose = jax.random.randint(kt, (batch,), 1, 12, dtype=jnp.int32)
    original = jax.random.randint(ko, (batch,), 1, 13, dtype=jnp.int32)
    transpose = (to_transpose + original) % 12
    difference = transpose - original

    # Per-ChromaNet-sample HCQT source row and crop offset (scalar prefetch):
    #   [0, 2B): stack_original (crop at `original`), [2B, 3B): segment_transpose.
    src = jnp.concatenate([jnp.arange(2 * batch, dtype=jnp.int32),
                           jnp.arange(batch, dtype=jnp.int32)])
    offsets = jnp.concatenate([original, original, transpose]).astype(jnp.int32)

    y = stone_fused_pallas(src, offsets, frames, basis, params)
    return y, difference


# ----------------------------- demo -----------------------------
if __name__ == "__main__":
    root = jax.random.PRNGKey(0)
    k_audio, k_params, k_rand = jax.random.split(root, 3)

    B = 2
    T = N_FRAMES * FRAME_LEN                              # 1024 samples / segment
    audio = jax.random.normal(k_audio, (B, T, 2), jnp.float32)

    params = init_chromanet_params(k_params)
    basis = make_cqt_basis()

    fwd = jax.jit(stone_forward)
    y, difference = fwd(audio, params, basis, k_rand)
    jax.block_until_ready(y)
    jax.block_until_ready(difference)

    assert y.shape == (3 * B, 24)
    assert difference.shape == (B,)
    # softmax rows should sum to ~1 (approx reciprocal -> loose tolerance)
    assert bool(jnp.all(jnp.abs(jnp.sum(y, axis=1) - 1.0) < 1e-2))
    print("KERNEL_OK")
</pallas_src>

<mosaic_0001>
module attributes {stable_mosaic.version = 11 : i64} {
  func.func @_stone_kernel(%arg0: i32, %arg1: memref<6xi32, #tpu.memory_space<smem>>, %arg2: memref<6xi32, #tpu.memory_space<smem>>, %arg3: memref<1x8x128xbf16, #tpu.memory_space<vmem>>, %arg4: memref<128x512xbf16, #tpu.memory_space<vmem>>, %arg5: memref<72xf32, #tpu.memory_space<smem>>, %arg6: memref<4xf32, #tpu.memory_space<smem>>, %arg7: memref<288xf32, #tpu.memory_space<smem>>, %arg8: memref<8xf32, #tpu.memory_space<smem>>, %arg9: memref<8x24xf32, #tpu.memory_space<vmem>>, %arg10: memref<1x24xf32, #tpu.memory_space<vmem>>, %arg11: memref<1x1x24xf32, #tpu.memory_space<vmem>>, %arg12: memref<2x10x86xf32, #tpu.memory_space<vmem>>, %arg13: memref<4x10x86xf32, #tpu.memory_space<vmem>>) attributes {dimension_semantics = [#tpu.dimension_semantics<parallel>], iteration_bounds = array<i64: 6>, scalar_prefetch = 2 : i64, scratch_operands = 2 : i64, tpu.core_type = #tpu.core_type<tc>, window_params = [{transform_indices = @transform_0, window_bounds = array<i64: 1, 8, 128>}, {pipeline_mode = #tpu.pipeline_mode<synchronous>, transform_indices = @transform_1, window_bounds = array<i64: 128, 512>}, {transform_indices = @transform_2, window_bounds = array<i64: 72>}, {transform_indices = @transform_3, window_bounds = array<i64: 4>}, {transform_indices = @transform_4, window_bounds = array<i64: 288>}, {transform_indices = @transform_5, window_bounds = array<i64: 8>}, {pipeline_mode = #tpu.pipeline_mode<synchronous>, transform_indices = @transform_6, window_bounds = array<i64: 8, 24>}, {pipeline_mode = #tpu.pipeline_mode<synchronous>, transform_indices = @transform_7, window_bounds = array<i64: 1, 24>}, {transform_indices = @transform_8, window_bounds = array<i64: 1, 1, 24>}]} {
    %0 = arith.index_cast %arg0 : i32 to index
    %1 = memref.load %arg2[%0] : memref<6xi32, #tpu.memory_space<smem>>
    %c0 = arith.constant 0 : index
    %c0_0 = arith.constant 0 : index
    %c0_1 = arith.constant 0 : index
    %2 = vector.load %arg3[%c0, %c0_0, %c0_1] : memref<1x8x128xbf16, #tpu.memory_space<vmem>>, vector<1x8x128xbf16>
    %3 = vector.shape_cast %2 : vector<1x8x128xbf16> to vector<8x128xbf16>
    %c0_2 = arith.constant 0 : index
    %c0_3 = arith.constant 0 : index
    %4 = vector.load %arg4[%c0_2, %c0_3] : memref<128x512xbf16, #tpu.memory_space<vmem>>, vector<128x512xbf16>
    %cst = arith.constant dense<0.000000e+00> : vector<8x512xf32>
    %5 = tpu.matmul %3, %4, %cst {dimension_numbers = #tpu.dot_dimension_numbers<[1], [0], [0], [1], [0, 0, 1, 1], [], []>} : vector<8x128xbf16>, vector<128x512xbf16>, vector<8x512xf32> -> vector<8x512xf32>
    %6 = tpu.iota {dimensions = array<i32: 0>} : vector<128x84xi32>
    %7 = tpu.iota {dimensions = array<i32: 1>} : vector<128x84xi32>
    %8 = vector.broadcast %1 : i32 to vector<128x84xi32>
    %9 = arith.addi %7, %8 : vector<128x84xi32>
    %10 = arith.cmpi eq, %6, %9 : vector<128x84xi32>
    %11 = arith.extui %10 : vector<128x84xi1> to vector<128x84xi32>
    %12 = arith.sitofp %11 : vector<128x84xi32> to vector<128x84xf32>
    %cst_4 = arith.constant 0.000000e+00 : f32
    %13 = vector.broadcast %cst_4 : f32 to vector<2x10x86xf32>
    %c0_5 = arith.constant 0 : index
    %c0_6 = arith.constant 0 : index
    %c0_7 = arith.constant 0 : index
    %14 = vector.load %arg12[%c0_5, %c0_6, %c0_7] : memref<2x10x86xf32, #tpu.memory_space<vmem>>, vector<2x10x86xf32>
    tpu.vector_store %arg12[%c0_5, %c0_6, %c0_7], %13 {strides = array<i32>} : memref<2x10x86xf32, #tpu.memory_space<vmem>>, vector<2x10x86xf32>,
    %15 = vector.extract_strided_slice %5 {offsets = [0, 0], sizes = [8, 128], strides = [1, 1]} : vector<8x512xf32> to vector<8x128xf32>
    %16 = vector.extract_strided_slice %5 {offsets = [0, 256], sizes = [8, 128], strides = [1, 1]} : vector<8x512xf32> to vector<8x128xf32>
    %17 = arith.mulf %15, %15 : vector<8x128xf32>
    %18 = arith.mulf %16, %16 : vector<8x128xf32>
    %19 = arith.addf %17, %18 : vector<8x128xf32>
    %cst_8 = arith.constant 9.99999996E-13 : f32
    %20 = vector.broadcast %cst_8 : f32 to vector<8x128xf32>
    %21 = arith.addf %19, %20 : vector<8x128xf32>
    %22 = math.sqrt %21 : vector<8x128xf32>
    %cst_9 = arith.constant dense<0.000000e+00> : vector<8x84xf32>
    %23 = tpu.matmul %22, %12, %cst_9 {dimension_numbers = #tpu.dot_dimension_numbers<[1], [0], [0], [1], [0, 0, 1, 1], [], []>} : vector<8x128xf32>, vector<128x84xf32>, vector<8x84xf32> -> vector<8x84xf32>
    %c0_10 = arith.constant 0 : index
    %c1 = arith.constant 1 : index
    %c1_11 = arith.constant 1 : index
    %24 = vector.load %arg12[%c0_10, %c1, %c1_11] : memref<2x10x86xf32, #tpu.memory_space<vmem>>, vector<1x8x84xf32>
    %25 = vector.shape_cast %24 : vector<1x8x84xf32> to vector<8x84xf32>
    %26 = vector.shape_cast %23 : vector<8x84xf32> to vector<1x8x84xf32>
    tpu.vector_store %arg12[%c0_10, %c1, %c1_11], %26 {strides = array<i32>} : memref<2x10x86xf32, #tpu.memory_space<vmem>>, vector<1x8x84xf32>,
    %27 = vector.extract_strided_slice %5 {offsets = [0, 128], sizes = [8, 128], strides = [1, 1]} : vector<8x512xf32> to vector<8x128xf32>
    %28 = vector.extract_strided_slice %5 {offsets = [0, 384], sizes = [8, 128], strides = [1, 1]} : vector<8x512xf32> to vector<8x128xf32>
    %29 = arith.mulf %27, %27 : vector<8x128xf32>
    %30 = arith.mulf %28, %28 : vector<8x128xf32>
    %31 = arith.addf %29, %30 : vector<8x128xf32>
    %cst_12 = arith.constant 9.99999996E-13 : f32
    %32 = vector.broadcast %cst_12 : f32 to vector<8x128xf32>
    %33 = arith.addf %31, %32 : vector<8x128xf32>
    %34 = math.sqrt %33 : vector<8x128xf32>
    %cst_13 = arith.constant dense<0.000000e+00> : vector<8x84xf32>
    %35 = tpu.matmul %34, %12, %cst_13 {dimension_numbers = #tpu.dot_dimension_numbers<[1], [0], [0], [1], [0, 0, 1, 1], [], []>} : vector<8x128xf32>, vector<128x84xf32>, vector<8x84xf32> -> vector<8x84xf32>
    %c1_14 = arith.constant 1 : index
    %c1_15 = arith.constant 1 : index
    %c1_16 = arith.constant 1 : index
    %36 = vector.load %arg12[%c1_14, %c1_15, %c1_16] : memref<2x10x86xf32, #tpu.memory_space<vmem>>, vector<1x8x84xf32>
    %37 = vector.shape_cast %36 : vector<1x8x84xf32> to vector<8x84xf32>
    %38 = vector.shape_cast %35 : vector<8x84xf32> to vector<1x8x84xf32>
    tpu.vector_store %arg12[%c1_14, %c1_15, %c1_16], %38 {strides = array<i32>} : memref<2x10x86xf32, #tpu.memory_space<vmem>>, vector<1x8x84xf32>,
    %c0_17 = arith.constant 0 : index
    %c0_18 = arith.constant 0 : index
    %c0_19 = arith.constant 0 : index
    %39 = vector.load %arg12[%c0_17, %c0_18, %c0_19] : memref<2x10x86xf32, #tpu.memory_space<vmem>>, vector<2x10x86xf32>
    %40 = vector.extract_strided_slice %39 {offsets = [0, 0, 0], sizes = [1, 8, 84], strides = [1, 1, 1]} : vector<2x10x86xf32> to vector<1x8x84xf32>
    %41 = vector.shape_cast %40 : vector<1x8x84xf32> to vector<8x84xf32>
    %42 = vector.extract_strided_slice %39 {offsets = [0, 0, 1], sizes = [1, 8, 84], strides = [1, 1, 1]} : vector<2x10x86xf32> to vector<1x8x84xf32>
    %43 = vector.shape_cast %42 : vector<1x8x84xf32> to vector<8x84xf32>
    %44 = vector.extract_strided_slice %39 {offsets = [0, 0, 2], sizes = [1, 8, 84], strides = [1, 1, 1]} : vector<2x10x86xf32> to vector<1x8x84xf32>
    %45 = vector.shape_cast %44 : vector<1x8x84xf32> to vector<8x84xf32>
    %46 = vector.extract_strided_slice %39 {offsets = [0, 1, 0], sizes = [1, 8, 84], strides = [1, 1, 1]} : vector<2x10x86xf32> to vector<1x8x84xf32>
    %47 = vector.shape_cast %46 : vector<1x8x84xf32> to vector<8x84xf32>
    %48 = vector.extract_strided_slice %39 {offsets = [0, 1, 1], sizes = [1, 8, 84], strides = [1, 1, 1]} : vector<2x10x86xf32> to vector<1x8x84xf32>
    %49 = vector.shape_cast %48 : vector<1x8x84xf32> to vector<8x84xf32>
    %50 = vector.extract_strided_slice %39 {offsets = [0, 1, 2], sizes = [1, 8, 84], strides = [1, 1, 1]} : vector<2x10x86xf32> to vector<1x8x84xf32>
    %51 = vector.shape_cast %50 : vector<1x8x84xf32> to vector<8x84xf32>
    %52 = vector.extract_strided_slice %39 {offsets = [0, 2, 0], sizes = [1, 8, 84], strides = [1, 1, 1]} : vector<2x10x86xf32> to vector<1x8x84xf32>
    %53 = vector.shape_cast %52 : vector<1x8x84xf32> to vector<8x84xf32>
    %54 = vector.extract_strided_slice %39 {offsets = [0, 2, 1], sizes = [1, 8, 84], strides = [1, 1, 1]} : vector<2x10x86xf32> to vector<1x8x84xf32>
    %55 = vector.shape_cast %54 : vector<1x8x84xf32> to vector<8x84xf32>
    %56 = vector.extract_strided_slice %39 {offsets = [0, 2, 2], sizes = [1, 8, 84], strides = [1, 1, 1]} : vector<2x10x86xf32> to vector<1x8x84xf32>
    %57 = vector.shape_cast %56 : vector<1x8x84xf32> to vector<8x84xf32>
    %58 = vector.extract_strided_slice %39 {offsets = [1, 0, 0], sizes = [1, 8, 84], strides = [1, 1, 1]} : vector<2x10x86xf32> to vector<1x8x84xf32>
    %59 = vector.shape_cast %58 : vector<1x8x84xf32> to vector<8x84xf32>
    %60 = vector.extract_strided_slice %39 {offsets = [1, 0, 1], sizes = [1, 8, 84], strides = [1, 1, 1]} : vector<2x10x86xf32> to vector<1x8x84xf32>
    %61 = vector.shape_cast %60 : vector<1x8x84xf32> to vector<8x84xf32>
    %62 = vector.extract_strided_slice %39 {offsets = [1, 0, 2], sizes = [1, 8, 84], strides = [1, 1, 1]} : vector<2x10x86xf32> to vector<1x8x84xf32>
    %63 = vector.shape_cast %62 : vector<1x8x84xf32> to vector<8x84xf32>
    %64 = vector.extract_strided_slice %39 {offsets = [1, 1, 0], sizes = [1, 8, 84], strides = [1, 1, 1]} : vector<2x10x86xf32> to vector<1x8x84xf32>
    %65 = vector.shape_cast %64 : vector<1x8x84xf32> to vector<8x84xf32>
    %66 = vector.extract_strided_slice %39 {offsets = [1, 1, 1], sizes = [1, 8, 84], strides = [1, 1, 1]} : vector<2x10x86xf32> to vector<1x8x84xf32>
    %67 = vector.shape_cast %66 : vector<1x8x84xf32> to vector<8x84xf32>
    %68 = vector.extract_strided_slice %39 {offsets = [1, 1, 2], sizes = [1, 8, 84], strides = [1, 1, 1]} : vector<2x10x86xf32> to vector<1x8x84xf32>
    %69 = vector.shape_cast %68 : vector<1x8x84xf32> to vector<8x84xf32>
    %70 = vector.extract_strided_slice %39 {offsets = [1, 2, 0], sizes = [1, 8, 84], strides = [1, 1, 1]} : vector<2x10x86xf32> to vector<1x8x84xf32>
    %71 = vector.shape_cast %70 : vector<1x8x84xf32> to vector<8x84xf32>
    %72 = vector.extract_strided_slice %39 {offsets = [1, 2, 1], sizes = [1, 8, 84], strides = [1, 1, 1]} : vector<2x10x86xf32> to vector<1x8x84xf32>
    %73 = vector.shape_cast %72 : vector<1x8x84xf32> to vector<8x84xf32>
    %74 = vector.extract_strided_slice %39 {offsets = [1, 2, 2], sizes = [1, 8, 84], strides = [1, 1, 1]} : vector<2x10x86xf32> to vector<1x8x84xf32>
    %75 = vector.shape_cast %74 : vector<1x8x84xf32> to vector<8x84xf32>
    %cst_20 = arith.constant 0.000000e+00 : f32
    %76 = vector.broadcast %cst_20 : f32 to vector<4x10x86xf32>
    %c0_21 = arith.constant 0 : index
    %c0_22 = arith.constant 0 : index
    %c0_23 = arith.constant 0 : index
    %77 = vector.load %arg13[%c0_21, %c0_22, %c0_23] : memref<4x10x86xf32, #tpu.memory_space<vmem>>, vector<4x10x86xf32>
    tpu.vector_store %arg13[%c0_21, %c0_22, %c0_23], %76 {strides = array<i32>} : memref<4x10x86xf32, #tpu.memory_space<vmem>>, vector<4x10x86xf32>,
    %cst_24 = arith.constant 0.000000e+00 : f32
    %78 = vector.broadcast %cst_24 : f32 to vector<8x84xf32>
    %c0_25 = arith.constant 0 : index
    %79 = memref.load %arg5[%c0_25] : memref<72xf32, #tpu.memory_space<smem>>
    %80 = vector.broadcast %79 : f32 to vector<8x84xf32>
    %81 = arith.mulf %80, %41 : vector<8x84xf32>
    %82 = arith.addf %78, %81 : vector<8x84xf32>
    %c1_26 = arith.constant 1 : index
    %83 = memref.load %arg5[%c1_26] : memref<72xf32, #tpu.memory_space<smem>>
    %84 = vector.broadcast %83 : f32 to vector<8x84xf32>
    %85 = arith.mulf %84, %43 : vector<8x84xf32>
    %86 = arith.addf %82, %85 : vector<8x84xf32>
    %c2 = arith.constant 2 : index
    %87 = memref.load %arg5[%c2] : memref<72xf32, #tpu.memory_space<smem>>
    %88 = vector.broadcast %87 : f32 to vector<8x84xf32>
    %89 = arith.mulf %88, %45 : vector<8x84xf32>
    %90 = arith.addf %86, %89 : vector<8x84xf32>
    %c3 = arith.constant 3 : index
    %91 = memref.load %arg5[%c3] : memref<72xf32, #tpu.memory_space<smem>>
    %92 = vector.broadcast %91 : f32 to vector<8x84xf32>
    %93 = arith.mulf %92, %47 : vector<8x84xf32>
    %94 = arith.addf %90, %93 : vector<8x84xf32>
    %c4 = arith.constant 4 : index
    %95 = memref.load %arg5[%c4] : memref<72xf32, #tpu.memory_space<smem>>
    %96 = vector.broadcast %95 : f32 to vector<8x84xf32>
    %97 = arith.mulf %96, %49 : vector<8x84xf32>
    %98 = arith.addf %94, %97 : vector<8x84xf32>
    %c5 = arith.constant 5 : index
    %99 = memref.load %arg5[%c5] : memref<72xf32, #tpu.memory_space<smem>>
    %100 = vector.broadcast %99 : f32 to vector<8x84xf32>
    %101 = arith.mulf %100, %51 : vector<8x84xf32>
    %102 = arith.addf %98, %101 : vector<8x84xf32>
    %c6 = arith.constant 6 : index
    %103 = memref.load %arg5[%c6] : memref<72xf32, #tpu.memory_space<smem>>
    %104 = vector.broadcast %103 : f32 to vector<8x84xf32>
    %105 = arith.mulf %104, %53 : vector<8x84xf32>
    %106 = arith.addf %102, %105 : vector<8x84xf32>
    %c7 = arith.constant 7 : index
    %107 = memref.load %arg5[%c7] : memref<72xf32, #tpu.memory_space<smem>>
    %108 = vector.broadcast %107 : f32 to vector<8x84xf32>
    %109 = arith.mulf %108, %55 : vector<8x84xf32>
    %110 = arith.addf %106, %109 : vector<8x84xf32>
    %c8 = arith.constant 8 : index
    %111 = memref.load %arg5[%c8] : memref<72xf32, #tpu.memory_space<smem>>
    %112 = vector.broadcast %111 : f32 to vector<8x84xf32>
    %113 = arith.mulf %112, %57 : vector<8x84xf32>
    %114 = arith.addf %110, %113 : vector<8x84xf32>
    %c9 = arith.constant 9 : index
    %115 = memref.load %arg5[%c9] : memref<72xf32, #tpu.memory_space<smem>>
    %116 = vector.broadcast %115 : f32 to vector<8x84xf32>
    %117 = arith.mulf %116, %59 : vector<8x84xf32>
    %118 = arith.addf %114, %117 : vector<8x84xf32>
    %c10 = arith.constant 10 : index
    %119 = memref.load %arg5[%c10] : memref<72xf32, #tpu.memory_space<smem>>
    %120 = vector.broadcast %119 : f32 to vector<8x84xf32>
    %121 = arith.mulf %120, %61 : vector<8x84xf32>
    %122 = arith.addf %118, %121 : vector<8x84xf32>
    %c11 = arith.constant 11 : index
    %123 = memref.load %arg5[%c11] : memref<72xf32, #tpu.memory_space<smem>>
    %124 = vector.broadcast %123 : f32 to vector<8x84xf32>
    %125 = arith.mulf %124, %63 : vector<8x84xf32>
    %126 = arith.addf %122, %125 : vector<8x84xf32>
    %c12 = arith.constant 12 : index
    %127 = memref.load %arg5[%c12] : memref<72xf32, #tpu.memory_space<smem>>
    %128 = vector.broadcast %127 : f32 to vector<8x84xf32>
    %129 = arith.mulf %128, %65 : vector<8x84xf32>
    %130 = arith.addf %126, %129 : vector<8x84xf32>
    %c13 = arith.constant 13 : index
    %131 = memref.load %arg5[%c13] : memref<72xf32, #tpu.memory_space<smem>>
    %132 = vector.broadcast %131 : f32 to vector<8x84xf32>
    %133 = arith.mulf %132, %67 : vector<8x84xf32>
    %134 = arith.addf %130, %133 : vector<8x84xf32>
    %c14 = arith.constant 14 : index
    %135 = memref.load %arg5[%c14] : memref<72xf32, #tpu.memory_space<smem>>
    %136 = vector.broadcast %135 : f32 to vector<8x84xf32>
    %137 = arith.mulf %136, %69 : vector<8x84xf32>
    %138 = arith.addf %134, %137 : vector<8x84xf32>
    %c15 = arith.constant 15 : index
    %139 = memref.load %arg5[%c15] : memref<72xf32, #tpu.memory_space<smem>>
    %140 = vector.broadcast %139 : f32 to vector<8x84xf32>
    %141 = arith.mulf %140, %71 : vector<8x84xf32>
    %142 = arith.addf %138, %141 : vector<8x84xf32>
    %c16 = arith.constant 16 : index
    %143 = memref.load %arg5[%c16] : memref<72xf32, #tpu.memory_space<smem>>
    %144 = vector.broadcast %143 : f32 to vector<8x84xf32>
    %145 = arith.mulf %144, %73 : vector<8x84xf32>
    %146 = arith.addf %142, %145 : vector<8x84xf32>
    %c17 = arith.constant 17 : index
    %147 = memref.load %arg5[%c17] : memref<72xf32, #tpu.memory_space<smem>>
    %148 = vector.broadcast %147 : f32 to vector<8x84xf32>
    %149 = arith.mulf %148, %75 : vector<8x84xf32>
    %150 = arith.addf %146, %149 : vector<8x84xf32>
    %c0_27 = arith.constant 0 : index
    %151 = memref.load %arg6[%c0_27] : memref<4xf32, #tpu.memory_space<smem>>
    %152 = vector.broadcast %151 : f32 to vector<8x84xf32>
    %153 = arith.addf %150, %152 : vector<8x84xf32>
    %cst_28 = arith.constant 0.000000e+00 : f32
    %154 = vector.broadcast %cst_28 : f32 to vector<8x84xf32>
    %155 = arith.maximumf %153, %154 : vector<8x84xf32>
    %c0_29 = arith.constant 0 : index
    %c1_30 = arith.constant 1 : index
    %c1_31 = arith.constant 1 : index
    %156 = vector.load %arg13[%c0_29, %c1_30, %c1_31] : memref<4x10x86xf32, #tpu.memory_space<vmem>>, vector<1x8x84xf32>
    %157 = vector.shape_cast %156 : vector<1x8x84xf32> to vector<8x84xf32>
    %158 = vector.shape_cast %155 : vector<8x84xf32> to vector<1x8x84xf32>
    tpu.vector_store %arg13[%c0_29, %c1_30, %c1_31], %158 {strides = array<i32>} : memref<4x10x86xf32, #tpu.memory_space<vmem>>, vector<1x8x84xf32>,
    %cst_32 = arith.constant 0.000000e+00 : f32
    %159 = vector.broadcast %cst_32 : f32 to vector<8x84xf32>
    %c18 = arith.constant 18 : index
    %160 = memref.load %arg5[%c18] : memref<72xf32, #tpu.memory_space<smem>>
    %161 = vector.broadcast %160 : f32 to vector<8x84xf32>
    %162 = arith.mulf %161, %41 : vector<8x84xf32>
    %163 = arith.addf %159, %162 : vector<8x84xf32>
    %c19 = arith.constant 19 : index
    %164 = memref.load %arg5[%c19] : memref<72xf32, #tpu.memory_space<smem>>
    %165 = vector.broadcast %164 : f32 to vector<8x84xf32>
    %166 = arith.mulf %165, %43 : vector<8x84xf32>
    %167 = arith.addf %163, %166 : vector<8x84xf32>
    %c20 = arith.constant 20 : index
    %168 = memref.load %arg5[%c20] : memref<72xf32, #tpu.memory_space<smem>>
    %169 = vector.broadcast %168 : f32 to vector<8x84xf32>
    %170 = arith.mulf %169, %45 : vector<8x84xf32>
    %171 = arith.addf %167, %170 : vector<8x84xf32>
    %c21 = arith.constant 21 : index
    %172 = memref.load %arg5[%c21] : memref<72xf32, #tpu.memory_space<smem>>
    %173 = vector.broadcast %172 : f32 to vector<8x84xf32>
    %174 = arith.mulf %173, %47 : vector<8x84xf32>
    %175 = arith.addf %171, %174 : vector<8x84xf32>
    %c22 = arith.constant 22 : index
    %176 = memref.load %arg5[%c22] : memref<72xf32, #tpu.memory_space<smem>>
    %177 = vector.broadcast %176 : f32 to vector<8x84xf32>
    %178 = arith.mulf %177, %49 : vector<8x84xf32>
    %179 = arith.addf %175, %178 : vector<8x84xf32>
    %c23 = arith.constant 23 : index
    %180 = memref.load %arg5[%c23] : memref<72xf32, #tpu.memory_space<smem>>
    %181 = vector.broadcast %180 : f32 to vector<8x84xf32>
    %182 = arith.mulf %181, %51 : vector<8x84xf32>
    %183 = arith.addf %179, %182 : vector<8x84xf32>
    %c24 = arith.constant 24 : index
    %184 = memref.load %arg5[%c24] : memref<72xf32, #tpu.memory_space<smem>>
    %185 = vector.broadcast %184 : f32 to vector<8x84xf32>
    %186 = arith.mulf %185, %53 : vector<8x84xf32>
    %187 = arith.addf %183, %186 : vector<8x84xf32>
    %c25 = arith.constant 25 : index
    %188 = memref.load %arg5[%c25] : memref<72xf32, #tpu.memory_space<smem>>
    %189 = vector.broadcast %188 : f32 to vector<8x84xf32>
    %190 = arith.mulf %189, %55 : vector<8x84xf32>
    %191 = arith.addf %187, %190 : vector<8x84xf32>
    %c26 = arith.constant 26 : index
    %192 = memref.load %arg5[%c26] : memref<72xf32, #tpu.memory_space<smem>>
    %193 = vector.broadcast %192 : f32 to vector<8x84xf32>
    %194 = arith.mulf %193, %57 : vector<8x84xf32>
    %195 = arith.addf %191, %194 : vector<8x84xf32>
    %c27 = arith.constant 27 : index
    %196 = memref.load %arg5[%c27] : memref<72xf32, #tpu.memory_space<smem>>
    %197 = vector.broadcast %196 : f32 to vector<8x84xf32>
    %198 = arith.mulf %197, %59 : vector<8x84xf32>
    %199 = arith.addf %195, %198 : vector<8x84xf32>
    %c28 = arith.constant 28 : index
    %200 = memref.load %arg5[%c28] : memref<72xf32, #tpu.memory_space<smem>>
    %201 = vector.broadcast %200 : f32 to vector<8x84xf32>
    %202 = arith.mulf %201, %61 : vector<8x84xf32>
    %203 = arith.addf %199, %202 : vector<8x84xf32>
    %c29 = arith.constant 29 : index
    %204 = memref.load %arg5[%c29] : memref<72xf32, #tpu.memory_space<smem>>
    %205 = vector.broadcast %204 : f32 to vector<8x84xf32>
    %206 = arith.mulf %205, %63 : vector<8x84xf32>
    %207 = arith.addf %203, %206 : vector<8x84xf32>
    %c30 = arith.constant 30 : index
    %208 = memref.load %arg5[%c30] : memref<72xf32, #tpu.memory_space<smem>>
    %209 = vector.broadcast %208 : f32 to vector<8x84xf32>
    %210 = arith.mulf %209, %65 : vector<8x84xf32>
    %211 = arith.addf %207, %210 : vector<8x84xf32>
    %c31 = arith.constant 31 : index
    %212 = memref.load %arg5[%c31] : memref<72xf32, #tpu.memory_space<smem>>
    %213 = vector.broadcast %212 : f32 to vector<8x84xf32>
    %214 = arith.mulf %213, %67 : vector<8x84xf32>
    %215 = arith.addf %211, %214 : vector<8x84xf32>
    %c32 = arith.constant 32 : index
    %216 = memref.load %arg5[%c32] : memref<72xf32, #tpu.memory_space<smem>>
    %217 = vector.broadcast %216 : f32 to vector<8x84xf32>
    %218 = arith.mulf %217, %69 : vector<8x84xf32>
    %219 = arith.addf %215, %218 : vector<8x84xf32>
    %c33 = arith.constant 33 : index
    %220 = memref.load %arg5[%c33] : memref<72xf32, #tpu.memory_space<smem>>
    %221 = vector.broadcast %220 : f32 to vector<8x84xf32>
    %222 = arith.mulf %221, %71 : vector<8x84xf32>
    %223 = arith.addf %219, %222 : vector<8x84xf32>
    %c34 = arith.constant 34 : index
    %224 = memref.load %arg5[%c34] : memref<72xf32, #tpu.memory_space<smem>>
    %225 = vector.broadcast %224 : f32 to vector<8x84xf32>
    %226 = arith.mulf %225, %73 : vector<8x84xf32>
    %227 = arith.addf %223, %226 : vector<8x84xf32>
    %c35 = arith.constant 35 : index
    %228 = memref.load %arg5[%c35] : memref<72xf32, #tpu.memory_space<smem>>
    %229 = vector.broadcast %228 : f32 to vector<8x84xf32>
    %230 = arith.mulf %229, %75 : vector<8x84xf32>
    %231 = arith.addf %227, %230 : vector<8x84xf32>
    %c1_33 = arith.constant 1 : index
    %232 = memref.load %arg6[%c1_33] : memref<4xf32, #tpu.memory_space<smem>>
    %233 = vector.broadcast %232 : f32 to vector<8x84xf32>
    %234 = arith.addf %231, %233 : vector<8x84xf32>
    %cst_34 = arith.constant 0.000000e+00 : f32
    %235 = vector.broadcast %cst_34 : f32 to vector<8x84xf32>
    %236 = arith.maximumf %234, %235 : vector<8x84xf32>
    %c1_35 = arith.constant 1 : index
    %c1_36 = arith.constant 1 : index
    %c1_37 = arith.constant 1 : index
    %237 = vector.load %arg13[%c1_35, %c1_36, %c1_37] : memref<4x10x86xf32, #tpu.memory_space<vmem>>, vector<1x8x84xf32>
    %238 = vector.shape_cast %237 : vector<1x8x84xf32> to vector<8x84xf32>
    %239 = vector.shape_cast %236 : vector<8x84xf32> to vector<1x8x84xf32>
    tpu.vector_store %arg13[%c1_35, %c1_36, %c1_37], %239 {strides = array<i32>} : memref<4x10x86xf32, #tpu.memory_space<vmem>>, vector<1x8x84xf32>,
    %cst_38 = arith.constant 0.000000e+00 : f32
    %240 = vector.broadcast %cst_38 : f32 to vector<8x84xf32>
    %c36 = arith.constant 36 : index
    %241 = memref.load %arg5[%c36] : memref<72xf32, #tpu.memory_space<smem>>
    %242 = vector.broadcast %241 : f32 to vector<8x84xf32>
    %243 = arith.mulf %242, %41 : vector<8x84xf32>
    %244 = arith.addf %240, %243 : vector<8x84xf32>
    %c37 = arith.constant 37 : index
    %245 = memref.load %arg5[%c37] : memref<72xf32, #tpu.memory_space<smem>>
    %246 = vector.broadcast %245 : f32 to vector<8x84xf32>
    %247 = arith.mulf %246, %43 : vector<8x84xf32>
    %248 = arith.addf %244, %247 : vector<8x84xf32>
    %c38 = arith.constant 38 : index
    %249 = memref.load %arg5[%c38] : memref<72xf32, #tpu.memory_space<smem>>
    %250 = vector.broadcast %249 : f32 to vector<8x84xf32>
    %251 = arith.mulf %250, %45 : vector<8x84xf32>
    %252 = arith.addf %248, %251 : vector<8x84xf32>
    %c39 = arith.constant 39 : index
    %253 = memref.load %arg5[%c39] : memref<72xf32, #tpu.memory_space<smem>>
    %254 = vector.broadcast %253 : f32 to vector<8x84xf32>
    %255 = arith.mulf %254, %47 : vector<8x84xf32>
    %256 = arith.addf %252, %255 : vector<8x84xf32>
    %c40 = arith.constant 40 : index
    %257 = memref.load %arg5[%c40] : memref<72xf32, #tpu.memory_space<smem>>
    %258 = vector.broadcast %257 : f32 to vector<8x84xf32>
    %259 = arith.mulf %258, %49 : vector<8x84xf32>
    %260 = arith.addf %256, %259 : vector<8x84xf32>
    %c41 = arith.constant 41 : index
    %261 = memref.load %arg5[%c41] : memref<72xf32, #tpu.memory_space<smem>>
    %262 = vector.broadcast %261 : f32 to vector<8x84xf32>
    %263 = arith.mulf %262, %51 : vector<8x84xf32>
    %264 = arith.addf %260, %263 : vector<8x84xf32>
    %c42 = arith.constant 42 : index
    %265 = memref.load %arg5[%c42] : memref<72xf32, #tpu.memory_space<smem>>
    %266 = vector.broadcast %265 : f32 to vector<8x84xf32>
    %267 = arith.mulf %266, %53 : vector<8x84xf32>
    %268 = arith.addf %264, %267 : vector<8x84xf32>
    %c43 = arith.constant 43 : index
    %269 = memref.load %arg5[%c43] : memref<72xf32, #tpu.memory_space<smem>>
    %270 = vector.broadcast %269 : f32 to vector<8x84xf32>
    %271 = arith.mulf %270, %55 : vector<8x84xf32>
    %272 = arith.addf %268, %271 : vector<8x84xf32>
    %c44 = arith.constant 44 : index
    %273 = memref.load %arg5[%c44] : memref<72xf32, #tpu.memory_space<smem>>
    %274 = vector.broadcast %273 : f32 to vector<8x84xf32>
    %275 = arith.mulf %274, %57 : vector<8x84xf32>
    %276 = arith.addf %272, %275 : vector<8x84xf32>
    %c45 = arith.constant 45 : index
    %277 = memref.load %arg5[%c45] : memref<72xf32, #tpu.memory_space<smem>>
    %278 = vector.broadcast %277 : f32 to vector<8x84xf32>
    %279 = arith.mulf %278, %59 : vector<8x84xf32>
    %280 = arith.addf %276, %279 : vector<8x84xf32>
    %c46 = arith.constant 46 : index
    %281 = memref.load %arg5[%c46] : memref<72xf32, #tpu.memory_space<smem>>
    %282 = vector.broadcast %281 : f32 to vector<8x84xf32>
    %283 = arith.mulf %282, %61 : vector<8x84xf32>
    %284 = arith.addf %280, %283 : vector<8x84xf32>
    %c47 = arith.constant 47 : index
    %285 = memref.load %arg5[%c47] : memref<72xf32, #tpu.memory_space<smem>>
    %286 = vector.broadcast %285 : f32 to vector<8x84xf32>
    %287 = arith.mulf %286, %63 : vector<8x84xf32>
    %288 = arith.addf %284, %287 : vector<8x84xf32>
    %c48 = arith.constant 48 : index
    %289 = memref.load %arg5[%c48] : memref<72xf32, #tpu.memory_space<smem>>
    %290 = vector.broadcast %289 : f32 to vector<8x84xf32>
    %291 = arith.mulf %290, %65 : vector<8x84xf32>
    %292 = arith.addf %288, %291 : vector<8x84xf32>
    %c49 = arith.constant 49 : index
    %293 = memref.load %arg5[%c49] : memref<72xf32, #tpu.memory_space<smem>>
    %294 = vector.broadcast %293 : f32 to vector<8x84xf32>
    %295 = arith.mulf %294, %67 : vector<8x84xf32>
    %296 = arith.addf %292, %295 : vector<8x84xf32>
    %c50 = arith.constant 50 : index
    %297 = memref.load %arg5[%c50] : memref<72xf32, #tpu.memory_space<smem>>
    %298 = vector.broadcast %297 : f32 to vector<8x84xf32>
    %299 = arith.mulf %298, %69 : vector<8x84xf32>
    %300 = arith.addf %296, %299 : vector<8x84xf32>
    %c51 = arith.constant 51 : index
    %301 = memref.load %arg5[%c51] : memref<72xf32, #tpu.memory_space<smem>>
    %302 = vector.broadcast %301 : f32 to vector<8x84xf32>
    %303 = arith.mulf %302, %71 : vector<8x84xf32>
    %304 = arith.addf %300, %303 : vector<8x84xf32>
    %c52 = arith.constant 52 : index
    %305 = memref.load %arg5[%c52] : memref<72xf32, #tpu.memory_space<smem>>
    %306 = vector.broadcast %305 : f32 to vector<8x84xf32>
    %307 = arith.mulf %306, %73 : vector<8x84xf32>
    %308 = arith.addf %304, %307 : vector<8x84xf32>
    %c53 = arith.constant 53 : index
    %309 = memref.load %arg5[%c53] : memref<72xf32, #tpu.memory_space<smem>>
    %310 = vector.broadcast %309 : f32 to vector<8x84xf32>
    %311 = arith.mulf %310, %75 : vector<8x84xf32>
    %312 = arith.addf %308, %311 : vector<8x84xf32>
    %c2_39 = arith.constant 2 : index
    %313 = memref.load %arg6[%c2_39] : memref<4xf32, #tpu.memory_space<smem>>
    %314 = vector.broadcast %313 : f32 to vector<8x84xf32>
    %315 = arith.addf %312, %314 : vector<8x84xf32>
    %cst_40 = arith.constant 0.000000e+00 : f32
    %316 = vector.broadcast %cst_40 : f32 to vector<8x84xf32>
    %317 = arith.maximumf %315, %316 : vector<8x84xf32>
    %c2_41 = arith.constant 2 : index
    %c1_42 = arith.constant 1 : index
    %c1_43 = arith.constant 1 : index
    %318 = vector.load %arg13[%c2_41, %c1_42, %c1_43] : memref<4x10x86xf32, #tpu.memory_space<vmem>>, vector<1x8x84xf32>
    %319 = vector.shape_cast %318 : vector<1x8x84xf32> to vector<8x84xf32>
    %320 = vector.shape_cast %317 : vector<8x84xf32> to vector<1x8x84xf32>
    tpu.vector_store %arg13[%c2_41, %c1_42, %c1_43], %320 {strides = array<i32>} : memref<4x10x86xf32, #tpu.memory_space<vmem>>, vector<1x8x84xf32>,
    %cst_44 = arith.constant 0.000000e+00 : f32
    %321 = vector.broadcast %cst_44 : f32 to vector<8x84xf32>
    %c54 = arith.constant 54 : index
    %322 = memref.load %arg5[%c54] : memref<72xf32, #tpu.memory_space<smem>>
    %323 = vector.broadcast %322 : f32 to vector<8x84xf32>
    %324 = arith.mulf %323, %41 : vector<8x84xf32>
    %325 = arith.addf %321, %324 : vector<8x84xf32>
    %c55 = arith.constant 55 : index
    %326 = memref.load %arg5[%c55] : memref<72xf32, #tpu.memory_space<smem>>
    %327 = vector.broadcast %326 : f32 to vector<8x84xf32>
    %328 = arith.mulf %327, %43 : vector<8x84xf32>
    %329 = arith.addf %325, %328 : vector<8x84xf32>
    %c56 = arith.constant 56 : index
    %330 = memref.load %arg5[%c56] : memref<72xf32, #tpu.memory_space<smem>>
    %331 = vector.broadcast %330 : f32 to vector<8x84xf32>
    %332 = arith.mulf %331, %45 : vector<8x84xf32>
    %333 = arith.addf %329, %332 : vector<8x84xf32>
    %c57 = arith.constant 57 : index
    %334 = memref.load %arg5[%c57] : memref<72xf32, #tpu.memory_space<smem>>
    %335 = vector.broadcast %334 : f32 to vector<8x84xf32>
    %336 = arith.mulf %335, %47 : vector<8x84xf32>
    %337 = arith.addf %333, %336 : vector<8x84xf32>
    %c58 = arith.constant 58 : index
    %338 = memref.load %arg5[%c58] : memref<72xf32, #tpu.memory_space<smem>>
    %339 = vector.broadcast %338 : f32 to vector<8x84xf32>
    %340 = arith.mulf %339, %49 : vector<8x84xf32>
    %341 = arith.addf %337, %340 : vector<8x84xf32>
    %c59 = arith.constant 59 : index
    %342 = memref.load %arg5[%c59] : memref<72xf32, #tpu.memory_space<smem>>
    %343 = vector.broadcast %342 : f32 to vector<8x84xf32>
    %344 = arith.mulf %343, %51 : vector<8x84xf32>
    %345 = arith.addf %341, %344 : vector<8x84xf32>
    %c60 = arith.constant 60 : index
    %346 = memref.load %arg5[%c60] : memref<72xf32, #tpu.memory_space<smem>>
    %347 = vector.broadcast %346 : f32 to vector<8x84xf32>
    %348 = arith.mulf %347, %53 : vector<8x84xf32>
    %349 = arith.addf %345, %348 : vector<8x84xf32>
    %c61 = arith.constant 61 : index
    %350 = memref.load %arg5[%c61] : memref<72xf32, #tpu.memory_space<smem>>
    %351 = vector.broadcast %350 : f32 to vector<8x84xf32>
    %352 = arith.mulf %351, %55 : vector<8x84xf32>
    %353 = arith.addf %349, %352 : vector<8x84xf32>
    %c62 = arith.constant 62 : index
    %354 = memref.load %arg5[%c62] : memref<72xf32, #tpu.memory_space<smem>>
    %355 = vector.broadcast %354 : f32 to vector<8x84xf32>
    %356 = arith.mulf %355, %57 : vector<8x84xf32>
    %357 = arith.addf %353, %356 : vector<8x84xf32>
    %c63 = arith.constant 63 : index
    %358 = memref.load %arg5[%c63] : memref<72xf32, #tpu.memory_space<smem>>
    %359 = vector.broadcast %358 : f32 to vector<8x84xf32>
    %360 = arith.mulf %359, %59 : vector<8x84xf32>
    %361 = arith.addf %357, %360 : vector<8x84xf32>
    %c64 = arith.constant 64 : index
    %362 = memref.load %arg5[%c64] : memref<72xf32, #tpu.memory_space<smem>>
    %363 = vector.broadcast %362 : f32 to vector<8x84xf32>
    %364 = arith.mulf %363, %61 : vector<8x84xf32>
    %365 = arith.addf %361, %364 : vector<8x84xf32>
    %c65 = arith.constant 65 : index
    %366 = memref.load %arg5[%c65] : memref<72xf32, #tpu.memory_space<smem>>
    %367 = vector.broadcast %366 : f32 to vector<8x84xf32>
    %368 = arith.mulf %367, %63 : vector<8x84xf32>
    %369 = arith.addf %365, %368 : vector<8x84xf32>
    %c66 = arith.constant 66 : index
    %370 = memref.load %arg5[%c66] : memref<72xf32, #tpu.memory_space<smem>>
    %371 = vector.broadcast %370 : f32 to vector<8x84xf32>
    %372 = arith.mulf %371, %65 : vector<8x84xf32>
    %373 = arith.addf %369, %372 : vector<8x84xf32>
    %c67 = arith.constant 67 : index
    %374 = memref.load %arg5[%c67] : memref<72xf32, #tpu.memory_space<smem>>
    %375 = vector.broadcast %374 : f32 to vector<8x84xf32>
    %376 = arith.mulf %375, %67 : vector<8x84xf32>
    %377 = arith.addf %373, %376 : vector<8x84xf32>
    %c68 = arith.constant 68 : index
    %378 = memref.load %arg5[%c68] : memref<72xf32, #tpu.memory_space<smem>>
    %379 = vector.broadcast %378 : f32 to vector<8x84xf32>
    %380 = arith.mulf %379, %69 : vector<8x84xf32>
    %381 = arith.addf %377, %380 : vector<8x84xf32>
    %c69 = arith.constant 69 : index
    %382 = memref.load %arg5[%c69] : memref<72xf32, #tpu.memory_space<smem>>
    %383 = vector.broadcast %382 : f32 to vector<8x84xf32>
    %384 = arith.mulf %383, %71 : vector<8x84xf32>
    %385 = arith.addf %381, %384 : vector<8x84xf32>
    %c70 = arith.constant 70 : index
    %386 = memref.load %arg5[%c70] : memref<72xf32, #tpu.memory_space<smem>>
    %387 = vector.broadcast %386 : f32 to vector<8x84xf32>
    %388 = arith.mulf %387, %73 : vector<8x84xf32>
    %389 = arith.addf %385, %388 : vector<8x84xf32>
    %c71 = arith.constant 71 : index
    %390 = memref.load %arg5[%c71] : memref<72xf32, #tpu.memory_space<smem>>
    %391 = vector.broadcast %390 : f32 to vector<8x84xf32>
    %392 = arith.mulf %391, %75 : vector<8x84xf32>
    %393 = arith.addf %389, %392 : vector<8x84xf32>
    %c3_45 = arith.constant 3 : index
    %394 = memref.load %arg6[%c3_45] : memref<4xf32, #tpu.memory_space<smem>>
    %395 = vector.broadcast %394 : f32 to vector<8x84xf32>
    %396 = arith.addf %393, %395 : vector<8x84xf32>
    %cst_46 = arith.constant 0.000000e+00 : f32
    %397 = vector.broadcast %cst_46 : f32 to vector<8x84xf32>
    %398 = arith.maximumf %396, %397 : vector<8x84xf32>
    %c3_47 = arith.constant 3 : index
    %c1_48 = arith.constant 1 : index
    %c1_49 = arith.constant 1 : index
    %399 = vector.load %arg13[%c3_47, %c1_48, %c1_49] : memref<4x10x86xf32, #tpu.memory_space<vmem>>, vector<1x8x84xf32>
    %400 = vector.shape_cast %399 : vector<1x8x84xf32> to vector<8x84xf32>
    %401 = vector.shape_cast %398 : vector<8x84xf32> to vector<1x8x84xf32>
    tpu.vector_store %arg13[%c3_47, %c1_48, %c1_49], %401 {strides = array<i32>} : memref<4x10x86xf32, #tpu.memory_space<vmem>>, vector<1x8x84xf32>,
    %c0_50 = arith.constant 0 : index
    %c0_51 = arith.constant 0 : index
    %c0_52 = arith.constant 0 : index
    %402 = vector.load %arg13[%c0_50, %c0_51, %c0_52] : memref<4x10x86xf32, #tpu.memory_space<vmem>>, vector<4x10x86xf32>
    %403 = vector.extract_strided_slice %402 {offsets = [0, 0, 0], sizes = [1, 8, 84], strides = [1, 1, 1]} : vector<4x10x86xf32> to vector<1x8x84xf32>
    %404 = vector.shape_cast %403 : vector<1x8x84xf32> to vector<8x84xf32>
    %405 = vector.extract_strided_slice %402 {offsets = [0, 0, 1], sizes = [1, 8, 84], strides = [1, 1, 1]} : vector<4x10x86xf32> to vector<1x8x84xf32>
    %406 = vector.shape_cast %405 : vector<1x8x84xf32> to vector<8x84xf32>
    %407 = vector.extract_strided_slice %402 {offsets = [0, 0, 2], sizes = [1, 8, 84], strides = [1, 1, 1]} : vector<4x10x86xf32> to vector<1x8x84xf32>
    %408 = vector.shape_cast %407 : vector<1x8x84xf32> to vector<8x84xf32>
    %409 = vector.extract_strided_slice %402 {offsets = [0, 1, 0], sizes = [1, 8, 84], strides = [1, 1, 1]} : vector<4x10x86xf32> to vector<1x8x84xf32>
    %410 = vector.shape_cast %409 : vector<1x8x84xf32> to vector<8x84xf32>
    %411 = vector.extract_strided_slice %402 {offsets = [0, 1, 1], sizes = [1, 8, 84], strides = [1, 1, 1]} : vector<4x10x86xf32> to vector<1x8x84xf32>
    %412 = vector.shape_cast %411 : vector<1x8x84xf32> to vector<8x84xf32>
    %413 = vector.extract_strided_slice %402 {offsets = [0, 1, 2], sizes = [1, 8, 84], strides = [1, 1, 1]} : vector<4x10x86xf32> to vector<1x8x84xf32>
    %414 = vector.shape_cast %413 : vector<1x8x84xf32> to vector<8x84xf32>
    %415 = vector.extract_strided_slice %402 {offsets = [0, 2, 0], sizes = [1, 8, 84], strides = [1, 1, 1]} : vector<4x10x86xf32> to vector<1x8x84xf32>
    %416 = vector.shape_cast %415 : vector<1x8x84xf32> to vector<8x84xf32>
    %417 = vector.extract_strided_slice %402 {offsets = [0, 2, 1], sizes = [1, 8, 84], strides = [1, 1, 1]} : vector<4x10x86xf32> to vector<1x8x84xf32>
    %418 = vector.shape_cast %417 : vector<1x8x84xf32> to vector<8x84xf32>
    %419 = vector.extract_strided_slice %402 {offsets = [0, 2, 2], sizes = [1, 8, 84], strides = [1, 1, 1]} : vector<4x10x86xf32> to vector<1x8x84xf32>
    %420 = vector.shape_cast %419 : vector<1x8x84xf32> to vector<8x84xf32>
    %421 = vector.extract_strided_slice %402 {offsets = [1, 0, 0], sizes = [1, 8, 84], strides = [1, 1, 1]} : vector<4x10x86xf32> to vector<1x8x84xf32>
    %422 = vector.shape_cast %421 : vector<1x8x84xf32> to vector<8x84xf32>
    %423 = vector.extract_strided_slice %402 {offsets = [1, 0, 1], sizes = [1, 8, 84], strides = [1, 1, 1]} : vector<4x10x86xf32> to vector<1x8x84xf32>
    %424 = vector.shape_cast %423 : vector<1x8x84xf32> to vector<8x84xf32>
    %425 = vector.extract_strided_slice %402 {offsets = [1, 0, 2], sizes = [1, 8, 84], strides = [1, 1, 1]} : vector<4x10x86xf32> to vector<1x8x84xf32>
    %426 = vector.shape_cast %425 : vector<1x8x84xf32> to vector<8x84xf32>
    %427 = vector.extract_strided_slice %402 {offsets = [1, 1, 0], sizes = [1, 8, 84], strides = [1, 1, 1]} : vector<4x10x86xf32> to vector<1x8x84xf32>
    %428 = vector.shape_cast %427 : vector<1x8x84xf32> to vector<8x84xf32>
    %429 = vector.extract_strided_slice %402 {offsets = [1, 1, 1], sizes = [1, 8, 84], strides = [1, 1, 1]} : vector<4x10x86xf32> to vector<1x8x84xf32>
    %430 = vector.shape_cast %429 : vector<1x8x84xf32> to vector<8x84xf32>
    %431 = vector.extract_strided_slice %402 {offsets = [1, 1, 2], sizes = [1, 8, 84], strides = [1, 1, 1]} : vector<4x10x86xf32> to vector<1x8x84xf32>
    %432 = vector.shape_cast %431 : vector<1x8x84xf32> to vector<8x84xf32>
    %433 = vector.extract_strided_slice %402 {offsets = [1, 2, 0], sizes = [1, 8, 84], strides = [1, 1, 1]} : vector<4x10x86xf32> to vector<1x8x84xf32>
    %434 = vector.shape_cast %433 : vector<1x8x84xf32> to vector<8x84xf32>
    %435 = vector.extract_strided_slice %402 {offsets = [1, 2, 1], sizes = [1, 8, 84], strides = [1, 1, 1]} : vector<4x10x86xf32> to vector<1x8x84xf32>
    %436 = vector.shape_cast %435 : vector<1x8x84xf32> to vector<8x84xf32>
    %437 = vector.extract_strided_slice %402 {offsets = [1, 2, 2], sizes = [1, 8, 84], strides = [1, 1, 1]} : vector<4x10x86xf32> to vector<1x8x84xf32>
    %438 = vector.shape_cast %437 : vector<1x8x84xf32> to vector<8x84xf32>
    %439 = vector.extract_strided_slice %402 {offsets = [2, 0, 0], sizes = [1, 8, 84], strides = [1, 1, 1]} : vector<4x10x86xf32> to vector<1x8x84xf32>
    %440 = vector.shape_cast %439 : vector<1x8x84xf32> to vector<8x84xf32>
    %441 = vector.extract_strided_slice %402 {offsets = [2, 0, 1], sizes = [1, 8, 84], strides = [1, 1, 1]} : vector<4x10x86xf32> to vector<1x8x84xf32>
    %442 = vector.shape_cast %441 : vector<1x8x84xf32> to vector<8x84xf32>
    %443 = vector.extract_strided_slice %402 {offsets = [2, 0, 2], sizes = [1, 8, 84], strides = [1, 1, 1]} : vector<4x10x86xf32> to vector<1x8x84xf32>
    %444 = vector.shape_cast %443 : vector<1x8x84xf32> to vector<8x84xf32>
    %445 = vector.extract_strided_slice %402 {offsets = [2, 1, 0], sizes = [1, 8, 84], strides = [1, 1, 1]} : vector<4x10x86xf32> to vector<1x8x84xf32>
    %446 = vector.shape_cast %445 : vector<1x8x84xf32> to vector<8x84xf32>
    %447 = vector.extract_strided_slice %402 {offsets = [2, 1, 1], sizes = [1, 8, 84], strides = [1, 1, 1]} : vector<4x10x86xf32> to vector<1x8x84xf32>
    %448 = vector.shape_cast %447 : vector<1x8x84xf32> to vector<8x84xf32>
    %449 = vector.extract_strided_slice %402 {offsets = [2, 1, 2], sizes = [1, 8, 84], strides = [1, 1, 1]} : vector<4x10x86xf32> to vector<1x8x84xf32>
    %450 = vector.shape_cast %449 : vector<1x8x84xf32> to vector<8x84xf32>
    %451 = vector.extract_strided_slice %402 {offsets = [2, 2, 0], sizes = [1, 8, 84], strides = [1, 1, 1]} : vector<4x10x86xf32> to vector<1x8x84xf32>
    %452 = vector.shape_cast %451 : vector<1x8x84xf32> to vector<8x84xf32>
    %453 = vector.extract_strided_slice %402 {offsets = [2, 2, 1], sizes = [1, 8, 84], strides = [1, 1, 1]} : vector<4x10x86xf32> to vector<1x8x84xf32>
    %454 = vector.shape_cast %453 : vector<1x8x84xf32> to vector<8x84xf32>
    %455 = vector.extract_strided_slice %402 {offsets = [2, 2, 2], sizes = [1, 8, 84], strides = [1, 1, 1]} : vector<4x10x86xf32> to vector<1x8x84xf32>
    %456 = vector.shape_cast %455 : vector<1x8x84xf32> to vector<8x84xf32>
    %457 = vector.extract_strided_slice %402 {offsets = [3, 0, 0], sizes = [1, 8, 84], strides = [1, 1, 1]} : vector<4x10x86xf32> to vector<1x8x84xf32>
    %458 = vector.shape_cast %457 : vector<1x8x84xf32> to vector<8x84xf32>
    %459 = vector.extract_strided_slice %402 {offsets = [3, 0, 1], sizes = [1, 8, 84], strides = [1, 1, 1]} : vector<4x10x86xf32> to vector<1x8x84xf32>
    %460 = vector.shape_cast %459 : vector<1x8x84xf32> to vector<8x84xf32>
    %461 = vector.extract_strided_slice %402 {offsets = [3, 0, 2], sizes = [1, 8, 84], strides = [1, 1, 1]} : vector<4x10x86xf32> to vector<1x8x84xf32>
    %462 = vector.shape_cast %461 : vector<1x8x84xf32> to vector<8x84xf32>
    %463 = vector.extract_strided_slice %402 {offsets = [3, 1, 0], sizes = [1, 8, 84], strides = [1, 1, 1]} : vector<4x10x86xf32> to vector<1x8x84xf32>
    %464 = vector.shape_cast %463 : vector<1x8x84xf32> to vector<8x84xf32>
    %465 = vector.extract_strided_slice %402 {offsets = [3, 1, 1], sizes = [1, 8, 84], strides = [1, 1, 1]} : vector<4x10x86xf32> to vector<1x8x84xf32>
    %466 = vector.shape_cast %465 : vector<1x8x84xf32> to vector<8x84xf32>
    %467 = vector.extract_strided_slice %402 {offsets = [3, 1, 2], sizes = [1, 8, 84], strides = [1, 1, 1]} : vector<4x10x86xf32> to vector<1x8x84xf32>
    %468 = vector.shape_cast %467 : vector<1x8x84xf32> to vector<8x84xf32>
    %469 = vector.extract_strided_slice %402 {offsets = [3, 2, 0], sizes = [1, 8, 84], strides = [1, 1, 1]} : vector<4x10x86xf32> to vector<1x8x84xf32>
    %470 = vector.shape_cast %469 : vector<1x8x84xf32> to vector<8x84xf32>
    %471 = vector.extract_strided_slice %402 {offsets = [3, 2, 1], sizes = [1, 8, 84], strides = [1, 1, 1]} : vector<4x10x86xf32> to vector<1x8x84xf32>
    %472 = vector.shape_cast %471 : vector<1x8x84xf32> to vector<8x84xf32>
    %473 = vector.extract_strided_slice %402 {offsets = [3, 2, 2], sizes = [1, 8, 84], strides = [1, 1, 1]} : vector<4x10x86xf32> to vector<1x8x84xf32>
    %474 = vector.shape_cast %473 : vector<1x8x84xf32> to vector<8x84xf32>
    %c0_53 = arith.constant 0 : index
    %c0_54 = arith.constant 0 : index
    %475 = vector.load %arg10[%c0_53, %c0_54] : memref<1x24xf32, #tpu.memory_space<vmem>>, vector<1x24xf32>
    %cst_55 = arith.constant 1.000000e+01 : f32
    %476 = vector.broadcast %cst_55 : f32 to vector<1x24xf32>
    %477 = arith.mulf %475, %476 : vector<1x24xf32>
    %cst_56 = arith.constant 0.000000e+00 : f32
    %478 = vector.broadcast %cst_56 : f32 to vector<8x84xf32>
    %c0_57 = arith.constant 0 : index
    %479 = memref.load %arg7[%c0_57] : memref<288xf32, #tpu.memory_space<smem>>
    %480 = vector.broadcast %479 : f32 to vector<8x84xf32>
    %481 = arith.mulf %480, %404 : vector<8x84xf32>
    %482 = arith.addf %478, %481 : vector<8x84xf32>
    %c1_58 = arith.constant 1 : index
    %483 = memref.load %arg7[%c1_58] : memref<288xf32, #tpu.memory_space<smem>>
    %484 = vector.broadcast %483 : f32 to vector<8x84xf32>
    %485 = arith.mulf %484, %406 : vector<8x84xf32>
    %486 = arith.addf %482, %485 : vector<8x84xf32>
    %c2_59 = arith.constant 2 : index
    %487 = memref.load %arg7[%c2_59] : memref<288xf32, #tpu.memory_space<smem>>
    %488 = vector.broadcast %487 : f32 to vector<8x84xf32>
    %489 = arith.mulf %488, %408 : vector<8x84xf32>
    %490 = arith.addf %486, %489 : vector<8x84xf32>
    %c3_60 = arith.constant 3 : index
    %491 = memref.load %arg7[%c3_60] : memref<288xf32, #tpu.memory_space<smem>>
    %492 = vector.broadcast %491 : f32 to vector<8x84xf32>
    %493 = arith.mulf %492, %410 : vector<8x84xf32>
    %494 = arith.addf %490, %493 : vector<8x84xf32>
    %c4_61 = arith.constant 4 : index
    %495 = memref.load %arg7[%c4_61] : memref<288xf32, #tpu.memory_space<smem>>
    %496 = vector.broadcast %495 : f32 to vector<8x84xf32>
    %497 = arith.mulf %496, %412 : vector<8x84xf32>
    %498 = arith.addf %494, %497 : vector<8x84xf32>
    %c5_62 = arith.constant 5 : index
    %499 = memref.load %arg7[%c5_62] : memref<288xf32, #tpu.memory_space<smem>>
    %500 = vector.broadcast %499 : f32 to vector<8x84xf32>
    %501 = arith.mulf %500, %414 : vector<8x84xf32>
    %502 = arith.addf %498, %501 : vector<8x84xf32>
    %c6_63 = arith.constant 6 : index
    %503 = memref.load %arg7[%c6_63] : memref<288xf32, #tpu.memory_space<smem>>
    %504 = vector.broadcast %503 : f32 to vector<8x84xf32>
    %505 = arith.mulf %504, %416 : vector<8x84xf32>
    %506 = arith.addf %502, %505 : vector<8x84xf32>
    %c7_64 = arith.constant 7 : index
    %507 = memref.load %arg7[%c7_64] : memref<288xf32, #tpu.memory_space<smem>>
    %508 = vector.broadcast %507 : f32 to vector<8x84xf32>
    %509 = arith.mulf %508, %418 : vector<8x84xf32>
    %510 = arith.addf %506, %509 : vector<8x84xf32>
    %c8_65 = arith.constant 8 : index
    %511 = memref.load %arg7[%c8_65] : memref<288xf32, #tpu.memory_space<smem>>
    %512 = vector.broadcast %511 : f32 to vector<8x84xf32>
    %513 = arith.mulf %512, %420 : vector<8x84xf32>
    %514 = arith.addf %510, %513 : vector<8x84xf32>
    %c9_66 = arith.constant 9 : index
    %515 = memref.load %arg7[%c9_66] : memref<288xf32, #tpu.memory_space<smem>>
    %516 = vector.broadcast %515 : f32 to vector<8x84xf32>
    %517 = arith.mulf %516, %422 : vector<8x84xf32>
    %518 = arith.addf %514, %517 : vector<8x84xf32>
    %c10_67 = arith.constant 10 : index
    %519 = memref.load %arg7[%c10_67] : memref<288xf32, #tpu.memory_space<smem>>
    %520 = vector.broadcast %519 : f32 to vector<8x84xf32>
    %521 = arith.mulf %520, %424 : vector<8x84xf32>
    %522 = arith.addf %518, %521 : vector<8x84xf32>
    %c11_68 = arith.constant 11 : index
    %523 = memref.load %arg7[%c11_68] : memref<288xf32, #tpu.memory_space<smem>>
    %524 = vector.broadcast %523 : f32 to vector<8x84xf32>
    %525 = arith.mulf %524, %426 : vector<8x84xf32>
    %526 = arith.addf %522, %525 : vector<8x84xf32>
    %c12_69 = arith.constant 12 : index
    %527 = memref.load %arg7[%c12_69] : memref<288xf32, #tpu.memory_space<smem>>
    %528 = vector.broadcast %527 : f32 to vector<8x84xf32>
    %529 = arith.mulf %528, %428 : vector<8x84xf32>
    %530 = arith.addf %526, %529 : vector<8x84xf32>
    %c13_70 = arith.constant 13 : index
    %531 = memref.load %arg7[%c13_70] : memref<288xf32, #tpu.memory_space<smem>>
    %532 = vector.broadcast %531 : f32 to vector<8x84xf32>
    %533 = arith.mulf %532, %430 : vector<8x84xf32>
    %534 = arith.addf %530, %533 : vector<8x84xf32>
    %c14_71 = arith.constant 14 : index
    %535 = memref.load %arg7[%c14_71] : memref<288xf32, #tpu.memory_space<smem>>
    %536 = vector.broadcast %535 : f32 to vector<8x84xf32>
    %537 = arith.mulf %536, %432 : vector<8x84xf32>
    %538 = arith.addf %534, %537 : vector<8x84xf32>
    %c15_72 = arith.constant 15 : index
    %539 = memref.load %arg7[%c15_72] : memref<288xf32, #tpu.memory_space<smem>>
    %540 = vector.broadcast %539 : f32 to vector<8x84xf32>
    %541 = arith.mulf %540, %434 : vector<8x84xf32>
    %542 = arith.addf %538, %541 : vector<8x84xf32>
    %c16_73 = arith.constant 16 : index
    %543 = memref.load %arg7[%c16_73] : memref<288xf32, #tpu.memory_space<smem>>
    %544 = vector.broadcast %543 : f32 to vector<8x84xf32>
    %545 = arith.mulf %544, %436 : vector<8x84xf32>
    %546 = arith.addf %542, %545 : vector<8x84xf32>
    %c17_74 = arith.constant 17 : index
    %547 = memref.load %arg7[%c17_74] : memref<288xf32, #tpu.memory_space<smem>>
    %548 = vector.broadcast %547 : f32 to vector<8x84xf32>
    %549 = arith.mulf %548, %438 : vector<8x84xf32>
    %550 = arith.addf %546, %549 : vector<8x84xf32>
    %c18_75 = arith.constant 18 : index
    %551 = memref.load %arg7[%c18_75] : memref<288xf32, #tpu.memory_space<smem>>
    %552 = vector.broadcast %551 : f32 to vector<8x84xf32>
    %553 = arith.mulf %552, %440 : vector<8x84xf32>
    %554 = arith.addf %550, %553 : vector<8x84xf32>
    %c19_76 = arith.constant 19 : index
    %555 = memref.load %arg7[%c19_76] : memref<288xf32, #tpu.memory_space<smem>>
    %556 = vector.broadcast %555 : f32 to vector<8x84xf32>
    %557 = arith.mulf %556, %442 : vector<8x84xf32>
    %558 = arith.addf %554, %557 : vector<8x84xf32>
    %c20_77 = arith.constant 20 : index
    %559 = memref.load %arg7[%c20_77] : memref<288xf32, #tpu.memory_space<smem>>
    %560 = vector.broadcast %559 : f32 to vector<8x84xf32>
    %561 = arith.mulf %560, %444 : vector<8x84xf32>
    %562 = arith.addf %558, %561 : vector<8x84xf32>
    %c21_78 = arith.constant 21 : index
    %563 = memref.load %arg7[%c21_78] : memref<288xf32, #tpu.memory_space<smem>>
    %564 = vector.broadcast %563 : f32 to vector<8x84xf32>
    %565 = arith.mulf %564, %446 : vector<8x84xf32>
    %566 = arith.addf %562, %565 : vector<8x84xf32>
    %c22_79 = arith.constant 22 : index
    %567 = memref.load %arg7[%c22_79] : memref<288xf32, #tpu.memory_space<smem>>
    %568 = vector.broadcast %567 : f32 to vector<8x84xf32>
    %569 = arith.mulf %568, %448 : vector<8x84xf32>
    %570 = arith.addf %566, %569 : vector<8x84xf32>
    %c23_80 = arith.constant 23 : index
    %571 = memref.load %arg7[%c23_80] : memref<288xf32, #tpu.memory_space<smem>>
    %572 = vector.broadcast %571 : f32 to vector<8x84xf32>
    %573 = arith.mulf %572, %450 : vector<8x84xf32>
    %574 = arith.addf %570, %573 : vector<8x84xf32>
    %c24_81 = arith.constant 24 : index
    %575 = memref.load %arg7[%c24_81] : memref<288xf32, #tpu.memory_space<smem>>
    %576 = vector.broadcast %575 : f32 to vector<8x84xf32>
    %577 = arith.mulf %576, %452 : vector<8x84xf32>
    %578 = arith.addf %574, %577 : vector<8x84xf32>
    %c25_82 = arith.constant 25 : index
    %579 = memref.load %arg7[%c25_82] : memref<288xf32, #tpu.memory_space<smem>>
    %580 = vector.broadcast %579 : f32 to vector<8x84xf32>
    %581 = arith.mulf %580, %454 : vector<8x84xf32>
    %582 = arith.addf %578, %581 : vector<8x84xf32>
    %c26_83 = arith.constant 26 : index
    %583 = memref.load %arg7[%c26_83] : memref<288xf32, #tpu.memory_space<smem>>
    %584 = vector.broadcast %583 : f32 to vector<8x84xf32>
    %585 = arith.mulf %584, %456 : vector<8x84xf32>
    %586 = arith.addf %582, %585 : vector<8x84xf32>
    %c27_84 = arith.constant 27 : index
    %587 = memref.load %arg7[%c27_84] : memref<288xf32, #tpu.memory_space<smem>>
    %588 = vector.broadcast %587 : f32 to vector<8x84xf32>
    %589 = arith.mulf %588, %458 : vector<8x84xf32>
    %590 = arith.addf %586, %589 : vector<8x84xf32>
    %c28_85 = arith.constant 28 : index
    %591 = memref.load %arg7[%c28_85] : memref<288xf32, #tpu.memory_space<smem>>
    %592 = vector.broadcast %591 : f32 to vector<8x84xf32>
    %593 = arith.mulf %592, %460 : vector<8x84xf32>
    %594 = arith.addf %590, %593 : vector<8x84xf32>
    %c29_86 = arith.constant 29 : index
    %595 = memref.load %arg7[%c29_86] : memref<288xf32, #tpu.memory_space<smem>>
    %596 = vector.broadcast %595 : f32 to vector<8x84xf32>
    %597 = arith.mulf %596, %462 : vector<8x84xf32>
    %598 = arith.addf %594, %597 : vector<8x84xf32>
    %c30_87 = arith.constant 30 : index
    %599 = memref.load %arg7[%c30_87] : memref<288xf32, #tpu.memory_space<smem>>
    %600 = vector.broadcast %599 : f32 to vector<8x84xf32>
    %601 = arith.mulf %600, %464 : vector<8x84xf32>
    %602 = arith.addf %598, %601 : vector<8x84xf32>
    %c31_88 = arith.constant 31 : index
    %603 = memref.load %arg7[%c31_88] : memref<288xf32, #tpu.memory_space<smem>>
    %604 = vector.broadcast %603 : f32 to vector<8x84xf32>
    %605 = arith.mulf %604, %466 : vector<8x84xf32>
    %606 = arith.addf %602, %605 : vector<8x84xf32>
    %c32_89 = arith.constant 32 : index
    %607 = memref.load %arg7[%c32_89] : memref<288xf32, #tpu.memory_space<smem>>
    %608 = vector.broadcast %607 : f32 to vector<8x84xf32>
    %609 = arith.mulf %608, %468 : vector<8x84xf32>
    %610 = arith.addf %606, %609 : vector<8x84xf32>
    %c33_90 = arith.constant 33 : index
    %611 = memref.load %arg7[%c33_90] : memref<288xf32, #tpu.memory_space<smem>>
    %612 = vector.broadcast %611 : f32 to vector<8x84xf32>
    %613 = arith.mulf %612, %470 : vector<8x84xf32>
    %614 = arith.addf %610, %613 : vector<8x84xf32>
    %c34_91 = arith.constant 34 : index
    %615 = memref.load %arg7[%c34_91] : memref<288xf32, #tpu.memory_space<smem>>
    %616 = vector.broadcast %615 : f32 to vector<8x84xf32>
    %617 = arith.mulf %616, %472 : vector<8x84xf32>
    %618 = arith.addf %614, %617 : vector<8x84xf32>
    %c35_92 = arith.constant 35 : index
    %619 = memref.load %arg7[%c35_92] : memref<288xf32, #tpu.memory_space<smem>>
    %620 = vector.broadcast %619 : f32 to vector<8x84xf32>
    %621 = arith.mulf %620, %474 : vector<8x84xf32>
    %622 = arith.addf %618, %621 : vector<8x84xf32>
    %c0_93 = arith.constant 0 : index
    %623 = memref.load %arg8[%c0_93] : memref<8xf32, #tpu.memory_space<smem>>
    %624 = vector.broadcast %623 : f32 to vector<8x84xf32>
    %625 = arith.addf %622, %624 : vector<8x84xf32>
    %cst_94 = arith.constant 0.000000e+00 : f32
    %626 = vector.broadcast %cst_94 : f32 to vector<8x84xf32>
    %627 = arith.maximumf %625, %626 : vector<8x84xf32>
    %cst_95 = arith.constant dense<0.000000e+00> : vector<8xf32>
    %628 = vector.multi_reduction <add>, %627, %cst_95 [1] : vector<8x84xf32> to vector<8xf32>
    %629 = vector.shape_cast %628 : vector<8xf32> to vector<8x1xf32>
    %cst_96 = arith.constant dense<0.000000e+00> : vector<1xf32>
    %630 = vector.multi_reduction <add>, %629, %cst_96 [0] : vector<8x1xf32> to vector<1xf32>
    %631 = vector.shape_cast %630 : vector<1xf32> to vector<1x1xf32>
    %cst_97 = arith.constant 0.0148809524 : f32
    %632 = vector.broadcast %cst_97 : f32 to vector<1x1xf32>
    %633 = arith.mulf %631, %632 : vector<1x1xf32>
    %c0_98 = arith.constant 0 : index
    %c0_99 = arith.constant 0 : index
    %634 = vector.load %arg9[%c0_98, %c0_99] : memref<8x24xf32, #tpu.memory_space<vmem>>, vector<1x24xf32>
    %635 = vector.broadcast %633 : vector<1x1xf32> to vector<1x24xf32>
    %636 = arith.mulf %635, %634 : vector<1x24xf32>
    %637 = arith.addf %477, %636 : vector<1x24xf32>
    %cst_100 = arith.constant 0.000000e+00 : f32
    %638 = vector.broadcast %cst_100 : f32 to vector<8x84xf32>
    %c36_101 = arith.constant 36 : index
    %639 = memref.load %arg7[%c36_101] : memref<288xf32, #tpu.memory_space<smem>>
    %640 = vector.broadcast %639 : f32 to vector<8x84xf32>
    %641 = arith.mulf %640, %404 : vector<8x84xf32>
    %642 = arith.addf %638, %641 : vector<8x84xf32>
    %c37_102 = arith.constant 37 : index
    %643 = memref.load %arg7[%c37_102] : memref<288xf32, #tpu.memory_space<smem>>
    %644 = vector.broadcast %643 : f32 to vector<8x84xf32>
    %645 = arith.mulf %644, %406 : vector<8x84xf32>
    %646 = arith.addf %642, %645 : vector<8x84xf32>
    %c38_103 = arith.constant 38 : index
    %647 = memref.load %arg7[%c38_103] : memref<288xf32, #tpu.memory_space<smem>>
    %648 = vector.broadcast %647 : f32 to vector<8x84xf32>
    %649 = arith.mulf %648, %408 : vector<8x84xf32>
    %650 = arith.addf %646, %649 : vector<8x84xf32>
    %c39_104 = arith.constant 39 : index
    %651 = memref.load %arg7[%c39_104] : memref<288xf32, #tpu.memory_space<smem>>
    %652 = vector.broadcast %651 : f32 to vector<8x84xf32>
    %653 = arith.mulf %652, %410 : vector<8x84xf32>
    %654 = arith.addf %650, %653 : vector<8x84xf32>
    %c40_105 = arith.constant 40 : index
    %655 = memref.load %arg7[%c40_105] : memref<288xf32, #tpu.memory_space<smem>>
    %656 = vector.broadcast %655 : f32 to vector<8x84xf32>
    %657 = arith.mulf %656, %412 : vector<8x84xf32>
    %658 = arith.addf %654, %657 : vector<8x84xf32>
    %c41_106 = arith.constant 41 : index
    %659 = memref.load %arg7[%c41_106] : memref<288xf32, #tpu.memory_space<smem>>
    %660 = vector.broadcast %659 : f32 to vector<8x84xf32>
    %661 = arith.mulf %660, %414 : vector<8x84xf32>
    %662 = arith.addf %658, %661 : vector<8x84xf32>
    %c42_107 = arith.constant 42 : index
    %663 = memref.load %arg7[%c42_107] : memref<288xf32, #tpu.memory_space<smem>>
    %664 = vector.broadcast %663 : f32 to vector<8x84xf32>
    %665 = arith.mulf %664, %416 : vector<8x84xf32>
    %666 = arith.addf %662, %665 : vector<8x84xf32>
    %c43_108 = arith.constant 43 : index
    %667 = memref.load %arg7[%c43_108] : memref<288xf32, #tpu.memory_space<smem>>
    %668 = vector.broadcast %667 : f32 to vector<8x84xf32>
    %669 = arith.mulf %668, %418 : vector<8x84xf32>
    %670 = arith.addf %666, %669 : vector<8x84xf32>
    %c44_109 = arith.constant 44 : index
    %671 = memref.load %arg7[%c44_109] : memref<288xf32, #tpu.memory_space<smem>>
    %672 = vector.broadcast %671 : f32 to vector<8x84xf32>
    %673 = arith.mulf %672, %420 : vector<8x84xf32>
    %674 = arith.addf %670, %673 : vector<8x84xf32>
    %c45_110 = arith.constant 45 : index
    %675 = memref.load %arg7[%c45_110] : memref<288xf32, #tpu.memory_space<smem>>
    %676 = vector.broadcast %675 : f32 to vector<8x84xf32>
    %677 = arith.mulf %676, %422 : vector<8x84xf32>
    %678 = arith.addf %674, %677 : vector<8x84xf32>
    %c46_111 = arith.constant 46 : index
    %679 = memref.load %arg7[%c46_111] : memref<288xf32, #tpu.memory_space<smem>>
    %680 = vector.broadcast %679 : f32 to vector<8x84xf32>
    %681 = arith.mulf %680, %424 : vector<8x84xf32>
    %682 = arith.addf %678, %681 : vector<8x84xf32>
    %c47_112 = arith.constant 47 : index
    %683 = memref.load %arg7[%c47_112] : memref<288xf32, #tpu.memory_space<smem>>
    %684 = vector.broadcast %683 : f32 to vector<8x84xf32>
    %685 = arith.mulf %684, %426 : vector<8x84xf32>
    %686 = arith.addf %682, %685 : vector<8x84xf32>
    %c48_113 = arith.constant 48 : index
    %687 = memref.load %arg7[%c48_113] : memref<288xf32, #tpu.memory_space<smem>>
    %688 = vector.broadcast %687 : f32 to vector<8x84xf32>
    %689 = arith.mulf %688, %428 : vector<8x84xf32>
    %690 = arith.addf %686, %689 : vector<8x84xf32>
    %c49_114 = arith.constant 49 : index
    %691 = memref.load %arg7[%c49_114] : memref<288xf32, #tpu.memory_space<smem>>
    %692 = vector.broadcast %691 : f32 to vector<8x84xf32>
    %693 = arith.mulf %692, %430 : vector<8x84xf32>
    %694 = arith.addf %690, %693 : vector<8x84xf32>
    %c50_115 = arith.constant 50 : index
    %695 = memref.load %arg7[%c50_115] : memref<288xf32, #tpu.memory_space<smem>>
    %696 = vector.broadcast %695 : f32 to vector<8x84xf32>
    %697 = arith.mulf %696, %432 : vector<8x84xf32>
    %698 = arith.addf %694, %697 : vector<8x84xf32>
    %c51_116 = arith.constant 51 : index
    %699 = memref.load %arg7[%c51_116] : memref<288xf32, #tpu.memory_space<smem>>
    %700 = vector.broadcast %699 : f32 to vector<8x84xf32>
    %701 = arith.mulf %700, %434 : vector<8x84xf32>
    %702 = arith.addf %698, %701 : vector<8x84xf32>
    %c52_117 = arith.constant 52 : index
    %703 = memref.load %arg7[%c52_117] : memref<288xf32, #tpu.memory_space<smem>>
    %704 = vector.broadcast %703 : f32 to vector<8x84xf32>
    %705 = arith.mulf %704, %436 : vector<8x84xf32>
    %706 = arith.addf %702, %705 : vector<8x84xf32>
    %c53_118 = arith.constant 53 : index
    %707 = memref.load %arg7[%c53_118] : memref<288xf32, #tpu.memory_space<smem>>
    %708 = vector.broadcast %707 : f32 to vector<8x84xf32>
    %709 = arith.mulf %708, %438 : vector<8x84xf32>
    %710 = arith.addf %706, %709 : vector<8x84xf32>
    %c54_119 = arith.constant 54 : index
    %711 = memref.load %arg7[%c54_119] : memref<288xf32, #tpu.memory_space<smem>>
    %712 = vector.broadcast %711 : f32 to vector<8x84xf32>
    %713 = arith.mulf %712, %440 : vector<8x84xf32>
    %714 = arith.addf %710, %713 : vector<8x84xf32>
    %c55_120 = arith.constant 55 : index
    %715 = memref.load %arg7[%c55_120] : memref<288xf32, #tpu.memory_space<smem>>
    %716 = vector.broadcast %715 : f32 to vector<8x84xf32>
    %717 = arith.mulf %716, %442 : vector<8x84xf32>
    %718 = arith.addf %714, %717 : vector<8x84xf32>
    %c56_121 = arith.constant 56 : index
    %719 = memref.load %arg7[%c56_121] : memref<288xf32, #tpu.memory_space<smem>>
    %720 = vector.broadcast %719 : f32 to vector<8x84xf32>
    %721 = arith.mulf %720, %444 : vector<8x84xf32>
    %722 = arith.addf %718, %721 : vector<8x84xf32>
    %c57_122 = arith.constant 57 : index
    %723 = memref.load %arg7[%c57_122] : memref<288xf32, #tpu.memory_space<smem>>
    %724 = vector.broadcast %723 : f32 to vector<8x84xf32>
    %725 = arith.mulf %724, %446 : vector<8x84xf32>
    %726 = arith.addf %722, %725 : vector<8x84xf32>
    %c58_123 = arith.constant 58 : index
    %727 = memref.load %arg7[%c58_123] : memref<288xf32, #tpu.memory_space<smem>>
    %728 = vector.broadcast %727 : f32 to vector<8x84xf32>
    %729 = arith.mulf %728, %448 : vector<8x84xf32>
    %730 = arith.addf %726, %729 : vector<8x84xf32>
    %c59_124 = arith.constant 59 : index
    %731 = memref.load %arg7[%c59_124] : memref<288xf32, #tpu.memory_space<smem>>
    %732 = vector.broadcast %731 : f32 to vector<8x84xf32>
    %733 = arith.mulf %732, %450 : vector<8x84xf32>
    %734 = arith.addf %730, %733 : vector<8x84xf32>
    %c60_125 = arith.constant 60 : index
    %735 = memref.load %arg7[%c60_125] : memref<288xf32, #tpu.memory_space<smem>>
    %736 = vector.broadcast %735 : f32 to vector<8x84xf32>
    %737 = arith.mulf %736, %452 : vector<8x84xf32>
    %738 = arith.addf %734, %737 : vector<8x84xf32>
    %c61_126 = arith.constant 61 : index
    %739 = memref.load %arg7[%c61_126] : memref<288xf32, #tpu.memory_space<smem>>
    %740 = vector.broadcast %739 : f32 to vector<8x84xf32>
    %741 = arith.mulf %740, %454 : vector<8x84xf32>
    %742 = arith.addf %738, %741 : vector<8x84xf32>
    %c62_127 = arith.constant 62 : index
    %743 = memref.load %arg7[%c62_127] : memref<288xf32, #tpu.memory_space<smem>>
    %744 = vector.broadcast %743 : f32 to vector<8x84xf32>
    %745 = arith.mulf %744, %456 : vector<8x84xf32>
    %746 = arith.addf %742, %745 : vector<8x84xf32>
    %c63_128 = arith.constant 63 : index
    %747 = memref.load %arg7[%c63_128] : memref<288xf32, #tpu.memory_space<smem>>
    %748 = vector.broadcast %747 : f32 to vector<8x84xf32>
    %749 = arith.mulf %748, %458 : vector<8x84xf32>
    %750 = arith.addf %746, %749 : vector<8x84xf32>
    %c64_129 = arith.constant 64 : index
    %751 = memref.load %arg7[%c64_129] : memref<288xf32, #tpu.memory_space<smem>>
    %752 = vector.broadcast %751 : f32 to vector<8x84xf32>
    %753 = arith.mulf %752, %460 : vector<8x84xf32>
    %754 = arith.addf %750, %753 : vector<8x84xf32>
    %c65_130 = arith.constant 65 : index
    %755 = memref.load %arg7[%c65_130] : memref<288xf32, #tpu.memory_space<smem>>
    %756 = vector.broadcast %755 : f32 to vector<8x84xf32>
    %757 = arith.mulf %756, %462 : vector<8x84xf32>
    %758 = arith.addf %754, %757 : vector<8x84xf32>
    %c66_131 = arith.constant 66 : index
    %759 = memref.load %arg7[%c66_131] : memref<288xf32, #tpu.memory_space<smem>>
    %760 = vector.broadcast %759 : f32 to vector<8x84xf32>
    %761 = arith.mulf %760, %464 : vector<8x84xf32>
    %762 = arith.addf %758, %761 : vector<8x84xf32>
    %c67_132 = arith.constant 67 : index
    %763 = memref.load %arg7[%c67_132] : memref<288xf32, #tpu.memory_space<smem>>
    %764 = vector.broadcast %763 : f32 to vector<8x84xf32>
    %765 = arith.mulf %764, %466 : vector<8x84xf32>
    %766 = arith.addf %762, %765 : vector<8x84xf32>
    %c68_133 = arith.constant 68 : index
    %767 = memref.load %arg7[%c68_133] : memref<288xf32, #tpu.memory_space<smem>>
    %768 = vector.broadcast %767 : f32 to vector<8x84xf32>
    %769 = arith.mulf %768, %468 : vector<8x84xf32>
    %770 = arith.addf %766, %769 : vector<8x84xf32>
    %c69_134 = arith.constant 69 : index
    %771 = memref.load %arg7[%c69_134] : memref<288xf32, #tpu.memory_space<smem>>
    %772 = vector.broadcast %771 : f32 to vector<8x84xf32>
    %773 = arith.mulf %772, %470 : vector<8x84xf32>
    %774 = arith.addf %770, %773 : vector<8x84xf32>
    %c70_135 = arith.constant 70 : index
    %775 = memref.load %arg7[%c70_135] : memref<288xf32, #tpu.memory_space<smem>>
    %776 = vector.broadcast %775 : f32 to vector<8x84xf32>
    %777 = arith.mulf %776, %472 : vector<8x84xf32>
    %778 = arith.addf %774, %777 : vector<8x84xf32>
    %c71_136 = arith.constant 71 : index
    %779 = memref.load %arg7[%c71_136] : memref<288xf32, #tpu.memory_space<smem>>
    %780 = vector.broadcast %779 : f32 to vector<8x84xf32>
    %781 = arith.mulf %780, %474 : vector<8x84xf32>
    %782 = arith.addf %778, %781 : vector<8x84xf32>
    %c1_137 = arith.constant 1 : index
    %783 = memref.load %arg8[%c1_137] : memref<8xf32, #tpu.memory_space<smem>>
    %784 = vector.broadcast %783 : f32 to vector<8x84xf32>
    %785 = arith.addf %782, %784 : vector<8x84xf32>
    %cst_138 = arith.constant 0.000000e+00 : f32
    %786 = vector.broadcast %cst_138 : f32 to vector<8x84xf32>
    %787 = arith.maximumf %785, %786 : vector<8x84xf32>
    %cst_139 = arith.constant dense<0.000000e+00> : vector<8xf32>
    %788 = vector.multi_reduction <add>, %787, %cst_139 [1] : vector<8x84xf32> to vector<8xf32>
    %789 = vector.shape_cast %788 : vector<8xf32> to vector<8x1xf32>
    %cst_140 = arith.constant dense<0.000000e+00> : vector<1xf32>
    %790 = vector.multi_reduction <add>, %789, %cst_140 [0] : vector<8x1xf32> to vector<1xf32>
    %791 = vector.shape_cast %790 : vector<1xf32> to vector<1x1xf32>
    %cst_141 = arith.constant 0.0148809524 : f32
    %792 = vector.broadcast %cst_141 : f32 to vector<1x1xf32>
    %793 = arith.mulf %791, %792 : vector<1x1xf32>
    %c1_142 = arith.constant 1 : index
    %c0_143 = arith.constant 0 : index
    %794 = vector.load %arg9[%c1_142, %c0_143] : memref<8x24xf32, #tpu.memory_space<vmem>>, vector<1x24xf32>
    %795 = vector.broadcast %793 : vector<1x1xf32> to vector<1x24xf32>
    %796 = arith.mulf %795, %794 : vector<1x24xf32>
    %797 = arith.addf %637, %796 : vector<1x24xf32>
    %cst_144 = arith.constant 0.000000e+00 : f32
    %798 = vector.broadcast %cst_144 : f32 to vector<8x84xf32>
    %c72 = arith.constant 72 : index
    %799 = memref.load %arg7[%c72] : memref<288xf32, #tpu.memory_space<smem>>
    %800 = vector.broadcast %799 : f32 to vector<8x84xf32>
    %801 = arith.mulf %800, %404 : vector<8x84xf32>
    %802 = arith.addf %798, %801 : vector<8x84xf32>
    %c73 = arith.constant 73 : index
    %803 = memref.load %arg7[%c73] : memref<288xf32, #tpu.memory_space<smem>>
    %804 = vector.broadcast %803 : f32 to vector<8x84xf32>
    %805 = arith.mulf %804, %406 : vector<8x84xf32>
    %806 = arith.addf %802, %805 : vector<8x84xf32>
    %c74 = arith.constant 74 : index
    %807 = memref.load %arg7[%c74] : memref<288xf32, #tpu.memory_space<smem>>
    %808 = vector.broadcast %807 : f32 to vector<8x84xf32>
    %809 = arith.mulf %808, %408 : vector<8x84xf32>
    %810 = arith.addf %806, %809 : vector<8x84xf32>
    %c75 = arith.constant 75 : index
    %811 = memref.load %arg7[%c75] : memref<288xf32, #tpu.memory_space<smem>>
    %812 = vector.broadcast %811 : f32 to vector<8x84xf32>
    %813 = arith.mulf %812, %410 : vector<8x84xf32>
    %814 = arith.addf %810, %813 : vector<8x84xf32>
    %c76 = arith.constant 76 : index
    %815 = memref.load %arg7[%c76] : memref<288xf32, #tpu.memory_space<smem>>
    %816 = vector.broadcast %815 : f32 to vector<8x84xf32>
    %817 = arith.mulf %816, %412 : vector<8x84xf32>
    %818 = arith.addf %814, %817 : vector<8x84xf32>
    %c77 = arith.constant 77 : index
    %819 = memref.load %arg7[%c77] : memref<288xf32, #tpu.memory_space<smem>>
    %820 = vector.broadcast %819 : f32 to vector<8x84xf32>
    %821 = arith.mulf %820, %414 : vector<8x84xf32>
    %822 = arith.addf %818, %821 : vector<8x84xf32>
    %c78 = arith.constant 78 : index
    %823 = memref.load %arg7[%c78] : memref<288xf32, #tpu.memory_space<smem>>
    %824 = vector.broadcast %823 : f32 to vector<8x84xf32>
    %825 = arith.mulf %824, %416 : vector<8x84xf32>
    %826 = arith.addf %822, %825 : vector<8x84xf32>
    %c79 = arith.constant 79 : index
    %827 = memref.load %arg7[%c79] : memref<288xf32, #tpu.memory_space<smem>>
    %828 = vector.broadcast %827 : f32 to vector<8x84xf32>
    %829 = arith.mulf %828, %418 : vector<8x84xf32>
    %830 = arith.addf %826, %829 : vector<8x84xf32>
    %c80 = arith.constant 80 : index
    %831 = memref.load %arg7[%c80] : memref<288xf32, #tpu.memory_space<smem>>
    %832 = vector.broadcast %831 : f32 to vector<8x84xf32>
    %833 = arith.mulf %832, %420 : vector<8x84xf32>
    %834 = arith.addf %830, %833 : vector<8x84xf32>
    %c81 = arith.constant 81 : index
    %835 = memref.load %arg7[%c81] : memref<288xf32, #tpu.memory_space<smem>>
    %836 = vector.broadcast %835 : f32 to vector<8x84xf32>
    %837 = arith.mulf %836, %422 : vector<8x84xf32>
    %838 = arith.addf %834, %837 : vector<8x84xf32>
    %c82 = arith.constant 82 : index
    %839 = memref.load %arg7[%c82] : memref<288xf32, #tpu.memory_space<smem>>
    %840 = vector.broadcast %839 : f32 to vector<8x84xf32>
    %841 = arith.mulf %840, %424 : vector<8x84xf32>
    %842 = arith.addf %838, %841 : vector<8x84xf32>
    %c83 = arith.constant 83 : index
    %843 = memref.load %arg7[%c83] : memref<288xf32, #tpu.memory_space<smem>>
    %844 = vector.broadcast %843 : f32 to vector<8x84xf32>
    %845 = arith.mulf %844, %426 : vector<8x84xf32>
    %846 = arith.addf %842, %845 : vector<8x84xf32>
    %c84 = arith.constant 84 : index
    %847 = memref.load %arg7[%c84] : memref<288xf32, #tpu.memory_space<smem>>
    %848 = vector.broadcast %847 : f32 to vector<8x84xf32>
    %849 = arith.mulf %848, %428 : vector<8x84xf32>
    %850 = arith.addf %846, %849 : vector<8x84xf32>
    %c85 = arith.constant 85 : index
    %851 = memref.load %arg7[%c85] : memref<288xf32, #tpu.memory_space<smem>>
    %852 = vector.broadcast %851 : f32 to vector<8x84xf32>
    %853 = arith.mulf %852, %430 : vector<8x84xf32>
    %854 = arith.addf %850, %853 : vector<8x84xf32>
    %c86 = arith.constant 86 : index
    %855 = memref.load %arg7[%c86] : memref<288xf32, #tpu.memory_space<smem>>
    %856 = vector.broadcast %855 : f32 to vector<8x84xf32>
    %857 = arith.mulf %856, %432 : vector<8x84xf32>
    %858 = arith.addf %854, %857 : vector<8x84xf32>
    %c87 = arith.constant 87 : index
    %859 = memref.load %arg7[%c87] : memref<288xf32, #tpu.memory_space<smem>>
    %860 = vector.broadcast %859 : f32 to vector<8x84xf32>
    %861 = arith.mulf %860, %434 : vector<8x84xf32>
    %862 = arith.addf %858, %861 : vector<8x84xf32>
    %c88 = arith.constant 88 : index
    %863 = memref.load %arg7[%c88] : memref<288xf32, #tpu.memory_space<smem>>
    %864 = vector.broadcast %863 : f32 to vector<8x84xf32>
    %865 = arith.mulf %864, %436 : vector<8x84xf32>
    %866 = arith.addf %862, %865 : vector<8x84xf32>
    %c89 = arith.constant 89 : index
    %867 = memref.load %arg7[%c89] : memref<288xf32, #tpu.memory_space<smem>>
    %868 = vector.broadcast %867 : f32 to vector<8x84xf32>
    %869 = arith.mulf %868, %438 : vector<8x84xf32>
    %870 = arith.addf %866, %869 : vector<8x84xf32>
    %c90 = arith.constant 90 : index
    %871 = memref.load %arg7[%c90] : memref<288xf32, #tpu.memory_space<smem>>
    %872 = vector.broadcast %871 : f32 to vector<8x84xf32>
    %873 = arith.mulf %872, %440 : vector<8x84xf32>
    %874 = arith.addf %870, %873 : vector<8x84xf32>
    %c91 = arith.constant 91 : index
    %875 = memref.load %arg7[%c91] : memref<288xf32, #tpu.memory_space<smem>>
    %876 = vector.broadcast %875 : f32 to vector<8x84xf32>
    %877 = arith.mulf %876, %442 : vector<8x84xf32>
    %878 = arith.addf %874, %877 : vector<8x84xf32>
    %c92 = arith.constant 92 : index
    %879 = memref.load %arg7[%c92] : memref<288xf32, #tpu.memory_space<smem>>
    %880 = vector.broadcast %879 : f32 to vector<8x84xf32>
    %881 = arith.mulf %880, %444 : vector<8x84xf32>
    %882 = arith.addf %878, %881 : vector<8x84xf32>
    %c93 = arith.constant 93 : index
    %883 = memref.load %arg7[%c93] : memref<288xf32, #tpu.memory_space<smem>>
    %884 = vector.broadcast %883 : f32 to vector<8x84xf32>
    %885 = arith.mulf %884, %446 : vector<8x84xf32>
    %886 = arith.addf %882, %885 : vector<8x84xf32>
    %c94 = arith.constant 94 : index
    %887 = memref.load %arg7[%c94] : memref<288xf32, #tpu.memory_space<smem>>
    %888 = vector.broadcast %887 : f32 to vector<8x84xf32>
    %889 = arith.mulf %888, %448 : vector<8x84xf32>
    %890 = arith.addf %886, %889 : vector<8x84xf32>
    %c95 = arith.constant 95 : index
    %891 = memref.load %arg7[%c95] : memref<288xf32, #tpu.memory_space<smem>>
    %892 = vector.broadcast %891 : f32 to vector<8x84xf32>
    %893 = arith.mulf %892, %450 : vector<8x84xf32>
    %894 = arith.addf %890, %893 : vector<8x84xf32>
    %c96 = arith.constant 96 : index
    %895 = memref.load %arg7[%c96] : memref<288xf32, #tpu.memory_space<smem>>
    %896 = vector.broadcast %895 : f32 to vector<8x84xf32>
    %897 = arith.mulf %896, %452 : vector<8x84xf32>
    %898 = arith.addf %894, %897 : vector<8x84xf32>
    %c97 = arith.constant 97 : index
    %899 = memref.load %arg7[%c97] : memref<288xf32, #tpu.memory_space<smem>>
    %900 = vector.broadcast %899 : f32 to vector<8x84xf32>
    %901 = arith.mulf %900, %454 : vector<8x84xf32>
    %902 = arith.addf %898, %901 : vector<8x84xf32>
    %c98 = arith.constant 98 : index
    %903 = memref.load %arg7[%c98] : memref<288xf32, #tpu.memory_space<smem>>
    %904 = vector.broadcast %903 : f32 to vector<8x84xf32>
    %905 = arith.mulf %904, %456 : vector<8x84xf32>
    %906 = arith.addf %902, %905 : vector<8x84xf32>
    %c99 = arith.constant 99 : index
    %907 = memref.load %arg7[%c99] : memref<288xf32, #tpu.memory_space<smem>>
    %908 = vector.broadcast %907 : f32 to vector<8x84xf32>
    %909 = arith.mulf %908, %458 : vector<8x84xf32>
    %910 = arith.addf %906, %909 : vector<8x84xf32>
    %c100 = arith.constant 100 : index
    %911 = memref.load %arg7[%c100] : memref<288xf32, #tpu.memory_space<smem>>
    %912 = vector.broadcast %911 : f32 to vector<8x84xf32>
    %913 = arith.mulf %912, %460 : vector<8x84xf32>
    %914 = arith.addf %910, %913 : vector<8x84xf32>
    %c101 = arith.constant 101 : index
    %915 = memref.load %arg7[%c101] : memref<288xf32, #tpu.memory_space<smem>>
    %916 = vector.broadcast %915 : f32 to vector<8x84xf32>
    %917 = arith.mulf %916, %462 : vector<8x84xf32>
    %918 = arith.addf %914, %917 : vector<8x84xf32>
    %c102 = arith.constant 102 : index
    %919 = memref.load %arg7[%c102] : memref<288xf32, #tpu.memory_space<smem>>
    %920 = vector.broadcast %919 : f32 to vector<8x84xf32>
    %921 = arith.mulf %920, %464 : vector<8x84xf32>
    %922 = arith.addf %918, %921 : vector<8x84xf32>
    %c103 = arith.constant 103 : index
    %923 = memref.load %arg7[%c103] : memref<288xf32, #tpu.memory_space<smem>>
    %924 = vector.broadcast %923 : f32 to vector<8x84xf32>
    %925 = arith.mulf %924, %466 : vector<8x84xf32>
    %926 = arith.addf %922, %925 : vector<8x84xf32>
    %c104 = arith.constant 104 : index
    %927 = memref.load %arg7[%c104] : memref<288xf32, #tpu.memory_space<smem>>
    %928 = vector.broadcast %927 : f32 to vector<8x84xf32>
    %929 = arith.mulf %928, %468 : vector<8x84xf32>
    %930 = arith.addf %926, %929 : vector<8x84xf32>
    %c105 = arith.constant 105 : index
    %931 = memref.load %arg7[%c105] : memref<288xf32, #tpu.memory_space<smem>>
    %932 = vector.broadcast %931 : f32 to vector<8x84xf32>
    %933 = arith.mulf %932, %470 : vector<8x84xf32>
    %934 = arith.addf %930, %933 : vector<8x84xf32>
    %c106 = arith.constant 106 : index
    %935 = memref.load %arg7[%c106] : memref<288xf32, #tpu.memory_space<smem>>
    %936 = vector.broadcast %935 : f32 to vector<8x84xf32>
    %937 = arith.mulf %936, %472 : vector<8x84xf32>
    %938 = arith.addf %934, %937 : vector<8x84xf32>
    %c107 = arith.constant 107 : index
    %939 = memref.load %arg7[%c107] : memref<288xf32, #tpu.memory_space<smem>>
    %940 = vector.broadcast %939 : f32 to vector<8x84xf32>
    %941 = arith.mulf %940, %474 : vector<8x84xf32>
    %942 = arith.addf %938, %941 : vector<8x84xf32>
    %c2_145 = arith.constant 2 : index
    %943 = memref.load %arg8[%c2_145] : memref<8xf32, #tpu.memory_space<smem>>
    %944 = vector.broadcast %943 : f32 to vector<8x84xf32>
    %945 = arith.addf %942, %944 : vector<8x84xf32>
    %cst_146 = arith.constant 0.000000e+00 : f32
    %946 = vector.broadcast %cst_146 : f32 to vector<8x84xf32>
    %947 = arith.maximumf %945, %946 : vector<8x84xf32>
    %cst_147 = arith.constant dense<0.000000e+00> : vector<8xf32>
    %948 = vector.multi_reduction <add>, %947, %cst_147 [1] : vector<8x84xf32> to vector<8xf32>
    %949 = vector.shape_cast %948 : vector<8xf32> to vector<8x1xf32>
    %cst_148 = arith.constant dense<0.000000e+00> : vector<1xf32>
    %950 = vector.multi_reduction <add>, %949, %cst_148 [0] : vector<8x1xf32> to vector<1xf32>
    %951 = vector.shape_cast %950 : vector<1xf32> to vector<1x1xf32>
    %cst_149 = arith.constant 0.0148809524 : f32
    %952 = vector.broadcast %cst_149 : f32 to vector<1x1xf32>
    %953 = arith.mulf %951, %952 : vector<1x1xf32>
    %c2_150 = arith.constant 2 : index
    %c0_151 = arith.constant 0 : index
    %954 = vector.load %arg9[%c2_150, %c0_151] : memref<8x24xf32, #tpu.memory_space<vmem>>, vector<1x24xf32>
    %955 = vector.broadcast %953 : vector<1x1xf32> to vector<1x24xf32>
    %956 = arith.mulf %955, %954 : vector<1x24xf32>
    %957 = arith.addf %797, %956 : vector<1x24xf32>
    %cst_152 = arith.constant 0.000000e+00 : f32
    %958 = vector.broadcast %cst_152 : f32 to vector<8x84xf32>
    %c108 = arith.constant 108 : index
    %959 = memref.load %arg7[%c108] : memref<288xf32, #tpu.memory_space<smem>>
    %960 = vector.broadcast %959 : f32 to vector<8x84xf32>
    %961 = arith.mulf %960, %404 : vector<8x84xf32>
    %962 = arith.addf %958, %961 : vector<8x84xf32>
    %c109 = arith.constant 109 : index
    %963 = memref.load %arg7[%c109] : memref<288xf32, #tpu.memory_space<smem>>
    %964 = vector.broadcast %963 : f32 to vector<8x84xf32>
    %965 = arith.mulf %964, %406 : vector<8x84xf32>
    %966 = arith.addf %962, %965 : vector<8x84xf32>
    %c110 = arith.constant 110 : index
    %967 = memref.load %arg7[%c110] : memref<288xf32, #tpu.memory_space<smem>>
    %968 = vector.broadcast %967 : f32 to vector<8x84xf32>
    %969 = arith.mulf %968, %408 : vector<8x84xf32>
    %970 = arith.addf %966, %969 : vector<8x84xf32>
    %c111 = arith.constant 111 : index
    %971 = memref.load %arg7[%c111] : memref<288xf32, #tpu.memory_space<smem>>
    %972 = vector.broadcast %971 : f32 to vector<8x84xf32>
    %973 = arith.mulf %972, %410 : vector<8x84xf32>
    %974 = arith.addf %970, %973 : vector<8x84xf32>
    %c112 = arith.constant 112 : index
    %975 = memref.load %arg7[%c112] : memref<288xf32, #tpu.memory_space<smem>>
    %976 = vector.broadcast %975 : f32 to vector<8x84xf32>
    %977 = arith.mulf %976, %412 : vector<8x84xf32>
    %978 = arith.addf %974, %977 : vector<8x84xf32>
    %c113 = arith.constant 113 : index
    %979 = memref.load %arg7[%c113] : memref<288xf32, #tpu.memory_space<smem>>
    %980 = vector.broadcast %979 : f32 to vector<8x84xf32>
    %981 = arith.mulf %980, %414 : vector<8x84xf32>
    %982 = arith.addf %978, %981 : vector<8x84xf32>
    %c114 = arith.constant 114 : index
    %983 = memref.load %arg7[%c114] : memref<288xf32, #tpu.memory_space<smem>>
    %984 = vector.broadcast %983 : f32 to vector<8x84xf32>
    %985 = arith.mulf %984, %416 : vector<8x84xf32>
    %986 = arith.addf %982, %985 : vector<8x84xf32>
    %c115 = arith.constant 115 : index
    %987 = memref.load %arg7[%c115] : memref<288xf32, #tpu.memory_space<smem>>
    %988 = vector.broadcast %987 : f32 to vector<8x84xf32>
    %989 = arith.mulf %988, %418 : vector<8x84xf32>
    %990 = arith.addf %986, %989 : vector<8x84xf32>
    %c116 = arith.constant 116 : index
    %991 = memref.load %arg7[%c116] : memref<288xf32, #tpu.memory_space<smem>>
    %992 = vector.broadcast %991 : f32 to vector<8x84xf32>
    %993 = arith.mulf %992, %420 : vector<8x84xf32>
    %994 = arith.addf %990, %993 : vector<8x84xf32>
    %c117 = arith.constant 117 : index
    %995 = memref.load %arg7[%c117] : memref<288xf32, #tpu.memory_space<smem>>
    %996 = vector.broadcast %995 : f32 to vector<8x84xf32>
    %997 = arith.mulf %996, %422 : vector<8x84xf32>
    %998 = arith.addf %994, %997 : vector<8x84xf32>
    %c118 = arith.constant 118 : index
    %999 = memref.load %arg7[%c118] : memref<288xf32, #tpu.memory_space<smem>>
    %1000 = vector.broadcast %999 : f32 to vector<8x84xf32>
    %1001 = arith.mulf %1000, %424 : vector<8x84xf32>
    %1002 = arith.addf %998, %1001 : vector<8x84xf32>
    %c119 = arith.constant 119 : index
    %1003 = memref.load %arg7[%c119] : memref<288xf32, #tpu.memory_space<smem>>
    %1004 = vector.broadcast %1003 : f32 to vector<8x84xf32>
    %1005 = arith.mulf %1004, %426 : vector<8x84xf32>
    %1006 = arith.addf %1002, %1005 : vector<8x84xf32>
    %c120 = arith.constant 120 : index
    %1007 = memref.load %arg7[%c120] : memref<288xf32, #tpu.memory_space<smem>>
    %1008 = vector.broadcast %1007 : f32 to vector<8x84xf32>
    %1009 = arith.mulf %1008, %428 : vector<8x84xf32>
    %1010 = arith.addf %1006, %1009 : vector<8x84xf32>
    %c121 = arith.constant 121 : index
    %1011 = memref.load %arg7[%c121] : memref<288xf32, #tpu.memory_space<smem>>
    %1012 = vector.broadcast %1011 : f32 to vector<8x84xf32>
    %1013 = arith.mulf %1012, %430 : vector<8x84xf32>
    %1014 = arith.addf %1010, %1013 : vector<8x84xf32>
    %c122 = arith.constant 122 : index
    %1015 = memref.load %arg7[%c122] : memref<288xf32, #tpu.memory_space<smem>>
    %1016 = vector.broadcast %1015 : f32 to vector<8x84xf32>
    %1017 = arith.mulf %1016, %432 : vector<8x84xf32>
    %1018 = arith.addf %1014, %1017 : vector<8x84xf32>
    %c123 = arith.constant 123 : index
    %1019 = memref.load %arg7[%c123] : memref<288xf32, #tpu.memory_space<smem>>
    %1020 = vector.broadcast %1019 : f32 to vector<8x84xf32>
    %1021 = arith.mulf %1020, %434 : vector<8x84xf32>
    %1022 = arith.addf %1018, %1021 : vector<8x84xf32>
    %c124 = arith.constant 124 : index
    %1023 = memref.load %arg7[%c124] : memref<288xf32, #tpu.memory_space<smem>>
    %1024 = vector.broadcast %1023 : f32 to vector<8x84xf32>
    %1025 = arith.mulf %1024, %436 : vector<8x84xf32>
    %1026 = arith.addf %1022, %1025 : vector<8x84xf32>
    %c125 = arith.constant 125 : index
    %1027 = memref.load %arg7[%c125] : memref<288xf32, #tpu.memory_space<smem>>
    %1028 = vector.broadcast %1027 : f32 to vector<8x84xf32>
    %1029 = arith.mulf %1028, %438 : vector<8x84xf32>
    %1030 = arith.addf %1026, %1029 : vector<8x84xf32>
    %c126 = arith.constant 126 : index
    %1031 = memref.load %arg7[%c126] : memref<288xf32, #tpu.memory_space<smem>>
    %1032 = vector.broadcast %1031 : f32 to vector<8x84xf32>
    %1033 = arith.mulf %1032, %440 : vector<8x84xf32>
    %1034 = arith.addf %1030, %1033 : vector<8x84xf32>
    %c127 = arith.constant 127 : index
    %1035 = memref.load %arg7[%c127] : memref<288xf32, #tpu.memory_space<smem>>
    %1036 = vector.broadcast %1035 : f32 to vector<8x84xf32>
    %1037 = arith.mulf %1036, %442 : vector<8x84xf32>
    %1038 = arith.addf %1034, %1037 : vector<8x84xf32>
    %c128 = arith.constant 128 : index
    %1039 = memref.load %arg7[%c128] : memref<288xf32, #tpu.memory_space<smem>>
    %1040 = vector.broadcast %1039 : f32 to vector<8x84xf32>
    %1041 = arith.mulf %1040, %444 : vector<8x84xf32>
    %1042 = arith.addf %1038, %1041 : vector<8x84xf32>
    %c129 = arith.constant 129 : index
    %1043 = memref.load %arg7[%c129] : memref<288xf32, #tpu.memory_space<smem>>
    %1044 = vector.broadcast %1043 : f32 to vector<8x84xf32>
    %1045 = arith.mulf %1044, %446 : vector<8x84xf32>
    %1046 = arith.addf %1042, %1045 : vector<8x84xf32>
    %c130 = arith.constant 130 : index
    %1047 = memref.load %arg7[%c130] : memref<288xf32, #tpu.memory_space<smem>>
    %1048 = vector.broadcast %1047 : f32 to vector<8x84xf32>
    %1049 = arith.mulf %1048, %448 : vector<8x84xf32>
    %1050 = arith.addf %1046, %1049 : vector<8x84xf32>
    %c131 = arith.constant 131 : index
    %1051 = memref.load %arg7[%c131] : memref<288xf32, #tpu.memory_space<smem>>
    %1052 = vector.broadcast %1051 : f32 to vector<8x84xf32>
    %1053 = arith.mulf %1052, %450 : vector<8x84xf32>
    %1054 = arith.addf %1050, %1053 : vector<8x84xf32>
    %c132 = arith.constant 132 : index
    %1055 = memref.load %arg7[%c132] : memref<288xf32, #tpu.memory_space<smem>>
    %1056 = vector.broadcast %1055 : f32 to vector<8x84xf32>
    %1057 = arith.mulf %1056, %452 : vector<8x84xf32>
    %1058 = arith.addf %1054, %1057 : vector<8x84xf32>
    %c133 = arith.constant 133 : index
    %1059 = memref.load %arg7[%c133] : memref<288xf32, #tpu.memory_space<smem>>
    %1060 = vector.broadcast %1059 : f32 to vector<8x84xf32>
    %1061 = arith.mulf %1060, %454 : vector<8x84xf32>
    %1062 = arith.addf %1058, %1061 : vector<8x84xf32>
    %c134 = arith.constant 134 : index
    %1063 = memref.load %arg7[%c134] : memref<288xf32, #tpu.memory_space<smem>>
    %1064 = vector.broadcast %1063 : f32 to vector<8x84xf32>
    %1065 = arith.mulf %1064, %456 : vector<8x84xf32>
    %1066 = arith.addf %1062, %1065 : vector<8x84xf32>
    %c135 = arith.constant 135 : index
    %1067 = memref.load %arg7[%c135] : memref<288xf32, #tpu.memory_space<smem>>
    %1068 = vector.broadcast %1067 : f32 to vector<8x84xf32>
    %1069 = arith.mulf %1068, %458 : vector<8x84xf32>
    %1070 = arith.addf %1066, %1069 : vector<8x84xf32>
    %c136 = arith.constant 136 : index
    %1071 = memref.load %arg7[%c136] : memref<288xf32, #tpu.memory_space<smem>>
    %1072 = vector.broadcast %1071 : f32 to vector<8x84xf32>
    %1073 = arith.mulf %1072, %460 : vector<8x84xf32>
    %1074 = arith.addf %1070, %1073 : vector<8x84xf32>
    %c137 = arith.constant 137 : index
    %1075 = memref.load %arg7[%c137] : memref<288xf32, #tpu.memory_space<smem>>
    %1076 = vector.broadcast %1075 : f32 to vector<8x84xf32>
    %1077 = arith.mulf %1076, %462 : vector<8x84xf32>
    %1078 = arith.addf %1074, %1077 : vector<8x84xf32>
    %c138 = arith.constant 138 : index
    %1079 = memref.load %arg7[%c138] : memref<288xf32, #tpu.memory_space<smem>>
    %1080 = vector.broadcast %1079 : f32 to vector<8x84xf32>
    %1081 = arith.mulf %1080, %464 : vector<8x84xf32>
    %1082 = arith.addf %1078, %1081 : vector<8x84xf32>
    %c139 = arith.constant 139 : index
    %1083 = memref.load %arg7[%c139] : memref<288xf32, #tpu.memory_space<smem>>
    %1084 = vector.broadcast %1083 : f32 to vector<8x84xf32>
    %1085 = arith.mulf %1084, %466 : vector<8x84xf32>
    %1086 = arith.addf %1082, %1085 : vector<8x84xf32>
    %c140 = arith.constant 140 : index
    %1087 = memref.load %arg7[%c140] : memref<288xf32, #tpu.memory_space<smem>>
    %1088 = vector.broadcast %1087 : f32 to vector<8x84xf32>
    %1089 = arith.mulf %1088, %468 : vector<8x84xf32>
    %1090 = arith.addf %1086, %1089 : vector<8x84xf32>
    %c141 = arith.constant 141 : index
    %1091 = memref.load %arg7[%c141] : memref<288xf32, #tpu.memory_space<smem>>
    %1092 = vector.broadcast %1091 : f32 to vector<8x84xf32>
    %1093 = arith.mulf %1092, %470 : vector<8x84xf32>
    %1094 = arith.addf %1090, %1093 : vector<8x84xf32>
    %c142 = arith.constant 142 : index
    %1095 = memref.load %arg7[%c142] : memref<288xf32, #tpu.memory_space<smem>>
    %1096 = vector.broadcast %1095 : f32 to vector<8x84xf32>
    %1097 = arith.mulf %1096, %472 : vector<8x84xf32>
    %1098 = arith.addf %1094, %1097 : vector<8x84xf32>
    %c143 = arith.constant 143 : index
    %1099 = memref.load %arg7[%c143] : memref<288xf32, #tpu.memory_space<smem>>
    %1100 = vector.broadcast %1099 : f32 to vector<8x84xf32>
    %1101 = arith.mulf %1100, %474 : vector<8x84xf32>
    %1102 = arith.addf %1098, %1101 : vector<8x84xf32>
    %c3_153 = arith.constant 3 : index
    %1103 = memref.load %arg8[%c3_153] : memref<8xf32, #tpu.memory_space<smem>>
    %1104 = vector.broadcast %1103 : f32 to vector<8x84xf32>
    %1105 = arith.addf %1102, %1104 : vector<8x84xf32>
    %cst_154 = arith.constant 0.000000e+00 : f32
    %1106 = vector.broadcast %cst_154 : f32 to vector<8x84xf32>
    %1107 = arith.maximumf %1105, %1106 : vector<8x84xf32>
    %cst_155 = arith.constant dense<0.000000e+00> : vector<8xf32>
    %1108 = vector.multi_reduction <add>, %1107, %cst_155 [1] : vector<8x84xf32> to vector<8xf32>
    %1109 = vector.shape_cast %1108 : vector<8xf32> to vector<8x1xf32>
    %cst_156 = arith.constant dense<0.000000e+00> : vector<1xf32>
    %1110 = vector.multi_reduction <add>, %1109, %cst_156 [0] : vector<8x1xf32> to vector<1xf32>
    %1111 = vector.shape_cast %1110 : vector<1xf32> to vector<1x1xf32>
    %cst_157 = arith.constant 0.0148809524 : f32
    %1112 = vector.broadcast %cst_157 : f32 to vector<1x1xf32>
    %1113 = arith.mulf %1111, %1112 : vector<1x1xf32>
    %c3_158 = arith.constant 3 : index
    %c0_159 = arith.constant 0 : index
    %1114 = vector.load %arg9[%c3_158, %c0_159] : memref<8x24xf32, #tpu.memory_space<vmem>>, vector<1x24xf32>
    %1115 = vector.broadcast %1113 : vector<1x1xf32> to vector<1x24xf32>
    %1116 = arith.mulf %1115, %1114 : vector<1x24xf32>
    %1117 = arith.addf %957, %1116 : vector<1x24xf32>
    %cst_160 = arith.constant 0.000000e+00 : f32
    %1118 = vector.broadcast %cst_160 : f32 to vector<8x84xf32>
    %c144 = arith.constant 144 : index
    %1119 = memref.load %arg7[%c144] : memref<288xf32, #tpu.memory_space<smem>>
    %1120 = vector.broadcast %1119 : f32 to vector<8x84xf32>
    %1121 = arith.mulf %1120, %404 : vector<8x84xf32>
    %1122 = arith.addf %1118, %1121 : vector<8x84xf32>
    %c145 = arith.constant 145 : index
    %1123 = memref.load %arg7[%c145] : memref<288xf32, #tpu.memory_space<smem>>
    %1124 = vector.broadcast %1123 : f32 to vector<8x84xf32>
    %1125 = arith.mulf %1124, %406 : vector<8x84xf32>
    %1126 = arith.addf %1122, %1125 : vector<8x84xf32>
    %c146 = arith.constant 146 : index
    %1127 = memref.load %arg7[%c146] : memref<288xf32, #tpu.memory_space<smem>>
    %1128 = vector.broadcast %1127 : f32 to vector<8x84xf32>
    %1129 = arith.mulf %1128, %408 : vector<8x84xf32>
    %1130 = arith.addf %1126, %1129 : vector<8x84xf32>
    %c147 = arith.constant 147 : index
    %1131 = memref.load %arg7[%c147] : memref<288xf32, #tpu.memory_space<smem>>
    %1132 = vector.broadcast %1131 : f32 to vector<8x84xf32>
    %1133 = arith.mulf %1132, %410 : vector<8x84xf32>
    %1134 = arith.addf %1130, %1133 : vector<8x84xf32>
    %c148 = arith.constant 148 : index
    %1135 = memref.load %arg7[%c148] : memref<288xf32, #tpu.memory_space<smem>>
    %1136 = vector.broadcast %1135 : f32 to vector<8x84xf32>
    %1137 = arith.mulf %1136, %412 : vector<8x84xf32>
    %1138 = arith.addf %1134, %1137 : vector<8x84xf32>
    %c149 = arith.constant 149 : index
    %1139 = memref.load %arg7[%c149] : memref<288xf32, #tpu.memory_space<smem>>
    %1140 = vector.broadcast %1139 : f32 to vector<8x84xf32>
    %1141 = arith.mulf %1140, %414 : vector<8x84xf32>
    %1142 = arith.addf %1138, %1141 : vector<8x84xf32>
    %c150 = arith.constant 150 : index
    %1143 = memref.load %arg7[%c150] : memref<288xf32, #tpu.memory_space<smem>>
    %1144 = vector.broadcast %1143 : f32 to vector<8x84xf32>
    %1145 = arith.mulf %1144, %416 : vector<8x84xf32>
    %1146 = arith.addf %1142, %1145 : vector<8x84xf32>
    %c151 = arith.constant 151 : index
    %1147 = memref.load %arg7[%c151] : memref<288xf32, #tpu.memory_space<smem>>
    %1148 = vector.broadcast %1147 : f32 to vector<8x84xf32>
    %1149 = arith.mulf %1148, %418 : vector<8x84xf32>
    %1150 = arith.addf %1146, %1149 : vector<8x84xf32>
    %c152 = arith.constant 152 : index
    %1151 = memref.load %arg7[%c152] : memref<288xf32, #tpu.memory_space<smem>>
    %1152 = vector.broadcast %1151 : f32 to vector<8x84xf32>
    %1153 = arith.mulf %1152, %420 : vector<8x84xf32>
    %1154 = arith.addf %1150, %1153 : vector<8x84xf32>
    %c153 = arith.constant 153 : index
    %1155 = memref.load %arg7[%c153] : memref<288xf32, #tpu.memory_space<smem>>
    %1156 = vector.broadcast %1155 : f32 to vector<8x84xf32>
    %1157 = arith.mulf %1156, %422 : vector<8x84xf32>
    %1158 = arith.addf %1154, %1157 : vector<8x84xf32>
    %c154 = arith.constant 154 : index
    %1159 = memref.load %arg7[%c154] : memref<288xf32, #tpu.memory_space<smem>>
    %1160 = vector.broadcast %1159 : f32 to vector<8x84xf32>
    %1161 = arith.mulf %1160, %424 : vector<8x84xf32>
    %1162 = arith.addf %1158, %1161 : vector<8x84xf32>
    %c155 = arith.constant 155 : index
    %1163 = memref.load %arg7[%c155] : memref<288xf32, #tpu.memory_space<smem>>
    %1164 = vector.broadcast %1163 : f32 to vector<8x84xf32>
    %1165 = arith.mulf %1164, %426 : vector<8x84xf32>
    %1166 = arith.addf %1162, %1165 : vector<8x84xf32>
    %c156 = arith.constant 156 : index
    %1167 = memref.load %arg7[%c156] : memref<288xf32, #tpu.memory_space<smem>>
    %1168 = vector.broadcast %1167 : f32 to vector<8x84xf32>
    %1169 = arith.mulf %1168, %428 : vector<8x84xf32>
    %1170 = arith.addf %1166, %1169 : vector<8x84xf32>
    %c157 = arith.constant 157 : index
    %1171 = memref.load %arg7[%c157] : memref<288xf32, #tpu.memory_space<smem>>
    %1172 = vector.broadcast %1171 : f32 to vector<8x84xf32>
    %1173 = arith.mulf %1172, %430 : vector<8x84xf32>
    %1174 = arith.addf %1170, %1173 : vector<8x84xf32>
    %c158 = arith.constant 158 : index
    %1175 = memref.load %arg7[%c158] : memref<288xf32, #tpu.memory_space<smem>>
    %1176 = vector.broadcast %1175 : f32 to vector<8x84xf32>
    %1177 = arith.mulf %1176, %432 : vector<8x84xf32>
    %1178 = arith.addf %1174, %1177 : vector<8x84xf32>
    %c159 = arith.constant 159 : index
    %1179 = memref.load %arg7[%c159] : memref<288xf32, #tpu.memory_space<smem>>
    %1180 = vector.broadcast %1179 : f32 to vector<8x84xf32>
    %1181 = arith.mulf %1180, %434 : vector<8x84xf32>
    %1182 = arith.addf %1178, %1181 : vector<8x84xf32>
    %c160 = arith.constant 160 : index
    %1183 = memref.load %arg7[%c160] : memref<288xf32, #tpu.memory_space<smem>>
    %1184 = vector.broadcast %1183 : f32 to vector<8x84xf32>
    %1185 = arith.mulf %1184, %436 : vector<8x84xf32>
    %1186 = arith.addf %1182, %1185 : vector<8x84xf32>
    %c161 = arith.constant 161 : index
    %1187 = memref.load %arg7[%c161] : memref<288xf32, #tpu.memory_space<smem>>
    %1188 = vector.broadcast %1187 : f32 to vector<8x84xf32>
    %1189 = arith.mulf %1188, %438 : vector<8x84xf32>
    %1190 = arith.addf %1186, %1189 : vector<8x84xf32>
    %c162 = arith.constant 162 : index
    %1191 = memref.load %arg7[%c162] : memref<288xf32, #tpu.memory_space<smem>>
    %1192 = vector.broadcast %1191 : f32 to vector<8x84xf32>
    %1193 = arith.mulf %1192, %440 : vector<8x84xf32>
    %1194 = arith.addf %1190, %1193 : vector<8x84xf32>
    %c163 = arith.constant 163 : index
    %1195 = memref.load %arg7[%c163] : memref<288xf32, #tpu.memory_space<smem>>
    %1196 = vector.broadcast %1195 : f32 to vector<8x84xf32>
    %1197 = arith.mulf %1196, %442 : vector<8x84xf32>
    %1198 = arith.addf %1194, %1197 : vector<8x84xf32>
    %c164 = arith.constant 164 : index
    %1199 = memref.load %arg7[%c164] : memref<288xf32, #tpu.memory_space<smem>>
    %1200 = vector.broadcast %1199 : f32 to vector<8x84xf32>
    %1201 = arith.mulf %1200, %444 : vector<8x84xf32>
    %1202 = arith.addf %1198, %1201 : vector<8x84xf32>
    %c165 = arith.constant 165 : index
    %1203 = memref.load %arg7[%c165] : memref<288xf32, #tpu.memory_space<smem>>
    %1204 = vector.broadcast %1203 : f32 to vector<8x84xf32>
    %1205 = arith.mulf %1204, %446 : vector<8x84xf32>
    %1206 = arith.addf %1202, %1205 : vector<8x84xf32>
    %c166 = arith.constant 166 : index
    %1207 = memref.load %arg7[%c166] : memref<288xf32, #tpu.memory_space<smem>>
    %1208 = vector.broadcast %1207 : f32 to vector<8x84xf32>
    %1209 = arith.mulf %1208, %448 : vector<8x84xf32>
    %1210 = arith.addf %1206, %1209 : vector<8x84xf32>
    %c167 = arith.constant 167 : index
    %1211 = memref.load %arg7[%c167] : memref<288xf32, #tpu.memory_space<smem>>
    %1212 = vector.broadcast %1211 : f32 to vector<8x84xf32>
    %1213 = arith.mulf %1212, %450 : vector<8x84xf32>
    %1214 = arith.addf %1210, %1213 : vector<8x84xf32>
    %c168 = arith.constant 168 : index
    %1215 = memref.load %arg7[%c168] : memref<288xf32, #tpu.memory_space<smem>>
    %1216 = vector.broadcast %1215 : f32 to vector<8x84xf32>
    %1217 = arith.mulf %1216, %452 : vector<8x84xf32>
    %1218 = arith.addf %1214, %1217 : vector<8x84xf32>
    %c169 = arith.constant 169 : index
    %1219 = memref.load %arg7[%c169] : memref<288xf32, #tpu.memory_space<smem>>
    %1220 = vector.broadcast %1219 : f32 to vector<8x84xf32>
    %1221 = arith.mulf %1220, %454 : vector<8x84xf32>
    %1222 = arith.addf %1218, %1221 : vector<8x84xf32>
    %c170 = arith.constant 170 : index
    %1223 = memref.load %arg7[%c170] : memref<288xf32, #tpu.memory_space<smem>>
    %1224 = vector.broadcast %1223 : f32 to vector<8x84xf32>
    %1225 = arith.mulf %1224, %456 : vector<8x84xf32>
    %1226 = arith.addf %1222, %1225 : vector<8x84xf32>
    %c171 = arith.constant 171 : index
    %1227 = memref.load %arg7[%c171] : memref<288xf32, #tpu.memory_space<smem>>
    %1228 = vector.broadcast %1227 : f32 to vector<8x84xf32>
    %1229 = arith.mulf %1228, %458 : vector<8x84xf32>
    %1230 = arith.addf %1226, %1229 : vector<8x84xf32>
    %c172 = arith.constant 172 : index
    %1231 = memref.load %arg7[%c172] : memref<288xf32, #tpu.memory_space<smem>>
    %1232 = vector.broadcast %1231 : f32 to vector<8x84xf32>
    %1233 = arith.mulf %1232, %460 : vector<8x84xf32>
    %1234 = arith.addf %1230, %1233 : vector<8x84xf32>
    %c173 = arith.constant 173 : index
    %1235 = memref.load %arg7[%c173] : memref<288xf32, #tpu.memory_space<smem>>
    %1236 = vector.broadcast %1235 : f32 to vector<8x84xf32>
    %1237 = arith.mulf %1236, %462 : vector<8x84xf32>
    %1238 = arith.addf %1234, %1237 : vector<8x84xf32>
    %c174 = arith.constant 174 : index
    %1239 = memref.load %arg7[%c174] : memref<288xf32, #tpu.memory_space<smem>>
    %1240 = vector.broadcast %1239 : f32 to vector<8x84xf32>
    %1241 = arith.mulf %1240, %464 : vector<8x84xf32>
    %1242 = arith.addf %1238, %1241 : vector<8x84xf32>
    %c175 = arith.constant 175 : index
    %1243 = memref.load %arg7[%c175] : memref<288xf32, #tpu.memory_space<smem>>
    %1244 = vector.broadcast %1243 : f32 to vector<8x84xf32>
    %1245 = arith.mulf %1244, %466 : vector<8x84xf32>
    %1246 = arith.addf %1242, %1245 : vector<8x84xf32>
    %c176 = arith.constant 176 : index
    %1247 = memref.load %arg7[%c176] : memref<288xf32, #tpu.memory_space<smem>>
    %1248 = vector.broadcast %1247 : f32 to vector<8x84xf32>
    %1249 = arith.mulf %1248, %468 : vector<8x84xf32>
    %1250 = arith.addf %1246, %1249 : vector<8x84xf32>
    %c177 = arith.constant 177 : index
    %1251 = memref.load %arg7[%c177] : memref<288xf32, #tpu.memory_space<smem>>
    %1252 = vector.broadcast %1251 : f32 to vector<8x84xf32>
    %1253 = arith.mulf %1252, %470 : vector<8x84xf32>
    %1254 = arith.addf %1250, %1253 : vector<8x84xf32>
    %c178 = arith.constant 178 : index
    %1255 = memref.load %arg7[%c178] : memref<288xf32, #tpu.memory_space<smem>>
    %1256 = vector.broadcast %1255 : f32 to vector<8x84xf32>
    %1257 = arith.mulf %1256, %472 : vector<8x84xf32>
    %1258 = arith.addf %1254, %1257 : vector<8x84xf32>
    %c179 = arith.constant 179 : index
    %1259 = memref.load %arg7[%c179] : memref<288xf32, #tpu.memory_space<smem>>
    %1260 = vector.broadcast %1259 : f32 to vector<8x84xf32>
    %1261 = arith.mulf %1260, %474 : vector<8x84xf32>
    %1262 = arith.addf %1258, %1261 : vector<8x84xf32>
    %c4_161 = arith.constant 4 : index
    %1263 = memref.load %arg8[%c4_161] : memref<8xf32, #tpu.memory_space<smem>>
    %1264 = vector.broadcast %1263 : f32 to vector<8x84xf32>
    %1265 = arith.addf %1262, %1264 : vector<8x84xf32>
    %cst_162 = arith.constant 0.000000e+00 : f32
    %1266 = vector.broadcast %cst_162 : f32 to vector<8x84xf32>
    %1267 = arith.maximumf %1265, %1266 : vector<8x84xf32>
    %cst_163 = arith.constant dense<0.000000e+00> : vector<8xf32>
    %1268 = vector.multi_reduction <add>, %1267, %cst_163 [1] : vector<8x84xf32> to vector<8xf32>
    %1269 = vector.shape_cast %1268 : vector<8xf32> to vector<8x1xf32>
    %cst_164 = arith.constant dense<0.000000e+00> : vector<1xf32>
    %1270 = vector.multi_reduction <add>, %1269, %cst_164 [0] : vector<8x1xf32> to vector<1xf32>
    %1271 = vector.shape_cast %1270 : vector<1xf32> to vector<1x1xf32>
    %cst_165 = arith.constant 0.0148809524 : f32
    %1272 = vector.broadcast %cst_165 : f32 to vector<1x1xf32>
    %1273 = arith.mulf %1271, %1272 : vector<1x1xf32>
    %c4_166 = arith.constant 4 : index
    %c0_167 = arith.constant 0 : index
    %1274 = vector.load %arg9[%c4_166, %c0_167] : memref<8x24xf32, #tpu.memory_space<vmem>>, vector<1x24xf32>
    %1275 = vector.broadcast %1273 : vector<1x1xf32> to vector<1x24xf32>
    %1276 = arith.mulf %1275, %1274 : vector<1x24xf32>
    %1277 = arith.addf %1117, %1276 : vector<1x24xf32>
    %cst_168 = arith.constant 0.000000e+00 : f32
    %1278 = vector.broadcast %cst_168 : f32 to vector<8x84xf32>
    %c180 = arith.constant 180 : index
    %1279 = memref.load %arg7[%c180] : memref<288xf32, #tpu.memory_space<smem>>
    %1280 = vector.broadcast %1279 : f32 to vector<8x84xf32>
    %1281 = arith.mulf %1280, %404 : vector<8x84xf32>
    %1282 = arith.addf %1278, %1281 : vector<8x84xf32>
    %c181 = arith.constant 181 : index
    %1283 = memref.load %arg7[%c181] : memref<288xf32, #tpu.memory_space<smem>>
    %1284 = vector.broadcast %1283 : f32 to vector<8x84xf32>
    %1285 = arith.mulf %1284, %406 : vector<8x84xf32>
    %1286 = arith.addf %1282, %1285 : vector<8x84xf32>
    %c182 = arith.constant 182 : index
    %1287 = memref.load %arg7[%c182] : memref<288xf32, #tpu.memory_space<smem>>
    %1288 = vector.broadcast %1287 : f32 to vector<8x84xf32>
    %1289 = arith.mulf %1288, %408 : vector<8x84xf32>
    %1290 = arith.addf %1286, %1289 : vector<8x84xf32>
    %c183 = arith.constant 183 : index
    %1291 = memref.load %arg7[%c183] : memref<288xf32, #tpu.memory_space<smem>>
    %1292 = vector.broadcast %1291 : f32 to vector<8x84xf32>
    %1293 = arith.mulf %1292, %410 : vector<8x84xf32>
    %1294 = arith.addf %1290, %1293 : vector<8x84xf32>
    %c184 = arith.constant 184 : index
    %1295 = memref.load %arg7[%c184] : memref<288xf32, #tpu.memory_space<smem>>
    %1296 = vector.broadcast %1295 : f32 to vector<8x84xf32>
    %1297 = arith.mulf %1296, %412 : vector<8x84xf32>
    %1298 = arith.addf %1294, %1297 : vector<8x84xf32>
    %c185 = arith.constant 185 : index
    %1299 = memref.load %arg7[%c185] : memref<288xf32, #tpu.memory_space<smem>>
    %1300 = vector.broadcast %1299 : f32 to vector<8x84xf32>
    %1301 = arith.mulf %1300, %414 : vector<8x84xf32>
    %1302 = arith.addf %1298, %1301 : vector<8x84xf32>
    %c186 = arith.constant 186 : index
    %1303 = memref.load %arg7[%c186] : memref<288xf32, #tpu.memory_space<smem>>
    %1304 = vector.broadcast %1303 : f32 to vector<8x84xf32>
    %1305 = arith.mulf %1304, %416 : vector<8x84xf32>
    %1306 = arith.addf %1302, %1305 : vector<8x84xf32>
    %c187 = arith.constant 187 : index
    %1307 = memref.load %arg7[%c187] : memref<288xf32, #tpu.memory_space<smem>>
    %1308 = vector.broadcast %1307 : f32 to vector<8x84xf32>
    %1309 = arith.mulf %1308, %418 : vector<8x84xf32>
    %1310 = arith.addf %1306, %1309 : vector<8x84xf32>
    %c188 = arith.constant 188 : index
    %1311 = memref.load %arg7[%c188] : memref<288xf32, #tpu.memory_space<smem>>
    %1312 = vector.broadcast %1311 : f32 to vector<8x84xf32>
    %1313 = arith.mulf %1312, %420 : vector<8x84xf32>
    %1314 = arith.addf %1310, %1313 : vector<8x84xf32>
    %c189 = arith.constant 189 : index
    %1315 = memref.load %arg7[%c189] : memref<288xf32, #tpu.memory_space<smem>>
    %1316 = vector.broadcast %1315 : f32 to vector<8x84xf32>
    %1317 = arith.mulf %1316, %422 : vector<8x84xf32>
    %1318 = arith.addf %1314, %1317 : vector<8x84xf32>
    %c190 = arith.constant 190 : index
    %1319 = memref.load %arg7[%c190] : memref<288xf32, #tpu.memory_space<smem>>
    %1320 = vector.broadcast %1319 : f32 to vector<8x84xf32>
    %1321 = arith.mulf %1320, %424 : vector<8x84xf32>
    %1322 = arith.addf %1318, %1321 : vector<8x84xf32>
    %c191 = arith.constant 191 : index
    %1323 = memref.load %arg7[%c191] : memref<288xf32, #tpu.memory_space<smem>>
    %1324 = vector.broadcast %1323 : f32 to vector<8x84xf32>
    %1325 = arith.mulf %1324, %426 : vector<8x84xf32>
    %1326 = arith.addf %1322, %1325 : vector<8x84xf32>
    %c192 = arith.constant 192 : index
    %1327 = memref.load %arg7[%c192] : memref<288xf32, #tpu.memory_space<smem>>
    %1328 = vector.broadcast %1327 : f32 to vector<8x84xf32>
    %1329 = arith.mulf %1328, %428 : vector<8x84xf32>
    %1330 = arith.addf %1326, %1329 : vector<8x84xf32>
    %c193 = arith.constant 193 : index
    %1331 = memref.load %arg7[%c193] : memref<288xf32, #tpu.memory_space<smem>>
    %1332 = vector.broadcast %1331 : f32 to vector<8x84xf32>
    %1333 = arith.mulf %1332, %430 : vector<8x84xf32>
    %1334 = arith.addf %1330, %1333 : vector<8x84xf32>
    %c194 = arith.constant 194 : index
    %1335 = memref.load %arg7[%c194] : memref<288xf32, #tpu.memory_space<smem>>
    %1336 = vector.broadcast %1335 : f32 to vector<8x84xf32>
    %1337 = arith.mulf %1336, %432 : vector<8x84xf32>
    %1338 = arith.addf %1334, %1337 : vector<8x84xf32>
    %c195 = arith.constant 195 : index
    %1339 = memref.load %arg7[%c195] : memref<288xf32, #tpu.memory_space<smem>>
    %1340 = vector.broadcast %1339 : f32 to vector<8x84xf32>
    %1341 = arith.mulf %1340, %434 : vector<8x84xf32>
    %1342 = arith.addf %1338, %1341 : vector<8x84xf32>
    %c196 = arith.constant 196 : index
    %1343 = memref.load %arg7[%c196] : memref<288xf32, #tpu.memory_space<smem>>
    %1344 = vector.broadcast %1343 : f32 to vector<8x84xf32>
    %1345 = arith.mulf %1344, %436 : vector<8x84xf32>
    %1346 = arith.addf %1342, %1345 : vector<8x84xf32>
    %c197 = arith.constant 197 : index
    %1347 = memref.load %arg7[%c197] : memref<288xf32, #tpu.memory_space<smem>>
    %1348 = vector.broadcast %1347 : f32 to vector<8x84xf32>
    %1349 = arith.mulf %1348, %438 : vector<8x84xf32>
    %1350 = arith.addf %1346, %1349 : vector<8x84xf32>
    %c198 = arith.constant 198 : index
    %1351 = memref.load %arg7[%c198] : memref<288xf32, #tpu.memory_space<smem>>
    %1352 = vector.broadcast %1351 : f32 to vector<8x84xf32>
    %1353 = arith.mulf %1352, %440 : vector<8x84xf32>
    %1354 = arith.addf %1350, %1353 : vector<8x84xf32>
    %c199 = arith.constant 199 : index
    %1355 = memref.load %arg7[%c199] : memref<288xf32, #tpu.memory_space<smem>>
    %1356 = vector.broadcast %1355 : f32 to vector<8x84xf32>
    %1357 = arith.mulf %1356, %442 : vector<8x84xf32>
    %1358 = arith.addf %1354, %1357 : vector<8x84xf32>
    %c200 = arith.constant 200 : index
    %1359 = memref.load %arg7[%c200] : memref<288xf32, #tpu.memory_space<smem>>
    %1360 = vector.broadcast %1359 : f32 to vector<8x84xf32>
    %1361 = arith.mulf %1360, %444 : vector<8x84xf32>
    %1362 = arith.addf %1358, %1361 : vector<8x84xf32>
    %c201 = arith.constant 201 : index
    %1363 = memref.load %arg7[%c201] : memref<288xf32, #tpu.memory_space<smem>>
    %1364 = vector.broadcast %1363 : f32 to vector<8x84xf32>
    %1365 = arith.mulf %1364, %446 : vector<8x84xf32>
    %1366 = arith.addf %1362, %1365 : vector<8x84xf32>
    %c202 = arith.constant 202 : index
    %1367 = memref.load %arg7[%c202] : memref<288xf32, #tpu.memory_space<smem>>
    %1368 = vector.broadcast %1367 : f32 to vector<8x84xf32>
    %1369 = arith.mulf %1368, %448 : vector<8x84xf32>
    %1370 = arith.addf %1366, %1369 : vector<8x84xf32>
    %c203 = arith.constant 203 : index
    %1371 = memref.load %arg7[%c203] : memref<288xf32, #tpu.memory_space<smem>>
    %1372 = vector.broadcast %1371 : f32 to vector<8x84xf32>
    %1373 = arith.mulf %1372, %450 : vector<8x84xf32>
    %1374 = arith.addf %1370, %1373 : vector<8x84xf32>
    %c204 = arith.constant 204 : index
    %1375 = memref.load %arg7[%c204] : memref<288xf32, #tpu.memory_space<smem>>
    %1376 = vector.broadcast %1375 : f32 to vector<8x84xf32>
    %1377 = arith.mulf %1376, %452 : vector<8x84xf32>
    %1378 = arith.addf %1374, %1377 : vector<8x84xf32>
    %c205 = arith.constant 205 : index
    %1379 = memref.load %arg7[%c205] : memref<288xf32, #tpu.memory_space<smem>>
    %1380 = vector.broadcast %1379 : f32 to vector<8x84xf32>
    %1381 = arith.mulf %1380, %454 : vector<8x84xf32>
    %1382 = arith.addf %1378, %1381 : vector<8x84xf32>
    %c206 = arith.constant 206 : index
    %1383 = memref.load %arg7[%c206] : memref<288xf32, #tpu.memory_space<smem>>
    %1384 = vector.broadcast %1383 : f32 to vector<8x84xf32>
    %1385 = arith.mulf %1384, %456 : vector<8x84xf32>
    %1386 = arith.addf %1382, %1385 : vector<8x84xf32>
    %c207 = arith.constant 207 : index
    %1387 = memref.load %arg7[%c207] : memref<288xf32, #tpu.memory_space<smem>>
    %1388 = vector.broadcast %1387 : f32 to vector<8x84xf32>
    %1389 = arith.mulf %1388, %458 : vector<8x84xf32>
    %1390 = arith.addf %1386, %1389 : vector<8x84xf32>
    %c208 = arith.constant 208 : index
    %1391 = memref.load %arg7[%c208] : memref<288xf32, #tpu.memory_space<smem>>
    %1392 = vector.broadcast %1391 : f32 to vector<8x84xf32>
    %1393 = arith.mulf %1392, %460 : vector<8x84xf32>
    %1394 = arith.addf %1390, %1393 : vector<8x84xf32>
    %c209 = arith.constant 209 : index
    %1395 = memref.load %arg7[%c209] : memref<288xf32, #tpu.memory_space<smem>>
    %1396 = vector.broadcast %1395 : f32 to vector<8x84xf32>
    %1397 = arith.mulf %1396, %462 : vector<8x84xf32>
    %1398 = arith.addf %1394, %1397 : vector<8x84xf32>
    %c210 = arith.constant 210 : index
    %1399 = memref.load %arg7[%c210] : memref<288xf32, #tpu.memory_space<smem>>
    %1400 = vector.broadcast %1399 : f32 to vector<8x84xf32>
    %1401 = arith.mulf %1400, %464 : vector<8x84xf32>
    %1402 = arith.addf %1398, %1401 : vector<8x84xf32>
    %c211 = arith.constant 211 : index
    %1403 = memref.load %arg7[%c211] : memref<288xf32, #tpu.memory_space<smem>>
    %1404 = vector.broadcast %1403 : f32 to vector<8x84xf32>
    %1405 = arith.mulf %1404, %466 : vector<8x84xf32>
    %1406 = arith.addf %1402, %1405 : vector<8x84xf32>
    %c212 = arith.constant 212 : index
    %1407 = memref.load %arg7[%c212] : memref<288xf32, #tpu.memory_space<smem>>
    %1408 = vector.broadcast %1407 : f32 to vector<8x84xf32>
    %1409 = arith.mulf %1408, %468 : vector<8x84xf32>
    %1410 = arith.addf %1406, %1409 : vector<8x84xf32>
    %c213 = arith.constant 213 : index
    %1411 = memref.load %arg7[%c213] : memref<288xf32, #tpu.memory_space<smem>>
    %1412 = vector.broadcast %1411 : f32 to vector<8x84xf32>
    %1413 = arith.mulf %1412, %470 : vector<8x84xf32>
    %1414 = arith.addf %1410, %1413 : vector<8x84xf32>
    %c214 = arith.constant 214 : index
    %1415 = memref.load %arg7[%c214] : memref<288xf32, #tpu.memory_space<smem>>
    %1416 = vector.broadcast %1415 : f32 to vector<8x84xf32>
    %1417 = arith.mulf %1416, %472 : vector<8x84xf32>
    %1418 = arith.addf %1414, %1417 : vector<8x84xf32>
    %c215 = arith.constant 215 : index
    %1419 = memref.load %arg7[%c215] : memref<288xf32, #tpu.memory_space<smem>>
    %1420 = vector.broadcast %1419 : f32 to vector<8x84xf32>
    %1421 = arith.mulf %1420, %474 : vector<8x84xf32>
    %1422 = arith.addf %1418, %1421 : vector<8x84xf32>
    %c5_169 = arith.constant 5 : index
    %1423 = memref.load %arg8[%c5_169] : memref<8xf32, #tpu.memory_space<smem>>
    %1424 = vector.broadcast %1423 : f32 to vector<8x84xf32>
    %1425 = arith.addf %1422, %1424 : vector<8x84xf32>
    %cst_170 = arith.constant 0.000000e+00 : f32
    %1426 = vector.broadcast %cst_170 : f32 to vector<8x84xf32>
    %1427 = arith.maximumf %1425, %1426 : vector<8x84xf32>
    %cst_171 = arith.constant dense<0.000000e+00> : vector<8xf32>
    %1428 = vector.multi_reduction <add>, %1427, %cst_171 [1] : vector<8x84xf32> to vector<8xf32>
    %1429 = vector.shape_cast %1428 : vector<8xf32> to vector<8x1xf32>
    %cst_172 = arith.constant dense<0.000000e+00> : vector<1xf32>
    %1430 = vector.multi_reduction <add>, %1429, %cst_172 [0] : vector<8x1xf32> to vector<1xf32>
    %1431 = vector.shape_cast %1430 : vector<1xf32> to vector<1x1xf32>
    %cst_173 = arith.constant 0.0148809524 : f32
    %1432 = vector.broadcast %cst_173 : f32 to vector<1x1xf32>
    %1433 = arith.mulf %1431, %1432 : vector<1x1xf32>
    %c5_174 = arith.constant 5 : index
    %c0_175 = arith.constant 0 : index
    %1434 = vector.load %arg9[%c5_174, %c0_175] : memref<8x24xf32, #tpu.memory_space<vmem>>, vector<1x24xf32>
    %1435 = vector.broadcast %1433 : vector<1x1xf32> to vector<1x24xf32>
    %1436 = arith.mulf %1435, %1434 : vector<1x24xf32>
    %1437 = arith.addf %1277, %1436 : vector<1x24xf32>
    %cst_176 = arith.constant 0.000000e+00 : f32
    %1438 = vector.broadcast %cst_176 : f32 to vector<8x84xf32>
    %c216 = arith.constant 216 : index
    %1439 = memref.load %arg7[%c216] : memref<288xf32, #tpu.memory_space<smem>>
    %1440 = vector.broadcast %1439 : f32 to vector<8x84xf32>
    %1441 = arith.mulf %1440, %404 : vector<8x84xf32>
    %1442 = arith.addf %1438, %1441 : vector<8x84xf32>
    %c217 = arith.constant 217 : index
    %1443 = memref.load %arg7[%c217] : memref<288xf32, #tpu.memory_space<smem>>
    %1444 = vector.broadcast %1443 : f32 to vector<8x84xf32>
    %1445 = arith.mulf %1444, %406 : vector<8x84xf32>
    %1446 = arith.addf %1442, %1445 : vector<8x84xf32>
    %c218 = arith.constant 218 : index
    %1447 = memref.load %arg7[%c218] : memref<288xf32, #tpu.memory_space<smem>>
    %1448 = vector.broadcast %1447 : f32 to vector<8x84xf32>
    %1449 = arith.mulf %1448, %408 : vector<8x84xf32>
    %1450 = arith.addf %1446, %1449 : vector<8x84xf32>
    %c219 = arith.constant 219 : index
    %1451 = memref.load %arg7[%c219] : memref<288xf32, #tpu.memory_space<smem>>
    %1452 = vector.broadcast %1451 : f32 to vector<8x84xf32>
    %1453 = arith.mulf %1452, %410 : vector<8x84xf32>
    %1454 = arith.addf %1450, %1453 : vector<8x84xf32>
    %c220 = arith.constant 220 : index
    %1455 = memref.load %arg7[%c220] : memref<288xf32, #tpu.memory_space<smem>>
    %1456 = vector.broadcast %1455 : f32 to vector<8x84xf32>
    %1457 = arith.mulf %1456, %412 : vector<8x84xf32>
    %1458 = arith.addf %1454, %1457 : vector<8x84xf32>
    %c221 = arith.constant 221 : index
    %1459 = memref.load %arg7[%c221] : memref<288xf32, #tpu.memory_space<smem>>
    %1460 = vector.broadcast %1459 : f32 to vector<8x84xf32>
    %1461 = arith.mulf %1460, %414 : vector<8x84xf32>
    %1462 = arith.addf %1458, %1461 : vector<8x84xf32>
    %c222 = arith.constant 222 : index
    %1463 = memref.load %arg7[%c222] : memref<288xf32, #tpu.memory_space<smem>>
    %1464 = vector.broadcast %1463 : f32 to vector<8x84xf32>
    %1465 = arith.mulf %1464, %416 : vector<8x84xf32>
    %1466 = arith.addf %1462, %1465 : vector<8x84xf32>
    %c223 = arith.constant 223 : index
    %1467 = memref.load %arg7[%c223] : memref<288xf32, #tpu.memory_space<smem>>
    %1468 = vector.broadcast %1467 : f32 to vector<8x84xf32>
    %1469 = arith.mulf %1468, %418 : vector<8x84xf32>
    %1470 = arith.addf %1466, %1469 : vector<8x84xf32>
    %c224 = arith.constant 224 : index
    %1471 = memref.load %arg7[%c224] : memref<288xf32, #tpu.memory_space<smem>>
    %1472 = vector.broadcast %1471 : f32 to vector<8x84xf32>
    %1473 = arith.mulf %1472, %420 : vector<8x84xf32>
    %1474 = arith.addf %1470, %1473 : vector<8x84xf32>
    %c225 = arith.constant 225 : index
    %1475 = memref.load %arg7[%c225] : memref<288xf32, #tpu.memory_space<smem>>
    %1476 = vector.broadcast %1475 : f32 to vector<8x84xf32>
    %1477 = arith.mulf %1476, %422 : vector<8x84xf32>
    %1478 = arith.addf %1474, %1477 : vector<8x84xf32>
    %c226 = arith.constant 226 : index
    %1479 = memref.load %arg7[%c226] : memref<288xf32, #tpu.memory_space<smem>>
    %1480 = vector.broadcast %1479 : f32 to vector<8x84xf32>
    %1481 = arith.mulf %1480, %424 : vector<8x84xf32>
    %1482 = arith.addf %1478, %1481 : vector<8x84xf32>
    %c227 = arith.constant 227 : index
    %1483 = memref.load %arg7[%c227] : memref<288xf32, #tpu.memory_space<smem>>
    %1484 = vector.broadcast %1483 : f32 to vector<8x84xf32>
    %1485 = arith.mulf %1484, %426 : vector<8x84xf32>
    %1486 = arith.addf %1482, %1485 : vector<8x84xf32>
    %c228 = arith.constant 228 : index
    %1487 = memref.load %arg7[%c228] : memref<288xf32, #tpu.memory_space<smem>>
    %1488 = vector.broadcast %1487 : f32 to vector<8x84xf32>
    %1489 = arith.mulf %1488, %428 : vector<8x84xf32>
    %1490 = arith.addf %1486, %1489 : vector<8x84xf32>
    %c229 = arith.constant 229 : index
    %1491 = memref.load %arg7[%c229] : memref<288xf32, #tpu.memory_space<smem>>
    %1492 = vector.broadcast %1491 : f32 to vector<8x84xf32>
    %1493 = arith.mulf %1492, %430 : vector<8x84xf32>
    %1494 = arith.addf %1490, %1493 : vector<8x84xf32>
    %c230 = arith.constant 230 : index
    %1495 = memref.load %arg7[%c230] : memref<288xf32, #tpu.memory_space<smem>>
    %1496 = vector.broadcast %1495 : f32 to vector<8x84xf32>
    %1497 = arith.mulf %1496, %432 : vector<8x84xf32>
    %1498 = arith.addf %1494, %1497 : vector<8x84xf32>
    %c231 = arith.constant 231 : index
    %1499 = memref.load %arg7[%c231] : memref<288xf32, #tpu.memory_space<smem>>
    %1500 = vector.broadcast %1499 : f32 to vector<8x84xf32>
    %1501 = arith.mulf %1500, %434 : vector<8x84xf32>
    %1502 = arith.addf %1498, %1501 : vector<8x84xf32>
    %c232 = arith.constant 232 : index
    %1503 = memref.load %arg7[%c232] : memref<288xf32, #tpu.memory_space<smem>>
    %1504 = vector.broadcast %1503 : f32 to vector<8x84xf32>
    %1505 = arith.mulf %1504, %436 : vector<8x84xf32>
    %1506 = arith.addf %1502, %1505 : vector<8x84xf32>
    %c233 = arith.constant 233 : index
    %1507 = memref.load %arg7[%c233] : memref<288xf32, #tpu.memory_space<smem>>
    %1508 = vector.broadcast %1507 : f32 to vector<8x84xf32>
    %1509 = arith.mulf %1508, %438 : vector<8x84xf32>
    %1510 = arith.addf %1506, %1509 : vector<8x84xf32>
    %c234 = arith.constant 234 : index
    %1511 = memref.load %arg7[%c234] : memref<288xf32, #tpu.memory_space<smem>>
    %1512 = vector.broadcast %1511 : f32 to vector<8x84xf32>
    %1513 = arith.mulf %1512, %440 : vector<8x84xf32>
    %1514 = arith.addf %1510, %1513 : vector<8x84xf32>
    %c235 = arith.constant 235 : index
    %1515 = memref.load %arg7[%c235] : memref<288xf32, #tpu.memory_space<smem>>
    %1516 = vector.broadcast %1515 : f32 to vector<8x84xf32>
    %1517 = arith.mulf %1516, %442 : vector<8x84xf32>
    %1518 = arith.addf %1514, %1517 : vector<8x84xf32>
    %c236 = arith.constant 236 : index
    %1519 = memref.load %arg7[%c236] : memref<288xf32, #tpu.memory_space<smem>>
    %1520 = vector.broadcast %1519 : f32 to vector<8x84xf32>
    %1521 = arith.mulf %1520, %444 : vector<8x84xf32>
    %1522 = arith.addf %1518, %1521 : vector<8x84xf32>
    %c237 = arith.constant 237 : index
    %1523 = memref.load %arg7[%c237] : memref<288xf32, #tpu.memory_space<smem>>
    %1524 = vector.broadcast %1523 : f32 to vector<8x84xf32>
    %1525 = arith.mulf %1524, %446 : vector<8x84xf32>
    %1526 = arith.addf %1522, %1525 : vector<8x84xf32>
    %c238 = arith.constant 238 : index
    %1527 = memref.load %arg7[%c238] : memref<288xf32, #tpu.memory_space<smem>>
    %1528 = vector.broadcast %1527 : f32 to vector<8x84xf32>
    %1529 = arith.mulf %1528, %448 : vector<8x84xf32>
    %1530 = arith.addf %1526, %1529 : vector<8x84xf32>
    %c239 = arith.constant 239 : index
    %1531 = memref.load %arg7[%c239] : memref<288xf32, #tpu.memory_space<smem>>
    %1532 = vector.broadcast %1531 : f32 to vector<8x84xf32>
    %1533 = arith.mulf %1532, %450 : vector<8x84xf32>
    %1534 = arith.addf %1530, %1533 : vector<8x84xf32>
    %c240 = arith.constant 240 : index
    %1535 = memref.load %arg7[%c240] : memref<288xf32, #tpu.memory_space<smem>>
    %1536 = vector.broadcast %1535 : f32 to vector<8x84xf32>
    %1537 = arith.mulf %1536, %452 : vector<8x84xf32>
    %1538 = arith.addf %1534, %1537 : vector<8x84xf32>
    %c241 = arith.constant 241 : index
    %1539 = memref.load %arg7[%c241] : memref<288xf32, #tpu.memory_space<smem>>
    %1540 = vector.broadcast %1539 : f32 to vector<8x84xf32>
    %1541 = arith.mulf %1540, %454 : vector<8x84xf32>
    %1542 = arith.addf %1538, %1541 : vector<8x84xf32>
    %c242 = arith.constant 242 : index
    %1543 = memref.load %arg7[%c242] : memref<288xf32, #tpu.memory_space<smem>>
    %1544 = vector.broadcast %1543 : f32 to vector<8x84xf32>
    %1545 = arith.mulf %1544, %456 : vector<8x84xf32>
    %1546 = arith.addf %1542, %1545 : vector<8x84xf32>
    %c243 = arith.constant 243 : index
    %1547 = memref.load %arg7[%c243] : memref<288xf32, #tpu.memory_space<smem>>
    %1548 = vector.broadcast %1547 : f32 to vector<8x84xf32>
    %1549 = arith.mulf %1548, %458 : vector<8x84xf32>
    %1550 = arith.addf %1546, %1549 : vector<8x84xf32>
    %c244 = arith.constant 244 : index
    %1551 = memref.load %arg7[%c244] : memref<288xf32, #tpu.memory_space<smem>>
    %1552 = vector.broadcast %1551 : f32 to vector<8x84xf32>
    %1553 = arith.mulf %1552, %460 : vector<8x84xf32>
    %1554 = arith.addf %1550, %1553 : vector<8x84xf32>
    %c245 = arith.constant 245 : index
    %1555 = memref.load %arg7[%c245] : memref<288xf32, #tpu.memory_space<smem>>
    %1556 = vector.broadcast %1555 : f32 to vector<8x84xf32>
    %1557 = arith.mulf %1556, %462 : vector<8x84xf32>
    %1558 = arith.addf %1554, %1557 : vector<8x84xf32>
    %c246 = arith.constant 246 : index
    %1559 = memref.load %arg7[%c246] : memref<288xf32, #tpu.memory_space<smem>>
    %1560 = vector.broadcast %1559 : f32 to vector<8x84xf32>
    %1561 = arith.mulf %1560, %464 : vector<8x84xf32>
    %1562 = arith.addf %1558, %1561 : vector<8x84xf32>
    %c247 = arith.constant 247 : index
    %1563 = memref.load %arg7[%c247] : memref<288xf32, #tpu.memory_space<smem>>
    %1564 = vector.broadcast %1563 : f32 to vector<8x84xf32>
    %1565 = arith.mulf %1564, %466 : vector<8x84xf32>
    %1566 = arith.addf %1562, %1565 : vector<8x84xf32>
    %c248 = arith.constant 248 : index
    %1567 = memref.load %arg7[%c248] : memref<288xf32, #tpu.memory_space<smem>>
    %1568 = vector.broadcast %1567 : f32 to vector<8x84xf32>
    %1569 = arith.mulf %1568, %468 : vector<8x84xf32>
    %1570 = arith.addf %1566, %1569 : vector<8x84xf32>
    %c249 = arith.constant 249 : index
    %1571 = memref.load %arg7[%c249] : memref<288xf32, #tpu.memory_space<smem>>
    %1572 = vector.broadcast %1571 : f32 to vector<8x84xf32>
    %1573 = arith.mulf %1572, %470 : vector<8x84xf32>
    %1574 = arith.addf %1570, %1573 : vector<8x84xf32>
    %c250 = arith.constant 250 : index
    %1575 = memref.load %arg7[%c250] : memref<288xf32, #tpu.memory_space<smem>>
    %1576 = vector.broadcast %1575 : f32 to vector<8x84xf32>
    %1577 = arith.mulf %1576, %472 : vector<8x84xf32>
    %1578 = arith.addf %1574, %1577 : vector<8x84xf32>
    %c251 = arith.constant 251 : index
    %1579 = memref.load %arg7[%c251] : memref<288xf32, #tpu.memory_space<smem>>
    %1580 = vector.broadcast %1579 : f32 to vector<8x84xf32>
    %1581 = arith.mulf %1580, %474 : vector<8x84xf32>
    %1582 = arith.addf %1578, %1581 : vector<8x84xf32>
    %c6_177 = arith.constant 6 : index
    %1583 = memref.load %arg8[%c6_177] : memref<8xf32, #tpu.memory_space<smem>>
    %1584 = vector.broadcast %1583 : f32 to vector<8x84xf32>
    %1585 = arith.addf %1582, %1584 : vector<8x84xf32>
    %cst_178 = arith.constant 0.000000e+00 : f32
    %1586 = vector.broadcast %cst_178 : f32 to vector<8x84xf32>
    %1587 = arith.maximumf %1585, %1586 : vector<8x84xf32>
    %cst_179 = arith.constant dense<0.000000e+00> : vector<8xf32>
    %1588 = vector.multi_reduction <add>, %1587, %cst_179 [1] : vector<8x84xf32> to vector<8xf32>
    %1589 = vector.shape_cast %1588 : vector<8xf32> to vector<8x1xf32>
    %cst_180 = arith.constant dense<0.000000e+00> : vector<1xf32>
    %1590 = vector.multi_reduction <add>, %1589, %cst_180 [0] : vector<8x1xf32> to vector<1xf32>
    %1591 = vector.shape_cast %1590 : vector<1xf32> to vector<1x1xf32>
    %cst_181 = arith.constant 0.0148809524 : f32
    %1592 = vector.broadcast %cst_181 : f32 to vector<1x1xf32>
    %1593 = arith.mulf %1591, %1592 : vector<1x1xf32>
    %c6_182 = arith.constant 6 : index
    %c0_183 = arith.constant 0 : index
    %1594 = vector.load %arg9[%c6_182, %c0_183] : memref<8x24xf32, #tpu.memory_space<vmem>>, vector<1x24xf32>
    %1595 = vector.broadcast %1593 : vector<1x1xf32> to vector<1x24xf32>
    %1596 = arith.mulf %1595, %1594 : vector<1x24xf32>
    %1597 = arith.addf %1437, %1596 : vector<1x24xf32>
    %cst_184 = arith.constant 0.000000e+00 : f32
    %1598 = vector.broadcast %cst_184 : f32 to vector<8x84xf32>
    %c252 = arith.constant 252 : index
    %1599 = memref.load %arg7[%c252] : memref<288xf32, #tpu.memory_space<smem>>
    %1600 = vector.broadcast %1599 : f32 to vector<8x84xf32>
    %1601 = arith.mulf %1600, %404 : vector<8x84xf32>
    %1602 = arith.addf %1598, %1601 : vector<8x84xf32>
    %c253 = arith.constant 253 : index
    %1603 = memref.load %arg7[%c253] : memref<288xf32, #tpu.memory_space<smem>>
    %1604 = vector.broadcast %1603 : f32 to vector<8x84xf32>
    %1605 = arith.mulf %1604, %406 : vector<8x84xf32>
    %1606 = arith.addf %1602, %1605 : vector<8x84xf32>
    %c254 = arith.constant 254 : index
    %1607 = memref.load %arg7[%c254] : memref<288xf32, #tpu.memory_space<smem>>
    %1608 = vector.broadcast %1607 : f32 to vector<8x84xf32>
    %1609 = arith.mulf %1608, %408 : vector<8x84xf32>
    %1610 = arith.addf %1606, %1609 : vector<8x84xf32>
    %c255 = arith.constant 255 : index
    %1611 = memref.load %arg7[%c255] : memref<288xf32, #tpu.memory_space<smem>>
    %1612 = vector.broadcast %1611 : f32 to vector<8x84xf32>
    %1613 = arith.mulf %1612, %410 : vector<8x84xf32>
    %1614 = arith.addf %1610, %1613 : vector<8x84xf32>
    %c256 = arith.constant 256 : index
    %1615 = memref.load %arg7[%c256] : memref<288xf32, #tpu.memory_space<smem>>
    %1616 = vector.broadcast %1615 : f32 to vector<8x84xf32>
    %1617 = arith.mulf %1616, %412 : vector<8x84xf32>
    %1618 = arith.addf %1614, %1617 : vector<8x84xf32>
    %c257 = arith.constant 257 : index
    %1619 = memref.load %arg7[%c257] : memref<288xf32, #tpu.memory_space<smem>>
    %1620 = vector.broadcast %1619 : f32 to vector<8x84xf32>
    %1621 = arith.mulf %1620, %414 : vector<8x84xf32>
    %1622 = arith.addf %1618, %1621 : vector<8x84xf32>
    %c258 = arith.constant 258 : index
    %1623 = memref.load %arg7[%c258] : memref<288xf32, #tpu.memory_space<smem>>
    %1624 = vector.broadcast %1623 : f32 to vector<8x84xf32>
    %1625 = arith.mulf %1624, %416 : vector<8x84xf32>
    %1626 = arith.addf %1622, %1625 : vector<8x84xf32>
    %c259 = arith.constant 259 : index
    %1627 = memref.load %arg7[%c259] : memref<288xf32, #tpu.memory_space<smem>>
    %1628 = vector.broadcast %1627 : f32 to vector<8x84xf32>
    %1629 = arith.mulf %1628, %418 : vector<8x84xf32>
    %1630 = arith.addf %1626, %1629 : vector<8x84xf32>
    %c260 = arith.constant 260 : index
    %1631 = memref.load %arg7[%c260] : memref<288xf32, #tpu.memory_space<smem>>
    %1632 = vector.broadcast %1631 : f32 to vector<8x84xf32>
    %1633 = arith.mulf %1632, %420 : vector<8x84xf32>
    %1634 = arith.addf %1630, %1633 : vector<8x84xf32>
    %c261 = arith.constant 261 : index
    %1635 = memref.load %arg7[%c261] : memref<288xf32, #tpu.memory_space<smem>>
    %1636 = vector.broadcast %1635 : f32 to vector<8x84xf32>
    %1637 = arith.mulf %1636, %422 : vector<8x84xf32>
    %1638 = arith.addf %1634, %1637 : vector<8x84xf32>
    %c262 = arith.constant 262 : index
    %1639 = memref.load %arg7[%c262] : memref<288xf32, #tpu.memory_space<smem>>
    %1640 = vector.broadcast %1639 : f32 to vector<8x84xf32>
    %1641 = arith.mulf %1640, %424 : vector<8x84xf32>
    %1642 = arith.addf %1638, %1641 : vector<8x84xf32>
    %c263 = arith.constant 263 : index
    %1643 = memref.load %arg7[%c263] : memref<288xf32, #tpu.memory_space<smem>>
    %1644 = vector.broadcast %1643 : f32 to vector<8x84xf32>
    %1645 = arith.mulf %1644, %426 : vector<8x84xf32>
    %1646 = arith.addf %1642, %1645 : vector<8x84xf32>
    %c264 = arith.constant 264 : index
    %1647 = memref.load %arg7[%c264] : memref<288xf32, #tpu.memory_space<smem>>
    %1648 = vector.broadcast %1647 : f32 to vector<8x84xf32>
    %1649 = arith.mulf %1648, %428 : vector<8x84xf32>
    %1650 = arith.addf %1646, %1649 : vector<8x84xf32>
    %c265 = arith.constant 265 : index
    %1651 = memref.load %arg7[%c265] : memref<288xf32, #tpu.memory_space<smem>>
    %1652 = vector.broadcast %1651 : f32 to vector<8x84xf32>
    %1653 = arith.mulf %1652, %430 : vector<8x84xf32>
    %1654 = arith.addf %1650, %1653 : vector<8x84xf32>
    %c266 = arith.constant 266 : index
    %1655 = memref.load %arg7[%c266] : memref<288xf32, #tpu.memory_space<smem>>
    %1656 = vector.broadcast %1655 : f32 to vector<8x84xf32>
    %1657 = arith.mulf %1656, %432 : vector<8x84xf32>
    %1658 = arith.addf %1654, %1657 : vector<8x84xf32>
    %c267 = arith.constant 267 : index
    %1659 = memref.load %arg7[%c267] : memref<288xf32, #tpu.memory_space<smem>>
    %1660 = vector.broadcast %1659 : f32 to vector<8x84xf32>
    %1661 = arith.mulf %1660, %434 : vector<8x84xf32>
    %1662 = arith.addf %1658, %1661 : vector<8x84xf32>
    %c268 = arith.constant 268 : index
    %1663 = memref.load %arg7[%c268] : memref<288xf32, #tpu.memory_space<smem>>
    %1664 = vector.broadcast %1663 : f32 to vector<8x84xf32>
    %1665 = arith.mulf %1664, %436 : vector<8x84xf32>
    %1666 = arith.addf %1662, %1665 : vector<8x84xf32>
    %c269 = arith.constant 269 : index
    %1667 = memref.load %arg7[%c269] : memref<288xf32, #tpu.memory_space<smem>>
    %1668 = vector.broadcast %1667 : f32 to vector<8x84xf32>
    %1669 = arith.mulf %1668, %438 : vector<8x84xf32>
    %1670 = arith.addf %1666, %1669 : vector<8x84xf32>
    %c270 = arith.constant 270 : index
    %1671 = memref.load %arg7[%c270] : memref<288xf32, #tpu.memory_space<smem>>
    %1672 = vector.broadcast %1671 : f32 to vector<8x84xf32>
    %1673 = arith.mulf %1672, %440 : vector<8x84xf32>
    %1674 = arith.addf %1670, %1673 : vector<8x84xf32>
    %c271 = arith.constant 271 : index
    %1675 = memref.load %arg7[%c271] : memref<288xf32, #tpu.memory_space<smem>>
    %1676 = vector.broadcast %1675 : f32 to vector<8x84xf32>
    %1677 = arith.mulf %1676, %442 : vector<8x84xf32>
    %1678 = arith.addf %1674, %1677 : vector<8x84xf32>
    %c272 = arith.constant 272 : index
    %1679 = memref.load %arg7[%c272] : memref<288xf32, #tpu.memory_space<smem>>
    %1680 = vector.broadcast %1679 : f32 to vector<8x84xf32>
    %1681 = arith.mulf %1680, %444 : vector<8x84xf32>
    %1682 = arith.addf %1678, %1681 : vector<8x84xf32>
    %c273 = arith.constant 273 : index
    %1683 = memref.load %arg7[%c273] : memref<288xf32, #tpu.memory_space<smem>>
    %1684 = vector.broadcast %1683 : f32 to vector<8x84xf32>
    %1685 = arith.mulf %1684, %446 : vector<8x84xf32>
    %1686 = arith.addf %1682, %1685 : vector<8x84xf32>
    %c274 = arith.constant 274 : index
    %1687 = memref.load %arg7[%c274] : memref<288xf32, #tpu.memory_space<smem>>
    %1688 = vector.broadcast %1687 : f32 to vector<8x84xf32>
    %1689 = arith.mulf %1688, %448 : vector<8x84xf32>
    %1690 = arith.addf %1686, %1689 : vector<8x84xf32>
    %c275 = arith.constant 275 : index
    %1691 = memref.load %arg7[%c275] : memref<288xf32, #tpu.memory_space<smem>>
    %1692 = vector.broadcast %1691 : f32 to vector<8x84xf32>
    %1693 = arith.mulf %1692, %450 : vector<8x84xf32>
    %1694 = arith.addf %1690, %1693 : vector<8x84xf32>
    %c276 = arith.constant 276 : index
    %1695 = memref.load %arg7[%c276] : memref<288xf32, #tpu.memory_space<smem>>
    %1696 = vector.broadcast %1695 : f32 to vector<8x84xf32>
    %1697 = arith.mulf %1696, %452 : vector<8x84xf32>
    %1698 = arith.addf %1694, %1697 : vector<8x84xf32>
    %c277 = arith.constant 277 : index
    %1699 = memref.load %arg7[%c277] : memref<288xf32, #tpu.memory_space<smem>>
    %1700 = vector.broadcast %1699 : f32 to vector<8x84xf32>
    %1701 = arith.mulf %1700, %454 : vector<8x84xf32>
    %1702 = arith.addf %1698, %1701 : vector<8x84xf32>
    %c278 = arith.constant 278 : index
    %1703 = memref.load %arg7[%c278] : memref<288xf32, #tpu.memory_space<smem>>
    %1704 = vector.broadcast %1703 : f32 to vector<8x84xf32>
    %1705 = arith.mulf %1704, %456 : vector<8x84xf32>
    %1706 = arith.addf %1702, %1705 : vector<8x84xf32>
    %c279 = arith.constant 279 : index
    %1707 = memref.load %arg7[%c279] : memref<288xf32, #tpu.memory_space<smem>>
    %1708 = vector.broadcast %1707 : f32 to vector<8x84xf32>
    %1709 = arith.mulf %1708, %458 : vector<8x84xf32>
    %1710 = arith.addf %1706, %1709 : vector<8x84xf32>
    %c280 = arith.constant 280 : index
    %1711 = memref.load %arg7[%c280] : memref<288xf32, #tpu.memory_space<smem>>
    %1712 = vector.broadcast %1711 : f32 to vector<8x84xf32>
    %1713 = arith.mulf %1712, %460 : vector<8x84xf32>
    %1714 = arith.addf %1710, %1713 : vector<8x84xf32>
    %c281 = arith.constant 281 : index
    %1715 = memref.load %arg7[%c281] : memref<288xf32, #tpu.memory_space<smem>>
    %1716 = vector.broadcast %1715 : f32 to vector<8x84xf32>
    %1717 = arith.mulf %1716, %462 : vector<8x84xf32>
    %1718 = arith.addf %1714, %1717 : vector<8x84xf32>
    %c282 = arith.constant 282 : index
    %1719 = memref.load %arg7[%c282] : memref<288xf32, #tpu.memory_space<smem>>
    %1720 = vector.broadcast %1719 : f32 to vector<8x84xf32>
    %1721 = arith.mulf %1720, %464 : vector<8x84xf32>
    %1722 = arith.addf %1718, %1721 : vector<8x84xf32>
    %c283 = arith.constant 283 : index
    %1723 = memref.load %arg7[%c283] : memref<288xf32, #tpu.memory_space<smem>>
    %1724 = vector.broadcast %1723 : f32 to vector<8x84xf32>
    %1725 = arith.mulf %1724, %466 : vector<8x84xf32>
    %1726 = arith.addf %1722, %1725 : vector<8x84xf32>
    %c284 = arith.constant 284 : index
    %1727 = memref.load %arg7[%c284] : memref<288xf32, #tpu.memory_space<smem>>
    %1728 = vector.broadcast %1727 : f32 to vector<8x84xf32>
    %1729 = arith.mulf %1728, %468 : vector<8x84xf32>
    %1730 = arith.addf %1726, %1729 : vector<8x84xf32>
    %c285 = arith.constant 285 : index
    %1731 = memref.load %arg7[%c285] : memref<288xf32, #tpu.memory_space<smem>>
    %1732 = vector.broadcast %1731 : f32 to vector<8x84xf32>
    %1733 = arith.mulf %1732, %470 : vector<8x84xf32>
    %1734 = arith.addf %1730, %1733 : vector<8x84xf32>
    %c286 = arith.constant 286 : index
    %1735 = memref.load %arg7[%c286] : memref<288xf32, #tpu.memory_space<smem>>
    %1736 = vector.broadcast %1735 : f32 to vector<8x84xf32>
    %1737 = arith.mulf %1736, %472 : vector<8x84xf32>
    %1738 = arith.addf %1734, %1737 : vector<8x84xf32>
    %c287 = arith.constant 287 : index
    %1739 = memref.load %arg7[%c287] : memref<288xf32, #tpu.memory_space<smem>>
    %1740 = vector.broadcast %1739 : f32 to vector<8x84xf32>
    %1741 = arith.mulf %1740, %474 : vector<8x84xf32>
    %1742 = arith.addf %1738, %1741 : vector<8x84xf32>
    %c7_185 = arith.constant 7 : index
    %1743 = memref.load %arg8[%c7_185] : memref<8xf32, #tpu.memory_space<smem>>
    %1744 = vector.broadcast %1743 : f32 to vector<8x84xf32>
    %1745 = arith.addf %1742, %1744 : vector<8x84xf32>
    %cst_186 = arith.constant 0.000000e+00 : f32
    %1746 = vector.broadcast %cst_186 : f32 to vector<8x84xf32>
    %1747 = arith.maximumf %1745, %1746 : vector<8x84xf32>
    %cst_187 = arith.constant dense<0.000000e+00> : vector<8xf32>
    %1748 = vector.multi_reduction <add>, %1747, %cst_187 [1] : vector<8x84xf32> to vector<8xf32>
    %1749 = vector.shape_cast %1748 : vector<8xf32> to vector<8x1xf32>
    %cst_188 = arith.constant dense<0.000000e+00> : vector<1xf32>
    %1750 = vector.multi_reduction <add>, %1749, %cst_188 [0] : vector<8x1xf32> to vector<1xf32>
    %1751 = vector.shape_cast %1750 : vector<1xf32> to vector<1x1xf32>
    %cst_189 = arith.constant 0.0148809524 : f32
    %1752 = vector.broadcast %cst_189 : f32 to vector<1x1xf32>
    %1753 = arith.mulf %1751, %1752 : vector<1x1xf32>
    %c7_190 = arith.constant 7 : index
    %c0_191 = arith.constant 0 : index
    %1754 = vector.load %arg9[%c7_190, %c0_191] : memref<8x24xf32, #tpu.memory_space<vmem>>, vector<1x24xf32>
    %1755 = vector.broadcast %1753 : vector<1x1xf32> to vector<1x24xf32>
    %1756 = arith.mulf %1755, %1754 : vector<1x24xf32>
    %1757 = arith.addf %1597, %1756 : vector<1x24xf32>
    %cst_192 = arith.constant dense<0xFF800000> : vector<1xf32>
    %1758 = vector.multi_reduction <maximumf>, %1757, %cst_192 [1] : vector<1x24xf32> to vector<1xf32>
    %1759 = vector.shape_cast %1758 : vector<1xf32> to vector<1x1xf32>
    %1760 = vector.broadcast %1759 : vector<1x1xf32> to vector<1x24xf32>
    %1761 = arith.subf %1757, %1760 : vector<1x24xf32>
    %1762 = math.exp %1761 : vector<1x24xf32>
    %cst_193 = arith.constant dense<0.000000e+00> : vector<1xf32>
    %1763 = vector.multi_reduction <add>, %1762, %cst_193 [1] : vector<1x24xf32> to vector<1xf32>
    %1764 = vector.shape_cast %1763 : vector<1xf32> to vector<1x1xf32>
    %1765 = tpu.reciprocal %1764 {approx = true} : vector<1x1xf32> -> vector<1x1xf32>
    %1766 = vector.broadcast %1765 : vector<1x1xf32> to vector<1x24xf32>
    %1767 = arith.mulf %1762, %1766 : vector<1x24xf32>
    %c0_194 = arith.constant 0 : index
    %c0_195 = arith.constant 0 : index
    %c0_196 = arith.constant 0 : index
    %1768 = vector.load %arg11[%c0_194, %c0_195, %c0_196] : memref<1x1x24xf32, #tpu.memory_space<vmem>>, vector<1x1x24xf32>
    %1769 = vector.shape_cast %1768 : vector<1x1x24xf32> to vector<1x24xf32>
    %1770 = vector.shape_cast %1767 : vector<1x24xf32> to vector<1x1x24xf32>
    tpu.vector_store %arg11[%c0_194, %c0_195, %c0_196], %1770 {strides = array<i32>} : memref<1x1x24xf32, #tpu.memory_space<vmem>>, vector<1x1x24xf32>,
    return
  }
  func.func @transform_0(%arg0: i32, %arg1: memref<6xi32, #tpu.memory_space<smem>>, %arg2: memref<6xi32, #tpu.memory_space<smem>>) -> (i32, i32, i32) {
    %0 = arith.index_cast %arg0 : i32 to index
    %1 = memref.load %arg1[%0] : memref<6xi32, #tpu.memory_space<smem>>
    %c0_i32 = arith.constant 0 : i32
    %c0_i32_0 = arith.constant 0 : i32
    %c0_i32_1 = arith.constant 0 : i32
    return %1, %c0_i32, %c0_i32_0 : i32, i32, i32
  }
  func.func @transform_1(%arg0: i32, %arg1: memref<6xi32, #tpu.memory_space<smem>>, %arg2: memref<6xi32, #tpu.memory_space<smem>>) -> (i32, i32) {
    %c0_i32 = arith.constant 0 : i32
    %c0_i32_0 = arith.constant 0 : i32
    %c0_i32_1 = arith.constant 0 : i32
    return %c0_i32, %c0_i32_0 : i32, i32
  }
  func.func @transform_2(%arg0: i32, %arg1: memref<6xi32, #tpu.memory_space<smem>>, %arg2: memref<6xi32, #tpu.memory_space<smem>>) -> i32 {
    %c0_i32 = arith.constant 0 : i32
    %c0_i32_0 = arith.constant 0 : i32
    return %c0_i32 : i32
  }
  func.func @transform_3(%arg0: i32, %arg1: memref<6xi32, #tpu.memory_space<smem>>, %arg2: memref<6xi32, #tpu.memory_space<smem>>) -> i32 {
    %c0_i32 = arith.constant 0 : i32
    %c0_i32_0 = arith.constant 0 : i32
    return %c0_i32 : i32
  }
  func.func @transform_4(%arg0: i32, %arg1: memref<6xi32, #tpu.memory_space<smem>>, %arg2: memref<6xi32, #tpu.memory_space<smem>>) -> i32 {
    %c0_i32 = arith.constant 0 : i32
    %c0_i32_0 = arith.constant 0 : i32
    return %c0_i32 : i32
  }
  func.func @transform_5(%arg0: i32, %arg1: memref<6xi32, #tpu.memory_space<smem>>, %arg2: memref<6xi32, #tpu.memory_space<smem>>) -> i32 {
    %c0_i32 = arith.constant 0 : i32
    %c0_i32_0 = arith.constant 0 : i32
    return %c0_i32 : i32
  }
  func.func @transform_6(%arg0: i32, %arg1: memref<6xi32, #tpu.memory_space<smem>>, %arg2: memref<6xi32, #tpu.memory_space<smem>>) -> (i32, i32) {
    %c0_i32 = arith.constant 0 : i32
    %c0_i32_0 = arith.constant 0 : i32
    %c0_i32_1 = arith.constant 0 : i32
    return %c0_i32, %c0_i32_0 : i32, i32
  }
  func.func @transform_7(%arg0: i32, %arg1: memref<6xi32, #tpu.memory_space<smem>>, %arg2: memref<6xi32, #tpu.memory_space<smem>>) -> (i32, i32) {
    %c0_i32 = arith.constant 0 : i32
    %c0_i32_0 = arith.constant 0 : i32
    %c0_i32_1 = arith.constant 0 : i32
    return %c0_i32, %c0_i32_0 : i32, i32
  }
  func.func @transform_8(%arg0: i32, %arg1: memref<6xi32, #tpu.memory_space<smem>>, %arg2: memref<6xi32, #tpu.memory_space<smem>>) -> (i32, i32, i32) {
    %c0_i32 = arith.constant 0 : i32
    %c0_i32_0 = arith.constant 0 : i32
    %c0_i32_1 = arith.constant 0 : i32
    return %arg0, %c0_i32, %c0_i32_0 : i32, i32, i32
  }
}

</mosaic_0001>

<llo_original>
// kernel: stone_forward.39
$region0: #{stone_forward.39}
  #allocation0 [shape = 'u32[]', space=smem, size = 0x4, offset = 0x4, fixed_abs, tag = 'smem constant byte address 0x4 - core index']
  #allocation1 [shape = 'u32[144,128]{1,0:T(1,128)}', space=vmem, size = 0x12000, scoped, tag = 'internal scratch']
  #allocation2 [shape = 'f32[2,10,86]{2,1,0:T(8,128)}', space=vmem, size = 0x4000, scoped, tag = 'scratch operand']
  #allocation3 [shape = 'f32[4,10,86]{2,1,0:T(8,128)}', space=vmem, size = 0x8000, scoped, tag = 'scratch operand']
  #allocation4 [shape = 's32[1]{0}', space=sflag, size = 0x4, scoped, tag = 'scoped memory for stone_forward.39']
  #allocation5 [shape = 'u8[512]{0}', space=smem, size = 0x200, scoped, tag = 'prefetched SMEM operand 0']
  #allocation6 [shape = 'u8[512]{0}', space=smem, size = 0x200, scoped, tag = 'prefetched SMEM operand 1']
  %s0 = inlined_call_operand.vmem [shape: s32[6], index: 0, kind: input, shape index: {}]
  %s1 = inlined_call_operand.vmem [shape: s32[6], index: 1, kind: input, shape index: {}]
  %s2 = inlined_call_operand.vmem [shape: bf16[4,8,128], index: 2, kind: input, shape index: {}]
  %s3 = inlined_call_operand.vmem [shape: bf16[128,512], index: 3, kind: input, shape index: {}]
  %s4 = inlined_call_operand.vmem [shape: f32[72], index: 4, kind: input, shape index: {}]
  %s5 = inlined_call_operand.vmem [shape: f32[4], index: 5, kind: input, shape index: {}]
  %s6 = inlined_call_operand.vmem [shape: f32[288], index: 6, kind: input, shape index: {}]
  %s7 = inlined_call_operand.vmem [shape: f32[8], index: 7, kind: input, shape index: {}]
  %s8 = inlined_call_operand.vmem [shape: f32[8,24], index: 8, kind: input, shape index: {}]
  %s9 = inlined_call_operand.vmem [shape: f32[1,24], index: 9, kind: input, shape index: {}]
  %s10 = inlined_call_operand.vmem [shape: f32[6,1,24], index: 10, kind: output, shape index: {}]
  %s11 = sld [smem:[#allocation0]]
  $region81: #{stone_forward.39} parent=0
    _
  %s13 = ssub.s32 1, %s11
  %s14 = scalar_select 0, %s13, %s11
  %s15 = sshll.u32 %s0, 4
  %s16 = int_to_ptr.vmem [resolvable:$true] %s15
  %18 = dma.vmem_to_smem %s16, 16, [#allocation5], [#allocation4]
  %s19 = sshll.u32 %s1, 4
  %s20 = int_to_ptr.vmem [resolvable:$true] %s19
  %22 = dma.vmem_to_smem %s20, 16, [#allocation6], [#allocation4]
  %23 = dma.done [#allocation4], 32
  %24 = sfence
  $region1: #{stone_forward.39} parent=0
    #allocation7 [shape = 'u8[512]{0}', space=smem, size = 0x200, scoped, tag = 'input window, operand 4, single buffered']
    #allocation8 [shape = 's32[2]{0}', space=sflag, size = 0x8, scoped, tag = 'scoped memory for stone_forward.39']
    #allocation9 [shape = 'u8[512]{0}', space=smem, size = 0x200, scoped, tag = 'input window, operand 5, single buffered']
    #allocation10 [shape = 's32[1]{0}', space=sflag, size = 0x4, scoped, tag = 'scoped memory for stone_forward.39']
    #allocation11 [shape = 'u8[1536]{0}', space=smem, size = 0x600, scoped, tag = 'input window, operand 6, single buffered']
    #allocation12 [shape = 'u8[512]{0}', space=smem, size = 0x200, scoped, tag = 'input window, operand 7, single buffered']
    #allocation13 [shape = 's32[1]{0}', space=sflag, size = 0x4, scoped, tag = 'scoped memory for stone_forward.39']
    %25 = vsyncpa [#allocation8], 0
    %26 = vsyncpa [#allocation10], 0
    %27 = vsyncpa [#allocation13], 0
    loop: start=0, step=1, limit=8
    $region2: #{stone_forward.39} parent=1 // loop_pre_header
      _
    $region3: #{stone_forward.39} parent=1 // loop_header
      %s29 = sphi 0, %s33
      %p30 = scmp.ge.s32.totalorder %s29, 8
      %s41 = sphi 0, %s43
      %s44 = sphi 0, %s41
      %s45 = sphi 0, %s44
      %s61 = sphi 0, %s45
      %s65 = sphi 0, %s65
      %s67 = sphi 0, %s65
      %s68 = sphi 0, %s67
      %s82 = sphi 0, %s68
      %s86 = sphi 0, %s86
      %s88 = sphi 0, %s86
      %s89 = sphi 0, %s88
      %s103 = sphi 0, %s89
      %s107 = sphi 0, %s107
      %s109 = sphi 0, %s107
      %s110 = sphi 0, %s109
      %s124 = sphi 0, %s110
      %s128 = sphi 0, %s128
      %s130 = sphi 0, %s128
      %s131 = sphi 0, %s130
      %s145 = sphi 0, %s131
      %s149 = sphi 0, %s149
      %s151 = sphi 0, %s149
      %s152 = sphi 0, %s151
      %s166 = sphi 0, %s152
      %s170 = sphi 0, %s170
      %s172 = sphi 0, %s170
      %s173 = sphi 0, %s172
      %s187 = sphi 0, %s173
      %s191 = sphi 0, %s191
      %s193 = sphi 0, %s191
      %s194 = sphi 0, %s193
      %s208 = sphi 0, %s194
      %s214 = sphi 0, %s216
      %s217 = sphi 0, %s214
      %s218 = sphi 0, %s217
      %s234 = sphi 0, %s218
    $region4: #{stone_forward.39} parent=1 // loop_header_branch
      %32 = sbr.rel (%p30) target = $region8
    $region5: #{stone_forward.39} parent=1 // loop_body
      %s34 = ssub.s32 %s29, 1
      %s35 = ssub.s32 %s29, 2
      %s36 = sadd.s32 %s29, 1
      %s37 = sld [smem:[#allocation5 + %s29]]
      %s38 = sld [smem:[#allocation5 + %s36]]
      %s39 = ssub.s32 %s37, %s38
      %p40 = scmp.eq.s32.totalorder %s39, 0
      %s42 = sadd.s32 %s41, 1
      %s43 = scalar_select %p40, %s41, %s42
      %p46 = pneg %p40
      %p47 = scmp.eq.s32.totalorder %s29, 5
      %p48 = por %p46, %p47
      %p49 = scmp.ne.s32.totalorder %s41, %s44
      %p50 = scmp.eq.s32.totalorder %s29, 0
      %p51 = por %p49, %p50
      %p52 = scmp.ne.s32.totalorder %s41, %s44
      %p53 = scmp.eq.s32.totalorder %s34, 5
      %p54 = por %p52, %p53
      %p55 = scmp.ne.s32.totalorder %s44, %s45
      %p56 = scmp.eq.s32.totalorder %s34, 0
      %p57 = por %p55, %p56
      %p58 = scmp.ne.s32.totalorder %s44, %s45
      %p59 = scmp.eq.s32.totalorder %s35, 5
      %p60 = por %p58, %p59
      %p62 = scmp.ne.s32.totalorder %s45, %s61
      %p63 = scmp.eq.s32.totalorder %s35, 0
      %p64 = por %p62, %p63
      %s66 = sadd.s32 %s65, 1
      %p69 = scmp.eq.s32.totalorder %s29, 5
      %p70 = scmp.ne.s32.totalorder %s65, %s67
      %p71 = scmp.eq.s32.totalorder %s29, 0
      %p72 = por %p70, %p71
      %p73 = scmp.ne.s32.totalorder %s65, %s67
      %p74 = scmp.eq.s32.totalorder %s34, 5
      %p75 = por %p73, %p74
      %p76 = scmp.ne.s32.totalorder %s67, %s68
      %p77 = scmp.eq.s32.totalorder %s34, 0
      %p78 = por %p76, %p77
      %p79 = scmp.ne.s32.totalorder %s67, %s68
      %p80 = scmp.eq.s32.totalorder %s35, 5
      %p81 = por %p79, %p80
      %p83 = scmp.ne.s32.totalorder %s68, %s82
      %p84 = scmp.eq.s32.totalorder %s35, 0
      %p85 = por %p83, %p84
      %s87 = sadd.s32 %s86, 1
      %p90 = scmp.eq.s32.totalorder %s29, 5
      %p91 = scmp.ne.s32.totalorder %s86, %s88
      %p92 = scmp.eq.s32.totalorder %s29, 0
      %p93 = por %p91, %p92
      %p94 = scmp.ne.s32.totalorder %s86, %s88
      %p95 = scmp.eq.s32.totalorder %s34, 5
      %p96 = por %p94, %p95
      %p97 = scmp.ne.s32.totalorder %s88, %s89
      %p98 = scmp.eq.s32.totalorder %s34, 0
      %p99 = por %p97, %p98
      %p100 = scmp.ne.s32.totalorder %s88, %s89
      %p101 = scmp.eq.s32.totalorder %s35, 5
      %p102 = por %p100, %p101
      %p104 = scmp.ne.s32.totalorder %s89, %s103
      %p105 = scmp.eq.s32.totalorder %s35, 0
      %p106 = por %p104, %p105
      %s108 = sadd.s32 %s107, 1
      %p111 = scmp.eq.s32.totalorder %s29, 5
      %p112 = scmp.ne.s32.totalorder %s107, %s109
      %p113 = scmp.eq.s32.totalorder %s29, 0
      %p114 = por %p112, %p113
      %p115 = scmp.ne.s32.totalorder %s107, %s109
      %p116 = scmp.eq.s32.totalorder %s34, 5
      %p117 = por %p115, %p116
      %p118 = scmp.ne.s32.totalorder %s109, %s110
      %p119 = scmp.eq.s32.totalorder %s34, 0
      %p120 = por %p118, %p119
      %p121 = scmp.ne.s32.totalorder %s109, %s110
      %p122 = scmp.eq.s32.totalorder %s35, 5
      %p123 = por %p121, %p122
      %p125 = scmp.ne.s32.totalorder %s110, %s124
      %p126 = scmp.eq.s32.totalorder %s35, 0
      %p127 = por %p125, %p126
      %s129 = sadd.s32 %s128, 1
      %p132 = scmp.eq.s32.totalorder %s29, 5
      %p133 = scmp.ne.s32.totalorder %s128, %s130
      %p134 = scmp.eq.s32.totalorder %s29, 0
      %p135 = por %p133, %p134
      %p136 = scmp.ne.s32.totalorder %s128, %s130
      %p137 = scmp.eq.s32.totalorder %s34, 5
      %p138 = por %p136, %p137
      %p139 = scmp.ne.s32.totalorder %s130, %s131
      %p140 = scmp.eq.s32.totalorder %s34, 0
      %p141 = por %p139, %p140
      %p142 = scmp.ne.s32.totalorder %s130, %s131
      %p143 = scmp.eq.s32.totalorder %s35, 5
      %p144 = por %p142, %p143
      %p146 = scmp.ne.s32.totalorder %s131, %s145
      %p147 = scmp.eq.s32.totalorder %s35, 0
      %p148 = por %p146, %p147
      %s150 = sadd.s32 %s149, 1
      %p153 = scmp.eq.s32.totalorder %s29, 5
      %p154 = scmp.ne.s32.totalorder %s149, %s151
      %p155 = scmp.eq.s32.totalorder %s29, 0
      %p156 = por %p154, %p155
      %p157 = scmp.ne.s32.totalorder %s149, %s151
      %p158 = scmp.eq.s32.totalorder %s34, 5
      %p159 = por %p157, %p158
      %p160 = scmp.ne.s32.totalorder %s151, %s152
      %p161 = scmp.eq.s32.totalorder %s34, 0
      %p162 = por %p160, %p161
      %p163 = scmp.ne.s32.totalorder %s151, %s152
      %p164 = scmp.eq.s32.totalorder %s35, 5
      %p165 = por %p163, %p164
      %p167 = scmp.ne.s32.totalorder %s152, %s166
      %p168 = scmp.eq.s32.totalorder %s35, 0
      %p169 = por %p167, %p168
      %s171 = sadd.s32 %s170, 1
      %p174 = scmp.eq.s32.totalorder %s29, 5
      %p175 = scmp.ne.s32.totalorder %s170, %s172
      %p176 = scmp.eq.s32.totalorder %s29, 0
      %p177 = por %p175, %p176
      %p178 = scmp.ne.s32.totalorder %s170, %s172
      %p179 = scmp.eq.s32.totalorder %s34, 5
      %p180 = por %p178, %p179
      %p181 = scmp.ne.s32.totalorder %s172, %s173
      %p182 = scmp.eq.s32.totalorder %s34, 0
      %p183 = por %p181, %p182
      %p184 = scmp.ne.s32.totalorder %s172, %s173
      %p185 = scmp.eq.s32.totalorder %s35, 5
      %p186 = por %p184, %p185
      %p188 = scmp.ne.s32.totalorder %s173, %s187
      %p189 = scmp.eq.s32.totalorder %s35, 0
      %p190 = por %p188, %p189
      %s192 = sadd.s32 %s191, 1
      %p195 = scmp.eq.s32.totalorder %s29, 5
      %p196 = scmp.ne.s32.totalorder %s191, %s193
      %p197 = scmp.eq.s32.totalorder %s29, 0
      %p198 = por %p196, %p197
      %p199 = scmp.ne.s32.totalorder %s191, %s193
      %p200 = scmp.eq.s32.totalorder %s34, 5
      %p201 = por %p199, %p200
      %p202 = scmp.ne.s32.totalorder %s193, %s194
      %p203 = scmp.eq.s32.totalorder %s34, 0
      %p204 = por %p202, %p203
      %p205 = scmp.ne.s32.totalorder %s193, %s194
      %p206 = scmp.eq.s32.totalorder %s35, 5
      %p207 = por %p205, %p206
      %p209 = scmp.ne.s32.totalorder %s194, %s208
      %p210 = scmp.eq.s32.totalorder %s35, 0
      %p211 = por %p209, %p210
      %s212 = ssub.s32 %s29, %s36
      %p213 = scmp.eq.s32.totalorder %s212, 0
      %s215 = sadd.s32 %s214, 1
      %s216 = scalar_select %p213, %s214, %s215
      %p219 = pneg %p213
      %p220 = scmp.eq.s32.totalorder %s29, 5
      %p221 = por %p219, %p220
      %p222 = scmp.ne.s32.totalorder %s214, %s217
      %p223 = scmp.eq.s32.totalorder %s29, 0
      %p224 = por %p222, %p223
      %p225 = scmp.ne.s32.totalorder %s214, %s217
      %p226 = scmp.eq.s32.totalorder %s34, 5
      %p227 = por %p225, %p226
      %p228 = scmp.ne.s32.totalorder %s217, %s218
      %p229 = scmp.eq.s32.totalorder %s34, 0
      %p230 = por %p228, %p229
      %p231 = scmp.ne.s32.totalorder %s217, %s218
      %p232 = scmp.eq.s32.totalorder %s35, 5
      %p233 = por %p231, %p232
      %p235 = scmp.ne.s32.totalorder %s218, %s234
      %p236 = scmp.eq.s32.totalorder %s35, 0
      %p237 = por %p235, %p236
      %p238 = scmp.le.s32.totalorder 1, %s29
      %p239 = scmp.lt.s32.totalorder %s29, 7
      %p240 = pnand %p238, %p239
      %p241 = pneg %p240
      // Predicated region
      $region9: #{stone_forward.39} parent=5 // pred_check
        _
      $region10: #{stone_forward.39} parent=5 // pred_check_branch
        %243 = sbr.rel (%p240) target = $region12
      $region11: #{stone_forward.39} parent=5 // pred_region
        %s244 = ssub.s32 %s29, 1
        // Predicated region
        $region13: #{stone_forward.39} parent=11 // pred_check
          %p245 = pneg %p78
        $region14: #{stone_forward.39} parent=11 // pred_check_branch
          %247 = sbr.rel (%p245) target = $region16
        $region15: #{stone_forward.39} parent=11 // pred_region
          _
        $region16: #{stone_forward.39} parent=11 // pred_fallthru
          _
        // Predicated region
        $region17: #{stone_forward.39} parent=11 // pred_check
          %p248 = pneg %p99
        $region18: #{stone_forward.39} parent=11 // pred_check_branch
          %250 = sbr.rel (%p248) target = $region20
        $region19: #{stone_forward.39} parent=11 // pred_region
          %s252 = ssub.s32 16, 16
          %253 = vsyncadd [#allocation8], %s252
          %s255 = sshll.u32 %s4, 4
          %s256 = int_to_ptr.vmem [resolvable:$true] %s255
          %258 = dma.vmem_to_smem %s256, 16, [#allocation7], [#allocation8]
        $region20: #{stone_forward.39} parent=11 // pred_fallthru
          _
        // Predicated region
        $region21: #{stone_forward.39} parent=11 // pred_check
          %p259 = pneg %p120
        $region22: #{stone_forward.39} parent=11 // pred_check_branch
          %261 = sbr.rel (%p259) target = $region24
        $region23: #{stone_forward.39} parent=11 // pred_region
          %s263 = ssub.s32 16, 16
          %264 = vsyncadd [#allocation10], %s263
          %s266 = sshll.u32 %s5, 4
          %s267 = int_to_ptr.vmem [resolvable:$true] %s266
          %269 = dma.vmem_to_smem %s267, 16, [#allocation9], [#allocation10]
        $region24: #{stone_forward.39} parent=11 // pred_fallthru
          _
        // Predicated region
        $region25: #{stone_forward.39} parent=11 // pred_check
          %p270 = pneg %p141
        $region26: #{stone_forward.39} parent=11 // pred_check_branch
          %272 = sbr.rel (%p270) target = $region28
        $region27: #{stone_forward.39} parent=11 // pred_region
          %s274 = ssub.s32 48, 48
          %275 = vsyncadd [#allocation10], %s274
          %s277 = sshll.u32 %s6, 4
          %s278 = int_to_ptr.vmem [resolvable:$true] %s277
          %280 = dma.vmem_to_smem %s278, 48, [#allocation11], [#allocation10]
        $region28: #{stone_forward.39} parent=11 // pred_fallthru
          _
        // Predicated region
        $region29: #{stone_forward.39} parent=11 // pred_check
          %p281 = pneg %p162
        $region30: #{stone_forward.39} parent=11 // pred_check_branch
          %283 = sbr.rel (%p281) target = $region32
        $region31: #{stone_forward.39} parent=11 // pred_region
          %s285 = ssub.s32 16, 16
          %286 = vsyncadd [#allocation13], %s285
          %s288 = sshll.u32 %s7, 4
          %s289 = int_to_ptr.vmem [resolvable:$true] %s288
          %291 = dma.vmem_to_smem %s289, 16, [#allocation12], [#allocation13]
        $region32: #{stone_forward.39} parent=11 // pred_fallthru
          _
        // Predicated region
        $region33: #{stone_forward.39} parent=11 // pred_check
          %p292 = pneg %p183
        $region34: #{stone_forward.39} parent=11 // pred_check_branch
          %294 = sbr.rel (%p292) target = $region36
        $region35: #{stone_forward.39} parent=11 // pred_region
          _
        $region36: #{stone_forward.39} parent=11 // pred_fallthru
          _
        // Predicated region
        $region37: #{stone_forward.39} parent=11 // pred_check
          %p295 = pneg %p204
        $region38: #{stone_forward.39} parent=11 // pred_check_branch
          %297 = sbr.rel (%p295) target = $region40
        $region39: #{stone_forward.39} parent=11 // pred_region
          _
        $region40: #{stone_forward.39} parent=11 // pred_fallthru
          _
      $region12: #{stone_forward.39} parent=5 // pred_fallthru
        _
      %p298 = scmp.lt.s32.totalorder %s29, 6
      // Predicated region
      $region41: #{stone_forward.39} parent=5 // pred_check
        %p299 = pneg %p298
      $region42: #{stone_forward.39} parent=5 // pred_check_branch
        %301 = sbr.rel (%p299) target = $region44
      $region43: #{stone_forward.39} parent=5 // pred_region
        // Predicated region
        $region45: #{stone_forward.39} parent=43 // pred_check
          %p302 = pneg %p51
        $region46: #{stone_forward.39} parent=43 // pred_check_branch
          %304 = sbr.rel (%p302) target = $region48
        $region47: #{stone_forward.39} parent=43 // pred_region
          %s305 = sld [smem:[#allocation5 + %s29]]
          %p306 = scmp.lt.s32.totalorder %s305, 3
          %s307 = scalar_select %p306, %s305, 3
          %s308 = smul.addr %s307, 4
          %s309 = scalar_lea.vmem %s2, %s308
          %s310 = sld [smem:[#allocation5 + %s29]]
        $region48: #{stone_forward.39} parent=43 // pred_fallthru
          _
      $region44: #{stone_forward.39} parent=5 // pred_fallthru
        _
      %p311 = scmp.le.s32.totalorder 1, %s29
      %p312 = scmp.lt.s32.totalorder %s29, 7
      %p313 = pnand %p311, %p312
      %p314 = pneg %p313
      // Predicated region
      $region49: #{stone_forward.39} parent=5 // pred_check
        _
      $region50: #{stone_forward.39} parent=5 // pred_check_branch
        %316 = sbr.rel (%p313) target = $region52
      $region51: #{stone_forward.39} parent=5 // pred_region
        %s317 = ssub.s32 %s29, 1
        // Predicated region
        $region53: #{stone_forward.39} parent=51 // pred_check
          %p318 = pneg %p99
        $region54: #{stone_forward.39} parent=51 // pred_check_branch
          %320 = sbr.rel (%p318) target = $region56
        $region55: #{stone_forward.39} parent=51 // pred_region
          %321 = dma.done [#allocation8], 16
        $region56: #{stone_forward.39} parent=51 // pred_fallthru
          _
        // Predicated region
        $region57: #{stone_forward.39} parent=51 // pred_check
          %p322 = pneg %p120
        $region58: #{stone_forward.39} parent=51 // pred_check_branch
          %324 = sbr.rel (%p322) target = $region60
        $region59: #{stone_forward.39} parent=51 // pred_region
          %325 = dma.done [#allocation10], 16
        $region60: #{stone_forward.39} parent=51 // pred_fallthru
          _
        // Predicated region
        $region61: #{stone_forward.39} parent=51 // pred_check
          %p326 = pneg %p141
        $region62: #{stone_forward.39} parent=51 // pred_check_branch
          %328 = sbr.rel (%p326) target = $region64
        $region63: #{stone_forward.39} parent=51 // pred_region
          %329 = dma.done [#allocation10], 48
        $region64: #{stone_forward.39} parent=51 // pred_fallthru
          _
        // Predicated region
        $region65: #{stone_forward.39} parent=51 // pred_check
          %p330 = pneg %p162
        $region66: #{stone_forward.39} parent=51 // pred_check_branch
          %332 = sbr.rel (%p330) target = $region68
        $region67: #{stone_forward.39} parent=51 // pred_region
          %333 = dma.done [#allocation13], 16
        $region68: #{stone_forward.39} parent=51 // pred_fallthru
          _
        %334 = sfence
        %s335 = sld [smem:[#allocation5 + %s34]]
        %p336 = scmp.lt.s32.totalorder %s335, 3
        %s337 = scalar_select %p336, %s335, 3
        %s338 = smul.addr %s337, 4
        %s339 = scalar_lea.vmem %s2, %s338
        %p340 = pneg %p57
        %p341 = pneg %p54
        %p342 = pneg %p78
        %p343 = pneg %p75
        %p344 = pneg %p99
        %p345 = pneg %p96
        %p346 = pneg %p120
        %p347 = pneg %p117
        %p348 = pneg %p141
        %p349 = pneg %p138
        %p350 = pneg %p162
        %p351 = pneg %p159
        %p352 = pneg %p183
        %p353 = pneg %p180
        %p354 = pneg %p204
        %p355 = pneg %p201
        %p356 = pneg %p230
        %p357 = pneg %p227
        %p358 = scmp.lt.s32.totalorder %s34, 5
        %s359 = scalar_select %p358, %s34, 5
        %s360 = scalar_lea.vmem %s10, %s359
        %s361 = sld [smem:[#allocation5 + %s34]]
        %p362 = scmp.lt.s32.totalorder %s361, 3
        %s363 = scalar_select %p362, %s361, 3
        %s364 = smul.addr %s363, 4
        %s365 = scalar_lea.vmem %s2, %s364
        %s366 = sld [smem:[#allocation5 + %s34]]
        %p367 = scmp.lt.s32.totalorder %s34, 5
        %s368 = scalar_select %p367, %s34, 5
        %s369 = scalar_lea.vmem %s10, %s368
        %s371 = sld [smem:[#allocation6 + %s34]]
        %v372 = vld [vmem:[%s365] sm:$0xf]
        %v373 = vld [vmem:[%s3] sm:$0xff]
        %v374 = vld [vmem:[%s3 + $0x8] sm:$0xff]
        %v375 = vld [vmem:[%s3 + $0x10] sm:$0xff]
        %v376 = vld [vmem:[%s3 + $0x18] sm:$0xff]
        %v377 = vld [vmem:[%s3 + $0x20] sm:$0xff]
        %v378 = vld [vmem:[%s3 + $0x28] sm:$0xff]
        %v379 = vld [vmem:[%s3 + $0x30] sm:$0xff]
        %v380 = vld [vmem:[%s3 + $0x38] sm:$0xff]
        %v381 = vld [vmem:[%s3 + $0x40] sm:$0xff]
        %v382 = vld [vmem:[%s3 + $0x48] sm:$0xff]
        %v383 = vld [vmem:[%s3 + $0x50] sm:$0xff]
        %v384 = vld [vmem:[%s3 + $0x58] sm:$0xff]
        %v385 = vld [vmem:[%s3 + $0x60] sm:$0xff]
        %v386 = vld [vmem:[%s3 + $0x68] sm:$0xff]
        %v387 = vld [vmem:[%s3 + $0x70] sm:$0xff]
        %v388 = vld [vmem:[%s3 + $0x78] sm:$0xff]
        %v389 = vld [vmem:[%s3 + $0x80] sm:$0xff]
        %v390 = vld [vmem:[%s3 + $0x88] sm:$0xff]
        %v391 = vld [vmem:[%s3 + $0x90] sm:$0xff]
        %v392 = vld [vmem:[%s3 + $0x98] sm:$0xff]
        %v393 = vld [vmem:[%s3 + $0xa0] sm:$0xff]
        %v394 = vld [vmem:[%s3 + $0xa8] sm:$0xff]
        %v395 = vld [vmem:[%s3 + $0xb0] sm:$0xff]
        %v396 = vld [vmem:[%s3 + $0xb8] sm:$0xff]
        %v397 = vld [vmem:[%s3 + $0xc0] sm:$0xff]
        %v398 = vld [vmem:[%s3 + $0xc8] sm:$0xff]
        %v399 = vld [vmem:[%s3 + $0xd0] sm:$0xff]
        %v400 = vld [vmem:[%s3 + $0xd8] sm:$0xff]
        %v401 = vld [vmem:[%s3 + $0xe0] sm:$0xff]
        %v402 = vld [vmem:[%s3 + $0xe8] sm:$0xff]
        %v403 = vld [vmem:[%s3 + $0xf0] sm:$0xff]
        %v404 = vld [vmem:[%s3 + $0xf8] sm:$0xff]
        %v437 = vunpack.c.l.b16 %v373
        %v438 = vunpack.c.h.b16 %v373
        %v439 = vunpack.c.l.b16 %v374
        %v440 = vunpack.c.h.b16 %v374
        %v441 = vunpack.c.l.b16 %v375
        %v442 = vunpack.c.h.b16 %v375
        %v443 = vunpack.c.l.b16 %v376
        %v444 = vunpack.c.h.b16 %v376
        %v445 = vunpack.c.l.b16 %v377
        %v446 = vunpack.c.h.b16 %v377
        %v447 = vunpack.c.l.b16 %v378
        %v448 = vunpack.c.h.b16 %v378
        %v449 = vunpack.c.l.b16 %v379
        %v450 = vunpack.c.h.b16 %v379
        %v451 = vunpack.c.l.b16 %v380
        %v452 = vunpack.c.h.b16 %v380
        %v453 = vunpack.c.l.b16 %v381
        %v454 = vunpack.c.h.b16 %v381
        %v455 = vunpack.c.l.b16 %v382
        %v456 = vunpack.c.h.b16 %v382
        %v457 = vunpack.c.l.b16 %v383
        %v458 = vunpack.c.h.b16 %v383
        %v459 = vunpack.c.l.b16 %v384
        %v460 = vunpack.c.h.b16 %v384
        %v461 = vunpack.c.l.b16 %v385
        %v462 = vunpack.c.h.b16 %v385
        %v463 = vunpack.c.l.b16 %v386
        %v464 = vunpack.c.h.b16 %v386
        %v465 = vunpack.c.l.b16 %v387
        %v466 = vunpack.c.h.b16 %v387
        %v467 = vunpack.c.l.b16 %v388
        %v468 = vunpack.c.h.b16 %v388
        %v469 = vunpack.c.l.b16 %v389
        %v470 = vunpack.c.h.b16 %v389
        %v471 = vunpack.c.l.b16 %v390
        %v472 = vunpack.c.h.b16 %v390
        %v473 = vunpack.c.l.b16 %v391
        %v474 = vunpack.c.h.b16 %v391
        %v475 = vunpack.c.l.b16 %v392
        %v476 = vunpack.c.h.b16 %v392
        %v477 = vunpack.c.l.b16 %v393
        %v478 = vunpack.c.h.b16 %v393
        %v479 = vunpack.c.l.b16 %v394
        %v480 = vunpack.c.h.b16 %v394
        %v481 = vunpack.c.l.b16 %v395
        %v482 = vunpack.c.h.b16 %v395
        %v483 = vunpack.c.l.b16 %v396
        %v484 = vunpack.c.h.b16 %v396
        %v485 = vunpack.c.l.b16 %v397
        %v486 = vunpack.c.h.b16 %v397
        %v487 = vunpack.c.l.b16 %v398
        %v488 = vunpack.c.h.b16 %v398
        %v489 = vunpack.c.l.b16 %v399
        %v490 = vunpack.c.h.b16 %v399
        %v491 = vunpack.c.l.b16 %v400
        %v492 = vunpack.c.h.b16 %v400
        %v493 = vunpack.c.l.b16 %v401
        %v494 = vunpack.c.h.b16 %v401
        %v495 = vunpack.c.l.b16 %v402
        %v496 = vunpack.c.h.b16 %v402
        %v497 = vunpack.c.l.b16 %v403
        %v498 = vunpack.c.h.b16 %v403
        %v499 = vunpack.c.l.b16 %v404
        %v500 = vunpack.c.h.b16 %v404
        %v501 = vpack.c.b16 %v441, %v437
        %v502 = vpack.c.b16 %v442, %v438
        %v503 = vpack.c.b16 %v443, %v439
        %v504 = vpack.c.b16 %v444, %v440
        %v505 = vpack.c.b16 %v449, %v445
        %v506 = vpack.c.b16 %v450, %v446
        %v507 = vpack.c.b16 %v451, %v447
        %v508 = vpack.c.b16 %v452, %v448
        %v509 = vpack.c.b16 %v457, %v453
        %v510 = vpack.c.b16 %v458, %v454
        %v511 = vpack.c.b16 %v459, %v455
        %v512 = vpack.c.b16 %v460, %v456
        %v513 = vpack.c.b16 %v465, %v461
        %v514 = vpack.c.b16 %v466, %v462
        %v515 = vpack.c.b16 %v467, %v463
        %v516 = vpack.c.b16 %v468, %v464
        %v517 = vpack.c.b16 %v473, %v469
        %v518 = vpack.c.b16 %v474, %v470
        %v519 = vpack.c.b16 %v475, %v471
        %v520 = vpack.c.b16 %v476, %v472
        %v521 = vpack.c.b16 %v481, %v477
        %v522 = vpack.c.b16 %v482, %v478
        %v523 = vpack.c.b16 %v483, %v479
        %v524 = vpack.c.b16 %v484, %v480
        %v525 = vpack.c.b16 %v489, %v485
        %v526 = vpack.c.b16 %v490, %v486
        %v527 = vpack.c.b16 %v491, %v487
        %v528 = vpack.c.b16 %v492, %v488
        %v529 = vpack.c.b16 %v497, %v493
        %v530 = vpack.c.b16 %v498, %v494
        %v531 = vpack.c.b16 %v499, %v495
        %v532 = vpack.c.b16 %v500, %v496
        %565 = vmatprep.subr.bf16.mxu0 %v502
        %566 = vmatpush1.bf16.msra.mxu0 %v501
        %567 = vmatprep.subr.bf16.mxu0 %v506
        %568 = vmatpush1.bf16.msra.mxu0 %v505
        %569 = vmatprep.subr.bf16.mxu0 %v510
        %570 = vmatpush1.bf16.msra.mxu0 %v509
        %571 = vmatprep.subr.bf16.mxu0 %v514
        %572 = vmatpush1.bf16.msra.mxu0 %v513
        %573 = vmatprep.subr.bf16.mxu0 %v518
        %574 = vmatpush1.bf16.msra.mxu0 %v517
        %575 = vmatprep.subr.bf16.mxu0 %v522
        %576 = vmatpush1.bf16.msra.mxu0 %v521
        %577 = vmatprep.subr.bf16.mxu0 %v526
        %578 = vmatpush1.bf16.msra.mxu0 %v525
        %579 = vmatprep.subr.bf16.mxu0 %v530
        %580 = vmatpush1.bf16.msra.mxu0 %v529
        %581 = vmatprep.subr.bf16.mxu0 0
        %582 = vmatpush1.bf16.msra.mxu0 0
        %583 = vmatprep.subr.bf16.mxu0 0
        %584 = vmatpush1.bf16.msra.mxu0 0
        %585 = vmatprep.subr.bf16.mxu0 0
        %586 = vmatpush1.bf16.msra.mxu0 0
        %587 = vmatprep.subr.bf16.mxu0 0
        %588 = vmatpush1.bf16.msra.mxu0 0
        %589 = vmatprep.subr.bf16.mxu0 0
        %590 = vmatpush1.bf16.msra.mxu0 0
        %591 = vmatprep.subr.bf16.mxu0 0
        %592 = vmatpush1.bf16.msra.mxu0 0
        %593 = vmatprep.subr.bf16.mxu0 0
        %594 = vmatpush1.bf16.msra.mxu0 0
        %595 = vmatprep.subr.bf16.mxu0 0
        %596 = vmatpush1.bf16.msra.mxu0 0
        %597 = vmatprep.mubr.bf16.mxu0 0
        %598 = vmatmul.mubr.bf16.gmra.mrb[0].mxu0 %v372
        %v599 = vpop.f32.mrb[0].mxu0
        %v600 = vadd.f32 0.0, %v599
        %v601 = vpop.f32.mrb[0].mxu0
        %v602 = vadd.f32 0.0, %v601
        %v603 = vpop.f32.mrb[0].mxu0
        %v604 = vpop.f32.mrb[0].mxu0
        %605 = vdwg.mxu0
        %606 = vmatprep.subr.bf16.mxu0 %v504
        %607 = vmatpush1.bf16.msra.mxu0 %v503
        %608 = vmatprep.subr.bf16.mxu0 %v508
        %609 = vmatpush1.bf16.msra.mxu0 %v507
        %610 = vmatprep.subr.bf16.mxu0 %v512
        %611 = vmatpush1.bf16.msra.mxu0 %v511
        %612 = vmatprep.subr.bf16.mxu0 %v516
        %613 = vmatpush1.bf16.msra.mxu0 %v515
        %614 = vmatprep.subr.bf16.mxu0 %v520
        %615 = vmatpush1.bf16.msra.mxu0 %v519
        %616 = vmatprep.subr.bf16.mxu0 %v524
        %617 = vmatpush1.bf16.msra.mxu0 %v523
        %618 = vmatprep.subr.bf16.mxu0 %v528
        %619 = vmatpush1.bf16.msra.mxu0 %v527
        %620 = vmatprep.subr.bf16.mxu0 %v532
        %621 = vmatpush1.bf16.msra.mxu0 %v531
        %622 = vmatprep.subr.bf16.mxu0 0
        %623 = vmatpush1.bf16.msra.mxu0 0
        %624 = vmatprep.subr.bf16.mxu0 0
        %625 = vmatpush1.bf16.msra.mxu0 0
        %626 = vmatprep.subr.bf16.mxu0 0
        %627 = vmatpush1.bf16.msra.mxu0 0
        %628 = vmatprep.subr.bf16.mxu0 0
        %629 = vmatpush1.bf16.msra.mxu0 0
        %630 = vmatprep.subr.bf16.mxu0 0
        %631 = vmatpush1.bf16.msra.mxu0 0
        %632 = vmatprep.subr.bf16.mxu0 0
        %633 = vmatpush1.bf16.msra.mxu0 0
        %634 = vmatprep.subr.bf16.mxu0 0
        %635 = vmatpush1.bf16.msra.mxu0 0
        %636 = vmatprep.subr.bf16.mxu0 0
        %637 = vmatpush1.bf16.msra.mxu0 0
        %638 = vmatprep.mubr.bf16.mxu0 0
        %639 = vmatmul.mubr.bf16.gmra.mrb[0].mxu0 %v372
        %v640 = vpop.f32.mrb[0].mxu0
        %v641 = vadd.f32 0.0, %v640
        %v642 = vpop.f32.mrb[0].mxu0
        %v643 = vadd.f32 0.0, %v642
        %v644 = vpop.f32.mrb[0].mxu0
        %v645 = vpop.f32.mrb[0].mxu0
        %646 = vdwg.mxu0
        %v647 = vlaneseq
        %v648 = vshrl.u32 %v647, 7
        %v649 = vadd.s32 %v648, 8
        %v650 = vadd.s32 %v648, 16
        %v651 = vadd.s32 %v648, 24
        %v652 = vadd.s32 %v648, 32
        %v653 = vadd.s32 %v648, 40
        %v654 = vadd.s32 %v648, 48
        %v655 = vadd.s32 %v648, 56
        %v656 = vadd.s32 %v648, 64
        %v657 = vadd.s32 %v648, 72
        %v658 = vadd.s32 %v648, 80
        %v659 = vadd.s32 %v648, 88
        %v660 = vadd.s32 %v648, 96
        %v661 = vadd.s32 %v648, 104
        %v662 = vadd.s32 %v648, 112
        %v663 = vadd.s32 %v648, 120
        %v664 = vlaneseq
        %v665 = vand.u32 %v664, 127
        %v666 = vstv %s371
        %v667 = vadd.s32 %v665, %v666
        %vm668 = vcmp.eq.s32.totalorder %v648, %v667
        %vm669 = vcmp.eq.s32.totalorder %v649, %v667
        %vm670 = vcmp.eq.s32.totalorder %v650, %v667
        %vm671 = vcmp.eq.s32.totalorder %v651, %v667
        %vm672 = vcmp.eq.s32.totalorder %v652, %v667
        %vm673 = vcmp.eq.s32.totalorder %v653, %v667
        %vm674 = vcmp.eq.s32.totalorder %v654, %v667
        %vm675 = vcmp.eq.s32.totalorder %v655, %v667
        %vm676 = vcmp.eq.s32.totalorder %v656, %v667
        %vm677 = vcmp.eq.s32.totalorder %v657, %v667
        %vm678 = vcmp.eq.s32.totalorder %v658, %v667
        %vm679 = vcmp.eq.s32.totalorder %v659, %v667
        %vm680 = vcmp.eq.s32.totalorder %v660, %v667
        %vm681 = vcmp.eq.s32.totalorder %v661, %v667
        %vm682 = vcmp.eq.s32.totalorder %v662, %v667
        %vm683 = vcmp.eq.s32.totalorder %v663, %v667
        %v684 = vsel %vm668, 1, 0
        %v685 = vsel %vm669, 1, 0
        %v686 = vsel %vm670, 1, 0
        %v687 = vsel %vm671, 1, 0
        %v688 = vsel %vm672, 1, 0
        %v689 = vsel %vm673, 1, 0
        %v690 = vsel %vm674, 1, 0
        %v691 = vsel %vm675, 1, 0
        %v692 = vsel %vm676, 1, 0
        %v693 = vsel %vm677, 1, 0
        %v694 = vsel %vm678, 1, 0
        %v695 = vsel %vm679, 1, 0
        %v696 = vsel %vm680, 1, 0
        %v697 = vsel %vm681, 1, 0
        %v698 = vsel %vm682, 1, 0
        %v699 = vsel %vm683, 1, 0
        %v700 = vcvt.s32.f32 %v684
        %v701 = vcvt.s32.f32 %v685
        %v702 = vcvt.s32.f32 %v686
        %v703 = vcvt.s32.f32 %v687
        %v704 = vcvt.s32.f32 %v688
        %v705 = vcvt.s32.f32 %v689
        %v706 = vcvt.s32.f32 %v690
        %v707 = vcvt.s32.f32 %v691
        %v708 = vcvt.s32.f32 %v692
        %v709 = vcvt.s32.f32 %v693
        %v710 = vcvt.s32.f32 %v694
        %v711 = vcvt.s32.f32 %v695
        %v712 = vcvt.s32.f32 %v696
        %v713 = vcvt.s32.f32 %v697
        %v714 = vcvt.s32.f32 %v698
        %v715 = vcvt.s32.f32 %v699
        %vm716 = vcmask 703488
        %717 = vst.msk [vmem:[#allocation2] sm:$0xff] %vm716, 0.0
        %vm718 = vcmask 697344
        %719 = vst.msk [vmem:[#allocation2 + $0x8] sm:$0x3] %vm718, 0.0
        %720 = vst.msk [vmem:[#allocation2 + $0x10] sm:$0xff] %vm716, 0.0
        %721 = vst.msk [vmem:[#allocation2 + $0x18] sm:$0x3] %vm718, 0.0
        %v722 = vmul.f32 %v600, %v600
        %v723 = vmul.f32 %v641, %v641
        %v724 = vadd.f32 %v722, %v723
        %v725 = vadd.f32 %v724, 1e-12
        %v726 = vrsqrt.pop %v725
        %v727 = vmul.f32 %v725, %v726
        %vm728 = vcmp.eq.f32.partialorder %v725, inf
        %v729 = vsel %vm728, %v725, %v727
        %vm730 = vcmp.eq.f32.partialorder %v725, 0.0
        %v731 = vand.u32 %v725, 2147483648
        %v732 = vsel %vm730, %v731, %v729
        %733 = vmatprep.subr.mxu0 0.0
        %734 = vmatpush1.msra.mxu0 %v700
        %735 = vmatprep.subr.mxu0 0.0
        %736 = vmatpush1.msra.mxu0 %v701
        %737 = vmatprep.subr.mxu0 0.0
        %738 = vmatpush1.msra.mxu0 %v702
        %739 = vmatprep.subr.mxu0 0.0
        %740 = vmatpush1.msra.mxu0 %v703
        %741 = vmatprep.subr.mxu0 0.0
        %742 = vmatpush1.msra.mxu0 %v704
        %743 = vmatprep.subr.mxu0 0.0
        %744 = vmatpush1.msra.mxu0 %v705
        %745 = vmatprep.subr.mxu0 0.0
        %746 = vmatpush1.msra.mxu0 %v706
        %747 = vmatprep.subr.mxu0 0.0
        %748 = vmatpush1.msra.mxu0 %v707
        %749 = vmatprep.subr.mxu0 0.0
        %750 = vmatpush1.msra.mxu0 %v708
        %751 = vmatprep.subr.mxu0 0.0
        %752 = vmatpush1.msra.mxu0 %v709
        %753 = vmatprep.subr.mxu0 0.0
        %754 = vmatpush1.msra.mxu0 %v710
        %755 = vmatprep.subr.mxu0 0.0
        %756 = vmatpush1.msra.mxu0 %v711
        %757 = vmatprep.subr.mxu0 0.0
        %758 = vmatpush1.msra.mxu0 %v712
        %759 = vmatprep.subr.mxu0 0.0
        %760 = vmatpush1.msra.mxu0 %v713
        %761 = vmatprep.subr.mxu0 0.0
        %762 = vmatpush1.msra.mxu0 %v714
        %763 = vmatprep.subr.mxu0 0.0
        %764 = vmatpush1.msra.mxu0 %v715
        %765 = vmatprep.subr.mxu0 0.0
        %766 = vmatpush1.msra.mxu0 0.0
        %767 = vmatprep.subr.mxu0 0.0
        %768 = vmatpush1.msra.mxu0 0.0
        %769 = vmatprep.subr.mxu0 0.0
        %770 = vmatpush1.msra.mxu0 0.0
        %771 = vmatprep.subr.mxu0 0.0
        %772 = vmatpush1.msra.mxu0 0.0
        %773 = vmatprep.subr.mxu0 0.0
        %774 = vmatpush1.msra.mxu0 0.0
        %775 = vmatprep.subr.mxu0 0.0
        %776 = vmatpush1.msra.mxu0 0.0
        %777 = vmatprep.subr.mxu0 0.0
        %778 = vmatpush1.msra.mxu0 0.0
        %779 = vmatprep.subr.mxu0 0.0
        %780 = vmatpush1.msra.mxu0 0.0
        %781 = vmatprep.subr.mxu0 0.0
        %782 = vmatpush1.msra.mxu0 0.0
        %783 = vmatprep.subr.mxu0 0.0
        %784 = vmatpush1.msra.mxu0 0.0
        %785 = vmatprep.subr.mxu0 0.0
        %786 = vmatpush1.msra.mxu0 0.0
        %787 = vmatprep.subr.mxu0 0.0
        %788 = vmatpush1.msra.mxu0 0.0
        %789 = vmatprep.subr.mxu0 0.0
        %790 = vmatpush1.msra.mxu0 0.0
        %791 = vmatprep.subr.mxu0 0.0
        %792 = vmatpush1.msra.mxu0 0.0
        %793 = vmatprep.subr.mxu0 0.0
        %794 = vmatpush1.msra.mxu0 0.0
        %795 = vmatprep.subr.mxu0 0.0
        %796 = vmatpush1.msra.mxu0 0.0
        %797 = vmatprep.mubr.f32.mxu0 0.0
        %798 = vmatmul.mubr.f32.gmra.mrb[0].mxu0 %v732
        %v799 = vpop.f32.mrb[0].mxu0
        %v800 = vadd.f32 0.0, %v799
        %v801 = vpop.f32.mrb[0].mxu0
        %802 = vdwg.mxu0
        %804 = vrot.lane.b32.xlu0 %v800, 1
        %v805 = vpop.permute.xlu0 %804
        %vm807 = vcmask 695304
        %808 = vst.msk [vmem:[#allocation2 + $0x1] sm:$0xff] %vm807, %v805
        %v809 = vmul.f32 %v602, %v602
        %v810 = vmul.f32 %v643, %v643
        %v811 = vadd.f32 %v809, %v810
        %v812 = vadd.f32 %v811, 1e-12
        %v813 = vrsqrt.pop %v812
        %v814 = vmul.f32 %v812, %v813
        %vm815 = vcmp.eq.f32.partialorder %v812, inf
        %v816 = vsel %vm815, %v812, %v814
        %vm817 = vcmp.eq.f32.partialorder %v812, 0.0
        %v818 = vand.u32 %v812, 2147483648
        %v819 = vsel %vm817, %v818, %v816
        %820 = vmatprep.subr.mxu0 0.0
        %821 = vmatpush1.msra.mxu0 %v700
        %822 = vmatprep.subr.mxu0 0.0
        %823 = vmatpush1.msra.mxu0 %v701
        %824 = vmatprep.subr.mxu0 0.0
        %825 = vmatpush1.msra.mxu0 %v702
        %826 = vmatprep.subr.mxu0 0.0
        %827 = vmatpush1.msra.mxu0 %v703
        %828 = vmatprep.subr.mxu0 0.0
        %829 = vmatpush1.msra.mxu0 %v704
        %830 = vmatprep.subr.mxu0 0.0
        %831 = vmatpush1.msra.mxu0 %v705
        %832 = vmatprep.subr.mxu0 0.0
        %833 = vmatpush1.msra.mxu0 %v706
        %834 = vmatprep.subr.mxu0 0.0
        %835 = vmatpush1.msra.mxu0 %v707
        %836 = vmatprep.subr.mxu0 0.0
        %837 = vmatpush1.msra.mxu0 %v708
        %838 = vmatprep.subr.mxu0 0.0
        %839 = vmatpush1.msra.mxu0 %v709
        %840 = vmatprep.subr.mxu0 0.0
        %841 = vmatpush1.msra.mxu0 %v710
        %842 = vmatprep.subr.mxu0 0.0
        %843 = vmatpush1.msra.mxu0 %v711
        %844 = vmatprep.subr.mxu0 0.0
        %845 = vmatpush1.msra.mxu0 %v712
        %846 = vmatprep.subr.mxu0 0.0
        %847 = vmatpush1.msra.mxu0 %v713
        %848 = vmatprep.subr.mxu0 0.0
        %849 = vmatpush1.msra.mxu0 %v714
        %850 = vmatprep.subr.mxu0 0.0
        %851 = vmatpush1.msra.mxu0 %v715
        %852 = vmatprep.subr.mxu0 0.0
        %853 = vmatpush1.msra.mxu0 0.0
        %854 = vmatprep.subr.mxu0 0.0
        %855 = vmatpush1.msra.mxu0 0.0
        %856 = vmatprep.subr.mxu0 0.0
        %857 = vmatpush1.msra.mxu0 0.0
        %858 = vmatprep.subr.mxu0 0.0
        %859 = vmatpush1.msra.mxu0 0.0
        %860 = vmatprep.subr.mxu0 0.0
        %861 = vmatpush1.msra.mxu0 0.0
        %862 = vmatprep.subr.mxu0 0.0
        %863 = vmatpush1.msra.mxu0 0.0
        %864 = vmatprep.subr.mxu0 0.0
        %865 = vmatpush1.msra.mxu0 0.0
        %866 = vmatprep.subr.mxu0 0.0
        %867 = vmatpush1.msra.mxu0 0.0
        %868 = vmatprep.subr.mxu0 0.0
        %869 = vmatpush1.msra.mxu0 0.0
        %870 = vmatprep.subr.mxu0 0.0
        %871 = vmatpush1.msra.mxu0 0.0
        %872 = vmatprep.subr.mxu0 0.0
        %873 = vmatpush1.msra.mxu0 0.0
        %874 = vmatprep.subr.mxu0 0.0
        %875 = vmatpush1.msra.mxu0 0.0
        %876 = vmatprep.subr.mxu0 0.0
        %877 = vmatpush1.msra.mxu0 0.0
        %878 = vmatprep.subr.mxu0 0.0
        %879 = vmatpush1.msra.mxu0 0.0
        %880 = vmatprep.subr.mxu0 0.0
        %881 = vmatpush1.msra.mxu0 0.0
        %882 = vmatprep.subr.mxu0 0.0
        %883 = vmatpush1.msra.mxu0 0.0
        %884 = vmatprep.mubr.f32.mxu0 0.0
        %885 = vmatmul.mubr.f32.gmra.mrb[0].mxu0 %v819
        %v886 = vpop.f32.mrb[0].mxu0
        %v887 = vadd.f32 0.0, %v886
        %v888 = vpop.f32.mrb[0].mxu0
        %889 = vdwg.mxu0
        %891 = vrot.lane.b32.xlu0 %v887, 1
        %v892 = vpop.permute.xlu0 %891
        %s894 = scalar_lea.vmem [#allocation2], 16
        %895 = vst.msk [vmem:[%s894 + $0x1] sm:$0xff] %vm807, %v892
        %v896 = vld [vmem:[#allocation2] sm:$0xff]
        %v897 = vld [vmem:[#allocation2 + $0x8] sm:$0x3]
        %v898 = vld [vmem:[#allocation2 + $0x10] sm:$0xff]
        %v899 = vld [vmem:[#allocation2 + $0x18] sm:$0x3]
        %900 = vst.msk [vmem:[#allocation3] sm:$0xff] %vm716, 0.0
        %901 = vst.msk [vmem:[#allocation3 + $0x8] sm:$0x3] %vm718, 0.0
        %902 = vst.msk [vmem:[#allocation3 + $0x10] sm:$0xff] %vm716, 0.0
        %903 = vst.msk [vmem:[#allocation3 + $0x18] sm:$0x3] %vm718, 0.0
        %904 = vst.msk [vmem:[#allocation3 + $0x20] sm:$0xff] %vm716, 0.0
        %905 = vst.msk [vmem:[#allocation3 + $0x28] sm:$0x3] %vm718, 0.0
        %906 = vst.msk [vmem:[#allocation3 + $0x30] sm:$0xff] %vm716, 0.0
        %907 = vst.msk [vmem:[#allocation3 + $0x38] sm:$0x3] %vm718, 0.0
        %s908 = sld [smem:[#allocation7]]
        %v909 = vstv %s908
        %v910 = vmul.f32 %v909, %v896
        %v911 = vadd.f32 %v910, 0.0
        %s912 = sld [smem:[#allocation7 + $0x1]]
        %v913 = vstv %s912
        %v914 = vmul.f32 %v913, %v896
        %916 = vrot.lane.b32.xlu0 %v914, 127
        %v917 = vpop.permute.xlu0 %916
        %v919 = vadd.f32 %v911, %v917
        %s920 = sld [smem:[#allocation7 + $0x2]]
        %v921 = vstv %s920
        %v922 = vmul.f32 %v921, %v896
        %924 = vrot.lane.b32.xlu0 %v922, 126
        %v925 = vpop.permute.xlu0 %924
        %v927 = vadd.f32 %v919, %v925
        %s928 = sld [smem:[#allocation7 + $0x3]]
        %v929 = vstv %s928
        %v930 = vmul.f32 %v929, %v896
        %v931 = vmul.f32 %v929, %v897
        %vm934 = vcmask 1046528
        %v935 = vrot.slane %v930, 1
        %v936 = vrot.slane %v931, 1
        %v937 = vsel %vm934, %v935, %v936
        %v939 = vadd.f32 %v927, %v937
        %s940 = sld [smem:[#allocation7 + $0x4]]
        %v941 = vstv %s940
        %v942 = vmul.f32 %v941, %v896
        %v943 = vmul.f32 %v941, %v897
        %v946 = vrot.slane %v942, 1
        %v947 = vrot.slane %v943, 1
        %v948 = vsel %vm934, %v946, %v947
        %949 = vrot.lane.b32.xlu0 %v948, 127
        %v950 = vpop.permute.xlu0 %949
        %v952 = vadd.f32 %v939, %v950
        %s953 = sld [smem:[#allocation7 + $0x5]]
        %v954 = vstv %s953
        %v955 = vmul.f32 %v954, %v896
        %v956 = vmul.f32 %v954, %v897
        %v959 = vrot.slane %v955, 1
        %v960 = vrot.slane %v956, 1
        %v961 = vsel %vm934, %v959, %v960
        %962 = vrot.lane.b32.xlu0 %v961, 126
        %v963 = vpop.permute.xlu0 %962
        %v965 = vadd.f32 %v952, %v963
        %s966 = sld [smem:[#allocation7 + $0x6]]
        %v967 = vstv %s966
        %v968 = vmul.f32 %v967, %v896
        %v969 = vmul.f32 %v967, %v897
        %vm972 = vcmask 1045504
        %v973 = vrot.slane %v968, 2
        %v974 = vrot.slane %v969, 2
        %v975 = vsel %vm972, %v973, %v974
        %v977 = vadd.f32 %v965, %v975
        %s978 = sld [smem:[#allocation7 + $0x7]]
        %v979 = vstv %s978
        %v980 = vmul.f32 %v979, %v896
        %v981 = vmul.f32 %v979, %v897
        %v984 = vrot.slane %v980, 2
        %v985 = vrot.slane %v981, 2
        %v986 = vsel %vm972, %v984, %v985
        %987 = vrot.lane.b32.xlu0 %v986, 127
        %v988 = vpop.permute.xlu0 %987
        %v990 = vadd.f32 %v977, %v988
        %s991 = sld [smem:[#allocation7 + $0x8]]
        %v992 = vstv %s991
        %v993 = vmul.f32 %v992, %v896
        %v994 = vmul.f32 %v992, %v897
        %v997 = vrot.slane %v993, 2
        %v998 = vrot.slane %v994, 2
        %v999 = vsel %vm972, %v997, %v998
        %1000 = vrot.lane.b32.xlu0 %v999, 126
        %v1001 = vpop.permute.xlu0 %1000
        %v1003 = vadd.f32 %v990, %v1001
        %s1004 = sld [smem:[#allocation7 + $0x9]]
        %v1005 = vstv %s1004
        %v1006 = vmul.f32 %v1005, %v898
        %v1007 = vadd.f32 %v1003, %v1006
        %s1008 = sld [smem:[#allocation7 + $0xa]]
        %v1009 = vstv %s1008
        %v1010 = vmul.f32 %v1009, %v898
        %1012 = vrot.lane.b32.xlu0 %v1010, 127
        %v1013 = vpop.permute.xlu0 %1012
        %v1015 = vadd.f32 %v1007, %v1013
        %s1016 = sld [smem:[#allocation7 + $0xb]]
        %v1017 = vstv %s1016
        %v1018 = vmul.f32 %v1017, %v898
        %1020 = vrot.lane.b32.xlu0 %v1018, 126
        %v1021 = vpop.permute.xlu0 %1020
        %v1023 = vadd.f32 %v1015, %v1021
        %s1024 = sld [smem:[#allocation7 + $0xc]]
        %v1025 = vstv %s1024
        %v1026 = vmul.f32 %v1025, %v898
        %v1027 = vmul.f32 %v1025, %v899
        %v1030 = vrot.slane %v1026, 1
        %v1031 = vrot.slane %v1027, 1
        %v1032 = vsel %vm934, %v1030, %v1031
        %v1034 = vadd.f32 %v1023, %v1032
        %s1035 = sld [smem:[#allocation7 + $0xd]]
        %v1036 = vstv %s1035
        %v1037 = vmul.f32 %v1036, %v898
        %v1038 = vmul.f32 %v1036, %v899
        %v1041 = vrot.slane %v1037, 1
        %v1042 = vrot.slane %v1038, 1
        %v1043 = vsel %vm934, %v1041, %v1042
        %1044 = vrot.lane.b32.xlu0 %v1043, 127
        %v1045 = vpop.permute.xlu0 %1044
        %v1047 = vadd.f32 %v1034, %v1045
        %s1048 = sld [smem:[#allocation7 + $0xe]]
        %v1049 = vstv %s1048
        %v1050 = vmul.f32 %v1049, %v898
        %v1051 = vmul.f32 %v1049, %v899
        %v1054 = vrot.slane %v1050, 1
        %v1055 = vrot.slane %v1051, 1
        %v1056 = vsel %vm934, %v1054, %v1055
        %1057 = vrot.lane.b32.xlu0 %v1056, 126
        %v1058 = vpop.permute.xlu0 %1057
        %v1060 = vadd.f32 %v1047, %v1058
        %s1061 = sld [smem:[#allocation7 + $0xf]]
        %v1062 = vstv %s1061
        %v1063 = vmul.f32 %v1062, %v898
        %v1064 = vmul.f32 %v1062, %v899
        %v1067 = vrot.slane %v1063, 2
        %v1068 = vrot.slane %v1064, 2
        %v1069 = vsel %vm972, %v1067, %v1068
        %v1071 = vadd.f32 %v1060, %v1069
        %s1072 = sld [smem:[#allocation7 + $0x10]]
        %v1073 = vstv %s1072
        %v1074 = vmul.f32 %v1073, %v898
        %v1075 = vmul.f32 %v1073, %v899
        %v1078 = vrot.slane %v1074, 2
        %v1079 = vrot.slane %v1075, 2
        %v1080 = vsel %vm972, %v1078, %v1079
        %1081 = vrot.lane.b32.xlu0 %v1080, 127
        %v1082 = vpop.permute.xlu0 %1081
        %v1084 = vadd.f32 %v1071, %v1082
        %s1085 = sld [smem:[#allocation7 + $0x11]]
        %v1086 = vstv %s1085
        %v1087 = vmul.f32 %v1086, %v898
        %v1088 = vmul.f32 %v1086, %v899
        %v1091 = vrot.slane %v1087, 2
        %v1092 = vrot.slane %v1088, 2
        %v1093 = vsel %vm972, %v1091, %v1092
        %1094 = vrot.lane.b32.xlu0 %v1093, 126
        %v1095 = vpop.permute.xlu0 %1094
        %v1097 = vadd.f32 %v1084, %v1095
        %s1098 = sld [smem:[#allocation9]]
        %v1099 = vstv %s1098
        %v1100 = vadd.f32 %v1097, %v1099
        %v1101 = vmax.f32 %v1100, 0.0
        %1103 = vrot.lane.b32.xlu0 %v1101, 1
        %v1104 = vpop.permute.xlu0 %1103
        %1106 = vst.msk [vmem:[#allocation3 + $0x1] sm:$0xff] %vm807, %v1104
        %s1107 = sld [smem:[#allocation7 + $0x12]]
        %v1108 = vstv %s1107
        %v1109 = vmul.f32 %v1108, %v896
        %v1110 = vadd.f32 %v1109, 0.0
        %s1111 = sld [smem:[#allocation7 + $0x13]]
        %v1112 = vstv %s1111
        %v1113 = vmul.f32 %v1112, %v896
        %1115 = vrot.lane.b32.xlu0 %v1113, 127
        %v1116 = vpop.permute.xlu0 %1115
        %v1118 = vadd.f32 %v1110, %v1116
        %s1119 = sld [smem:[#allocation7 + $0x14]]
        %v1120 = vstv %s1119
        %v1121 = vmul.f32 %v1120, %v896
        %1123 = vrot.lane.b32.xlu0 %v1121, 126
        %v1124 = vpop.permute.xlu0 %1123
        %v1126 = vadd.f32 %v1118, %v1124
        %s1127 = sld [smem:[#allocation7 + $0x15]]
        %v1128 = vstv %s1127
        %v1129 = vmul.f32 %v1128, %v896
        %v1130 = vmul.f32 %v1128, %v897
        %v1133 = vrot.slane %v1129, 1
        %v1134 = vrot.slane %v1130, 1
        %v1135 = vsel %vm934, %v1133, %v1134
        %v1137 = vadd.f32 %v1126, %v1135
        %s1138 = sld [smem:[#allocation7 + $0x16]]
        %v1139 = vstv %s1138
        %v1140 = vmul.f32 %v1139, %v896
        %v1141 = vmul.f32 %v1139, %v897
        %v1144 = vrot.slane %v1140, 1
        %v1145 = vrot.slane %v1141, 1
        %v1146 = vsel %vm934, %v1144, %v1145
        %1147 = vrot.lane.b32.xlu0 %v1146, 127
        %v1148 = vpop.permute.xlu0 %1147
        %v1150 = vadd.f32 %v1137, %v1148
        %s1151 = sld [smem:[#allocation7 + $0x17]]
        %v1152 = vstv %s1151
        %v1153 = vmul.f32 %v1152, %v896
        %v1154 = vmul.f32 %v1152, %v897
        %v1157 = vrot.slane %v1153, 1
        %v1158 = vrot.slane %v1154, 1
        %v1159 = vsel %vm934, %v1157, %v1158
        %1160 = vrot.lane.b32.xlu0 %v1159, 126
        %v1161 = vpop.permute.xlu0 %1160
        %v1163 = vadd.f32 %v1150, %v1161
        %s1164 = sld [smem:[#allocation7 + $0x18]]
        %v1165 = vstv %s1164
        %v1166 = vmul.f32 %v1165, %v896
        %v1167 = vmul.f32 %v1165, %v897
        %v1170 = vrot.slane %v1166, 2
        %v1171 = vrot.slane %v1167, 2
        %v1172 = vsel %vm972, %v1170, %v1171
        %v1174 = vadd.f32 %v1163, %v1172
        %s1175 = sld [smem:[#allocation7 + $0x19]]
        %v1176 = vstv %s1175
        %v1177 = vmul.f32 %v1176, %v896
        %v1178 = vmul.f32 %v1176, %v897
        %v1181 = vrot.slane %v1177, 2
        %v1182 = vrot.slane %v1178, 2
        %v1183 = vsel %vm972, %v1181, %v1182
        %1184 = vrot.lane.b32.xlu0 %v1183, 127
        %v1185 = vpop.permute.xlu0 %1184
        %v1187 = vadd.f32 %v1174, %v1185
        %s1188 = sld [smem:[#allocation7 + $0x1a]]
        %v1189 = vstv %s1188
        %v1190 = vmul.f32 %v1189, %v896
        %v1191 = vmul.f32 %v1189, %v897
        %v1194 = vrot.slane %v1190, 2
        %v1195 = vrot.slane %v1191, 2
        %v1196 = vsel %vm972, %v1194, %v1195
        %1197 = vrot.lane.b32.xlu0 %v1196, 126
        %v1198 = vpop.permute.xlu0 %1197
        %v1200 = vadd.f32 %v1187, %v1198
        %s1201 = sld [smem:[#allocation7 + $0x1b]]
        %v1202 = vstv %s1201
        %v1203 = vmul.f32 %v1202, %v898
        %v1204 = vadd.f32 %v1200, %v1203
        %s1205 = sld [smem:[#allocation7 + $0x1c]]
        %v1206 = vstv %s1205
        %v1207 = vmul.f32 %v1206, %v898
        %1209 = vrot.lane.b32.xlu0 %v1207, 127
        %v1210 = vpop.permute.xlu0 %1209
        %v1212 = vadd.f32 %v1204, %v1210
        %s1213 = sld [smem:[#allocation7 + $0x1d]]
        %v1214 = vstv %s1213
        %v1215 = vmul.f32 %v1214, %v898
        %1217 = vrot.lane.b32.xlu0 %v1215, 126
        %v1218 = vpop.permute.xlu0 %1217
        %v1220 = vadd.f32 %v1212, %v1218
        %s1221 = sld [smem:[#allocation7 + $0x1e]]
        %v1222 = vstv %s1221
        %v1223 = vmul.f32 %v1222, %v898
        %v1224 = vmul.f32 %v1222, %v899
        %v1227 = vrot.slane %v1223, 1
        %v1228 = vrot.slane %v1224, 1
        %v1229 = vsel %vm934, %v1227, %v1228
        %v1231 = vadd.f32 %v1220, %v1229
        %s1232 = sld [smem:[#allocation7 + $0x1f]]
        %v1233 = vstv %s1232
        %v1234 = vmul.f32 %v1233, %v898
        %v1235 = vmul.f32 %v1233, %v899
        %v1238 = vrot.slane %v1234, 1
        %v1239 = vrot.slane %v1235, 1
        %v1240 = vsel %vm934, %v1238, %v1239
        %1241 = vrot.lane.b32.xlu0 %v1240, 127
        %v1242 = vpop.permute.xlu0 %1241
        %v1244 = vadd.f32 %v1231, %v1242
        %s1245 = sld [smem:[#allocation7 + $0x20]]
        %v1246 = vstv %s1245
        %v1247 = vmul.f32 %v1246, %v898
        %v1248 = vmul.f32 %v1246, %v899
        %v1251 = vrot.slane %v1247, 1
        %v1252 = vrot.slane %v1248, 1
        %v1253 = vsel %vm934, %v1251, %v1252
        %1254 = vrot.lane.b32.xlu0 %v1253, 126
        %v1255 = vpop.permute.xlu0 %1254
        %v1257 = vadd.f32 %v1244, %v1255
        %s1258 = sld [smem:[#allocation7 + $0x21]]
        %v1259 = vstv %s1258
        %v1260 = vmul.f32 %v1259, %v898
        %v1261 = vmul.f32 %v1259, %v899
        %v1264 = vrot.slane %v1260, 2
        %v1265 = vrot.slane %v1261, 2
        %v1266 = vsel %vm972, %v1264, %v1265
        %v1268 = vadd.f32 %v1257, %v1266
        %s1269 = sld [smem:[#allocation7 + $0x22]]
        %v1270 = vstv %s1269
        %v1271 = vmul.f32 %v1270, %v898
        %v1272 = vmul.f32 %v1270, %v899
        %v1275 = vrot.slane %v1271, 2
        %v1276 = vrot.slane %v1272, 2
        %v1277 = vsel %vm972, %v1275, %v1276
        %1278 = vrot.lane.b32.xlu0 %v1277, 127
        %v1279 = vpop.permute.xlu0 %1278
        %v1281 = vadd.f32 %v1268, %v1279
        %s1282 = sld [smem:[#allocation7 + $0x23]]
        %v1283 = vstv %s1282
        %v1284 = vmul.f32 %v1283, %v898
        %v1285 = vmul.f32 %v1283, %v899
        %v1288 = vrot.slane %v1284, 2
        %v1289 = vrot.slane %v1285, 2
        %v1290 = vsel %vm972, %v1288, %v1289
        %1291 = vrot.lane.b32.xlu0 %v1290, 126
        %v1292 = vpop.permute.xlu0 %1291
        %v1294 = vadd.f32 %v1281, %v1292
        %s1295 = sld [smem:[#allocation9 + $0x1]]
        %v1296 = vstv %s1295
        %v1297 = vadd.f32 %v1294, %v1296
        %v1298 = vmax.f32 %v1297, 0.0
        %1300 = vrot.lane.b32.xlu0 %v1298, 1
        %v1301 = vpop.permute.xlu0 %1300
        %s1303 = scalar_lea.vmem [#allocation3], 16
        %1304 = vst.msk [vmem:[%s1303 + $0x1] sm:$0xff] %vm807, %v1301
        %s1305 = sld [smem:[#allocation7 + $0x24]]
        %v1306 = vstv %s1305
        %v1307 = vmul.f32 %v1306, %v896
        %v1308 = vadd.f32 %v1307, 0.0
        %s1309 = sld [smem:[#allocation7 + $0x25]]
        %v1310 = vstv %s1309
        %v1311 = vmul.f32 %v1310, %v896
        %1313 = vrot.lane.b32.xlu0 %v1311, 127
        %v1314 = vpop.permute.xlu0 %1313
        %v1316 = vadd.f32 %v1308, %v1314
        %s1317 = sld [smem:[#allocation7 + $0x26]]
        %v1318 = vstv %s1317
        %v1319 = vmul.f32 %v1318, %v896
        %1321 = vrot.lane.b32.xlu0 %v1319, 126
        %v1322 = vpop.permute.xlu0 %1321
        %v1324 = vadd.f32 %v1316, %v1322
        %s1325 = sld [smem:[#allocation7 + $0x27]]
        %v1326 = vstv %s1325
        %v1327 = vmul.f32 %v1326, %v896
        %v1328 = vmul.f32 %v1326, %v897
        %v1331 = vrot.slane %v1327, 1
        %v1332 = vrot.slane %v1328, 1
        %v1333 = vsel %vm934, %v1331, %v1332
        %v1335 = vadd.f32 %v1324, %v1333
        %s1336 = sld [smem:[#allocation7 + $0x28]]
        %v1337 = vstv %s1336
        %v1338 = vmul.f32 %v1337, %v896
        %v1339 = vmul.f32 %v1337, %v897
        %v1342 = vrot.slane %v1338, 1
        %v1343 = vrot.slane %v1339, 1
        %v1344 = vsel %vm934, %v1342, %v1343
        %1345 = vrot.lane.b32.xlu0 %v1344, 127
        %v1346 = vpop.permute.xlu0 %1345
        %v1348 = vadd.f32 %v1335, %v1346
        %s1349 = sld [smem:[#allocation7 + $0x29]]
        %v1350 = vstv %s1349
        %v1351 = vmul.f32 %v1350, %v896
        %v1352 = vmul.f32 %v1350, %v897
        %v1355 = vrot.slane %v1351, 1
        %v1356 = vrot.slane %v1352, 1
        %v1357 = vsel %vm934, %v1355, %v1356
        %1358 = vrot.lane.b32.xlu0 %v1357, 126
        %v1359 = vpop.permute.xlu0 %1358
        %v1361 = vadd.f32 %v1348, %v1359
        %s1362 = sld [smem:[#allocation7 + $0x2a]]
        %v1363 = vstv %s1362
        %v1364 = vmul.f32 %v1363, %v896
        %v1365 = vmul.f32 %v1363, %v897
        %v1368 = vrot.slane %v1364, 2
        %v1369 = vrot.slane %v1365, 2
        %v1370 = vsel %vm972, %v1368, %v1369
        %v1372 = vadd.f32 %v1361, %v1370
        %s1373 = sld [smem:[#allocation7 + $0x2b]]
        %v1374 = vstv %s1373
        %v1375 = vmul.f32 %v1374, %v896
        %v1376 = vmul.f32 %v1374, %v897
        %v1379 = vrot.slane %v1375, 2
        %v1380 = vrot.slane %v1376, 2
        %v1381 = vsel %vm972, %v1379, %v1380
        %1382 = vrot.lane.b32.xlu0 %v1381, 127
        %v1383 = vpop.permute.xlu0 %1382
        %v1385 = vadd.f32 %v1372, %v1383
        %s1386 = sld [smem:[#allocation7 + $0x2c]]
        %v1387 = vstv %s1386
        %v1388 = vmul.f32 %v1387, %v896
        %v1389 = vmul.f32 %v1387, %v897
        %v1392 = vrot.slane %v1388, 2
        %v1393 = vrot.slane %v1389, 2
        %v1394 = vsel %vm972, %v1392, %v1393
        %1395 = vrot.lane.b32.xlu0 %v1394, 126
        %v1396 = vpop.permute.xlu0 %1395
        %v1398 = vadd.f32 %v1385, %v1396
        %s1399 = sld [smem:[#allocation7 + $0x2d]]
        %v1400 = vstv %s1399
        %v1401 = vmul.f32 %v1400, %v898
        %v1402 = vadd.f32 %v1398, %v1401
        %s1403 = sld [smem:[#allocation7 + $0x2e]]
        %v1404 = vstv %s1403
        %v1405 = vmul.f32 %v1404, %v898
        %1407 = vrot.lane.b32.xlu0 %v1405, 127
        %v1408 = vpop.permute.xlu0 %1407
        %v1410 = vadd.f32 %v1402, %v1408
        %s1411 = sld [smem:[#allocation7 + $0x2f]]
        %v1412 = vstv %s1411
        %v1413 = vmul.f32 %v1412, %v898
        %1415 = vrot.lane.b32.xlu0 %v1413, 126
        %v1416 = vpop.permute.xlu0 %1415
        %v1418 = vadd.f32 %v1410, %v1416
        %s1419 = sld [smem:[#allocation7 + $0x30]]
        %v1420 = vstv %s1419
        %v1421 = vmul.f32 %v1420, %v898
        %v1422 = vmul.f32 %v1420, %v899
        %v1425 = vrot.slane %v1421, 1
        %v1426 = vrot.slane %v1422, 1
        %v1427 = vsel %vm934, %v1425, %v1426
        %v1429 = vadd.f32 %v1418, %v1427
        %s1430 = sld [smem:[#allocation7 + $0x31]]
        %v1431 = vstv %s1430
        %v1432 = vmul.f32 %v1431, %v898
        %v1433 = vmul.f32 %v1431, %v899
        %v1436 = vrot.slane %v1432, 1
        %v1437 = vrot.slane %v1433, 1
        %v1438 = vsel %vm934, %v1436, %v1437
        %1439 = vrot.lane.b32.xlu0 %v1438, 127
        %v1440 = vpop.permute.xlu0 %1439
        %v1442 = vadd.f32 %v1429, %v1440
        %s1443 = sld [smem:[#allocation7 + $0x32]]
        %v1444 = vstv %s1443
        %v1445 = vmul.f32 %v1444, %v898
        %v1446 = vmul.f32 %v1444, %v899
        %v1449 = vrot.slane %v1445, 1
        %v1450 = vrot.slane %v1446, 1
        %v1451 = vsel %vm934, %v1449, %v1450
        %1452 = vrot.lane.b32.xlu0 %v1451, 126
        %v1453 = vpop.permute.xlu0 %1452
        %v1455 = vadd.f32 %v1442, %v1453
        %s1456 = sld [smem:[#allocation7 + $0x33]]
        %v1457 = vstv %s1456
        %v1458 = vmul.f32 %v1457, %v898
        %v1459 = vmul.f32 %v1457, %v899
        %v1462 = vrot.slane %v1458, 2
        %v1463 = vrot.slane %v1459, 2
        %v1464 = vsel %vm972, %v1462, %v1463
        %v1466 = vadd.f32 %v1455, %v1464
        %s1467 = sld [smem:[#allocation7 + $0x34]]
        %v1468 = vstv %s1467
        %v1469 = vmul.f32 %v1468, %v898
        %v1470 = vmul.f32 %v1468, %v899
        %v1473 = vrot.slane %v1469, 2
        %v1474 = vrot.slane %v1470, 2
        %v1475 = vsel %vm972, %v1473, %v1474
        %1476 = vrot.lane.b32.xlu0 %v1475, 127
        %v1477 = vpop.permute.xlu0 %1476
        %v1479 = vadd.f32 %v1466, %v1477
        %s1480 = sld [smem:[#allocation7 + $0x35]]
        %v1481 = vstv %s1480
        %v1482 = vmul.f32 %v1481, %v898
        %v1483 = vmul.f32 %v1481, %v899
        %v1486 = vrot.slane %v1482, 2
        %v1487 = vrot.slane %v1483, 2
        %v1488 = vsel %vm972, %v1486, %v1487
        %1489 = vrot.lane.b32.xlu0 %v1488, 126
        %v1490 = vpop.permute.xlu0 %1489
        %v1492 = vadd.f32 %v1479, %v1490
        %s1493 = sld [smem:[#allocation9 + $0x2]]
        %v1494 = vstv %s1493
        %v1495 = vadd.f32 %v1492, %v1494
        %v1496 = vmax.f32 %v1495, 0.0
        %1498 = vrot.lane.b32.xlu0 %v1496, 1
        %v1499 = vpop.permute.xlu0 %1498
        %s1501 = scalar_lea.vmem [#allocation3], 32
        %1502 = vst.msk [vmem:[%s1501 + $0x1] sm:$0xff] %vm807, %v1499
        %s1503 = sld [smem:[#allocation7 + $0x36]]
        %v1504 = vstv %s1503
        %v1505 = vmul.f32 %v1504, %v896
        %v1506 = vadd.f32 %v1505, 0.0
        %s1507 = sld [smem:[#allocation7 + $0x37]]
        %v1508 = vstv %s1507
        %v1509 = vmul.f32 %v1508, %v896
        %1511 = vrot.lane.b32.xlu0 %v1509, 127
        %v1512 = vpop.permute.xlu0 %1511
        %v1514 = vadd.f32 %v1506, %v1512
        %s1515 = sld [smem:[#allocation7 + $0x38]]
        %v1516 = vstv %s1515
        %v1517 = vmul.f32 %v1516, %v896
        %1519 = vrot.lane.b32.xlu0 %v1517, 126
        %v1520 = vpop.permute.xlu0 %1519
        %v1522 = vadd.f32 %v1514, %v1520
        %s1523 = sld [smem:[#allocation7 + $0x39]]
        %v1524 = vstv %s1523
        %v1525 = vmul.f32 %v1524, %v896
        %v1526 = vmul.f32 %v1524, %v897
        %v1529 = vrot.slane %v1525, 1
        %v1530 = vrot.slane %v1526, 1
        %v1531 = vsel %vm934, %v1529, %v1530
        %v1533 = vadd.f32 %v1522, %v1531
        %s1534 = sld [smem:[#allocation7 + $0x3a]]
        %v1535 = vstv %s1534
        %v1536 = vmul.f32 %v1535, %v896
        %v1537 = vmul.f32 %v1535, %v897
        %v1540 = vrot.slane %v1536, 1
        %v1541 = vrot.slane %v1537, 1
        %v1542 = vsel %vm934, %v1540, %v1541
        %1543 = vrot.lane.b32.xlu0 %v1542, 127
        %v1544 = vpop.permute.xlu0 %1543
        %v1546 = vadd.f32 %v1533, %v1544
        %s1547 = sld [smem:[#allocation7 + $0x3b]]
        %v1548 = vstv %s1547
        %v1549 = vmul.f32 %v1548, %v896
        %v1550 = vmul.f32 %v1548, %v897
        %v1553 = vrot.slane %v1549, 1
        %v1554 = vrot.slane %v1550, 1
        %v1555 = vsel %vm934, %v1553, %v1554
        %1556 = vrot.lane.b32.xlu0 %v1555, 126
        %v1557 = vpop.permute.xlu0 %1556
        %v1559 = vadd.f32 %v1546, %v1557
        %s1560 = sld [smem:[#allocation7 + $0x3c]]
        %v1561 = vstv %s1560
        %v1562 = vmul.f32 %v1561, %v896
        %v1563 = vmul.f32 %v1561, %v897
        %v1566 = vrot.slane %v1562, 2
        %v1567 = vrot.slane %v1563, 2
        %v1568 = vsel %vm972, %v1566, %v1567
        %v1570 = vadd.f32 %v1559, %v1568
        %s1571 = sld [smem:[#allocation7 + $0x3d]]
        %v1572 = vstv %s1571
        %v1573 = vmul.f32 %v1572, %v896
        %v1574 = vmul.f32 %v1572, %v897
        %v1577 = vrot.slane %v1573, 2
        %v1578 = vrot.slane %v1574, 2
        %v1579 = vsel %vm972, %v1577, %v1578
        %1580 = vrot.lane.b32.xlu0 %v1579, 127
        %v1581 = vpop.permute.xlu0 %1580
        %v1583 = vadd.f32 %v1570, %v1581
        %s1584 = sld [smem:[#allocation7 + $0x3e]]
        %v1585 = vstv %s1584
        %v1586 = vmul.f32 %v1585, %v896
        %v1587 = vmul.f32 %v1585, %v897
        %v1590 = vrot.slane %v1586, 2
        %v1591 = vrot.slane %v1587, 2
        %v1592 = vsel %vm972, %v1590, %v1591
        %1593 = vrot.lane.b32.xlu0 %v1592, 126
        %v1594 = vpop.permute.xlu0 %1593
        %v1596 = vadd.f32 %v1583, %v1594
        %s1597 = sld [smem:[#allocation7 + $0x3f]]
        %v1598 = vstv %s1597
        %v1599 = vmul.f32 %v1598, %v898
        %v1600 = vadd.f32 %v1596, %v1599
        %s1601 = sld [smem:[#allocation7 + $0x40]]
        %v1602 = vstv %s1601
        %v1603 = vmul.f32 %v1602, %v898
        %1605 = vrot.lane.b32.xlu0 %v1603, 127
        %v1606 = vpop.permute.xlu0 %1605
        %v1608 = vadd.f32 %v1600, %v1606
        %s1609 = sld [smem:[#allocation7 + $0x41]]
        %v1610 = vstv %s1609
        %v1611 = vmul.f32 %v1610, %v898
        %1613 = vrot.lane.b32.xlu0 %v1611, 126
        %v1614 = vpop.permute.xlu0 %1613
        %v1616 = vadd.f32 %v1608, %v1614
        %s1617 = sld [smem:[#allocation7 + $0x42]]
        %v1618 = vstv %s1617
        %v1619 = vmul.f32 %v1618, %v898
        %v1620 = vmul.f32 %v1618, %v899
        %v1623 = vrot.slane %v1619, 1
        %v1624 = vrot.slane %v1620, 1
        %v1625 = vsel %vm934, %v1623, %v1624
        %v1627 = vadd.f32 %v1616, %v1625
        %s1628 = sld [smem:[#allocation7 + $0x43]]
        %v1629 = vstv %s1628
        %v1630 = vmul.f32 %v1629, %v898
        %v1631 = vmul.f32 %v1629, %v899
        %v1634 = vrot.slane %v1630, 1
        %v1635 = vrot.slane %v1631, 1
        %v1636 = vsel %vm934, %v1634, %v1635
        %1637 = vrot.lane.b32.xlu0 %v1636, 127
        %v1638 = vpop.permute.xlu0 %1637
        %v1640 = vadd.f32 %v1627, %v1638
        %s1641 = sld [smem:[#allocation7 + $0x44]]
        %v1642 = vstv %s1641
        %v1643 = vmul.f32 %v1642, %v898
        %v1644 = vmul.f32 %v1642, %v899
        %v1647 = vrot.slane %v1643, 1
        %v1648 = vrot.slane %v1644, 1
        %v1649 = vsel %vm934, %v1647, %v1648
        %1650 = vrot.lane.b32.xlu0 %v1649, 126
        %v1651 = vpop.permute.xlu0 %1650
        %v1653 = vadd.f32 %v1640, %v1651
        %s1654 = sld [smem:[#allocation7 + $0x45]]
        %v1655 = vstv %s1654
        %v1656 = vmul.f32 %v1655, %v898
        %v1657 = vmul.f32 %v1655, %v899
        %v1660 = vrot.slane %v1656, 2
        %v1661 = vrot.slane %v1657, 2
        %v1662 = vsel %vm972, %v1660, %v1661
        %v1664 = vadd.f32 %v1653, %v1662
        %s1665 = sld [smem:[#allocation7 + $0x46]]
        %v1666 = vstv %s1665
        %v1667 = vmul.f32 %v1666, %v898
        %v1668 = vmul.f32 %v1666, %v899
        %v1671 = vrot.slane %v1667, 2
        %v1672 = vrot.slane %v1668, 2
        %v1673 = vsel %vm972, %v1671, %v1672
        %1674 = vrot.lane.b32.xlu0 %v1673, 127
        %v1675 = vpop.permute.xlu0 %1674
        %v1677 = vadd.f32 %v1664, %v1675
        %s1678 = sld [smem:[#allocation7 + $0x47]]
        %v1679 = vstv %s1678
        %v1680 = vmul.f32 %v1679, %v898
        %v1681 = vmul.f32 %v1679, %v899
        %v1684 = vrot.slane %v1680, 2
        %v1685 = vrot.slane %v1681, 2
        %v1686 = vsel %vm972, %v1684, %v1685
        %1687 = vrot.lane.b32.xlu0 %v1686, 126
        %v1688 = vpop.permute.xlu0 %1687
        %v1690 = vadd.f32 %v1677, %v1688
        %s1691 = sld [smem:[#allocation9 + $0x3]]
        %v1692 = vstv %s1691
        %v1693 = vadd.f32 %v1690, %v1692
        %v1694 = vmax.f32 %v1693, 0.0
        %1696 = vrot.lane.b32.xlu0 %v1694, 1
        %v1697 = vpop.permute.xlu0 %1696
        %s1699 = scalar_lea.vmem [#allocation3], 48
        %1700 = vst.msk [vmem:[%s1699 + $0x1] sm:$0xff] %vm807, %v1697
        %v1701 = vld [vmem:[#allocation3] sm:$0xff]
        %v1702 = vld [vmem:[#allocation3 + $0x8] sm:$0x3]
        %v1703 = vld [vmem:[#allocation3 + $0x10] sm:$0xff]
        %v1704 = vld [vmem:[#allocation3 + $0x18] sm:$0x3]
        %v1705 = vld [vmem:[#allocation3 + $0x20] sm:$0xff]
        %v1706 = vld [vmem:[#allocation3 + $0x28] sm:$0x3]
        %v1707 = vld [vmem:[#allocation3 + $0x30] sm:$0xff]
        %v1708 = vld [vmem:[#allocation3 + $0x38] sm:$0x3]
        %v1709 = vld [vmem:[%s9] sm:$0x1]
        %v1710 = vmul.f32 %v1709, 10.0
        %s1711 = sld [smem:[#allocation11]]
        %v1712 = vstv %s1711
        %v1713 = vmul.f32 %v1712, %v1701
        %v1714 = vadd.f32 %v1713, 0.0
        %s1715 = sld [smem:[#allocation11 + $0x1]]
        %v1716 = vstv %s1715
        %v1717 = vmul.f32 %v1716, %v1701
        %1719 = vrot.lane.b32.xlu0 %v1717, 127
        %v1720 = vpop.permute.xlu0 %1719
        %v1722 = vadd.f32 %v1714, %v1720
        %s1723 = sld [smem:[#allocation11 + $0x2]]
        %v1724 = vstv %s1723
        %v1725 = vmul.f32 %v1724, %v1701
        %1727 = vrot.lane.b32.xlu0 %v1725, 126
        %v1728 = vpop.permute.xlu0 %1727
        %v1730 = vadd.f32 %v1722, %v1728
        %s1731 = sld [smem:[#allocation11 + $0x3]]
        %v1732 = vstv %s1731
        %v1733 = vmul.f32 %v1732, %v1701
        %v1734 = vmul.f32 %v1732, %v1702
        %v1737 = vrot.slane %v1733, 1
        %v1738 = vrot.slane %v1734, 1
        %v1739 = vsel %vm934, %v1737, %v1738
        %v1741 = vadd.f32 %v1730, %v1739
        %s1742 = sld [smem:[#allocation11 + $0x4]]
        %v1743 = vstv %s1742
        %v1744 = vmul.f32 %v1743, %v1701
        %v1745 = vmul.f32 %v1743, %v1702
        %v1748 = vrot.slane %v1744, 1
        %v1749 = vrot.slane %v1745, 1
        %v1750 = vsel %vm934, %v1748, %v1749
        %1751 = vrot.lane.b32.xlu0 %v1750, 127
        %v1752 = vpop.permute.xlu0 %1751
        %v1754 = vadd.f32 %v1741, %v1752
        %s1755 = sld [smem:[#allocation11 + $0x5]]
        %v1756 = vstv %s1755
        %v1757 = vmul.f32 %v1756, %v1701
        %v1758 = vmul.f32 %v1756, %v1702
        %v1761 = vrot.slane %v1757, 1
        %v1762 = vrot.slane %v1758, 1
        %v1763 = vsel %vm934, %v1761, %v1762
        %1764 = vrot.lane.b32.xlu0 %v1763, 126
        %v1765 = vpop.permute.xlu0 %1764
        %v1767 = vadd.f32 %v1754, %v1765
        %s1768 = sld [smem:[#allocation11 + $0x6]]
        %v1769 = vstv %s1768
        %v1770 = vmul.f32 %v1769, %v1701
        %v1771 = vmul.f32 %v1769, %v1702
        %v1774 = vrot.slane %v1770, 2
        %v1775 = vrot.slane %v1771, 2
        %v1776 = vsel %vm972, %v1774, %v1775
        %v1778 = vadd.f32 %v1767, %v1776
        %s1779 = sld [smem:[#allocation11 + $0x7]]
        %v1780 = vstv %s1779
        %v1781 = vmul.f32 %v1780, %v1701
        %v1782 = vmul.f32 %v1780, %v1702
        %v1785 = vrot.slane %v1781, 2
        %v1786 = vrot.slane %v1782, 2
        %v1787 = vsel %vm972, %v1785, %v1786
        %1788 = vrot.lane.b32.xlu0 %v1787, 127
        %v1789 = vpop.permute.xlu0 %1788
        %v1791 = vadd.f32 %v1778, %v1789
        %s1792 = sld [smem:[#allocation11 + $0x8]]
        %v1793 = vstv %s1792
        %v1794 = vmul.f32 %v1793, %v1701
        %v1795 = vmul.f32 %v1793, %v1702
        %v1798 = vrot.slane %v1794, 2
        %v1799 = vrot.slane %v1795, 2
        %v1800 = vsel %vm972, %v1798, %v1799
        %1801 = vrot.lane.b32.xlu0 %v1800, 126
        %v1802 = vpop.permute.xlu0 %1801
        %v1804 = vadd.f32 %v1791, %v1802
        %s1805 = sld [smem:[#allocation11 + $0x9]]
        %v1806 = vstv %s1805
        %v1807 = vmul.f32 %v1806, %v1703
        %v1808 = vadd.f32 %v1804, %v1807
        %s1809 = sld [smem:[#allocation11 + $0xa]]
        %v1810 = vstv %s1809
        %v1811 = vmul.f32 %v1810, %v1703
        %1813 = vrot.lane.b32.xlu0 %v1811, 127
        %v1814 = vpop.permute.xlu0 %1813
        %v1816 = vadd.f32 %v1808, %v1814
        %s1817 = sld [smem:[#allocation11 + $0xb]]
        %v1818 = vstv %s1817
        %v1819 = vmul.f32 %v1818, %v1703
        %1821 = vrot.lane.b32.xlu0 %v1819, 126
        %v1822 = vpop.permute.xlu0 %1821
        %v1824 = vadd.f32 %v1816, %v1822
        %s1825 = sld [smem:[#allocation11 + $0xc]]
        %v1826 = vstv %s1825
        %v1827 = vmul.f32 %v1826, %v1703
        %v1828 = vmul.f32 %v1826, %v1704
        %v1831 = vrot.slane %v1827, 1
        %v1832 = vrot.slane %v1828, 1
        %v1833 = vsel %vm934, %v1831, %v1832
        %v1835 = vadd.f32 %v1824, %v1833
        %s1836 = sld [smem:[#allocation11 + $0xd]]
        %v1837 = vstv %s1836
        %v1838 = vmul.f32 %v1837, %v1703
        %v1839 = vmul.f32 %v1837, %v1704
        %v1842 = vrot.slane %v1838, 1
        %v1843 = vrot.slane %v1839, 1
        %v1844 = vsel %vm934, %v1842, %v1843
        %1845 = vrot.lane.b32.xlu0 %v1844, 127
        %v1846 = vpop.permute.xlu0 %1845
        %v1848 = vadd.f32 %v1835, %v1846
        %s1849 = sld [smem:[#allocation11 + $0xe]]
        %v1850 = vstv %s1849
        %v1851 = vmul.f32 %v1850, %v1703
        %v1852 = vmul.f32 %v1850, %v1704
        %v1855 = vrot.slane %v1851, 1
        %v1856 = vrot.slane %v1852, 1
        %v1857 = vsel %vm934, %v1855, %v1856
        %1858 = vrot.lane.b32.xlu0 %v1857, 126
        %v1859 = vpop.permute.xlu0 %1858
        %v1861 = vadd.f32 %v1848, %v1859
        %s1862 = sld [smem:[#allocation11 + $0xf]]
        %v1863 = vstv %s1862
        %v1864 = vmul.f32 %v1863, %v1703
        %v1865 = vmul.f32 %v1863, %v1704
        %v1868 = vrot.slane %v1864, 2
        %v1869 = vrot.slane %v1865, 2
        %v1870 = vsel %vm972, %v1868, %v1869
        %v1872 = vadd.f32 %v1861, %v1870
        %s1873 = sld [smem:[#allocation11 + $0x10]]
        %v1874 = vstv %s1873
        %v1875 = vmul.f32 %v1874, %v1703
        %v1876 = vmul.f32 %v1874, %v1704
        %v1879 = vrot.slane %v1875, 2
        %v1880 = vrot.slane %v1876, 2
        %v1881 = vsel %vm972, %v1879, %v1880
        %1882 = vrot.lane.b32.xlu0 %v1881, 127
        %v1883 = vpop.permute.xlu0 %1882
        %v1885 = vadd.f32 %v1872, %v1883
        %s1886 = sld [smem:[#allocation11 + $0x11]]
        %v1887 = vstv %s1886
        %v1888 = vmul.f32 %v1887, %v1703
        %v1889 = vmul.f32 %v1887, %v1704
        %v1892 = vrot.slane %v1888, 2
        %v1893 = vrot.slane %v1889, 2
        %v1894 = vsel %vm972, %v1892, %v1893
        %1895 = vrot.lane.b32.xlu0 %v1894, 126
        %v1896 = vpop.permute.xlu0 %1895
        %v1898 = vadd.f32 %v1885, %v1896
        %s1899 = sld [smem:[#allocation11 + $0x12]]
        %v1900 = vstv %s1899
        %v1901 = vmul.f32 %v1900, %v1705
        %v1902 = vadd.f32 %v1898, %v1901
        %s1903 = sld [smem:[#allocation11 + $0x13]]
        %v1904 = vstv %s1903
        %v1905 = vmul.f32 %v1904, %v1705
        %1907 = vrot.lane.b32.xlu0 %v1905, 127
        %v1908 = vpop.permute.xlu0 %1907
        %v1910 = vadd.f32 %v1902, %v1908
        %s1911 = sld [smem:[#allocation11 + $0x14]]
        %v1912 = vstv %s1911
        %v1913 = vmul.f32 %v1912, %v1705
        %1915 = vrot.lane.b32.xlu0 %v1913, 126
        %v1916 = vpop.permute.xlu0 %1915
        %v1918 = vadd.f32 %v1910, %v1916
        %s1919 = sld [smem:[#allocation11 + $0x15]]
        %v1920 = vstv %s1919
        %v1921 = vmul.f32 %v1920, %v1705
        %v1922 = vmul.f32 %v1920, %v1706
        %v1925 = vrot.slane %v1921, 1
        %v1926 = vrot.slane %v1922, 1
        %v1927 = vsel %vm934, %v1925, %v1926
        %v1929 = vadd.f32 %v1918, %v1927
        %s1930 = sld [smem:[#allocation11 + $0x16]]
        %v1931 = vstv %s1930
        %v1932 = vmul.f32 %v1931, %v1705
        %v1933 = vmul.f32 %v1931, %v1706
        %v1936 = vrot.slane %v1932, 1
        %v1937 = vrot.slane %v1933, 1
        %v1938 = vsel %vm934, %v1936, %v1937
        %1939 = vrot.lane.b32.xlu0 %v1938, 127
        %v1940 = vpop.permute.xlu0 %1939
        %v1942 = vadd.f32 %v1929, %v1940
        %s1943 = sld [smem:[#allocation11 + $0x17]]
        %v1944 = vstv %s1943
        %v1945 = vmul.f32 %v1944, %v1705
        %v1946 = vmul.f32 %v1944, %v1706
        %v1949 = vrot.slane %v1945, 1
        %v1950 = vrot.slane %v1946, 1
        %v1951 = vsel %vm934, %v1949, %v1950
        %1952 = vrot.lane.b32.xlu0 %v1951, 126
        %v1953 = vpop.permute.xlu0 %1952
        %v1955 = vadd.f32 %v1942, %v1953
        %s1956 = sld [smem:[#allocation11 + $0x18]]
        %v1957 = vstv %s1956
        %v1958 = vmul.f32 %v1957, %v1705
        %v1959 = vmul.f32 %v1957, %v1706
        %v1962 = vrot.slane %v1958, 2
        %v1963 = vrot.slane %v1959, 2
        %v1964 = vsel %vm972, %v1962, %v1963
        %v1966 = vadd.f32 %v1955, %v1964
        %s1967 = sld [smem:[#allocation11 + $0x19]]
        %v1968 = vstv %s1967
        %v1969 = vmul.f32 %v1968, %v1705
        %v1970 = vmul.f32 %v1968, %v1706
        %v1973 = vrot.slane %v1969, 2
        %v1974 = vrot.slane %v1970, 2
        %v1975 = vsel %vm972, %v1973, %v1974
        %1976 = vrot.lane.b32.xlu0 %v1975, 127
        %v1977 = vpop.permute.xlu0 %1976
        %v1979 = vadd.f32 %v1966, %v1977
        %s1980 = sld [smem:[#allocation11 + $0x1a]]
        %v1981 = vstv %s1980
        %v1982 = vmul.f32 %v1981, %v1705
        %v1983 = vmul.f32 %v1981, %v1706
        %v1986 = vrot.slane %v1982, 2
        %v1987 = vrot.slane %v1983, 2
        %v1988 = vsel %vm972, %v1986, %v1987
        %1989 = vrot.lane.b32.xlu0 %v1988, 126
        %v1990 = vpop.permute.xlu0 %1989
        %v1992 = vadd.f32 %v1979, %v1990
        %s1993 = sld [smem:[#allocation11 + $0x1b]]
        %v1994 = vstv %s1993
        %v1995 = vmul.f32 %v1994, %v1707
        %v1996 = vadd.f32 %v1992, %v1995
        %s1997 = sld [smem:[#allocation11 + $0x1c]]
        %v1998 = vstv %s1997
        %v1999 = vmul.f32 %v1998, %v1707
        %2001 = vrot.lane.b32.xlu0 %v1999, 127
        %v2002 = vpop.permute.xlu0 %2001
        %v2004 = vadd.f32 %v1996, %v2002
        %s2005 = sld [smem:[#allocation11 + $0x1d]]
        %v2006 = vstv %s2005
        %v2007 = vmul.f32 %v2006, %v1707
        %2009 = vrot.lane.b32.xlu0 %v2007, 126
        %v2010 = vpop.permute.xlu0 %2009
        %v2012 = vadd.f32 %v2004, %v2010
        %s2013 = sld [smem:[#allocation11 + $0x1e]]
        %v2014 = vstv %s2013
        %v2015 = vmul.f32 %v2014, %v1707
        %v2016 = vmul.f32 %v2014, %v1708
        %v2019 = vrot.slane %v2015, 1
        %v2020 = vrot.slane %v2016, 1
        %v2021 = vsel %vm934, %v2019, %v2020
        %v2023 = vadd.f32 %v2012, %v2021
        %s2024 = sld [smem:[#allocation11 + $0x1f]]
        %v2025 = vstv %s2024
        %v2026 = vmul.f32 %v2025, %v1707
        %v2027 = vmul.f32 %v2025, %v1708
        %v2030 = vrot.slane %v2026, 1
        %v2031 = vrot.slane %v2027, 1
        %v2032 = vsel %vm934, %v2030, %v2031
        %2033 = vrot.lane.b32.xlu0 %v2032, 127
        %v2034 = vpop.permute.xlu0 %2033
        %v2036 = vadd.f32 %v2023, %v2034
        %s2037 = sld [smem:[#allocation11 + $0x20]]
        %v2038 = vstv %s2037
        %v2039 = vmul.f32 %v2038, %v1707
        %v2040 = vmul.f32 %v2038, %v1708
        %v2043 = vrot.slane %v2039, 1
        %v2044 = vrot.slane %v2040, 1
        %v2045 = vsel %vm934, %v2043, %v2044
        %2046 = vrot.lane.b32.xlu0 %v2045, 126
        %v2047 = vpop.permute.xlu0 %2046
        %v2049 = vadd.f32 %v2036, %v2047
        %s2050 = sld [smem:[#allocation11 + $0x21]]
        %v2051 = vstv %s2050
        %v2052 = vmul.f32 %v2051, %v1707
        %v2053 = vmul.f32 %v2051, %v1708
        %v2056 = vrot.slane %v2052, 2
        %v2057 = vrot.slane %v2053, 2
        %v2058 = vsel %vm972, %v2056, %v2057
        %v2060 = vadd.f32 %v2049, %v2058
        %s2061 = sld [smem:[#allocation11 + $0x22]]
        %v2062 = vstv %s2061
        %v2063 = vmul.f32 %v2062, %v1707
        %v2064 = vmul.f32 %v2062, %v1708
        %v2067 = vrot.slane %v2063, 2
        %v2068 = vrot.slane %v2064, 2
        %v2069 = vsel %vm972, %v2067, %v2068
        %2070 = vrot.lane.b32.xlu0 %v2069, 127
        %v2071 = vpop.permute.xlu0 %2070
        %v2073 = vadd.f32 %v2060, %v2071
        %s2074 = sld [smem:[#allocation11 + $0x23]]
        %v2075 = vstv %s2074
        %v2076 = vmul.f32 %v2075, %v1707
        %v2077 = vmul.f32 %v2075, %v1708
        %v2080 = vrot.slane %v2076, 2
        %v2081 = vrot.slane %v2077, 2
        %v2082 = vsel %vm972, %v2080, %v2081
        %2083 = vrot.lane.b32.xlu0 %v2082, 126
        %v2084 = vpop.permute.xlu0 %2083
        %v2086 = vadd.f32 %v2073, %v2084
        %s2087 = sld [smem:[#allocation12]]
        %v2088 = vstv %s2087
        %v2089 = vadd.f32 %v2086, %v2088
        %v2090 = vmax.f32 %v2089, 0.0
        %vm2091 = vcmask 687104
        %v2092 = vsel %vm2091, %v2090, 0.0
        %2093 = vadd.xlane.f32.xlu0 %v2092
        %v2094 = vpop.xlane.xlu0 %2093
        %v2095 = vrot.slane %v2094, 4
        %v2096 = vadd.f32 %v2094, %v2095
        %v2097 = vrot.slane %v2096, 2
        %v2098 = vadd.f32 %v2096, %v2097
        %v2099 = vrot.slane %v2098, 1
        %v2100 = vadd.f32 %v2098, %v2099
        %v2101 = vmul.f32 %v2100, 0.014880952
        %v2102 = vld [vmem:[%s8] sm:$0x1]
        %v2103 = vmul.f32 %v2101, %v2102
        %v2104 = vadd.f32 %v1710, %v2103
        %s2105 = sld [smem:[#allocation11 + $0x24]]
        %v2106 = vstv %s2105
        %v2107 = vmul.f32 %v2106, %v1701
        %v2108 = vadd.f32 %v2107, 0.0
        %s2109 = sld [smem:[#allocation11 + $0x25]]
        %v2110 = vstv %s2109
        %v2111 = vmul.f32 %v2110, %v1701
        %2113 = vrot.lane.b32.xlu0 %v2111, 127
        %v2114 = vpop.permute.xlu0 %2113
        %v2116 = vadd.f32 %v2108, %v2114
        %s2117 = sld [smem:[#allocation11 + $0x26]]
        %v2118 = vstv %s2117
        %v2119 = vmul.f32 %v2118, %v1701
        %2121 = vrot.lane.b32.xlu0 %v2119, 126
        %v2122 = vpop.permute.xlu0 %2121
        %v2124 = vadd.f32 %v2116, %v2122
        %s2125 = sld [smem:[#allocation11 + $0x27]]
        %v2126 = vstv %s2125
        %v2127 = vmul.f32 %v2126, %v1701
        %v2128 = vmul.f32 %v2126, %v1702
        %v2131 = vrot.slane %v2127, 1
        %v2132 = vrot.slane %v2128, 1
        %v2133 = vsel %vm934, %v2131, %v2132
        %v2135 = vadd.f32 %v2124, %v2133
        %s2136 = sld [smem:[#allocation11 + $0x28]]
        %v2137 = vstv %s2136
        %v2138 = vmul.f32 %v2137, %v1701
        %v2139 = vmul.f32 %v2137, %v1702
        %v2142 = vrot.slane %v2138, 1
        %v2143 = vrot.slane %v2139, 1
        %v2144 = vsel %vm934, %v2142, %v2143
        %2145 = vrot.lane.b32.xlu0 %v2144, 127
        %v2146 = vpop.permute.xlu0 %2145
        %v2148 = vadd.f32 %v2135, %v2146
        %s2149 = sld [smem:[#allocation11 + $0x29]]
        %v2150 = vstv %s2149
        %v2151 = vmul.f32 %v2150, %v1701
        %v2152 = vmul.f32 %v2150, %v1702
        %v2155 = vrot.slane %v2151, 1
        %v2156 = vrot.slane %v2152, 1
        %v2157 = vsel %vm934, %v2155, %v2156
        %2158 = vrot.lane.b32.xlu0 %v2157, 126
        %v2159 = vpop.permute.xlu0 %2158
        %v2161 = vadd.f32 %v2148, %v2159
        %s2162 = sld [smem:[#allocation11 + $0x2a]]
        %v2163 = vstv %s2162
        %v2164 = vmul.f32 %v2163, %v1701
        %v2165 = vmul.f32 %v2163, %v1702
        %v2168 = vrot.slane %v2164, 2
        %v2169 = vrot.slane %v2165, 2
        %v2170 = vsel %vm972, %v2168, %v2169
        %v2172 = vadd.f32 %v2161, %v2170
        %s2173 = sld [smem:[#allocation11 + $0x2b]]
        %v2174 = vstv %s2173
        %v2175 = vmul.f32 %v2174, %v1701
        %v2176 = vmul.f32 %v2174, %v1702
        %v2179 = vrot.slane %v2175, 2
        %v2180 = vrot.slane %v2176, 2
        %v2181 = vsel %vm972, %v2179, %v2180
        %2182 = vrot.lane.b32.xlu0 %v2181, 127
        %v2183 = vpop.permute.xlu0 %2182
        %v2185 = vadd.f32 %v2172, %v2183
        %s2186 = sld [smem:[#allocation11 + $0x2c]]
        %v2187 = vstv %s2186
        %v2188 = vmul.f32 %v2187, %v1701
        %v2189 = vmul.f32 %v2187, %v1702
        %v2192 = vrot.slane %v2188, 2
        %v2193 = vrot.slane %v2189, 2
        %v2194 = vsel %vm972, %v2192, %v2193
        %2195 = vrot.lane.b32.xlu0 %v2194, 126
        %v2196 = vpop.permute.xlu0 %2195
        %v2198 = vadd.f32 %v2185, %v2196
        %s2199 = sld [smem:[#allocation11 + $0x2d]]
        %v2200 = vstv %s2199
        %v2201 = vmul.f32 %v2200, %v1703
        %v2202 = vadd.f32 %v2198, %v2201
        %s2203 = sld [smem:[#allocation11 + $0x2e]]
        %v2204 = vstv %s2203
        %v2205 = vmul.f32 %v2204, %v1703
        %2207 = vrot.lane.b32.xlu0 %v2205, 127
        %v2208 = vpop.permute.xlu0 %2207
        %v2210 = vadd.f32 %v2202, %v2208
        %s2211 = sld [smem:[#allocation11 + $0x2f]]
        %v2212 = vstv %s2211
        %v2213 = vmul.f32 %v2212, %v1703
        %2215 = vrot.lane.b32.xlu0 %v2213, 126
        %v2216 = vpop.permute.xlu0 %2215
        %v2218 = vadd.f32 %v2210, %v2216
        %s2219 = sld [smem:[#allocation11 + $0x30]]
        %v2220 = vstv %s2219
        %v2221 = vmul.f32 %v2220, %v1703
        %v2222 = vmul.f32 %v2220, %v1704
        %v2225 = vrot.slane %v2221, 1
        %v2226 = vrot.slane %v2222, 1
        %v2227 = vsel %vm934, %v2225, %v2226
        %v2229 = vadd.f32 %v2218, %v2227
        %s2230 = sld [smem:[#allocation11 + $0x31]]
        %v2231 = vstv %s2230
        %v2232 = vmul.f32 %v2231, %v1703
        %v2233 = vmul.f32 %v2231, %v1704
        %v2236 = vrot.slane %v2232, 1
        %v2237 = vrot.slane %v2233, 1
        %v2238 = vsel %vm934, %v2236, %v2237
        %2239 = vrot.lane.b32.xlu0 %v2238, 127
        %v2240 = vpop.permute.xlu0 %2239
        %v2242 = vadd.f32 %v2229, %v2240
        %s2243 = sld [smem:[#allocation11 + $0x32]]
        %v2244 = vstv %s2243
        %v2245 = vmul.f32 %v2244, %v1703
        %v2246 = vmul.f32 %v2244, %v1704
        %v2249 = vrot.slane %v2245, 1
        %v2250 = vrot.slane %v2246, 1
        %v2251 = vsel %vm934, %v2249, %v2250
        %2252 = vrot.lane.b32.xlu0 %v2251, 126
        %v2253 = vpop.permute.xlu0 %2252
        %v2255 = vadd.f32 %v2242, %v2253
        %s2256 = sld [smem:[#allocation11 + $0x33]]
        %v2257 = vstv %s2256
        %v2258 = vmul.f32 %v2257, %v1703
        %v2259 = vmul.f32 %v2257, %v1704
        %v2262 = vrot.slane %v2258, 2
        %v2263 = vrot.slane %v2259, 2
        %v2264 = vsel %vm972, %v2262, %v2263
        %v2266 = vadd.f32 %v2255, %v2264
        %s2267 = sld [smem:[#allocation11 + $0x34]]
        %v2268 = vstv %s2267
        %v2269 = vmul.f32 %v2268, %v1703
        %v2270 = vmul.f32 %v2268, %v1704
        %v2273 = vrot.slane %v2269, 2
        %v2274 = vrot.slane %v2270, 2
        %v2275 = vsel %vm972, %v2273, %v2274
        %2276 = vrot.lane.b32.xlu0 %v2275, 127
        %v2277 = vpop.permute.xlu0 %2276
        %v2279 = vadd.f32 %v2266, %v2277
        %s2280 = sld [smem:[#allocation11 + $0x35]]
        %v2281 = vstv %s2280
        %v2282 = vmul.f32 %v2281, %v1703
        %v2283 = vmul.f32 %v2281, %v1704
        %v2286 = vrot.slane %v2282, 2
        %v2287 = vrot.slane %v2283, 2
        %v2288 = vsel %vm972, %v2286, %v2287
        %2289 = vrot.lane.b32.xlu0 %v2288, 126
        %v2290 = vpop.permute.xlu0 %2289
        %v2292 = vadd.f32 %v2279, %v2290
        %s2293 = sld [smem:[#allocation11 + $0x36]]
        %v2294 = vstv %s2293
        %v2295 = vmul.f32 %v2294, %v1705
        %v2296 = vadd.f32 %v2292, %v2295
        %s2297 = sld [smem:[#allocation11 + $0x37]]
        %v2298 = vstv %s2297
        %v2299 = vmul.f32 %v2298, %v1705
        %2301 = vrot.lane.b32.xlu0 %v2299, 127
        %v2302 = vpop.permute.xlu0 %2301
        %v2304 = vadd.f32 %v2296, %v2302
        %s2305 = sld [smem:[#allocation11 + $0x38]]
        %v2306 = vstv %s2305
        %v2307 = vmul.f32 %v2306, %v1705
        %2309 = vrot.lane.b32.xlu0 %v2307, 126
        %v2310 = vpop.permute.xlu0 %2309
        %v2312 = vadd.f32 %v2304, %v2310
        %s2313 = sld [smem:[#allocation11 + $0x39]]
        %v2314 = vstv %s2313
        %v2315 = vmul.f32 %v2314, %v1705
        %v2316 = vmul.f32 %v2314, %v1706
        %v2319 = vrot.slane %v2315, 1
        %v2320 = vrot.slane %v2316, 1
        %v2321 = vsel %vm934, %v2319, %v2320
        %v2323 = vadd.f32 %v2312, %v2321
        %s2324 = sld [smem:[#allocation11 + $0x3a]]
        %v2325 = vstv %s2324
        %v2326 = vmul.f32 %v2325, %v1705
        %v2327 = vmul.f32 %v2325, %v1706
        %v2330 = vrot.slane %v2326, 1
        %v2331 = vrot.slane %v2327, 1
        %v2332 = vsel %vm934, %v2330, %v2331
        %2333 = vrot.lane.b32.xlu0 %v2332, 127
        %v2334 = vpop.permute.xlu0 %2333
        %v2336 = vadd.f32 %v2323, %v2334
        %s2337 = sld [smem:[#allocation11 + $0x3b]]
        %v2338 = vstv %s2337
        %v2339 = vmul.f32 %v2338, %v1705
        %v2340 = vmul.f32 %v2338, %v1706
        %v2343 = vrot.slane %v2339, 1
        %v2344 = vrot.slane %v2340, 1
        %v2345 = vsel %vm934, %v2343, %v2344
        %2346 = vrot.lane.b32.xlu0 %v2345, 126
        %v2347 = vpop.permute.xlu0 %2346
        %v2349 = vadd.f32 %v2336, %v2347
        %s2350 = sld [smem:[#allocation11 + $0x3c]]
        %v2351 = vstv %s2350
        %v2352 = vmul.f32 %v2351, %v1705
        %v2353 = vmul.f32 %v2351, %v1706
        %v2356 = vrot.slane %v2352, 2
        %v2357 = vrot.slane %v2353, 2
        %v2358 = vsel %vm972, %v2356, %v2357
        %v2360 = vadd.f32 %v2349, %v2358
        %s2361 = sld [smem:[#allocation11 + $0x3d]]
        %v2362 = vstv %s2361
        %v2363 = vmul.f32 %v2362, %v1705
        %v2364 = vmul.f32 %v2362, %v1706
        %v2367 = vrot.slane %v2363, 2
        %v2368 = vrot.slane %v2364, 2
        %v2369 = vsel %vm972, %v2367, %v2368
        %2370 = vrot.lane.b32.xlu0 %v2369, 127
        %v2371 = vpop.permute.xlu0 %2370
        %v2373 = vadd.f32 %v2360, %v2371
        %s2374 = sld [smem:[#allocation11 + $0x3e]]
        %v2375 = vstv %s2374
        %v2376 = vmul.f32 %v2375, %v1705
        %v2377 = vmul.f32 %v2375, %v1706
        %v2380 = vrot.slane %v2376, 2
        %v2381 = vrot.slane %v2377, 2
        %v2382 = vsel %vm972, %v2380, %v2381
        %2383 = vrot.lane.b32.xlu0 %v2382, 126
        %v2384 = vpop.permute.xlu0 %2383
        %v2386 = vadd.f32 %v2373, %v2384
        %s2387 = sld [smem:[#allocation11 + $0x3f]]
        %v2388 = vstv %s2387
        %v2389 = vmul.f32 %v2388, %v1707
        %v2390 = vadd.f32 %v2386, %v2389
        %s2391 = sld [smem:[#allocation11 + $0x40]]
        %v2392 = vstv %s2391
        %v2393 = vmul.f32 %v2392, %v1707
        %2395 = vrot.lane.b32.xlu0 %v2393, 127
        %v2396 = vpop.permute.xlu0 %2395
        %v2398 = vadd.f32 %v2390, %v2396
        %s2399 = sld [smem:[#allocation11 + $0x41]]
        %v2400 = vstv %s2399
        %v2401 = vmul.f32 %v2400, %v1707
        %2403 = vrot.lane.b32.xlu0 %v2401, 126
        %v2404 = vpop.permute.xlu0 %2403
        %v2406 = vadd.f32 %v2398, %v2404
        %s2407 = sld [smem:[#allocation11 + $0x42]]
        %v2408 = vstv %s2407
        %v2409 = vmul.f32 %v2408, %v1707
        %v2410 = vmul.f32 %v2408, %v1708
        %v2413 = vrot.slane %v2409, 1
        %v2414 = vrot.slane %v2410, 1
        %v2415 = vsel %vm934, %v2413, %v2414
        %v2417 = vadd.f32 %v2406, %v2415
        %s2418 = sld [smem:[#allocation11 + $0x43]]
        %v2419 = vstv %s2418
        %v2420 = vmul.f32 %v2419, %v1707
        %v2421 = vmul.f32 %v2419, %v1708
        %v2424 = vrot.slane %v2420, 1
        %v2425 = vrot.slane %v2421, 1
        %v2426 = vsel %vm934, %v2424, %v2425
        %2427 = vrot.lane.b32.xlu0 %v2426, 127
        %v2428 = vpop.permute.xlu0 %2427
        %v2430 = vadd.f32 %v2417, %v2428
        %s2431 = sld [smem:[#allocation11 + $0x44]]
        %v2432 = vstv %s2431
        %v2433 = vmul.f32 %v2432, %v1707
        %v2434 = vmul.f32 %v2432, %v1708
        %v2437 = vrot.slane %v2433, 1
        %v2438 = vrot.slane %v2434, 1
        %v2439 = vsel %vm934, %v2437, %v2438
        %2440 = vrot.lane.b32.xlu0 %v2439, 126
        %v2441 = vpop.permute.xlu0 %2440
        %v2443 = vadd.f32 %v2430, %v2441
        %s2444 = sld [smem:[#allocation11 + $0x45]]
        %v2445 = vstv %s2444
        %v2446 = vmul.f32 %v2445, %v1707
        %v2447 = vmul.f32 %v2445, %v1708
        %v2450 = vrot.slane %v2446, 2
        %v2451 = vrot.slane %v2447, 2
        %v2452 = vsel %vm972, %v2450, %v2451
        %v2454 = vadd.f32 %v2443, %v2452
        %s2455 = sld [smem:[#allocation11 + $0x46]]
        %v2456 = vstv %s2455
        %v2457 = vmul.f32 %v2456, %v1707
        %v2458 = vmul.f32 %v2456, %v1708
        %v2461 = vrot.slane %v2457, 2
        %v2462 = vrot.slane %v2458, 2
        %v2463 = vsel %vm972, %v2461, %v2462
        %2464 = vrot.lane.b32.xlu0 %v2463, 127
        %v2465 = vpop.permute.xlu0 %2464
        %v2467 = vadd.f32 %v2454, %v2465
        %s2468 = sld [smem:[#allocation11 + $0x47]]
        %v2469 = vstv %s2468
        %v2470 = vmul.f32 %v2469, %v1707
        %v2471 = vmul.f32 %v2469, %v1708
        %v2474 = vrot.slane %v2470, 2
        %v2475 = vrot.slane %v2471, 2
        %v2476 = vsel %vm972, %v2474, %v2475
        %2477 = vrot.lane.b32.xlu0 %v2476, 126
        %v2478 = vpop.permute.xlu0 %2477
        %v2480 = vadd.f32 %v2467, %v2478
        %s2481 = sld [smem:[#allocation12 + $0x1]]
        %v2482 = vstv %s2481
        %v2483 = vadd.f32 %v2480, %v2482
        %v2484 = vmax.f32 %v2483, 0.0
        %v2485 = vsel %vm2091, %v2484, 0.0
        %2486 = vadd.xlane.f32.xlu0 %v2485
        %v2487 = vpop.xlane.xlu0 %2486
        %v2488 = vrot.slane %v2487, 4
        %v2489 = vadd.f32 %v2487, %v2488
        %v2490 = vrot.slane %v2489, 2
        %v2491 = vadd.f32 %v2489, %v2490
        %v2492 = vrot.slane %v2491, 1
        %v2493 = vadd.f32 %v2491, %v2492
        %v2494 = vmul.f32 %v2493, 0.014880952
        %v2495 = vld [vmem:[%s8 + $0x1] sm:$0x1]
        %v2496 = vmul.f32 %v2494, %v2495
        %v2497 = vadd.f32 %v2104, %v2496
        %s2498 = sld [smem:[#allocation11 + $0x48]]
        %v2499 = vstv %s2498
        %v2500 = vmul.f32 %v2499, %v1701
        %v2501 = vadd.f32 %v2500, 0.0
        %s2502 = sld [smem:[#allocation11 + $0x49]]
        %v2503 = vstv %s2502
        %v2504 = vmul.f32 %v2503, %v1701
        %2506 = vrot.lane.b32.xlu0 %v2504, 127
        %v2507 = vpop.permute.xlu0 %2506
        %v2509 = vadd.f32 %v2501, %v2507
        %s2510 = sld [smem:[#allocation11 + $0x4a]]
        %v2511 = vstv %s2510
        %v2512 = vmul.f32 %v2511, %v1701
        %2514 = vrot.lane.b32.xlu0 %v2512, 126
        %v2515 = vpop.permute.xlu0 %2514
        %v2517 = vadd.f32 %v2509, %v2515
        %s2518 = sld [smem:[#allocation11 + $0x4b]]
        %v2519 = vstv %s2518
        %v2520 = vmul.f32 %v2519, %v1701
        %v2521 = vmul.f32 %v2519, %v1702
        %v2524 = vrot.slane %v2520, 1
        %v2525 = vrot.slane %v2521, 1
        %v2526 = vsel %vm934, %v2524, %v2525
        %v2528 = vadd.f32 %v2517, %v2526
        %s2529 = sld [smem:[#allocation11 + $0x4c]]
        %v2530 = vstv %s2529
        %v2531 = vmul.f32 %v2530, %v1701
        %v2532 = vmul.f32 %v2530, %v1702
        %v2535 = vrot.slane %v2531, 1
        %v2536 = vrot.slane %v2532, 1
        %v2537 = vsel %vm934, %v2535, %v2536
        %2538 = vrot.lane.b32.xlu0 %v2537, 127
        %v2539 = vpop.permute.xlu0 %2538
        %v2541 = vadd.f32 %v2528, %v2539
        %s2542 = sld [smem:[#allocation11 + $0x4d]]
        %v2543 = vstv %s2542
        %v2544 = vmul.f32 %v2543, %v1701
        %v2545 = vmul.f32 %v2543, %v1702
        %v2548 = vrot.slane %v2544, 1
        %v2549 = vrot.slane %v2545, 1
        %v2550 = vsel %vm934, %v2548, %v2549
        %2551 = vrot.lane.b32.xlu0 %v2550, 126
        %v2552 = vpop.permute.xlu0 %2551
        %v2554 = vadd.f32 %v2541, %v2552
        %s2555 = sld [smem:[#allocation11 + $0x4e]]
        %v2556 = vstv %s2555
        %v2557 = vmul.f32 %v2556, %v1701
        %v2558 = vmul.f32 %v2556, %v1702
        %v2561 = vrot.slane %v2557, 2
        %v2562 = vrot.slane %v2558, 2
        %v2563 = vsel %vm972, %v2561, %v2562
        %v2565 = vadd.f32 %v2554, %v2563
        %s2566 = sld [smem:[#allocation11 + $0x4f]]
        %v2567 = vstv %s2566
        %v2568 = vmul.f32 %v2567, %v1701
        %v2569 = vmul.f32 %v2567, %v1702
        %v2572 = vrot.slane %v2568, 2
        %v2573 = vrot.slane %v2569, 2
        %v2574 = vsel %vm972, %v2572, %v2573
        %2575 = vrot.lane.b32.xlu0 %v2574, 127
        %v2576 = vpop.permute.xlu0 %2575
        %v2578 = vadd.f32 %v2565, %v2576
        %s2579 = sld [smem:[#allocation11 + $0x50]]
        %v2580 = vstv %s2579
        %v2581 = vmul.f32 %v2580, %v1701
        %v2582 = vmul.f32 %v2580, %v1702
        %v2585 = vrot.slane %v2581, 2
        %v2586 = vrot.slane %v2582, 2
        %v2587 = vsel %vm972, %v2585, %v2586
        %2588 = vrot.lane.b32.xlu0 %v2587, 126
        %v2589 = vpop.permute.xlu0 %2588
        %v2591 = vadd.f32 %v2578, %v2589
        %s2592 = sld [smem:[#allocation11 + $0x51]]
        %v2593 = vstv %s2592
        %v2594 = vmul.f32 %v2593, %v1703
        %v2595 = vadd.f32 %v2591, %v2594
        %s2596 = sld [smem:[#allocation11 + $0x52]]
        %v2597 = vstv %s2596
        %v2598 = vmul.f32 %v2597, %v1703
        %2600 = vrot.lane.b32.xlu0 %v2598, 127
        %v2601 = vpop.permute.xlu0 %2600
        %v2603 = vadd.f32 %v2595, %v2601
        %s2604 = sld [smem:[#allocation11 + $0x53]]
        %v2605 = vstv %s2604
        %v2606 = vmul.f32 %v2605, %v1703
        %2608 = vrot.lane.b32.xlu0 %v2606, 126
        %v2609 = vpop.permute.xlu0 %2608
        %v2611 = vadd.f32 %v2603, %v2609
        %s2612 = sld [smem:[#allocation11 + $0x54]]
        %v2613 = vstv %s2612
        %v2614 = vmul.f32 %v2613, %v1703
        %v2615 = vmul.f32 %v2613, %v1704
        %v2618 = vrot.slane %v2614, 1
        %v2619 = vrot.slane %v2615, 1
        %v2620 = vsel %vm934, %v2618, %v2619
        %v2622 = vadd.f32 %v2611, %v2620
        %s2623 = sld [smem:[#allocation11 + $0x55]]
        %v2624 = vstv %s2623
        %v2625 = vmul.f32 %v2624, %v1703
        %v2626 = vmul.f32 %v2624, %v1704
        %v2629 = vrot.slane %v2625, 1
        %v2630 = vrot.slane %v2626, 1
        %v2631 = vsel %vm934, %v2629, %v2630
        %2632 = vrot.lane.b32.xlu0 %v2631, 127
        %v2633 = vpop.permute.xlu0 %2632
        %v2635 = vadd.f32 %v2622, %v2633
        %s2636 = sld [smem:[#allocation11 + $0x56]]
        %v2637 = vstv %s2636
        %v2638 = vmul.f32 %v2637, %v1703
        %v2639 = vmul.f32 %v2637, %v1704
        %v2642 = vrot.slane %v2638, 1
        %v2643 = vrot.slane %v2639, 1
        %v2644 = vsel %vm934, %v2642, %v2643
        %2645 = vrot.lane.b32.xlu0 %v2644, 126
        %v2646 = vpop.permute.xlu0 %2645
        %v2648 = vadd.f32 %v2635, %v2646
        %s2649 = sld [smem:[#allocation11 + $0x57]]
        %v2650 = vstv %s2649
        %v2651 = vmul.f32 %v2650, %v1703
        %v2652 = vmul.f32 %v2650, %v1704
        %v2655 = vrot.slane %v2651, 2
        %v2656 = vrot.slane %v2652, 2
        %v2657 = vsel %vm972, %v2655, %v2656
        %v2659 = vadd.f32 %v2648, %v2657
        %s2660 = sld [smem:[#allocation11 + $0x58]]
        %v2661 = vstv %s2660
        %v2662 = vmul.f32 %v2661, %v1703
        %v2663 = vmul.f32 %v2661, %v1704
        %v2666 = vrot.slane %v2662, 2
        %v2667 = vrot.slane %v2663, 2
        %v2668 = vsel %vm972, %v2666, %v2667
        %2669 = vrot.lane.b32.xlu0 %v2668, 127
        %v2670 = vpop.permute.xlu0 %2669
        %v2672 = vadd.f32 %v2659, %v2670
        %s2673 = sld [smem:[#allocation11 + $0x59]]
        %v2674 = vstv %s2673
        %v2675 = vmul.f32 %v2674, %v1703
        %v2676 = vmul.f32 %v2674, %v1704
        %v2679 = vrot.slane %v2675, 2
        %v2680 = vrot.slane %v2676, 2
        %v2681 = vsel %vm972, %v2679, %v2680
        %2682 = vrot.lane.b32.xlu0 %v2681, 126
        %v2683 = vpop.permute.xlu0 %2682
        %v2685 = vadd.f32 %v2672, %v2683
        %s2686 = sld [smem:[#allocation11 + $0x5a]]
        %v2687 = vstv %s2686
        %v2688 = vmul.f32 %v2687, %v1705
        %v2689 = vadd.f32 %v2685, %v2688
        %s2690 = sld [smem:[#allocation11 + $0x5b]]
        %v2691 = vstv %s2690
        %v2692 = vmul.f32 %v2691, %v1705
        %2694 = vrot.lane.b32.xlu0 %v2692, 127
        %v2695 = vpop.permute.xlu0 %2694
        %v2697 = vadd.f32 %v2689, %v2695
        %s2698 = sld [smem:[#allocation11 + $0x5c]]
        %v2699 = vstv %s2698
        %v2700 = vmul.f32 %v2699, %v1705
        %2702 = vrot.lane.b32.xlu0 %v2700, 126
        %v2703 = vpop.permute.xlu0 %2702
        %v2705 = vadd.f32 %v2697, %v2703
        %s2706 = sld [smem:[#allocation11 + $0x5d]]
        %v2707 = vstv %s2706
        %v2708 = vmul.f32 %v2707, %v1705
        %v2709 = vmul.f32 %v2707, %v1706
        %v2712 = vrot.slane %v2708, 1
        %v2713 = vrot.slane %v2709, 1
        %v2714 = vsel %vm934, %v2712, %v2713
        %v2716 = vadd.f32 %v2705, %v2714
        %s2717 = sld [smem:[#allocation11 + $0x5e]]
        %v2718 = vstv %s2717
        %v2719 = vmul.f32 %v2718, %v1705
        %v2720 = vmul.f32 %v2718, %v1706
        %v2723 = vrot.slane %v2719, 1
        %v2724 = vrot.slane %v2720, 1
        %v2725 = vsel %vm934, %v2723, %v2724
        %2726 = vrot.lane.b32.xlu0 %v2725, 127
        %v2727 = vpop.permute.xlu0 %2726
        %v2729 = vadd.f32 %v2716, %v2727
        %s2730 = sld [smem:[#allocation11 + $0x5f]]
        %v2731 = vstv %s2730
        %v2732 = vmul.f32 %v2731, %v1705
        %v2733 = vmul.f32 %v2731, %v1706
        %v2736 = vrot.slane %v2732, 1
        %v2737 = vrot.slane %v2733, 1
        %v2738 = vsel %vm934, %v2736, %v2737
        %2739 = vrot.lane.b32.xlu0 %v2738, 126
        %v2740 = vpop.permute.xlu0 %2739
        %v2742 = vadd.f32 %v2729, %v2740
        %s2743 = sld [smem:[#allocation11 + $0x60]]
        %v2744 = vstv %s2743
        %v2745 = vmul.f32 %v2744, %v1705
        %v2746 = vmul.f32 %v2744, %v1706
        %v2749 = vrot.slane %v2745, 2
        %v2750 = vrot.slane %v2746, 2
        %v2751 = vsel %vm972, %v2749, %v2750
        %v2753 = vadd.f32 %v2742, %v2751
        %s2754 = sld [smem:[#allocation11 + $0x61]]
        %v2755 = vstv %s2754
        %v2756 = vmul.f32 %v2755, %v1705
        %v2757 = vmul.f32 %v2755, %v1706
        %v2760 = vrot.slane %v2756, 2
        %v2761 = vrot.slane %v2757, 2
        %v2762 = vsel %vm972, %v2760, %v2761
        %2763 = vrot.lane.b32.xlu0 %v2762, 127
        %v2764 = vpop.permute.xlu0 %2763
        %v2766 = vadd.f32 %v2753, %v2764
        %s2767 = sld [smem:[#allocation11 + $0x62]]
        %v2768 = vstv %s2767
        %v2769 = vmul.f32 %v2768, %v1705
        %v2770 = vmul.f32 %v2768, %v1706
        %v2773 = vrot.slane %v2769, 2
        %v2774 = vrot.slane %v2770, 2
        %v2775 = vsel %vm972, %v2773, %v2774
        %2776 = vrot.lane.b32.xlu0 %v2775, 126
        %v2777 = vpop.permute.xlu0 %2776
        %v2779 = vadd.f32 %v2766, %v2777
        %s2780 = sld [smem:[#allocation11 + $0x63]]
        %v2781 = vstv %s2780
        %v2782 = vmul.f32 %v2781, %v1707
        %v2783 = vadd.f32 %v2779, %v2782
        %s2784 = sld [smem:[#allocation11 + $0x64]]
        %v2785 = vstv %s2784
        %v2786 = vmul.f32 %v2785, %v1707
        %2788 = vrot.lane.b32.xlu0 %v2786, 127
        %v2789 = vpop.permute.xlu0 %2788
        %v2791 = vadd.f32 %v2783, %v2789
        %s2792 = sld [smem:[#allocation11 + $0x65]]
        %v2793 = vstv %s2792
        %v2794 = vmul.f32 %v2793, %v1707
        %2796 = vrot.lane.b32.xlu0 %v2794, 126
        %v2797 = vpop.permute.xlu0 %2796
        %v2799 = vadd.f32 %v2791, %v2797
        %s2800 = sld [smem:[#allocation11 + $0x66]]
        %v2801 = vstv %s2800
        %v2802 = vmul.f32 %v2801, %v1707
        %v2803 = vmul.f32 %v2801, %v1708
        %v2806 = vrot.slane %v2802, 1
        %v2807 = vrot.slane %v2803, 1
        %v2808 = vsel %vm934, %v2806, %v2807
        %v2810 = vadd.f32 %v2799, %v2808
        %s2811 = sld [smem:[#allocation11 + $0x67]]
        %v2812 = vstv %s2811
        %v2813 = vmul.f32 %v2812, %v1707
        %v2814 = vmul.f32 %v2812, %v1708
        %v2817 = vrot.slane %v2813, 1
        %v2818 = vrot.slane %v2814, 1
        %v2819 = vsel %vm934, %v2817, %v2818
        %2820 = vrot.lane.b32.xlu0 %v2819, 127
        %v2821 = vpop.permute.xlu0 %2820
        %v2823 = vadd.f32 %v2810, %v2821
        %s2824 = sld [smem:[#allocation11 + $0x68]]
        %v2825 = vstv %s2824
        %v2826 = vmul.f32 %v2825, %v1707
        %v2827 = vmul.f32 %v2825, %v1708
        %v2830 = vrot.slane %v2826, 1
        %v2831 = vrot.slane %v2827, 1
        %v2832 = vsel %vm934, %v2830, %v2831
        %2833 = vrot.lane.b32.xlu0 %v2832, 126
        %v2834 = vpop.permute.xlu0 %2833
        %v2836 = vadd.f32 %v2823, %v2834
        %s2837 = sld [smem:[#allocation11 + $0x69]]
        %v2838 = vstv %s2837
        %v2839 = vmul.f32 %v2838, %v1707
        %v2840 = vmul.f32 %v2838, %v1708
        %v2843 = vrot.slane %v2839, 2
        %v2844 = vrot.slane %v2840, 2
        %v2845 = vsel %vm972, %v2843, %v2844
        %v2847 = vadd.f32 %v2836, %v2845
        %s2848 = sld [smem:[#allocation11 + $0x6a]]
        %v2849 = vstv %s2848
        %v2850 = vmul.f32 %v2849, %v1707
        %v2851 = vmul.f32 %v2849, %v1708
        %v2854 = vrot.slane %v2850, 2
        %v2855 = vrot.slane %v2851, 2
        %v2856 = vsel %vm972, %v2854, %v2855
        %2857 = vrot.lane.b32.xlu0 %v2856, 127
        %v2858 = vpop.permute.xlu0 %2857
        %v2860 = vadd.f32 %v2847, %v2858
        %s2861 = sld [smem:[#allocation11 + $0x6b]]
        %v2862 = vstv %s2861
        %v2863 = vmul.f32 %v2862, %v1707
        %v2864 = vmul.f32 %v2862, %v1708
        %v2867 = vrot.slane %v2863, 2
        %v2868 = vrot.slane %v2864, 2
        %v2869 = vsel %vm972, %v2867, %v2868
        %2870 = vrot.lane.b32.xlu0 %v2869, 126
        %v2871 = vpop.permute.xlu0 %2870
        %v2873 = vadd.f32 %v2860, %v2871
        %s2874 = sld [smem:[#allocation12 + $0x2]]
        %v2875 = vstv %s2874
        %v2876 = vadd.f32 %v2873, %v2875
        %v2877 = vmax.f32 %v2876, 0.0
        %v2878 = vsel %vm2091, %v2877, 0.0
        %2879 = vadd.xlane.f32.xlu0 %v2878
        %v2880 = vpop.xlane.xlu0 %2879
        %v2881 = vrot.slane %v2880, 4
        %v2882 = vadd.f32 %v2880, %v2881
        %v2883 = vrot.slane %v2882, 2
        %v2884 = vadd.f32 %v2882, %v2883
        %v2885 = vrot.slane %v2884, 1
        %v2886 = vadd.f32 %v2884, %v2885
        %v2887 = vmul.f32 %v2886, 0.014880952
        %v2888 = vld [vmem:[%s8 + $0x2] sm:$0x1]
        %v2889 = vmul.f32 %v2887, %v2888
        %v2890 = vadd.f32 %v2497, %v2889
        %s2891 = sld [smem:[#allocation11 + $0x6c]]
        %v2892 = vstv %s2891
        %v2893 = vmul.f32 %v2892, %v1701
        %v2894 = vadd.f32 %v2893, 0.0
        %s2895 = sld [smem:[#allocation11 + $0x6d]]
        %v2896 = vstv %s2895
        %v2897 = vmul.f32 %v2896, %v1701
        %2899 = vrot.lane.b32.xlu0 %v2897, 127
        %v2900 = vpop.permute.xlu0 %2899
        %v2902 = vadd.f32 %v2894, %v2900
        %s2903 = sld [smem:[#allocation11 + $0x6e]]
        %v2904 = vstv %s2903
        %v2905 = vmul.f32 %v2904, %v1701
        %2907 = vrot.lane.b32.xlu0 %v2905, 126
        %v2908 = vpop.permute.xlu0 %2907
        %v2910 = vadd.f32 %v2902, %v2908
        %s2911 = sld [smem:[#allocation11 + $0x6f]]
        %v2912 = vstv %s2911
        %v2913 = vmul.f32 %v2912, %v1701
        %v2914 = vmul.f32 %v2912, %v1702
        %v2917 = vrot.slane %v2913, 1
        %v2918 = vrot.slane %v2914, 1
        %v2919 = vsel %vm934, %v2917, %v2918
        %v2921 = vadd.f32 %v2910, %v2919
        %s2922 = sld [smem:[#allocation11 + $0x70]]
        %v2923 = vstv %s2922
        %v2924 = vmul.f32 %v2923, %v1701
        %v2925 = vmul.f32 %v2923, %v1702
        %v2928 = vrot.slane %v2924, 1
        %v2929 = vrot.slane %v2925, 1
        %v2930 = vsel %vm934, %v2928, %v2929
        %2931 = vrot.lane.b32.xlu0 %v2930, 127
        %v2932 = vpop.permute.xlu0 %2931
        %v2934 = vadd.f32 %v2921, %v2932
        %s2935 = sld [smem:[#allocation11 + $0x71]]
        %v2936 = vstv %s2935
        %v2937 = vmul.f32 %v2936, %v1701
        %v2938 = vmul.f32 %v2936, %v1702
        %v2941 = vrot.slane %v2937, 1
        %v2942 = vrot.slane %v2938, 1
        %v2943 = vsel %vm934, %v2941, %v2942
        %2944 = vrot.lane.b32.xlu0 %v2943, 126
        %v2945 = vpop.permute.xlu0 %2944
        %v2947 = vadd.f32 %v2934, %v2945
        %s2948 = sld [smem:[#allocation11 + $0x72]]
        %v2949 = vstv %s2948
        %v2950 = vmul.f32 %v2949, %v1701
        %v2951 = vmul.f32 %v2949, %v1702
        %v2954 = vrot.slane %v2950, 2
        %v2955 = vrot.slane %v2951, 2
        %v2956 = vsel %vm972, %v2954, %v2955
        %v2958 = vadd.f32 %v2947, %v2956
        %s2959 = sld [smem:[#allocation11 + $0x73]]
        %v2960 = vstv %s2959
        %v2961 = vmul.f32 %v2960, %v1701
        %v2962 = vmul.f32 %v2960, %v1702
        %v2965 = vrot.slane %v2961, 2
        %v2966 = vrot.slane %v2962, 2
        %v2967 = vsel %vm972, %v2965, %v2966
        %2968 = vrot.lane.b32.xlu0 %v2967, 127
        %v2969 = vpop.permute.xlu0 %2968
        %v2971 = vadd.f32 %v2958, %v2969
        %s2972 = sld [smem:[#allocation11 + $0x74]]
        %v2973 = vstv %s2972
        %v2974 = vmul.f32 %v2973, %v1701
        %v2975 = vmul.f32 %v2973, %v1702
        %v2978 = vrot.slane %v2974, 2
        %v2979 = vrot.slane %v2975, 2
        %v2980 = vsel %vm972, %v2978, %v2979
        %2981 = vrot.lane.b32.xlu0 %v2980, 126
        %v2982 = vpop.permute.xlu0 %2981
        %v2984 = vadd.f32 %v2971, %v2982
        %s2985 = sld [smem:[#allocation11 + $0x75]]
        %v2986 = vstv %s2985
        %v2987 = vmul.f32 %v2986, %v1703
        %v2988 = vadd.f32 %v2984, %v2987
        %s2989 = sld [smem:[#allocation11 + $0x76]]
        %v2990 = vstv %s2989
        %v2991 = vmul.f32 %v2990, %v1703
        %2993 = vrot.lane.b32.xlu0 %v2991, 127
        %v2994 = vpop.permute.xlu0 %2993
        %v2996 = vadd.f32 %v2988, %v2994
        %s2997 = sld [smem:[#allocation11 + $0x77]]
        %v2998 = vstv %s2997
        %v2999 = vmul.f32 %v2998, %v1703
        %3001 = vrot.lane.b32.xlu0 %v2999, 126
        %v3002 = vpop.permute.xlu0 %3001
        %v3004 = vadd.f32 %v2996, %v3002
        %s3005 = sld [smem:[#allocation11 + $0x78]]
        %v3006 = vstv %s3005
        %v3007 = vmul.f32 %v3006, %v1703
        %v3008 = vmul.f32 %v3006, %v1704
        %v3011 = vrot.slane %v3007, 1
        %v3012 = vrot.slane %v3008, 1
        %v3013 = vsel %vm934, %v3011, %v3012
        %v3015 = vadd.f32 %v3004, %v3013
        %s3016 = sld [smem:[#allocation11 + $0x79]]
        %v3017 = vstv %s3016
        %v3018 = vmul.f32 %v3017, %v1703
        %v3019 = vmul.f32 %v3017, %v1704
        %v3022 = vrot.slane %v3018, 1
        %v3023 = vrot.slane %v3019, 1
        %v3024 = vsel %vm934, %v3022, %v3023
        %3025 = vrot.lane.b32.xlu0 %v3024, 127
        %v3026 = vpop.permute.xlu0 %3025
        %v3028 = vadd.f32 %v3015, %v3026
        %s3029 = sld [smem:[#allocation11 + $0x7a]]
        %v3030 = vstv %s3029
        %v3031 = vmul.f32 %v3030, %v1703
        %v3032 = vmul.f32 %v3030, %v1704
        %v3035 = vrot.slane %v3031, 1
        %v3036 = vrot.slane %v3032, 1
        %v3037 = vsel %vm934, %v3035, %v3036
        %3038 = vrot.lane.b32.xlu0 %v3037, 126
        %v3039 = vpop.permute.xlu0 %3038
        %v3041 = vadd.f32 %v3028, %v3039
        %s3042 = sld [smem:[#allocation11 + $0x7b]]
        %v3043 = vstv %s3042
        %v3044 = vmul.f32 %v3043, %v1703
        %v3045 = vmul.f32 %v3043, %v1704
        %v3048 = vrot.slane %v3044, 2
        %v3049 = vrot.slane %v3045, 2
        %v3050 = vsel %vm972, %v3048, %v3049
        %v3052 = vadd.f32 %v3041, %v3050
        %s3053 = sld [smem:[#allocation11 + $0x7c]]
        %v3054 = vstv %s3053
        %v3055 = vmul.f32 %v3054, %v1703
        %v3056 = vmul.f32 %v3054, %v1704
        %v3059 = vrot.slane %v3055, 2
        %v3060 = vrot.slane %v3056, 2
        %v3061 = vsel %vm972, %v3059, %v3060
        %3062 = vrot.lane.b32.xlu0 %v3061, 127
        %v3063 = vpop.permute.xlu0 %3062
        %v3065 = vadd.f32 %v3052, %v3063
        %s3066 = sld [smem:[#allocation11 + $0x7d]]
        %v3067 = vstv %s3066
        %v3068 = vmul.f32 %v3067, %v1703
        %v3069 = vmul.f32 %v3067, %v1704
        %v3072 = vrot.slane %v3068, 2
        %v3073 = vrot.slane %v3069, 2
        %v3074 = vsel %vm972, %v3072, %v3073
        %3075 = vrot.lane.b32.xlu0 %v3074, 126
        %v3076 = vpop.permute.xlu0 %3075
        %v3078 = vadd.f32 %v3065, %v3076
        %s3079 = sld [smem:[#allocation11 + $0x7e]]
        %v3080 = vstv %s3079
        %v3081 = vmul.f32 %v3080, %v1705
        %v3082 = vadd.f32 %v3078, %v3081
        %s3083 = sld [smem:[#allocation11 + $0x7f]]
        %v3084 = vstv %s3083
        %v3085 = vmul.f32 %v3084, %v1705
        %3087 = vrot.lane.b32.xlu0 %v3085, 127
        %v3088 = vpop.permute.xlu0 %3087
        %v3090 = vadd.f32 %v3082, %v3088
        %s3091 = sld [smem:[#allocation11 + $0x80]]
        %v3092 = vstv %s3091
        %v3093 = vmul.f32 %v3092, %v1705
        %3095 = vrot.lane.b32.xlu0 %v3093, 126
        %v3096 = vpop.permute.xlu0 %3095
        %v3098 = vadd.f32 %v3090, %v3096
        %s3099 = sld [smem:[#allocation11 + $0x81]]
        %v3100 = vstv %s3099
        %v3101 = vmul.f32 %v3100, %v1705
        %v3102 = vmul.f32 %v3100, %v1706
        %v3105 = vrot.slane %v3101, 1
        %v3106 = vrot.slane %v3102, 1
        %v3107 = vsel %vm934, %v3105, %v3106
        %v3109 = vadd.f32 %v3098, %v3107
        %s3110 = sld [smem:[#allocation11 + $0x82]]
        %v3111 = vstv %s3110
        %v3112 = vmul.f32 %v3111, %v1705
        %v3113 = vmul.f32 %v3111, %v1706
        %v3116 = vrot.slane %v3112, 1
        %v3117 = vrot.slane %v3113, 1
        %v3118 = vsel %vm934, %v3116, %v3117
        %3119 = vrot.lane.b32.xlu0 %v3118, 127
        %v3120 = vpop.permute.xlu0 %3119
        %v3122 = vadd.f32 %v3109, %v3120
        %s3123 = sld [smem:[#allocation11 + $0x83]]
        %v3124 = vstv %s3123
        %v3125 = vmul.f32 %v3124, %v1705
        %v3126 = vmul.f32 %v3124, %v1706
        %v3129 = vrot.slane %v3125, 1
        %v3130 = vrot.slane %v3126, 1
        %v3131 = vsel %vm934, %v3129, %v3130
        %3132 = vrot.lane.b32.xlu0 %v3131, 126
        %v3133 = vpop.permute.xlu0 %3132
        %v3135 = vadd.f32 %v3122, %v3133
        %s3136 = sld [smem:[#allocation11 + $0x84]]
        %v3137 = vstv %s3136
        %v3138 = vmul.f32 %v3137, %v1705
        %v3139 = vmul.f32 %v3137, %v1706
        %v3142 = vrot.slane %v3138, 2
        %v3143 = vrot.slane %v3139, 2
        %v3144 = vsel %vm972, %v3142, %v3143
        %v3146 = vadd.f32 %v3135, %v3144
        %s3147 = sld [smem:[#allocation11 + $0x85]]
        %v3148 = vstv %s3147
        %v3149 = vmul.f32 %v3148, %v1705
        %v3150 = vmul.f32 %v3148, %v1706
        %v3153 = vrot.slane %v3149, 2
        %v3154 = vrot.slane %v3150, 2
        %v3155 = vsel %vm972, %v3153, %v3154
        %3156 = vrot.lane.b32.xlu0 %v3155, 127
        %v3157 = vpop.permute.xlu0 %3156
        %v3159 = vadd.f32 %v3146, %v3157
        %s3160 = sld [smem:[#allocation11 + $0x86]]
        %v3161 = vstv %s3160
        %v3162 = vmul.f32 %v3161, %v1705
        %v3163 = vmul.f32 %v3161, %v1706
        %v3166 = vrot.slane %v3162, 2
        %v3167 = vrot.slane %v3163, 2
        %v3168 = vsel %vm972, %v3166, %v3167
        %3169 = vrot.lane.b32.xlu0 %v3168, 126
        %v3170 = vpop.permute.xlu0 %3169
        %v3172 = vadd.f32 %v3159, %v3170
        %s3173 = sld [smem:[#allocation11 + $0x87]]
        %v3174 = vstv %s3173
        %v3175 = vmul.f32 %v3174, %v1707
        %v3176 = vadd.f32 %v3172, %v3175
        %s3177 = sld [smem:[#allocation11 + $0x88]]
        %v3178 = vstv %s3177
        %v3179 = vmul.f32 %v3178, %v1707
        %3181 = vrot.lane.b32.xlu0 %v3179, 127
        %v3182 = vpop.permute.xlu0 %3181
        %v3184 = vadd.f32 %v3176, %v3182
        %s3185 = sld [smem:[#allocation11 + $0x89]]
        %v3186 = vstv %s3185
        %v3187 = vmul.f32 %v3186, %v1707
        %3189 = vrot.lane.b32.xlu0 %v3187, 126
        %v3190 = vpop.permute.xlu0 %3189
        %v3192 = vadd.f32 %v3184, %v3190
        %s3193 = sld [smem:[#allocation11 + $0x8a]]
        %v3194 = vstv %s3193
        %v3195 = vmul.f32 %v3194, %v1707
        %v3196 = vmul.f32 %v3194, %v1708
        %v3199 = vrot.slane %v3195, 1
        %v3200 = vrot.slane %v3196, 1
        %v3201 = vsel %vm934, %v3199, %v3200
        %v3203 = vadd.f32 %v3192, %v3201
        %s3204 = sld [smem:[#allocation11 + $0x8b]]
        %v3205 = vstv %s3204
        %v3206 = vmul.f32 %v3205, %v1707
        %v3207 = vmul.f32 %v3205, %v1708
        %v3210 = vrot.slane %v3206, 1
        %v3211 = vrot.slane %v3207, 1
        %v3212 = vsel %vm934, %v3210, %v3211
        %3213 = vrot.lane.b32.xlu0 %v3212, 127
        %v3214 = vpop.permute.xlu0 %3213
        %v3216 = vadd.f32 %v3203, %v3214
        %s3217 = sld [smem:[#allocation11 + $0x8c]]
        %v3218 = vstv %s3217
        %v3219 = vmul.f32 %v3218, %v1707
        %v3220 = vmul.f32 %v3218, %v1708
        %v3223 = vrot.slane %v3219, 1
        %v3224 = vrot.slane %v3220, 1
        %v3225 = vsel %vm934, %v3223, %v3224
        %3226 = vrot.lane.b32.xlu0 %v3225, 126
        %v3227 = vpop.permute.xlu0 %3226
        %v3229 = vadd.f32 %v3216, %v3227
        %s3230 = sld [smem:[#allocation11 + $0x8d]]
        %v3231 = vstv %s3230
        %v3232 = vmul.f32 %v3231, %v1707
        %v3233 = vmul.f32 %v3231, %v1708
        %v3236 = vrot.slane %v3232, 2
        %v3237 = vrot.slane %v3233, 2
        %v3238 = vsel %vm972, %v3236, %v3237
        %v3240 = vadd.f32 %v3229, %v3238
        %s3241 = sld [smem:[#allocation11 + $0x8e]]
        %v3242 = vstv %s3241
        %v3243 = vmul.f32 %v3242, %v1707
        %v3244 = vmul.f32 %v3242, %v1708
        %v3247 = vrot.slane %v3243, 2
        %v3248 = vrot.slane %v3244, 2
        %v3249 = vsel %vm972, %v3247, %v3248
        %3250 = vrot.lane.b32.xlu0 %v3249, 127
        %v3251 = vpop.permute.xlu0 %3250
        %v3253 = vadd.f32 %v3240, %v3251
        %s3254 = sld [smem:[#allocation11 + $0x8f]]
        %v3255 = vstv %s3254
        %v3256 = vmul.f32 %v3255, %v1707
        %v3257 = vmul.f32 %v3255, %v1708
        %v3260 = vrot.slane %v3256, 2
        %v3261 = vrot.slane %v3257, 2
        %v3262 = vsel %vm972, %v3260, %v3261
        %3263 = vrot.lane.b32.xlu0 %v3262, 126
        %v3264 = vpop.permute.xlu0 %3263
        %v3266 = vadd.f32 %v3253, %v3264
        %s3267 = sld [smem:[#allocation12 + $0x3]]
        %v3268 = vstv %s3267
        %v3269 = vadd.f32 %v3266, %v3268
        %v3270 = vmax.f32 %v3269, 0.0
        %v3271 = vsel %vm2091, %v3270, 0.0
        %3272 = vadd.xlane.f32.xlu0 %v3271
        %v3273 = vpop.xlane.xlu0 %3272
        %v3274 = vrot.slane %v3273, 4
        %v3275 = vadd.f32 %v3273, %v3274
        %v3276 = vrot.slane %v3275, 2
        %v3277 = vadd.f32 %v3275, %v3276
        %v3278 = vrot.slane %v3277, 1
        %v3279 = vadd.f32 %v3277, %v3278
        %v3280 = vmul.f32 %v3279, 0.014880952
        %v3281 = vld [vmem:[%s8 + $0x3] sm:$0x1]
        %v3282 = vmul.f32 %v3280, %v3281
        %v3283 = vadd.f32 %v2890, %v3282
        %s3284 = sld [smem:[#allocation11 + $0x90]]
        %v3285 = vstv %s3284
        %v3286 = vmul.f32 %v3285, %v1701
        %v3287 = vadd.f32 %v3286, 0.0
        %s3288 = sld [smem:[#allocation11 + $0x91]]
        %v3289 = vstv %s3288
        %v3290 = vmul.f32 %v3289, %v1701
        %3292 = vrot.lane.b32.xlu0 %v3290, 127
        %v3293 = vpop.permute.xlu0 %3292
        %v3295 = vadd.f32 %v3287, %v3293
        %s3296 = sld [smem:[#allocation11 + $0x92]]
        %v3297 = vstv %s3296
        %v3298 = vmul.f32 %v3297, %v1701
        %3300 = vrot.lane.b32.xlu0 %v3298, 126
        %v3301 = vpop.permute.xlu0 %3300
        %v3303 = vadd.f32 %v3295, %v3301
        %s3304 = sld [smem:[#allocation11 + $0x93]]
        %v3305 = vstv %s3304
        %v3306 = vmul.f32 %v3305, %v1701
        %v3307 = vmul.f32 %v3305, %v1702
        %v3310 = vrot.slane %v3306, 1
        %v3311 = vrot.slane %v3307, 1
        %v3312 = vsel %vm934, %v3310, %v3311
        %v3314 = vadd.f32 %v3303, %v3312
        %s3315 = sld [smem:[#allocation11 + $0x94]]
        %v3316 = vstv %s3315
        %v3317 = vmul.f32 %v3316, %v1701
        %v3318 = vmul.f32 %v3316, %v1702
        %v3321 = vrot.slane %v3317, 1
        %v3322 = vrot.slane %v3318, 1
        %v3323 = vsel %vm934, %v3321, %v3322
        %3324 = vrot.lane.b32.xlu0 %v3323, 127
        %v3325 = vpop.permute.xlu0 %3324
        %v3327 = vadd.f32 %v3314, %v3325
        %s3328 = sld [smem:[#allocation11 + $0x95]]
        %v3329 = vstv %s3328
        %v3330 = vmul.f32 %v3329, %v1701
        %v3331 = vmul.f32 %v3329, %v1702
        %v3334 = vrot.slane %v3330, 1
        %v3335 = vrot.slane %v3331, 1
        %v3336 = vsel %vm934, %v3334, %v3335
        %3337 = vrot.lane.b32.xlu0 %v3336, 126
        %v3338 = vpop.permute.xlu0 %3337
        %v3340 = vadd.f32 %v3327, %v3338
        %s3341 = sld [smem:[#allocation11 + $0x96]]
        %v3342 = vstv %s3341
        %v3343 = vmul.f32 %v3342, %v1701
        %v3344 = vmul.f32 %v3342, %v1702
        %v3347 = vrot.slane %v3343, 2
        %v3348 = vrot.slane %v3344, 2
        %v3349 = vsel %vm972, %v3347, %v3348
        %v3351 = vadd.f32 %v3340, %v3349
        %s3352 = sld [smem:[#allocation11 + $0x97]]
        %v3353 = vstv %s3352
        %v3354 = vmul.f32 %v3353, %v1701
        %v3355 = vmul.f32 %v3353, %v1702
        %v3358 = vrot.slane %v3354, 2
        %v3359 = vrot.slane %v3355, 2
        %v3360 = vsel %vm972, %v3358, %v3359
        %3361 = vrot.lane.b32.xlu0 %v3360, 127
        %v3362 = vpop.permute.xlu0 %3361
        %v3364 = vadd.f32 %v3351, %v3362
        %s3365 = sld [smem:[#allocation11 + $0x98]]
        %v3366 = vstv %s3365
        %v3367 = vmul.f32 %v3366, %v1701
        %v3368 = vmul.f32 %v3366, %v1702
        %v3371 = vrot.slane %v3367, 2
        %v3372 = vrot.slane %v3368, 2
        %v3373 = vsel %vm972, %v3371, %v3372
        %3374 = vrot.lane.b32.xlu0 %v3373, 126
        %v3375 = vpop.permute.xlu0 %3374
        %v3377 = vadd.f32 %v3364, %v3375
        %s3378 = sld [smem:[#allocation11 + $0x99]]
        %v3379 = vstv %s3378
        %v3380 = vmul.f32 %v3379, %v1703
        %v3381 = vadd.f32 %v3377, %v3380
        %s3382 = sld [smem:[#allocation11 + $0x9a]]
        %v3383 = vstv %s3382
        %v3384 = vmul.f32 %v3383, %v1703
        %3386 = vrot.lane.b32.xlu0 %v3384, 127
        %v3387 = vpop.permute.xlu0 %3386
        %v3389 = vadd.f32 %v3381, %v3387
        %s3390 = sld [smem:[#allocation11 + $0x9b]]
        %v3391 = vstv %s3390
        %v3392 = vmul.f32 %v3391, %v1703
        %3394 = vrot.lane.b32.xlu0 %v3392, 126
        %v3395 = vpop.permute.xlu0 %3394
        %v3397 = vadd.f32 %v3389, %v3395
        %s3398 = sld [smem:[#allocation11 + $0x9c]]
        %v3399 = vstv %s3398
        %v3400 = vmul.f32 %v3399, %v1703
        %v3401 = vmul.f32 %v3399, %v1704
        %v3404 = vrot.slane %v3400, 1
        %v3405 = vrot.slane %v3401, 1
        %v3406 = vsel %vm934, %v3404, %v3405
        %v3408 = vadd.f32 %v3397, %v3406
        %s3409 = sld [smem:[#allocation11 + $0x9d]]
        %v3410 = vstv %s3409
        %v3411 = vmul.f32 %v3410, %v1703
        %v3412 = vmul.f32 %v3410, %v1704
        %v3415 = vrot.slane %v3411, 1
        %v3416 = vrot.slane %v3412, 1
        %v3417 = vsel %vm934, %v3415, %v3416
        %3418 = vrot.lane.b32.xlu0 %v3417, 127
        %v3419 = vpop.permute.xlu0 %3418
        %v3421 = vadd.f32 %v3408, %v3419
        %s3422 = sld [smem:[#allocation11 + $0x9e]]
        %v3423 = vstv %s3422
        %v3424 = vmul.f32 %v3423, %v1703
        %v3425 = vmul.f32 %v3423, %v1704
        %v3428 = vrot.slane %v3424, 1
        %v3429 = vrot.slane %v3425, 1
        %v3430 = vsel %vm934, %v3428, %v3429
        %3431 = vrot.lane.b32.xlu0 %v3430, 126
        %v3432 = vpop.permute.xlu0 %3431
        %v3434 = vadd.f32 %v3421, %v3432
        %s3435 = sld [smem:[#allocation11 + $0x9f]]
        %v3436 = vstv %s3435
        %v3437 = vmul.f32 %v3436, %v1703
        %v3438 = vmul.f32 %v3436, %v1704
        %v3441 = vrot.slane %v3437, 2
        %v3442 = vrot.slane %v3438, 2
        %v3443 = vsel %vm972, %v3441, %v3442
        %v3445 = vadd.f32 %v3434, %v3443
        %s3446 = sld [smem:[#allocation11 + $0xa0]]
        %v3447 = vstv %s3446
        %v3448 = vmul.f32 %v3447, %v1703
        %v3449 = vmul.f32 %v3447, %v1704
        %v3452 = vrot.slane %v3448, 2
        %v3453 = vrot.slane %v3449, 2
        %v3454 = vsel %vm972, %v3452, %v3453
        %3455 = vrot.lane.b32.xlu0 %v3454, 127
        %v3456 = vpop.permute.xlu0 %3455
        %v3458 = vadd.f32 %v3445, %v3456
        %s3459 = sld [smem:[#allocation11 + $0xa1]]
        %v3460 = vstv %s3459
        %v3461 = vmul.f32 %v3460, %v1703
        %v3462 = vmul.f32 %v3460, %v1704
        %v3465 = vrot.slane %v3461, 2
        %v3466 = vrot.slane %v3462, 2
        %v3467 = vsel %vm972, %v3465, %v3466
        %3468 = vrot.lane.b32.xlu0 %v3467, 126
        %v3469 = vpop.permute.xlu0 %3468
        %v3471 = vadd.f32 %v3458, %v3469
        %s3472 = sld [smem:[#allocation11 + $0xa2]]
        %v3473 = vstv %s3472
        %v3474 = vmul.f32 %v3473, %v1705
        %v3475 = vadd.f32 %v3471, %v3474
        %s3476 = sld [smem:[#allocation11 + $0xa3]]
        %v3477 = vstv %s3476
        %v3478 = vmul.f32 %v3477, %v1705
        %3480 = vrot.lane.b32.xlu0 %v3478, 127
        %v3481 = vpop.permute.xlu0 %3480
        %v3483 = vadd.f32 %v3475, %v3481
        %s3484 = sld [smem:[#allocation11 + $0xa4]]
        %v3485 = vstv %s3484
        %v3486 = vmul.f32 %v3485, %v1705
        %3488 = vrot.lane.b32.xlu0 %v3486, 126
        %v3489 = vpop.permute.xlu0 %3488
        %v3491 = vadd.f32 %v3483, %v3489
        %s3492 = sld [smem:[#allocation11 + $0xa5]]
        %v3493 = vstv %s3492
        %v3494 = vmul.f32 %v3493, %v1705
        %v3495 = vmul.f32 %v3493, %v1706
        %v3498 = vrot.slane %v3494, 1
        %v3499 = vrot.slane %v3495, 1
        %v3500 = vsel %vm934, %v3498, %v3499
        %v3502 = vadd.f32 %v3491, %v3500
        %s3503 = sld [smem:[#allocation11 + $0xa6]]
        %v3504 = vstv %s3503
        %v3505 = vmul.f32 %v3504, %v1705
        %v3506 = vmul.f32 %v3504, %v1706
        %v3509 = vrot.slane %v3505, 1
        %v3510 = vrot.slane %v3506, 1
        %v3511 = vsel %vm934, %v3509, %v3510
        %3512 = vrot.lane.b32.xlu0 %v3511, 127
        %v3513 = vpop.permute.xlu0 %3512
        %v3515 = vadd.f32 %v3502, %v3513
        %s3516 = sld [smem:[#allocation11 + $0xa7]]
        %v3517 = vstv %s3516
        %v3518 = vmul.f32 %v3517, %v1705
        %v3519 = vmul.f32 %v3517, %v1706
        %v3522 = vrot.slane %v3518, 1
        %v3523 = vrot.slane %v3519, 1
        %v3524 = vsel %vm934, %v3522, %v3523
        %3525 = vrot.lane.b32.xlu0 %v3524, 126
        %v3526 = vpop.permute.xlu0 %3525
        %v3528 = vadd.f32 %v3515, %v3526
        %s3529 = sld [smem:[#allocation11 + $0xa8]]
        %v3530 = vstv %s3529
        %v3531 = vmul.f32 %v3530, %v1705
        %v3532 = vmul.f32 %v3530, %v1706
        %v3535 = vrot.slane %v3531, 2
        %v3536 = vrot.slane %v3532, 2
        %v3537 = vsel %vm972, %v3535, %v3536
        %v3539 = vadd.f32 %v3528, %v3537
        %s3540 = sld [smem:[#allocation11 + $0xa9]]
        %v3541 = vstv %s3540
        %v3542 = vmul.f32 %v3541, %v1705
        %v3543 = vmul.f32 %v3541, %v1706
        %v3546 = vrot.slane %v3542, 2
        %v3547 = vrot.slane %v3543, 2
        %v3548 = vsel %vm972, %v3546, %v3547
        %3549 = vrot.lane.b32.xlu0 %v3548, 127
        %v3550 = vpop.permute.xlu0 %3549
        %v3552 = vadd.f32 %v3539, %v3550
        %s3553 = sld [smem:[#allocation11 + $0xaa]]
        %v3554 = vstv %s3553
        %v3555 = vmul.f32 %v3554, %v1705
        %v3556 = vmul.f32 %v3554, %v1706
        %v3559 = vrot.slane %v3555, 2
        %v3560 = vrot.slane %v3556, 2
        %v3561 = vsel %vm972, %v3559, %v3560
        %3562 = vrot.lane.b32.xlu0 %v3561, 126
        %v3563 = vpop.permute.xlu0 %3562
        %v3565 = vadd.f32 %v3552, %v3563
        %s3566 = sld [smem:[#allocation11 + $0xab]]
        %v3567 = vstv %s3566
        %v3568 = vmul.f32 %v3567, %v1707
        %v3569 = vadd.f32 %v3565, %v3568
        %s3570 = sld [smem:[#allocation11 + $0xac]]
        %v3571 = vstv %s3570
        %v3572 = vmul.f32 %v3571, %v1707
        %3574 = vrot.lane.b32.xlu0 %v3572, 127
        %v3575 = vpop.permute.xlu0 %3574
        %v3577 = vadd.f32 %v3569, %v3575
        %s3578 = sld [smem:[#allocation11 + $0xad]]
        %v3579 = vstv %s3578
        %v3580 = vmul.f32 %v3579, %v1707
        %3582 = vrot.lane.b32.xlu0 %v3580, 126
        %v3583 = vpop.permute.xlu0 %3582
        %v3585 = vadd.f32 %v3577, %v3583
        %s3586 = sld [smem:[#allocation11 + $0xae]]
        %v3587 = vstv %s3586
        %v3588 = vmul.f32 %v3587, %v1707
        %v3589 = vmul.f32 %v3587, %v1708
        %v3592 = vrot.slane %v3588, 1
        %v3593 = vrot.slane %v3589, 1
        %v3594 = vsel %vm934, %v3592, %v3593
        %v3596 = vadd.f32 %v3585, %v3594
        %s3597 = sld [smem:[#allocation11 + $0xaf]]
        %v3598 = vstv %s3597
        %v3599 = vmul.f32 %v3598, %v1707
        %v3600 = vmul.f32 %v3598, %v1708
        %v3603 = vrot.slane %v3599, 1
        %v3604 = vrot.slane %v3600, 1
        %v3605 = vsel %vm934, %v3603, %v3604
        %3606 = vrot.lane.b32.xlu0 %v3605, 127
        %v3607 = vpop.permute.xlu0 %3606
        %v3609 = vadd.f32 %v3596, %v3607
        %s3610 = sld [smem:[#allocation11 + $0xb0]]
        %v3611 = vstv %s3610
        %v3612 = vmul.f32 %v3611, %v1707
        %v3613 = vmul.f32 %v3611, %v1708
        %v3616 = vrot.slane %v3612, 1
        %v3617 = vrot.slane %v3613, 1
        %v3618 = vsel %vm934, %v3616, %v3617
        %3619 = vrot.lane.b32.xlu0 %v3618, 126
        %v3620 = vpop.permute.xlu0 %3619
        %v3622 = vadd.f32 %v3609, %v3620
        %s3623 = sld [smem:[#allocation11 + $0xb1]]
        %v3624 = vstv %s3623
        %v3625 = vmul.f32 %v3624, %v1707
        %v3626 = vmul.f32 %v3624, %v1708
        %v3629 = vrot.slane %v3625, 2
        %v3630 = vrot.slane %v3626, 2
        %v3631 = vsel %vm972, %v3629, %v3630
        %v3633 = vadd.f32 %v3622, %v3631
        %s3634 = sld [smem:[#allocation11 + $0xb2]]
        %v3635 = vstv %s3634
        %v3636 = vmul.f32 %v3635, %v1707
        %v3637 = vmul.f32 %v3635, %v1708
        %v3640 = vrot.slane %v3636, 2
        %v3641 = vrot.slane %v3637, 2
        %v3642 = vsel %vm972, %v3640, %v3641
        %3643 = vrot.lane.b32.xlu0 %v3642, 127
        %v3644 = vpop.permute.xlu0 %3643
        %v3646 = vadd.f32 %v3633, %v3644
        %s3647 = sld [smem:[#allocation11 + $0xb3]]
        %v3648 = vstv %s3647
        %v3649 = vmul.f32 %v3648, %v1707
        %v3650 = vmul.f32 %v3648, %v1708
        %v3653 = vrot.slane %v3649, 2
        %v3654 = vrot.slane %v3650, 2
        %v3655 = vsel %vm972, %v3653, %v3654
        %3656 = vrot.lane.b32.xlu0 %v3655, 126
        %v3657 = vpop.permute.xlu0 %3656
        %v3659 = vadd.f32 %v3646, %v3657
        %s3660 = sld [smem:[#allocation12 + $0x4]]
        %v3661 = vstv %s3660
        %v3662 = vadd.f32 %v3659, %v3661
        %v3663 = vmax.f32 %v3662, 0.0
        %v3664 = vsel %vm2091, %v3663, 0.0
        %3665 = vadd.xlane.f32.xlu0 %v3664
        %v3666 = vpop.xlane.xlu0 %3665
        %v3667 = vrot.slane %v3666, 4
        %v3668 = vadd.f32 %v3666, %v3667
        %v3669 = vrot.slane %v3668, 2
        %v3670 = vadd.f32 %v3668, %v3669
        %v3671 = vrot.slane %v3670, 1
        %v3672 = vadd.f32 %v3670, %v3671
        %v3673 = vmul.f32 %v3672, 0.014880952
        %v3674 = vld [vmem:[%s8 + $0x4] sm:$0x1]
        %v3675 = vmul.f32 %v3673, %v3674
        %v3676 = vadd.f32 %v3283, %v3675
        %s3677 = sld [smem:[#allocation11 + $0xb4]]
        %v3678 = vstv %s3677
        %v3679 = vmul.f32 %v3678, %v1701
        %v3680 = vadd.f32 %v3679, 0.0
        %s3681 = sld [smem:[#allocation11 + $0xb5]]
        %v3682 = vstv %s3681
        %v3683 = vmul.f32 %v3682, %v1701
        %3685 = vrot.lane.b32.xlu0 %v3683, 127
        %v3686 = vpop.permute.xlu0 %3685
        %v3688 = vadd.f32 %v3680, %v3686
        %s3689 = sld [smem:[#allocation11 + $0xb6]]
        %v3690 = vstv %s3689
        %v3691 = vmul.f32 %v3690, %v1701
        %3693 = vrot.lane.b32.xlu0 %v3691, 126
        %v3694 = vpop.permute.xlu0 %3693
        %v3696 = vadd.f32 %v3688, %v3694
        %s3697 = sld [smem:[#allocation11 + $0xb7]]
        %v3698 = vstv %s3697
        %v3699 = vmul.f32 %v3698, %v1701
        %v3700 = vmul.f32 %v3698, %v1702
        %v3703 = vrot.slane %v3699, 1
        %v3704 = vrot.slane %v3700, 1
        %v3705 = vsel %vm934, %v3703, %v3704
        %v3707 = vadd.f32 %v3696, %v3705
        %s3708 = sld [smem:[#allocation11 + $0xb8]]
        %v3709 = vstv %s3708
        %v3710 = vmul.f32 %v3709, %v1701
        %v3711 = vmul.f32 %v3709, %v1702
        %v3714 = vrot.slane %v3710, 1
        %v3715 = vrot.slane %v3711, 1
        %v3716 = vsel %vm934, %v3714, %v3715
        %3717 = vrot.lane.b32.xlu0 %v3716, 127
        %v3718 = vpop.permute.xlu0 %3717
        %v3720 = vadd.f32 %v3707, %v3718
        %s3721 = sld [smem:[#allocation11 + $0xb9]]
        %v3722 = vstv %s3721
        %v3723 = vmul.f32 %v3722, %v1701
        %v3724 = vmul.f32 %v3722, %v1702
        %v3727 = vrot.slane %v3723, 1
        %v3728 = vrot.slane %v3724, 1
        %v3729 = vsel %vm934, %v3727, %v3728
        %3730 = vrot.lane.b32.xlu0 %v3729, 126
        %v3731 = vpop.permute.xlu0 %3730
        %v3733 = vadd.f32 %v3720, %v3731
        %s3734 = sld [smem:[#allocation11 + $0xba]]
        %v3735 = vstv %s3734
        %v3736 = vmul.f32 %v3735, %v1701
        %v3737 = vmul.f32 %v3735, %v1702
        %v3740 = vrot.slane %v3736, 2
        %v3741 = vrot.slane %v3737, 2
        %v3742 = vsel %vm972, %v3740, %v3741
        %v3744 = vadd.f32 %v3733, %v3742
        %s3745 = sld [smem:[#allocation11 + $0xbb]]
        %v3746 = vstv %s3745
        %v3747 = vmul.f32 %v3746, %v1701
        %v3748 = vmul.f32 %v3746, %v1702
        %v3751 = vrot.slane %v3747, 2
        %v3752 = vrot.slane %v3748, 2
        %v3753 = vsel %vm972, %v3751, %v3752
        %3754 = vrot.lane.b32.xlu0 %v3753, 127
        %v3755 = vpop.permute.xlu0 %3754
        %v3757 = vadd.f32 %v3744, %v3755
        %s3758 = sld [smem:[#allocation11 + $0xbc]]
        %v3759 = vstv %s3758
        %v3760 = vmul.f32 %v3759, %v1701
        %v3761 = vmul.f32 %v3759, %v1702
        %v3764 = vrot.slane %v3760, 2
        %v3765 = vrot.slane %v3761, 2
        %v3766 = vsel %vm972, %v3764, %v3765
        %3767 = vrot.lane.b32.xlu0 %v3766, 126
        %v3768 = vpop.permute.xlu0 %3767
        %v3770 = vadd.f32 %v3757, %v3768
        %s3771 = sld [smem:[#allocation11 + $0xbd]]
        %v3772 = vstv %s3771
        %v3773 = vmul.f32 %v3772, %v1703
        %v3774 = vadd.f32 %v3770, %v3773
        %s3775 = sld [smem:[#allocation11 + $0xbe]]
        %v3776 = vstv %s3775
        %v3777 = vmul.f32 %v3776, %v1703
        %3779 = vrot.lane.b32.xlu0 %v3777, 127
        %v3780 = vpop.permute.xlu0 %3779
        %v3782 = vadd.f32 %v3774, %v3780
        %s3783 = sld [smem:[#allocation11 + $0xbf]]
        %v3784 = vstv %s3783
        %v3785 = vmul.f32 %v3784, %v1703
        %3787 = vrot.lane.b32.xlu0 %v3785, 126
        %v3788 = vpop.permute.xlu0 %3787
        %v3790 = vadd.f32 %v3782, %v3788
        %s3791 = sld [smem:[#allocation11 + $0xc0]]
        %v3792 = vstv %s3791
        %v3793 = vmul.f32 %v3792, %v1703
        %v3794 = vmul.f32 %v3792, %v1704
        %v3797 = vrot.slane %v3793, 1
        %v3798 = vrot.slane %v3794, 1
        %v3799 = vsel %vm934, %v3797, %v3798
        %v3801 = vadd.f32 %v3790, %v3799
        %s3802 = sld [smem:[#allocation11 + $0xc1]]
        %v3803 = vstv %s3802
        %v3804 = vmul.f32 %v3803, %v1703
        %v3805 = vmul.f32 %v3803, %v1704
        %v3808 = vrot.slane %v3804, 1
        %v3809 = vrot.slane %v3805, 1
        %v3810 = vsel %vm934, %v3808, %v3809
        %3811 = vrot.lane.b32.xlu0 %v3810, 127
        %v3812 = vpop.permute.xlu0 %3811
        %v3814 = vadd.f32 %v3801, %v3812
        %s3815 = sld [smem:[#allocation11 + $0xc2]]
        %v3816 = vstv %s3815
        %v3817 = vmul.f32 %v3816, %v1703
        %v3818 = vmul.f32 %v3816, %v1704
        %v3821 = vrot.slane %v3817, 1
        %v3822 = vrot.slane %v3818, 1
        %v3823 = vsel %vm934, %v3821, %v3822
        %3824 = vrot.lane.b32.xlu0 %v3823, 126
        %v3825 = vpop.permute.xlu0 %3824
        %v3827 = vadd.f32 %v3814, %v3825
        %s3828 = sld [smem:[#allocation11 + $0xc3]]
        %v3829 = vstv %s3828
        %v3830 = vmul.f32 %v3829, %v1703
        %v3831 = vmul.f32 %v3829, %v1704
        %v3834 = vrot.slane %v3830, 2
        %v3835 = vrot.slane %v3831, 2
        %v3836 = vsel %vm972, %v3834, %v3835
        %v3838 = vadd.f32 %v3827, %v3836
        %s3839 = sld [smem:[#allocation11 + $0xc4]]
        %v3840 = vstv %s3839
        %v3841 = vmul.f32 %v3840, %v1703
        %v3842 = vmul.f32 %v3840, %v1704
        %v3845 = vrot.slane %v3841, 2
        %v3846 = vrot.slane %v3842, 2
        %v3847 = vsel %vm972, %v3845, %v3846
        %3848 = vrot.lane.b32.xlu0 %v3847, 127
        %v3849 = vpop.permute.xlu0 %3848
        %v3851 = vadd.f32 %v3838, %v3849
        %s3852 = sld [smem:[#allocation11 + $0xc5]]
        %v3853 = vstv %s3852
        %v3854 = vmul.f32 %v3853, %v1703
        %v3855 = vmul.f32 %v3853, %v1704
        %v3858 = vrot.slane %v3854, 2
        %v3859 = vrot.slane %v3855, 2
        %v3860 = vsel %vm972, %v3858, %v3859
        %3861 = vrot.lane.b32.xlu0 %v3860, 126
        %v3862 = vpop.permute.xlu0 %3861
        %v3864 = vadd.f32 %v3851, %v3862
        %s3865 = sld [smem:[#allocation11 + $0xc6]]
        %v3866 = vstv %s3865
        %v3867 = vmul.f32 %v3866, %v1705
        %v3868 = vadd.f32 %v3864, %v3867
        %s3869 = sld [smem:[#allocation11 + $0xc7]]
        %v3870 = vstv %s3869
        %v3871 = vmul.f32 %v3870, %v1705
        %3873 = vrot.lane.b32.xlu0 %v3871, 127
        %v3874 = vpop.permute.xlu0 %3873
        %v3876 = vadd.f32 %v3868, %v3874
        %s3877 = sld [smem:[#allocation11 + $0xc8]]
        %v3878 = vstv %s3877
        %v3879 = vmul.f32 %v3878, %v1705
        %3881 = vrot.lane.b32.xlu0 %v3879, 126
        %v3882 = vpop.permute.xlu0 %3881
        %v3884 = vadd.f32 %v3876, %v3882
        %s3885 = sld [smem:[#allocation11 + $0xc9]]
        %v3886 = vstv %s3885
        %v3887 = vmul.f32 %v3886, %v1705
        %v3888 = vmul.f32 %v3886, %v1706
        %v3891 = vrot.slane %v3887, 1
        %v3892 = vrot.slane %v3888, 1
        %v3893 = vsel %vm934, %v3891, %v3892
        %v3895 = vadd.f32 %v3884, %v3893
        %s3896 = sld [smem:[#allocation11 + $0xca]]
        %v3897 = vstv %s3896
        %v3898 = vmul.f32 %v3897, %v1705
        %v3899 = vmul.f32 %v3897, %v1706
        %v3902 = vrot.slane %v3898, 1
        %v3903 = vrot.slane %v3899, 1
        %v3904 = vsel %vm934, %v3902, %v3903
        %3905 = vrot.lane.b32.xlu0 %v3904, 127
        %v3906 = vpop.permute.xlu0 %3905
        %v3908 = vadd.f32 %v3895, %v3906
        %s3909 = sld [smem:[#allocation11 + $0xcb]]
        %v3910 = vstv %s3909
        %v3911 = vmul.f32 %v3910, %v1705
        %v3912 = vmul.f32 %v3910, %v1706
        %v3915 = vrot.slane %v3911, 1
        %v3916 = vrot.slane %v3912, 1
        %v3917 = vsel %vm934, %v3915, %v3916
        %3918 = vrot.lane.b32.xlu0 %v3917, 126
        %v3919 = vpop.permute.xlu0 %3918
        %v3921 = vadd.f32 %v3908, %v3919
        %s3922 = sld [smem:[#allocation11 + $0xcc]]
        %v3923 = vstv %s3922
        %v3924 = vmul.f32 %v3923, %v1705
        %v3925 = vmul.f32 %v3923, %v1706
        %v3928 = vrot.slane %v3924, 2
        %v3929 = vrot.slane %v3925, 2
        %v3930 = vsel %vm972, %v3928, %v3929
        %v3932 = vadd.f32 %v3921, %v3930
        %s3933 = sld [smem:[#allocation11 + $0xcd]]
        %v3934 = vstv %s3933
        %v3935 = vmul.f32 %v3934, %v1705
        %v3936 = vmul.f32 %v3934, %v1706
        %v3939 = vrot.slane %v3935, 2
        %v3940 = vrot.slane %v3936, 2
        %v3941 = vsel %vm972, %v3939, %v3940
        %3942 = vrot.lane.b32.xlu0 %v3941, 127
        %v3943 = vpop.permute.xlu0 %3942
        %v3945 = vadd.f32 %v3932, %v3943
        %s3946 = sld [smem:[#allocation11 + $0xce]]
        %v3947 = vstv %s3946
        %v3948 = vmul.f32 %v3947, %v1705
        %v3949 = vmul.f32 %v3947, %v1706
        %v3952 = vrot.slane %v3948, 2
        %v3953 = vrot.slane %v3949, 2
        %v3954 = vsel %vm972, %v3952, %v3953
        %3955 = vrot.lane.b32.xlu0 %v3954, 126
        %v3956 = vpop.permute.xlu0 %3955
        %v3958 = vadd.f32 %v3945, %v3956
        %s3959 = sld [smem:[#allocation11 + $0xcf]]
        %v3960 = vstv %s3959
        %v3961 = vmul.f32 %v3960, %v1707
        %v3962 = vadd.f32 %v3958, %v3961
        %s3963 = sld [smem:[#allocation11 + $0xd0]]
        %v3964 = vstv %s3963
        %v3965 = vmul.f32 %v3964, %v1707
        %3967 = vrot.lane.b32.xlu0 %v3965, 127
        %v3968 = vpop.permute.xlu0 %3967
        %v3970 = vadd.f32 %v3962, %v3968
        %s3971 = sld [smem:[#allocation11 + $0xd1]]
        %v3972 = vstv %s3971
        %v3973 = vmul.f32 %v3972, %v1707
        %3975 = vrot.lane.b32.xlu0 %v3973, 126
        %v3976 = vpop.permute.xlu0 %3975
        %v3978 = vadd.f32 %v3970, %v3976
        %s3979 = sld [smem:[#allocation11 + $0xd2]]
        %v3980 = vstv %s3979
        %v3981 = vmul.f32 %v3980, %v1707
        %v3982 = vmul.f32 %v3980, %v1708
        %v3985 = vrot.slane %v3981, 1
        %v3986 = vrot.slane %v3982, 1
        %v3987 = vsel %vm934, %v3985, %v3986
        %v3989 = vadd.f32 %v3978, %v3987
        %s3990 = sld [smem:[#allocation11 + $0xd3]]
        %v3991 = vstv %s3990
        %v3992 = vmul.f32 %v3991, %v1707
        %v3993 = vmul.f32 %v3991, %v1708
        %v3996 = vrot.slane %v3992, 1
        %v3997 = vrot.slane %v3993, 1
        %v3998 = vsel %vm934, %v3996, %v3997
        %3999 = vrot.lane.b32.xlu0 %v3998, 127
        %v4000 = vpop.permute.xlu0 %3999
        %v4002 = vadd.f32 %v3989, %v4000
        %s4003 = sld [smem:[#allocation11 + $0xd4]]
        %v4004 = vstv %s4003
        %v4005 = vmul.f32 %v4004, %v1707
        %v4006 = vmul.f32 %v4004, %v1708
        %v4009 = vrot.slane %v4005, 1
        %v4010 = vrot.slane %v4006, 1
        %v4011 = vsel %vm934, %v4009, %v4010
        %4012 = vrot.lane.b32.xlu0 %v4011, 126
        %v4013 = vpop.permute.xlu0 %4012
        %v4015 = vadd.f32 %v4002, %v4013
        %s4016 = sld [smem:[#allocation11 + $0xd5]]
        %v4017 = vstv %s4016
        %v4018 = vmul.f32 %v4017, %v1707
        %v4019 = vmul.f32 %v4017, %v1708
        %v4022 = vrot.slane %v4018, 2
        %v4023 = vrot.slane %v4019, 2
        %v4024 = vsel %vm972, %v4022, %v4023
        %v4026 = vadd.f32 %v4015, %v4024
        %s4027 = sld [smem:[#allocation11 + $0xd6]]
        %v4028 = vstv %s4027
        %v4029 = vmul.f32 %v4028, %v1707
        %v4030 = vmul.f32 %v4028, %v1708
        %v4033 = vrot.slane %v4029, 2
        %v4034 = vrot.slane %v4030, 2
        %v4035 = vsel %vm972, %v4033, %v4034
        %4036 = vrot.lane.b32.xlu0 %v4035, 127
        %v4037 = vpop.permute.xlu0 %4036
        %v4039 = vadd.f32 %v4026, %v4037
        %s4040 = sld [smem:[#allocation11 + $0xd7]]
        %v4041 = vstv %s4040
        %v4042 = vmul.f32 %v4041, %v1707
        %v4043 = vmul.f32 %v4041, %v1708
        %v4046 = vrot.slane %v4042, 2
        %v4047 = vrot.slane %v4043, 2
        %v4048 = vsel %vm972, %v4046, %v4047
        %4049 = vrot.lane.b32.xlu0 %v4048, 126
        %v4050 = vpop.permute.xlu0 %4049
        %v4052 = vadd.f32 %v4039, %v4050
        %s4053 = sld [smem:[#allocation12 + $0x5]]
        %v4054 = vstv %s4053
        %v4055 = vadd.f32 %v4052, %v4054
        %v4056 = vmax.f32 %v4055, 0.0
        %v4057 = vsel %vm2091, %v4056, 0.0
        %4058 = vadd.xlane.f32.xlu0 %v4057
        %v4059 = vpop.xlane.xlu0 %4058
        %v4060 = vrot.slane %v4059, 4
        %v4061 = vadd.f32 %v4059, %v4060
        %v4062 = vrot.slane %v4061, 2
        %v4063 = vadd.f32 %v4061, %v4062
        %v4064 = vrot.slane %v4063, 1
        %v4065 = vadd.f32 %v4063, %v4064
        %v4066 = vmul.f32 %v4065, 0.014880952
        %v4067 = vld [vmem:[%s8 + $0x5] sm:$0x1]
        %v4068 = vmul.f32 %v4066, %v4067
        %v4069 = vadd.f32 %v3676, %v4068
        %s4070 = sld [smem:[#allocation11 + $0xd8]]
        %v4071 = vstv %s4070
        %v4072 = vmul.f32 %v4071, %v1701
        %v4073 = vadd.f32 %v4072, 0.0
        %s4074 = sld [smem:[#allocation11 + $0xd9]]
        %v4075 = vstv %s4074
        %v4076 = vmul.f32 %v4075, %v1701
        %4078 = vrot.lane.b32.xlu0 %v4076, 127
        %v4079 = vpop.permute.xlu0 %4078
        %v4081 = vadd.f32 %v4073, %v4079
        %s4082 = sld [smem:[#allocation11 + $0xda]]
        %v4083 = vstv %s4082
        %v4084 = vmul.f32 %v4083, %v1701
        %4086 = vrot.lane.b32.xlu0 %v4084, 126
        %v4087 = vpop.permute.xlu0 %4086
        %v4089 = vadd.f32 %v4081, %v4087
        %s4090 = sld [smem:[#allocation11 + $0xdb]]
        %v4091 = vstv %s4090
        %v4092 = vmul.f32 %v4091, %v1701
        %v4093 = vmul.f32 %v4091, %v1702
        %v4096 = vrot.slane %v4092, 1
        %v4097 = vrot.slane %v4093, 1
        %v4098 = vsel %vm934, %v4096, %v4097
        %v4100 = vadd.f32 %v4089, %v4098
        %s4101 = sld [smem:[#allocation11 + $0xdc]]
        %v4102 = vstv %s4101
        %v4103 = vmul.f32 %v4102, %v1701
        %v4104 = vmul.f32 %v4102, %v1702
        %v4107 = vrot.slane %v4103, 1
        %v4108 = vrot.slane %v4104, 1
        %v4109 = vsel %vm934, %v4107, %v4108
        %4110 = vrot.lane.b32.xlu0 %v4109, 127
        %v4111 = vpop.permute.xlu0 %4110
        %v4113 = vadd.f32 %v4100, %v4111
        %s4114 = sld [smem:[#allocation11 + $0xdd]]
        %v4115 = vstv %s4114
        %v4116 = vmul.f32 %v4115, %v1701
        %v4117 = vmul.f32 %v4115, %v1702
        %v4120 = vrot.slane %v4116, 1
        %v4121 = vrot.slane %v4117, 1
        %v4122 = vsel %vm934, %v4120, %v4121
        %4123 = vrot.lane.b32.xlu0 %v4122, 126
        %v4124 = vpop.permute.xlu0 %4123
        %v4126 = vadd.f32 %v4113, %v4124
        %s4127 = sld [smem:[#allocation11 + $0xde]]
        %v4128 = vstv %s4127
        %v4129 = vmul.f32 %v4128, %v1701
        %v4130 = vmul.f32 %v4128, %v1702
        %v4133 = vrot.slane %v4129, 2
        %v4134 = vrot.slane %v4130, 2
        %v4135 = vsel %vm972, %v4133, %v4134
        %v4137 = vadd.f32 %v4126, %v4135
        %s4138 = sld [smem:[#allocation11 + $0xdf]]
        %v4139 = vstv %s4138
        %v4140 = vmul.f32 %v4139, %v1701
        %v4141 = vmul.f32 %v4139, %v1702
        %v4144 = vrot.slane %v4140, 2
        %v4145 = vrot.slane %v4141, 2
        %v4146 = vsel %vm972, %v4144, %v4145
        %4147 = vrot.lane.b32.xlu0 %v4146, 127
        %v4148 = vpop.permute.xlu0 %4147
        %v4150 = vadd.f32 %v4137, %v4148
        %s4151 = sld [smem:[#allocation11 + $0xe0]]
        %v4152 = vstv %s4151
        %v4153 = vmul.f32 %v4152, %v1701
        %v4154 = vmul.f32 %v4152, %v1702
        %v4157 = vrot.slane %v4153, 2
        %v4158 = vrot.slane %v4154, 2
        %v4159 = vsel %vm972, %v4157, %v4158
        %4160 = vrot.lane.b32.xlu0 %v4159, 126
        %v4161 = vpop.permute.xlu0 %4160
        %v4163 = vadd.f32 %v4150, %v4161
        %s4164 = sld [smem:[#allocation11 + $0xe1]]
        %v4165 = vstv %s4164
        %v4166 = vmul.f32 %v4165, %v1703
        %v4167 = vadd.f32 %v4163, %v4166
        %s4168 = sld [smem:[#allocation11 + $0xe2]]
        %v4169 = vstv %s4168
        %v4170 = vmul.f32 %v4169, %v1703
        %4172 = vrot.lane.b32.xlu0 %v4170, 127
        %v4173 = vpop.permute.xlu0 %4172
        %v4175 = vadd.f32 %v4167, %v4173
        %s4176 = sld [smem:[#allocation11 + $0xe3]]
        %v4177 = vstv %s4176
        %v4178 = vmul.f32 %v4177, %v1703
        %4180 = vrot.lane.b32.xlu0 %v4178, 126
        %v4181 = vpop.permute.xlu0 %4180
        %v4183 = vadd.f32 %v4175, %v4181
        %s4184 = sld [smem:[#allocation11 + $0xe4]]
        %v4185 = vstv %s4184
        %v4186 = vmul.f32 %v4185, %v1703
        %v4187 = vmul.f32 %v4185, %v1704
        %v4190 = vrot.slane %v4186, 1
        %v4191 = vrot.slane %v4187, 1
        %v4192 = vsel %vm934, %v4190, %v4191
        %v4194 = vadd.f32 %v4183, %v4192
        %s4195 = sld [smem:[#allocation11 + $0xe5]]
        %v4196 = vstv %s4195
        %v4197 = vmul.f32 %v4196, %v1703
        %v4198 = vmul.f32 %v4196, %v1704
        %v4201 = vrot.slane %v4197, 1
        %v4202 = vrot.slane %v4198, 1
        %v4203 = vsel %vm934, %v4201, %v4202
        %4204 = vrot.lane.b32.xlu0 %v4203, 127
        %v4205 = vpop.permute.xlu0 %4204
        %v4207 = vadd.f32 %v4194, %v4205
        %s4208 = sld [smem:[#allocation11 + $0xe6]]
        %v4209 = vstv %s4208
        %v4210 = vmul.f32 %v4209, %v1703
        %v4211 = vmul.f32 %v4209, %v1704
        %v4214 = vrot.slane %v4210, 1
        %v4215 = vrot.slane %v4211, 1
        %v4216 = vsel %vm934, %v4214, %v4215
        %4217 = vrot.lane.b32.xlu0 %v4216, 126
        %v4218 = vpop.permute.xlu0 %4217
        %v4220 = vadd.f32 %v4207, %v4218
        %s4221 = sld [smem:[#allocation11 + $0xe7]]
        %v4222 = vstv %s4221
        %v4223 = vmul.f32 %v4222, %v1703
        %v4224 = vmul.f32 %v4222, %v1704
        %v4227 = vrot.slane %v4223, 2
        %v4228 = vrot.slane %v4224, 2
        %v4229 = vsel %vm972, %v4227, %v4228
        %v4231 = vadd.f32 %v4220, %v4229
        %s4232 = sld [smem:[#allocation11 + $0xe8]]
        %v4233 = vstv %s4232
        %v4234 = vmul.f32 %v4233, %v1703
        %v4235 = vmul.f32 %v4233, %v1704
        %v4238 = vrot.slane %v4234, 2
        %v4239 = vrot.slane %v4235, 2
        %v4240 = vsel %vm972, %v4238, %v4239
        %4241 = vrot.lane.b32.xlu0 %v4240, 127
        %v4242 = vpop.permute.xlu0 %4241
        %v4244 = vadd.f32 %v4231, %v4242
        %s4245 = sld [smem:[#allocation11 + $0xe9]]
        %v4246 = vstv %s4245
        %v4247 = vmul.f32 %v4246, %v1703
        %v4248 = vmul.f32 %v4246, %v1704
        %v4251 = vrot.slane %v4247, 2
        %v4252 = vrot.slane %v4248, 2
        %v4253 = vsel %vm972, %v4251, %v4252
        %4254 = vrot.lane.b32.xlu0 %v4253, 126
        %v4255 = vpop.permute.xlu0 %4254
        %v4257 = vadd.f32 %v4244, %v4255
        %s4258 = sld [smem:[#allocation11 + $0xea]]
        %v4259 = vstv %s4258
        %v4260 = vmul.f32 %v4259, %v1705
        %v4261 = vadd.f32 %v4257, %v4260
        %s4262 = sld [smem:[#allocation11 + $0xeb]]
        %v4263 = vstv %s4262
        %v4264 = vmul.f32 %v4263, %v1705
        %4266 = vrot.lane.b32.xlu0 %v4264, 127
        %v4267 = vpop.permute.xlu0 %4266
        %v4269 = vadd.f32 %v4261, %v4267
        %s4270 = sld [smem:[#allocation11 + $0xec]]
        %v4271 = vstv %s4270
        %v4272 = vmul.f32 %v4271, %v1705
        %4274 = vrot.lane.b32.xlu0 %v4272, 126
        %v4275 = vpop.permute.xlu0 %4274
        %v4277 = vadd.f32 %v4269, %v4275
        %s4278 = sld [smem:[#allocation11 + $0xed]]
        %v4279 = vstv %s4278
        %v4280 = vmul.f32 %v4279, %v1705
        %v4281 = vmul.f32 %v4279, %v1706
        %v4284 = vrot.slane %v4280, 1
        %v4285 = vrot.slane %v4281, 1
        %v4286 = vsel %vm934, %v4284, %v4285
        %v4288 = vadd.f32 %v4277, %v4286
        %s4289 = sld [smem:[#allocation11 + $0xee]]
        %v4290 = vstv %s4289
        %v4291 = vmul.f32 %v4290, %v1705
        %v4292 = vmul.f32 %v4290, %v1706
        %v4295 = vrot.slane %v4291, 1
        %v4296 = vrot.slane %v4292, 1
        %v4297 = vsel %vm934, %v4295, %v4296
        %4298 = vrot.lane.b32.xlu0 %v4297, 127
        %v4299 = vpop.permute.xlu0 %4298
        %v4301 = vadd.f32 %v4288, %v4299
        %s4302 = sld [smem:[#allocation11 + $0xef]]
        %v4303 = vstv %s4302
        %v4304 = vmul.f32 %v4303, %v1705
        %v4305 = vmul.f32 %v4303, %v1706
        %v4308 = vrot.slane %v4304, 1
        %v4309 = vrot.slane %v4305, 1
        %v4310 = vsel %vm934, %v4308, %v4309
        %4311 = vrot.lane.b32.xlu0 %v4310, 126
        %v4312 = vpop.permute.xlu0 %4311
        %v4314 = vadd.f32 %v4301, %v4312
        %s4315 = sld [smem:[#allocation11 + $0xf0]]
        %v4316 = vstv %s4315
        %v4317 = vmul.f32 %v4316, %v1705
        %v4318 = vmul.f32 %v4316, %v1706
        %v4321 = vrot.slane %v4317, 2
        %v4322 = vrot.slane %v4318, 2
        %v4323 = vsel %vm972, %v4321, %v4322
        %v4325 = vadd.f32 %v4314, %v4323
        %s4326 = sld [smem:[#allocation11 + $0xf1]]
        %v4327 = vstv %s4326
        %v4328 = vmul.f32 %v4327, %v1705
        %v4329 = vmul.f32 %v4327, %v1706
        %v4332 = vrot.slane %v4328, 2
        %v4333 = vrot.slane %v4329, 2
        %v4334 = vsel %vm972, %v4332, %v4333
        %4335 = vrot.lane.b32.xlu0 %v4334, 127
        %v4336 = vpop.permute.xlu0 %4335
        %v4338 = vadd.f32 %v4325, %v4336
        %s4339 = sld [smem:[#allocation11 + $0xf2]]
        %v4340 = vstv %s4339
        %v4341 = vmul.f32 %v4340, %v1705
        %v4342 = vmul.f32 %v4340, %v1706
        %v4345 = vrot.slane %v4341, 2
        %v4346 = vrot.slane %v4342, 2
        %v4347 = vsel %vm972, %v4345, %v4346
        %4348 = vrot.lane.b32.xlu0 %v4347, 126
        %v4349 = vpop.permute.xlu0 %4348
        %v4351 = vadd.f32 %v4338, %v4349
        %s4352 = sld [smem:[#allocation11 + $0xf3]]
        %v4353 = vstv %s4352
        %v4354 = vmul.f32 %v4353, %v1707
        %v4355 = vadd.f32 %v4351, %v4354
        %s4356 = sld [smem:[#allocation11 + $0xf4]]
        %v4357 = vstv %s4356
        %v4358 = vmul.f32 %v4357, %v1707
        %4360 = vrot.lane.b32.xlu0 %v4358, 127
        %v4361 = vpop.permute.xlu0 %4360
        %v4363 = vadd.f32 %v4355, %v4361
        %s4364 = sld [smem:[#allocation11 + $0xf5]]
        %v4365 = vstv %s4364
        %v4366 = vmul.f32 %v4365, %v1707
        %4368 = vrot.lane.b32.xlu0 %v4366, 126
        %v4369 = vpop.permute.xlu0 %4368
        %v4371 = vadd.f32 %v4363, %v4369
        %s4372 = sld [smem:[#allocation11 + $0xf6]]
        %v4373 = vstv %s4372
        %v4374 = vmul.f32 %v4373, %v1707
        %v4375 = vmul.f32 %v4373, %v1708
        %v4378 = vrot.slane %v4374, 1
        %v4379 = vrot.slane %v4375, 1
        %v4380 = vsel %vm934, %v4378, %v4379
        %v4382 = vadd.f32 %v4371, %v4380
        %s4383 = sld [smem:[#allocation11 + $0xf7]]
        %v4384 = vstv %s4383
        %v4385 = vmul.f32 %v4384, %v1707
        %v4386 = vmul.f32 %v4384, %v1708
        %v4389 = vrot.slane %v4385, 1
        %v4390 = vrot.slane %v4386, 1
        %v4391 = vsel %vm934, %v4389, %v4390
        %4392 = vrot.lane.b32.xlu0 %v4391, 127
        %v4393 = vpop.permute.xlu0 %4392
        %v4395 = vadd.f32 %v4382, %v4393
        %s4396 = sld [smem:[#allocation11 + $0xf8]]
        %v4397 = vstv %s4396
        %v4398 = vmul.f32 %v4397, %v1707
        %v4399 = vmul.f32 %v4397, %v1708
        %v4402 = vrot.slane %v4398, 1
        %v4403 = vrot.slane %v4399, 1
        %v4404 = vsel %vm934, %v4402, %v4403
        %4405 = vrot.lane.b32.xlu0 %v4404, 126
        %v4406 = vpop.permute.xlu0 %4405
        %v4408 = vadd.f32 %v4395, %v4406
        %s4409 = sld [smem:[#allocation11 + $0xf9]]
        %v4410 = vstv %s4409
        %v4411 = vmul.f32 %v4410, %v1707
        %v4412 = vmul.f32 %v4410, %v1708
        %v4415 = vrot.slane %v4411, 2
        %v4416 = vrot.slane %v4412, 2
        %v4417 = vsel %vm972, %v4415, %v4416
        %v4419 = vadd.f32 %v4408, %v4417
        %s4420 = sld [smem:[#allocation11 + $0xfa]]
        %v4421 = vstv %s4420
        %v4422 = vmul.f32 %v4421, %v1707
        %v4423 = vmul.f32 %v4421, %v1708
        %v4426 = vrot.slane %v4422, 2
        %v4427 = vrot.slane %v4423, 2
        %v4428 = vsel %vm972, %v4426, %v4427
        %4429 = vrot.lane.b32.xlu0 %v4428, 127
        %v4430 = vpop.permute.xlu0 %4429
        %v4432 = vadd.f32 %v4419, %v4430
        %s4433 = sld [smem:[#allocation11 + $0xfb]]
        %v4434 = vstv %s4433
        %v4435 = vmul.f32 %v4434, %v1707
        %v4436 = vmul.f32 %v4434, %v1708
        %v4439 = vrot.slane %v4435, 2
        %v4440 = vrot.slane %v4436, 2
        %v4441 = vsel %vm972, %v4439, %v4440
        %4442 = vrot.lane.b32.xlu0 %v4441, 126
        %v4443 = vpop.permute.xlu0 %4442
        %v4445 = vadd.f32 %v4432, %v4443
        %s4446 = sld [smem:[#allocation12 + $0x6]]
        %v4447 = vstv %s4446
        %v4448 = vadd.f32 %v4445, %v4447
        %v4449 = vmax.f32 %v4448, 0.0
        %v4450 = vsel %vm2091, %v4449, 0.0
        %4451 = vadd.xlane.f32.xlu0 %v4450
        %v4452 = vpop.xlane.xlu0 %4451
        %v4453 = vrot.slane %v4452, 4
        %v4454 = vadd.f32 %v4452, %v4453
        %v4455 = vrot.slane %v4454, 2
        %v4456 = vadd.f32 %v4454, %v4455
        %v4457 = vrot.slane %v4456, 1
        %v4458 = vadd.f32 %v4456, %v4457
        %v4459 = vmul.f32 %v4458, 0.014880952
        %v4460 = vld [vmem:[%s8 + $0x6] sm:$0x1]
        %v4461 = vmul.f32 %v4459, %v4460
        %v4462 = vadd.f32 %v4069, %v4461
        %s4463 = sld [smem:[#allocation11 + $0xfc]]
        %v4464 = vstv %s4463
        %v4465 = vmul.f32 %v4464, %v1701
        %v4466 = vadd.f32 %v4465, 0.0
        %s4467 = sld [smem:[#allocation11 + $0xfd]]
        %v4468 = vstv %s4467
        %v4469 = vmul.f32 %v4468, %v1701
        %4471 = vrot.lane.b32.xlu0 %v4469, 127
        %v4472 = vpop.permute.xlu0 %4471
        %v4474 = vadd.f32 %v4466, %v4472
        %s4475 = sld [smem:[#allocation11 + $0xfe]]
        %v4476 = vstv %s4475
        %v4477 = vmul.f32 %v4476, %v1701
        %4479 = vrot.lane.b32.xlu0 %v4477, 126
        %v4480 = vpop.permute.xlu0 %4479
        %v4482 = vadd.f32 %v4474, %v4480
        %s4483 = sld [smem:[#allocation11 + $0xff]]
        %v4484 = vstv %s4483
        %v4485 = vmul.f32 %v4484, %v1701
        %v4486 = vmul.f32 %v4484, %v1702
        %v4489 = vrot.slane %v4485, 1
        %v4490 = vrot.slane %v4486, 1
        %v4491 = vsel %vm934, %v4489, %v4490
        %v4493 = vadd.f32 %v4482, %v4491
        %s4494 = sld [smem:[#allocation11 + $0x100]]
        %v4495 = vstv %s4494
        %v4496 = vmul.f32 %v4495, %v1701
        %v4497 = vmul.f32 %v4495, %v1702
        %v4500 = vrot.slane %v4496, 1
        %v4501 = vrot.slane %v4497, 1
        %v4502 = vsel %vm934, %v4500, %v4501
        %4503 = vrot.lane.b32.xlu0 %v4502, 127
        %v4504 = vpop.permute.xlu0 %4503
        %v4506 = vadd.f32 %v4493, %v4504
        %s4507 = sld [smem:[#allocation11 + $0x101]]
        %v4508 = vstv %s4507
        %v4509 = vmul.f32 %v4508, %v1701
        %v4510 = vmul.f32 %v4508, %v1702
        %v4513 = vrot.slane %v4509, 1
        %v4514 = vrot.slane %v4510, 1
        %v4515 = vsel %vm934, %v4513, %v4514
        %4516 = vrot.lane.b32.xlu0 %v4515, 126
        %v4517 = vpop.permute.xlu0 %4516
        %v4519 = vadd.f32 %v4506, %v4517
        %s4520 = sld [smem:[#allocation11 + $0x102]]
        %v4521 = vstv %s4520
        %v4522 = vmul.f32 %v4521, %v1701
        %v4523 = vmul.f32 %v4521, %v1702
        %v4526 = vrot.slane %v4522, 2
        %v4527 = vrot.slane %v4523, 2
        %v4528 = vsel %vm972, %v4526, %v4527
        %v4530 = vadd.f32 %v4519, %v4528
        %s4531 = sld [smem:[#allocation11 + $0x103]]
        %v4532 = vstv %s4531
        %v4533 = vmul.f32 %v4532, %v1701
        %v4534 = vmul.f32 %v4532, %v1702
        %v4537 = vrot.slane %v4533, 2
        %v4538 = vrot.slane %v4534, 2
        %v4539 = vsel %vm972, %v4537, %v4538
        %4540 = vrot.lane.b32.xlu0 %v4539, 127
        %v4541 = vpop.permute.xlu0 %4540
        %v4543 = vadd.f32 %v4530, %v4541
        %s4544 = sld [smem:[#allocation11 + $0x104]]
        %v4545 = vstv %s4544
        %v4546 = vmul.f32 %v4545, %v1701
        %v4547 = vmul.f32 %v4545, %v1702
        %v4550 = vrot.slane %v4546, 2
        %v4551 = vrot.slane %v4547, 2
        %v4552 = vsel %vm972, %v4550, %v4551
        %4553 = vrot.lane.b32.xlu0 %v4552, 126
        %v4554 = vpop.permute.xlu0 %4553
        %v4556 = vadd.f32 %v4543, %v4554
        %s4557 = sld [smem:[#allocation11 + $0x105]]
        %v4558 = vstv %s4557
        %v4559 = vmul.f32 %v4558, %v1703
        %v4560 = vadd.f32 %v4556, %v4559
        %s4561 = sld [smem:[#allocation11 + $0x106]]
        %v4562 = vstv %s4561
        %v4563 = vmul.f32 %v4562, %v1703
        %4565 = vrot.lane.b32.xlu0 %v4563, 127
        %v4566 = vpop.permute.xlu0 %4565
        %v4568 = vadd.f32 %v4560, %v4566
        %s4569 = sld [smem:[#allocation11 + $0x107]]
        %v4570 = vstv %s4569
        %v4571 = vmul.f32 %v4570, %v1703
        %4573 = vrot.lane.b32.xlu0 %v4571, 126
        %v4574 = vpop.permute.xlu0 %4573
        %v4576 = vadd.f32 %v4568, %v4574
        %s4577 = sld [smem:[#allocation11 + $0x108]]
        %v4578 = vstv %s4577
        %v4579 = vmul.f32 %v4578, %v1703
        %v4580 = vmul.f32 %v4578, %v1704
        %v4583 = vrot.slane %v4579, 1
        %v4584 = vrot.slane %v4580, 1
        %v4585 = vsel %vm934, %v4583, %v4584
        %v4587 = vadd.f32 %v4576, %v4585
        %s4588 = sld [smem:[#allocation11 + $0x109]]
        %v4589 = vstv %s4588
        %v4590 = vmul.f32 %v4589, %v1703
        %v4591 = vmul.f32 %v4589, %v1704
        %v4594 = vrot.slane %v4590, 1
        %v4595 = vrot.slane %v4591, 1
        %v4596 = vsel %vm934, %v4594, %v4595
        %4597 = vrot.lane.b32.xlu0 %v4596, 127
        %v4598 = vpop.permute.xlu0 %4597
        %v4600 = vadd.f32 %v4587, %v4598
        %s4601 = sld [smem:[#allocation11 + $0x10a]]
        %v4602 = vstv %s4601
        %v4603 = vmul.f32 %v4602, %v1703
        %v4604 = vmul.f32 %v4602, %v1704
        %v4607 = vrot.slane %v4603, 1
        %v4608 = vrot.slane %v4604, 1
        %v4609 = vsel %vm934, %v4607, %v4608
        %4610 = vrot.lane.b32.xlu0 %v4609, 126
        %v4611 = vpop.permute.xlu0 %4610
        %v4613 = vadd.f32 %v4600, %v4611
        %s4614 = sld [smem:[#allocation11 + $0x10b]]
        %v4615 = vstv %s4614
        %v4616 = vmul.f32 %v4615, %v1703
        %v4617 = vmul.f32 %v4615, %v1704
        %v4620 = vrot.slane %v4616, 2
        %v4621 = vrot.slane %v4617, 2
        %v4622 = vsel %vm972, %v4620, %v4621
        %v4624 = vadd.f32 %v4613, %v4622
        %s4625 = sld [smem:[#allocation11 + $0x10c]]
        %v4626 = vstv %s4625
        %v4627 = vmul.f32 %v4626, %v1703
        %v4628 = vmul.f32 %v4626, %v1704
        %v4631 = vrot.slane %v4627, 2
        %v4632 = vrot.slane %v4628, 2
        %v4633 = vsel %vm972, %v4631, %v4632
        %4634 = vrot.lane.b32.xlu0 %v4633, 127
        %v4635 = vpop.permute.xlu0 %4634
        %v4637 = vadd.f32 %v4624, %v4635
        %s4638 = sld [smem:[#allocation11 + $0x10d]]
        %v4639 = vstv %s4638
        %v4640 = vmul.f32 %v4639, %v1703
        %v4641 = vmul.f32 %v4639, %v1704
        %v4644 = vrot.slane %v4640, 2
        %v4645 = vrot.slane %v4641, 2
        %v4646 = vsel %vm972, %v4644, %v4645
        %4647 = vrot.lane.b32.xlu0 %v4646, 126
        %v4648 = vpop.permute.xlu0 %4647
        %v4650 = vadd.f32 %v4637, %v4648
        %s4651 = sld [smem:[#allocation11 + $0x10e]]
        %v4652 = vstv %s4651
        %v4653 = vmul.f32 %v4652, %v1705
        %v4654 = vadd.f32 %v4650, %v4653
        %s4655 = sld [smem:[#allocation11 + $0x10f]]
        %v4656 = vstv %s4655
        %v4657 = vmul.f32 %v4656, %v1705
        %4659 = vrot.lane.b32.xlu0 %v4657, 127
        %v4660 = vpop.permute.xlu0 %4659
        %v4662 = vadd.f32 %v4654, %v4660
        %s4663 = sld [smem:[#allocation11 + $0x110]]
        %v4664 = vstv %s4663
        %v4665 = vmul.f32 %v4664, %v1705
        %4667 = vrot.lane.b32.xlu0 %v4665, 126
        %v4668 = vpop.permute.xlu0 %4667
        %v4670 = vadd.f32 %v4662, %v4668
        %s4671 = sld [smem:[#allocation11 + $0x111]]
        %v4672 = vstv %s4671
        %v4673 = vmul.f32 %v4672, %v1705
        %v4674 = vmul.f32 %v4672, %v1706
        %v4677 = vrot.slane %v4673, 1
        %v4678 = vrot.slane %v4674, 1
        %v4679 = vsel %vm934, %v4677, %v4678
        %v4681 = vadd.f32 %v4670, %v4679
        %s4682 = sld [smem:[#allocation11 + $0x112]]
        %v4683 = vstv %s4682
        %v4684 = vmul.f32 %v4683, %v1705
        %v4685 = vmul.f32 %v4683, %v1706
        %v4688 = vrot.slane %v4684, 1
        %v4689 = vrot.slane %v4685, 1
        %v4690 = vsel %vm934, %v4688, %v4689
        %4691 = vrot.lane.b32.xlu0 %v4690, 127
        %v4692 = vpop.permute.xlu0 %4691
        %v4694 = vadd.f32 %v4681, %v4692
        %s4695 = sld [smem:[#allocation11 + $0x113]]
        %v4696 = vstv %s4695
        %v4697 = vmul.f32 %v4696, %v1705
        %v4698 = vmul.f32 %v4696, %v1706
        %v4701 = vrot.slane %v4697, 1
        %v4702 = vrot.slane %v4698, 1
        %v4703 = vsel %vm934, %v4701, %v4702
        %4704 = vrot.lane.b32.xlu0 %v4703, 126
        %v4705 = vpop.permute.xlu0 %4704
        %v4707 = vadd.f32 %v4694, %v4705
        %s4708 = sld [smem:[#allocation11 + $0x114]]
        %v4709 = vstv %s4708
        %v4710 = vmul.f32 %v4709, %v1705
        %v4711 = vmul.f32 %v4709, %v1706
        %v4714 = vrot.slane %v4710, 2
        %v4715 = vrot.slane %v4711, 2
        %v4716 = vsel %vm972, %v4714, %v4715
        %v4718 = vadd.f32 %v4707, %v4716
        %s4719 = sld [smem:[#allocation11 + $0x115]]
        %v4720 = vstv %s4719
        %v4721 = vmul.f32 %v4720, %v1705
        %v4722 = vmul.f32 %v4720, %v1706
        %v4725 = vrot.slane %v4721, 2
        %v4726 = vrot.slane %v4722, 2
        %v4727 = vsel %vm972, %v4725, %v4726
        %4728 = vrot.lane.b32.xlu0 %v4727, 127
        %v4729 = vpop.permute.xlu0 %4728
        %v4731 = vadd.f32 %v4718, %v4729
        %s4732 = sld [smem:[#allocation11 + $0x116]]
        %v4733 = vstv %s4732
        %v4734 = vmul.f32 %v4733, %v1705
        %v4735 = vmul.f32 %v4733, %v1706
        %v4738 = vrot.slane %v4734, 2
        %v4739 = vrot.slane %v4735, 2
        %v4740 = vsel %vm972, %v4738, %v4739
        %4741 = vrot.lane.b32.xlu0 %v4740, 126
        %v4742 = vpop.permute.xlu0 %4741
        %v4744 = vadd.f32 %v4731, %v4742
        %s4745 = sld [smem:[#allocation11 + $0x117]]
        %v4746 = vstv %s4745
        %v4747 = vmul.f32 %v4746, %v1707
        %v4748 = vadd.f32 %v4744, %v4747
        %s4749 = sld [smem:[#allocation11 + $0x118]]
        %v4750 = vstv %s4749
        %v4751 = vmul.f32 %v4750, %v1707
        %4753 = vrot.lane.b32.xlu0 %v4751, 127
        %v4754 = vpop.permute.xlu0 %4753
        %v4756 = vadd.f32 %v4748, %v4754
        %s4757 = sld [smem:[#allocation11 + $0x119]]
        %v4758 = vstv %s4757
        %v4759 = vmul.f32 %v4758, %v1707
        %4761 = vrot.lane.b32.xlu0 %v4759, 126
        %v4762 = vpop.permute.xlu0 %4761
        %v4764 = vadd.f32 %v4756, %v4762
        %s4765 = sld [smem:[#allocation11 + $0x11a]]
        %v4766 = vstv %s4765
        %v4767 = vmul.f32 %v4766, %v1707
        %v4768 = vmul.f32 %v4766, %v1708
        %v4771 = vrot.slane %v4767, 1
        %v4772 = vrot.slane %v4768, 1
        %v4773 = vsel %vm934, %v4771, %v4772
        %v4775 = vadd.f32 %v4764, %v4773
        %s4776 = sld [smem:[#allocation11 + $0x11b]]
        %v4777 = vstv %s4776
        %v4778 = vmul.f32 %v4777, %v1707
        %v4779 = vmul.f32 %v4777, %v1708
        %v4782 = vrot.slane %v4778, 1
        %v4783 = vrot.slane %v4779, 1
        %v4784 = vsel %vm934, %v4782, %v4783
        %4785 = vrot.lane.b32.xlu0 %v4784, 127
        %v4786 = vpop.permute.xlu0 %4785
        %v4788 = vadd.f32 %v4775, %v4786
        %s4789 = sld [smem:[#allocation11 + $0x11c]]
        %v4790 = vstv %s4789
        %v4791 = vmul.f32 %v4790, %v1707
        %v4792 = vmul.f32 %v4790, %v1708
        %v4795 = vrot.slane %v4791, 1
        %v4796 = vrot.slane %v4792, 1
        %v4797 = vsel %vm934, %v4795, %v4796
        %4798 = vrot.lane.b32.xlu0 %v4797, 126
        %v4799 = vpop.permute.xlu0 %4798
        %v4801 = vadd.f32 %v4788, %v4799
        %s4802 = sld [smem:[#allocation11 + $0x11d]]
        %v4803 = vstv %s4802
        %v4804 = vmul.f32 %v4803, %v1707
        %v4805 = vmul.f32 %v4803, %v1708
        %v4808 = vrot.slane %v4804, 2
        %v4809 = vrot.slane %v4805, 2
        %v4810 = vsel %vm972, %v4808, %v4809
        %v4812 = vadd.f32 %v4801, %v4810
        %s4813 = sld [smem:[#allocation11 + $0x11e]]
        %v4814 = vstv %s4813
        %v4815 = vmul.f32 %v4814, %v1707
        %v4816 = vmul.f32 %v4814, %v1708
        %v4819 = vrot.slane %v4815, 2
        %v4820 = vrot.slane %v4816, 2
        %v4821 = vsel %vm972, %v4819, %v4820
        %4822 = vrot.lane.b32.xlu0 %v4821, 127
        %v4823 = vpop.permute.xlu0 %4822
        %v4825 = vadd.f32 %v4812, %v4823
        %s4826 = sld [smem:[#allocation11 + $0x11f]]
        %v4827 = vstv %s4826
        %v4828 = vmul.f32 %v4827, %v1707
        %v4829 = vmul.f32 %v4827, %v1708
        %v4832 = vrot.slane %v4828, 2
        %v4833 = vrot.slane %v4829, 2
        %v4834 = vsel %vm972, %v4832, %v4833
        %4835 = vrot.lane.b32.xlu0 %v4834, 126
        %v4836 = vpop.permute.xlu0 %4835
        %v4838 = vadd.f32 %v4825, %v4836
        %s4839 = sld [smem:[#allocation12 + $0x7]]
        %v4840 = vstv %s4839
        %v4841 = vadd.f32 %v4838, %v4840
        %v4842 = vmax.f32 %v4841, 0.0
        %v4843 = vsel %vm2091, %v4842, 0.0
        %4844 = vadd.xlane.f32.xlu0 %v4843
        %v4845 = vpop.xlane.xlu0 %4844
        %v4846 = vrot.slane %v4845, 4
        %v4847 = vadd.f32 %v4845, %v4846
        %v4848 = vrot.slane %v4847, 2
        %v4849 = vadd.f32 %v4847, %v4848
        %v4850 = vrot.slane %v4849, 1
        %v4851 = vadd.f32 %v4849, %v4850
        %v4852 = vmul.f32 %v4851, 0.014880952
        %v4853 = vld [vmem:[%s8 + $0x7] sm:$0x1]
        %v4854 = vmul.f32 %v4852, %v4853
        %v4855 = vadd.f32 %v4462, %v4854
        %vm4856 = vcmask 188416
        %v4857 = vsel %vm4856, %v4855, -inf
        %4858 = vmax.xlane.f32.xlu0 %v4857
        %v4859 = vpop.xlane.xlu0 %4858
        %v4860 = vsub.f32 %v4855, %v4859
        %v4861 = vmul.f32 %v4860, 1.442695
        %v4862 = vpow.pop %v4861
        %v4863 = vsel %vm4856, %v4862, 0.0
        %4864 = vadd.xlane.f32.xlu0 %v4863
        %v4865 = vpop.xlane.xlu0 %4864
        %v4866 = vrcp.pop %v4865
        %v4867 = vmul.f32 %v4862, %v4866
        %4868 = vst.msk [vmem:[%s369] sm:$0x1] %vm4856, %v4867
        %p4869 = scmp.lt.s32.totalorder %s34, 5
        %s4870 = scalar_select %p4869, %s34, 5
        %s4871 = scalar_lea.vmem %s10, %s4870
        // Predicated region
        $region69: #{stone_forward.39} parent=51 // pred_check
          %p4872 = pneg %p227
        $region70: #{stone_forward.39} parent=51 // pred_check_branch
          %4874 = sbr.rel (%p4872) target = $region72
        $region71: #{stone_forward.39} parent=51 // pred_region
          _
        $region72: #{stone_forward.39} parent=51 // pred_fallthru
          _
      $region52: #{stone_forward.39} parent=5 // pred_fallthru
        _
      %p4875 = scmp.le.s32.totalorder 2, %s29
      // Predicated region
      $region73: #{stone_forward.39} parent=5 // pred_check
        %p4876 = pneg %p4875
      $region74: #{stone_forward.39} parent=5 // pred_check_branch
        %4878 = sbr.rel (%p4876) target = $region76
      $region75: #{stone_forward.39} parent=5 // pred_region
        %s4879 = ssub.s32 %s29, 2
        // Predicated region
        $region77: #{stone_forward.39} parent=75 // pred_check
          %p4880 = pneg %p233
        $region78: #{stone_forward.39} parent=75 // pred_check_branch
          %4882 = sbr.rel (%p4880) target = $region80
        $region79: #{stone_forward.39} parent=75 // pred_region
          %p4883 = scmp.lt.s32.totalorder %s35, 5
          %s4884 = scalar_select %p4883, %s35, 5
          %s4885 = scalar_lea.vmem %s10, %s4884
        $region80: #{stone_forward.39} parent=75 // pred_fallthru
          _
      $region76: #{stone_forward.39} parent=5 // pred_fallthru
        _
    $region6: #{stone_forward.39} parent=1 // loop_footer
      %s33 = sadd.s32 1, %s29
    $region7: #{stone_forward.39} parent=1 // loop_footer_branch
      %28 = sbr.rel target = $region3
    $region8: #{stone_forward.39} parent=1 // loop_exit
      _
    %4886 = vsyncpa [#allocation8], 1
    %s4887 = scalar_lea.sflag [#allocation8], 1
    %4888 = vsyncpa %s4887, 1
    %4889 = vsyncpa [#allocation10], 1
    %4890 = vsyncpa [#allocation13], 1

</llo_original>
